<compile_context>
chip_gen: v5e
topology: v5e:2x2
jax: 0.10.0
libtpu: 0.0.40
codegen_flags: <defaults>
</compile_context>

<pallas_src>
import functools

import jax
import jax.numpy as jnp
from jax.experimental import pallas as pl
from jax.experimental.pallas import tpu as pltpu

# ---- module constants (from chatbot.py) ----
N_EMBD = 384
HIDDEN = 4 * N_EMBD          # 1536
BLOCK_SIZE = 128             # sequence length used by the chatbot model


# ---------------- Pallas kernel ----------------

def _ffn_kernel(x_ref, w1_ref, b1_ref, w2_ref, b2_ref, o_ref):
    """relu(x @ W1 + b1) @ W2 + b2 for one (TM, C) row tile."""
    x = x_ref[...]                                                      # (TM, C)

    # First linear + ReLU; the (TM, 4C) hidden stays resident in VMEM/vregs.
    h = jnp.dot(x, w1_ref[...], preferred_element_type=jnp.float32)    # (TM, 4C)
    h = jnp.maximum(h + b1_ref[...], 0.0)                              # bias+ReLU on the VPU

    # Second linear, lane-dense (TM, 384) store.
    out = jnp.dot(h, w2_ref[...], preferred_element_type=jnp.float32)  # (TM, C)
    o_ref[...] = out + b2_ref[...]


# ---------------- wrapper ----------------

def _pick_tm(m):
    """Largest row tile in {512, 256, 128} that divides m, else the full extent."""
    for tm in (512, 256, 128):
        if m % tm == 0:
            return tm
    return m  # full-array block (allowed: block equals array extent)


@functools.partial(jax.jit)
def feed_forward(x, w1, b1, w2, b2):
    """x: (B, T, C) f32.  w1: (C, 4C).  b1: (1, 4C).  w2: (4C, C).  b2: (1, C)."""
    B, T, C = x.shape
    D = w1.shape[1]

    # Fold batch into the matmul M dimension (free: B and T are adjacent).
    M = B * T
    x2 = x.reshape(M, C)

    TM = _pick_tm(M)
    num_tiles = M // TM

    # Constant (weight / bias) blocks: resident across the grid. With a
    # multi-step grid, drop their second pipeline buffer (~4.7 MiB reclaimed).
    const_kwargs = {"pipeline_mode": pl.Buffered(1)} if num_tiles > 1 else {}

    in_specs = [
        pl.BlockSpec((TM, C), lambda i: (i, 0)),                  # x row tile (lane-dense)
        pl.BlockSpec((C, D), lambda i: (0, 0), **const_kwargs),   # W1 (resident)
        pl.BlockSpec((1, D), lambda i: (0, 0), **const_kwargs),   # b1
        pl.BlockSpec((D, C), lambda i: (0, 0), **const_kwargs),   # W2 (resident)
        pl.BlockSpec((1, C), lambda i: (0, 0), **const_kwargs),   # b2
    ]
    out_spec = pl.BlockSpec((TM, C), lambda i: (i, 0))

    # Only shard the row axis across TensorCores once the problem is large
    # enough to amortize the duplicated weight DMA (v7x 2-TC footgun).
    semantics = ("parallel",) if (num_tiles > 1 and M >= 1024) else ("arbitrary",)

    out2 = pl.pallas_call(
        _ffn_kernel,
        out_shape=jax.ShapeDtypeStruct((M, C), jnp.float32),
        grid=(num_tiles,),
        in_specs=in_specs,
        out_specs=out_spec,
        compiler_params=pltpu.CompilerParams(
            dimension_semantics=semantics,
        ),
    )(x2, w1, b1, w2, b2)

    return out2.reshape(B, T, C)


def reference(x, w1, b1, w2, b2):
    """Pure-JAX reference mirroring the PyTorch forward (eval mode)."""
    h = jnp.maximum(x @ w1 + b1[0], 0.0)
    return h @ w2 + b2[0]


if __name__ == "__main__":
    B, T = 2, BLOCK_SIZE
    key = jax.random.PRNGKey(0)
    kx, k1, kb1, k2, kb2 = jax.random.split(key, 5)

    x = jax.random.normal(kx, (B, T, N_EMBD), dtype=jnp.float32)
    w1 = 0.02 * jax.random.normal(k1, (N_EMBD, HIDDEN), dtype=jnp.float32)
    b1 = 0.02 * jax.random.normal(kb1, (1, HIDDEN), dtype=jnp.float32)
    w2 = 0.02 * jax.random.normal(k2, (HIDDEN, N_EMBD), dtype=jnp.float32)
    b2 = 0.02 * jax.random.normal(kb2, (1, N_EMBD), dtype=jnp.float32)

    out = feed_forward(x, w1, b1, w2, b2)
    out = jax.block_until_ready(out)

    ref = reference(x, w1, b1, w2, b2)
    assert out.shape == (B, T, N_EMBD)
    assert jnp.allclose(out, ref, atol=1e-4, rtol=1e-4), "mismatch vs reference"

    print("KERNEL_OK")
</pallas_src>

<mosaic_0001>
module attributes {stable_mosaic.version = 11 : i64} {
  func.func @_ffn_kernel(%arg0: i32, %arg1: memref<256x384xf32, #tpu.memory_space<vmem>>, %arg2: memref<384x1536xf32, #tpu.memory_space<vmem>>, %arg3: memref<1x1536xf32, #tpu.memory_space<vmem>>, %arg4: memref<1536x384xf32, #tpu.memory_space<vmem>>, %arg5: memref<1x384xf32, #tpu.memory_space<vmem>>, %arg6: memref<256x384xf32, #tpu.memory_space<vmem>>) attributes {dimension_semantics = [#tpu.dimension_semantics<arbitrary>], iteration_bounds = array<i64: 1>, scalar_prefetch = 0 : i64, scratch_operands = 0 : i64, tpu.core_type = #tpu.core_type<tc>, window_params = [{transform_indices = @transform_0, window_bounds = array<i64: 256, 384>}, {pipeline_mode = #tpu.pipeline_mode<synchronous>, transform_indices = @transform_1, window_bounds = array<i64: 384, 1536>}, {pipeline_mode = #tpu.pipeline_mode<synchronous>, transform_indices = @transform_2, window_bounds = array<i64: 1, 1536>}, {pipeline_mode = #tpu.pipeline_mode<synchronous>, transform_indices = @transform_3, window_bounds = array<i64: 1536, 384>}, {pipeline_mode = #tpu.pipeline_mode<synchronous>, transform_indices = @transform_4, window_bounds = array<i64: 1, 384>}, {transform_indices = @transform_5, window_bounds = array<i64: 256, 384>}]} {
    %c0 = arith.constant 0 : index
    %c0_0 = arith.constant 0 : index
    %0 = vector.load %arg1[%c0, %c0_0] : memref<256x384xf32, #tpu.memory_space<vmem>>, vector<256x384xf32>
    %c0_1 = arith.constant 0 : index
    %c0_2 = arith.constant 0 : index
    %1 = vector.load %arg2[%c0_1, %c0_2] : memref<384x1536xf32, #tpu.memory_space<vmem>>, vector<384x1536xf32>
    %cst = arith.constant dense<0.000000e+00> : vector<256x1536xf32>
    %2 = tpu.matmul %0, %1, %cst {dimension_numbers = #tpu.dot_dimension_numbers<[1], [0], [0], [1], [0, 0, 1, 1], [], []>} : vector<256x384xf32>, vector<384x1536xf32>, vector<256x1536xf32> -> vector<256x1536xf32>
    %c0_3 = arith.constant 0 : index
    %c0_4 = arith.constant 0 : index
    %3 = vector.load %arg3[%c0_3, %c0_4] : memref<1x1536xf32, #tpu.memory_space<vmem>>, vector<1x1536xf32>
    %4 = vector.broadcast %3 : vector<1x1536xf32> to vector<256x1536xf32>
    %5 = arith.addf %2, %4 : vector<256x1536xf32>
    %cst_5 = arith.constant 0.000000e+00 : f32
    %6 = vector.broadcast %cst_5 : f32 to vector<256x1536xf32>
    %7 = arith.maximumf %5, %6 : vector<256x1536xf32>
    %c0_6 = arith.constant 0 : index
    %c0_7 = arith.constant 0 : index
    %8 = vector.load %arg4[%c0_6, %c0_7] : memref<1536x384xf32, #tpu.memory_space<vmem>>, vector<1536x384xf32>
    %cst_8 = arith.constant dense<0.000000e+00> : vector<256x384xf32>
    %9 = tpu.matmul %7, %8, %cst_8 {dimension_numbers = #tpu.dot_dimension_numbers<[1], [0], [0], [1], [0, 0, 1, 1], [], []>} : vector<256x1536xf32>, vector<1536x384xf32>, vector<256x384xf32> -> vector<256x384xf32>
    %c0_9 = arith.constant 0 : index
    %c0_10 = arith.constant 0 : index
    %10 = vector.load %arg5[%c0_9, %c0_10] : memref<1x384xf32, #tpu.memory_space<vmem>>, vector<1x384xf32>
    %11 = vector.broadcast %10 : vector<1x384xf32> to vector<256x384xf32>
    %12 = arith.addf %9, %11 : vector<256x384xf32>
    %c0_11 = arith.constant 0 : index
    %c0_12 = arith.constant 0 : index
    %13 = vector.load %arg6[%c0_11, %c0_12] : memref<256x384xf32, #tpu.memory_space<vmem>>, vector<256x384xf32>
    tpu.vector_store %arg6[%c0_11, %c0_12], %12 {strides = array<i32>} : memref<256x384xf32, #tpu.memory_space<vmem>>, vector<256x384xf32>,
    return
  }
  func.func @transform_0(%arg0: i32) -> (i32, i32) {
    %c0_i32 = arith.constant 0 : i32
    %c0_i32_0 = arith.constant 0 : i32
    return %arg0, %c0_i32 : i32, i32
  }
  func.func @transform_1(%arg0: i32) -> (i32, i32) {
    %c0_i32 = arith.constant 0 : i32
    %c0_i32_0 = arith.constant 0 : i32
    %c0_i32_1 = arith.constant 0 : i32
    return %c0_i32, %c0_i32_0 : i32, i32
  }
  func.func @transform_2(%arg0: i32) -> (i32, i32) {
    %c0_i32 = arith.constant 0 : i32
    %c0_i32_0 = arith.constant 0 : i32
    %c0_i32_1 = arith.constant 0 : i32
    return %c0_i32, %c0_i32_0 : i32, i32
  }
  func.func @transform_3(%arg0: i32) -> (i32, i32) {
    %c0_i32 = arith.constant 0 : i32
    %c0_i32_0 = arith.constant 0 : i32
    %c0_i32_1 = arith.constant 0 : i32
    return %c0_i32, %c0_i32_0 : i32, i32
  }
  func.func @transform_4(%arg0: i32) -> (i32, i32) {
    %c0_i32 = arith.constant 0 : i32
    %c0_i32_0 = arith.constant 0 : i32
    %c0_i32_1 = arith.constant 0 : i32
    return %c0_i32, %c0_i32_0 : i32, i32
  }
  func.func @transform_5(%arg0: i32) -> (i32, i32) {
    %c0_i32 = arith.constant 0 : i32
    %c0_i32_0 = arith.constant 0 : i32
    return %arg0, %c0_i32 : i32, i32
  }
}

</mosaic_0001>

<llo_original>
// kernel: feed_forward.1
$region0: #{feed_forward.1}
  #allocation0 [shape = 'u32[]', space=smem, size = 0x4, offset = 0x4, fixed_abs, tag = 'smem constant byte address 0x4 - core index']
  #allocation1 [shape = 'u32[72,128]{1,0:T(1,128)}', space=vmem, size = 0x9000, scoped, tag = 'internal scratch']
  %s0 = inlined_call_operand.hbm [shape: f32[256,384], index: 0, kind: input, shape index: {}]
  %s1 = inlined_call_operand.hbm [shape: f32[384,1536], index: 1, kind: input, shape index: {}]
  %s2 = inlined_call_operand.hbm [shape: f32[1,1536], index: 2, kind: input, shape index: {}]
  %s3 = inlined_call_operand.hbm [shape: f32[1536,384], index: 3, kind: input, shape index: {}]
  %s4 = inlined_call_operand.hbm [shape: f32[1,384], index: 4, kind: input, shape index: {}]
  %s5 = inlined_call_operand.hbm [shape: f32[256,384], index: 5, kind: output, shape index: {}]
  %s6 = sld [smem:[#allocation0]]
  $region50: #{feed_forward.1} parent=0
    _
  %s8 = ssub.s32 1, %s6
  %s9 = scalar_select 0, %s8, %s6
  $region1: #{feed_forward.1} parent=0
    #allocation2 [shape = 'u8[393216]{0}', space=vmem, size = 0x60000, scoped, tag = 'input window, operand 0, single buffered']
    #allocation3 [shape = 's32[1]{0}', space=sflag, size = 0x4, scoped, tag = 'scoped memory for feed_forward.1']
    #allocation4 [shape = 's32[1]{0}', space=sflag, size = 0x4, scoped, tag = 'scoped memory for feed_forward.1']
    #allocation5 [shape = 'u8[2359296]{0}', space=vmem, size = 0x240000, scoped, tag = 'input window, operand 1, single buffered']
    #allocation6 [shape = 's32[1]{0}', space=sflag, size = 0x4, scoped, tag = 'scoped memory for feed_forward.1']
    #allocation7 [shape = 'u8[6144]{0}', space=vmem, size = 0x1800, scoped, tag = 'input window, operand 2, single buffered']
    #allocation8 [shape = 'u8[2359296]{0}', space=vmem, size = 0x240000, scoped, tag = 'input window, operand 3, single buffered']
    #allocation9 [shape = 's32[1]{0}', space=sflag, size = 0x4, scoped, tag = 'scoped memory for feed_forward.1']
    #allocation10 [shape = 'u8[1536]{0}', space=vmem, size = 0x800, scoped, tag = 'input window, operand 4, single buffered']
    #allocation11 [shape = 'u8[393216]{0}', space=vmem, size = 0x60000, scoped, tag = 'output window, operand 0, single buffered']
    %10 = vsyncpa [#allocation3], 0
    %11 = vsyncpa [#allocation6], 0
    %12 = vsyncpa [#allocation9], 0
    %13 = vsyncpa [#allocation4], 0
    // Predicated region
    $region2: #{feed_forward.1} parent=1 // pred_check
      _
    $region3: #{feed_forward.1} parent=1 // pred_check_branch
      %15 = sbr.rel (0) target = $region5
    $region4: #{feed_forward.1} parent=1 // pred_region
      %17 = vsyncadd [#allocation3], 0
      %s18 = sshll.u32 %s0, 4
      %s19 = int_to_ptr.hbm [resolvable:$true] %s18
      %s20 = sshll.u32 [#allocation2], 4
      %s21 = int_to_ptr.vmem [resolvable:$true] %s20
      %26 = dma.hbm_to_vmem [thread:$0]  %s19, 12288, %s21, [#allocation3], 384, 384, 24
    $region5: #{feed_forward.1} parent=1 // pred_fallthru
      _
    // Predicated region
    $region6: #{feed_forward.1} parent=1 // pred_check
      _
    $region7: #{feed_forward.1} parent=1 // pred_check_branch
      %28 = sbr.rel (0) target = $region9
    $region8: #{feed_forward.1} parent=1 // pred_region
      %30 = vsyncadd [#allocation6], 0
      %s31 = sshll.u32 %s1, 4
      %s32 = int_to_ptr.hbm [resolvable:$true] %s31
      %s33 = sshll.u32 [#allocation5], 4
      %s34 = int_to_ptr.vmem [resolvable:$true] %s33
      %39 = dma.hbm_to_vmem [thread:$0]  %s32, 73728, %s34, [#allocation6], 1536, 1536, 96
    $region9: #{feed_forward.1} parent=1 // pred_fallthru
      _
    // Predicated region
    $region10: #{feed_forward.1} parent=1 // pred_check
      _
    $region11: #{feed_forward.1} parent=1 // pred_check_branch
      %41 = sbr.rel (0) target = $region13
    $region12: #{feed_forward.1} parent=1 // pred_region
      %43 = vsyncadd [#allocation6], 0
      %s45 = sshll.u32 %s2, 4
      %s46 = int_to_ptr.hbm [resolvable:$true] %s45
      %s47 = sshll.u32 [#allocation7], 4
      %s48 = int_to_ptr.vmem [resolvable:$true] %s47
      %50 = dma.hbm_to_vmem [thread:$0]  %s46, 192, %s48, [#allocation6]
    $region13: #{feed_forward.1} parent=1 // pred_fallthru
      _
    // Predicated region
    $region14: #{feed_forward.1} parent=1 // pred_check
      _
    $region15: #{feed_forward.1} parent=1 // pred_check_branch
      %52 = sbr.rel (0) target = $region17
    $region16: #{feed_forward.1} parent=1 // pred_region
      %54 = vsyncadd [#allocation9], 0
      %s55 = sshll.u32 %s3, 4
      %s56 = int_to_ptr.hbm [resolvable:$true] %s55
      %s57 = sshll.u32 [#allocation8], 4
      %s58 = int_to_ptr.vmem [resolvable:$true] %s57
      %63 = dma.hbm_to_vmem [thread:$0]  %s56, 73728, %s58, [#allocation9], 384, 384, 24
    $region17: #{feed_forward.1} parent=1 // pred_fallthru
      _
    // Predicated region
    $region18: #{feed_forward.1} parent=1 // pred_check
      _
    $region19: #{feed_forward.1} parent=1 // pred_check_branch
      %65 = sbr.rel (0) target = $region21
    $region20: #{feed_forward.1} parent=1 // pred_region
      %67 = vsyncadd [#allocation9], 0
      %s69 = sshll.u32 %s4, 4
      %s70 = int_to_ptr.hbm [resolvable:$true] %s69
      %s71 = sshll.u32 [#allocation10], 4
      %s72 = int_to_ptr.vmem [resolvable:$true] %s71
      %74 = dma.hbm_to_vmem [thread:$0]  %s70, 48, %s72, [#allocation9]
    $region21: #{feed_forward.1} parent=1 // pred_fallthru
      _
    // Predicated region
    $region22: #{feed_forward.1} parent=1 // pred_check
      _
    $region23: #{feed_forward.1} parent=1 // pred_check_branch
      %76 = sbr.rel (0) target = $region25
    $region24: #{feed_forward.1} parent=1 // pred_region
      %78 = dma.done [#allocation3], 12288
    $region25: #{feed_forward.1} parent=1 // pred_fallthru
      _
    // Predicated region
    $region26: #{feed_forward.1} parent=1 // pred_check
      _
    $region27: #{feed_forward.1} parent=1 // pred_check_branch
      %80 = sbr.rel (0) target = $region29
    $region28: #{feed_forward.1} parent=1 // pred_region
      %82 = dma.done [#allocation6], 73728
    $region29: #{feed_forward.1} parent=1 // pred_fallthru
      _
    // Predicated region
    $region30: #{feed_forward.1} parent=1 // pred_check
      _
    $region31: #{feed_forward.1} parent=1 // pred_check_branch
      %84 = sbr.rel (0) target = $region33
    $region32: #{feed_forward.1} parent=1 // pred_region
      %86 = dma.done [#allocation6], 192
    $region33: #{feed_forward.1} parent=1 // pred_fallthru
      _
    // Predicated region
    $region34: #{feed_forward.1} parent=1 // pred_check
      _
    $region35: #{feed_forward.1} parent=1 // pred_check_branch
      %88 = sbr.rel (0) target = $region37
    $region36: #{feed_forward.1} parent=1 // pred_region
      %90 = dma.done [#allocation9], 73728
    $region37: #{feed_forward.1} parent=1 // pred_fallthru
      _
    // Predicated region
    $region38: #{feed_forward.1} parent=1 // pred_check
      _
    $region39: #{feed_forward.1} parent=1 // pred_check_branch
      %92 = sbr.rel (0) target = $region41
    $region40: #{feed_forward.1} parent=1 // pred_region
      %94 = dma.done [#allocation9], 48
    $region41: #{feed_forward.1} parent=1 // pred_fallthru
      _
    %v95 = vld [vmem:[#allocation2] sm:$0xff]
    %v96 = vld [vmem:[#allocation2 + $0x8] sm:$0xff]
    %v97 = vld [vmem:[#allocation2 + $0x10] sm:$0xff]
    %v98 = vld [vmem:[#allocation2 + $0x18] sm:$0xff]
    %v99 = vld [vmem:[#allocation2 + $0x20] sm:$0xff]
    %v100 = vld [vmem:[#allocation2 + $0x28] sm:$0xff]
    %v101 = vld [vmem:[#allocation2 + $0x30] sm:$0xff]
    %v102 = vld [vmem:[#allocation2 + $0x38] sm:$0xff]
    %v103 = vld [vmem:[#allocation2 + $0x40] sm:$0xff]
    %v104 = vld [vmem:[#allocation2 + $0x48] sm:$0xff]
    %v105 = vld [vmem:[#allocation2 + $0x50] sm:$0xff]
    %v106 = vld [vmem:[#allocation2 + $0x58] sm:$0xff]
    %v107 = vld [vmem:[#allocation2 + $0x60] sm:$0xff]
    %v108 = vld [vmem:[#allocation2 + $0x68] sm:$0xff]
    %v109 = vld [vmem:[#allocation2 + $0x70] sm:$0xff]
    %v110 = vld [vmem:[#allocation2 + $0x78] sm:$0xff]
    %v111 = vld [vmem:[#allocation2 + $0x80] sm:$0xff]
    %v112 = vld [vmem:[#allocation2 + $0x88] sm:$0xff]
    %v113 = vld [vmem:[#allocation2 + $0x90] sm:$0xff]
    %v114 = vld [vmem:[#allocation2 + $0x98] sm:$0xff]
    %v115 = vld [vmem:[#allocation2 + $0xa0] sm:$0xff]
    %v116 = vld [vmem:[#allocation2 + $0xa8] sm:$0xff]
    %v117 = vld [vmem:[#allocation2 + $0xb0] sm:$0xff]
    %v118 = vld [vmem:[#allocation2 + $0xb8] sm:$0xff]
    %v119 = vld [vmem:[#allocation2 + $0xc0] sm:$0xff]
    %v120 = vld [vmem:[#allocation2 + $0xc8] sm:$0xff]
    %v121 = vld [vmem:[#allocation2 + $0xd0] sm:$0xff]
    %v122 = vld [vmem:[#allocation2 + $0xd8] sm:$0xff]
    %v123 = vld [vmem:[#allocation2 + $0xe0] sm:$0xff]
    %v124 = vld [vmem:[#allocation2 + $0xe8] sm:$0xff]
    %v125 = vld [vmem:[#allocation2 + $0xf0] sm:$0xff]
    %v126 = vld [vmem:[#allocation2 + $0xf8] sm:$0xff]
    %v127 = vld [vmem:[#allocation2 + $0x100] sm:$0xff]
    %v128 = vld [vmem:[#allocation2 + $0x108] sm:$0xff]
    %v129 = vld [vmem:[#allocation2 + $0x110] sm:$0xff]
    %v130 = vld [vmem:[#allocation2 + $0x118] sm:$0xff]
    %v131 = vld [vmem:[#allocation2 + $0x120] sm:$0xff]
    %v132 = vld [vmem:[#allocation2 + $0x128] sm:$0xff]
    %v133 = vld [vmem:[#allocation2 + $0x130] sm:$0xff]
    %v134 = vld [vmem:[#allocation2 + $0x138] sm:$0xff]
    %v135 = vld [vmem:[#allocation2 + $0x140] sm:$0xff]
    %v136 = vld [vmem:[#allocation2 + $0x148] sm:$0xff]
    %v137 = vld [vmem:[#allocation2 + $0x150] sm:$0xff]
    %v138 = vld [vmem:[#allocation2 + $0x158] sm:$0xff]
    %v139 = vld [vmem:[#allocation2 + $0x160] sm:$0xff]
    %v140 = vld [vmem:[#allocation2 + $0x168] sm:$0xff]
    %v141 = vld [vmem:[#allocation2 + $0x170] sm:$0xff]
    %v142 = vld [vmem:[#allocation2 + $0x178] sm:$0xff]
    %v143 = vld [vmem:[#allocation2 + $0x180] sm:$0xff]
    %v144 = vld [vmem:[#allocation2 + $0x188] sm:$0xff]
    %v145 = vld [vmem:[#allocation2 + $0x190] sm:$0xff]
    %v146 = vld [vmem:[#allocation2 + $0x198] sm:$0xff]
    %v147 = vld [vmem:[#allocation2 + $0x1a0] sm:$0xff]
    %v148 = vld [vmem:[#allocation2 + $0x1a8] sm:$0xff]
    %v149 = vld [vmem:[#allocation2 + $0x1b0] sm:$0xff]
    %v150 = vld [vmem:[#allocation2 + $0x1b8] sm:$0xff]
    %v151 = vld [vmem:[#allocation2 + $0x1c0] sm:$0xff]
    %v152 = vld [vmem:[#allocation2 + $0x1c8] sm:$0xff]
    %v153 = vld [vmem:[#allocation2 + $0x1d0] sm:$0xff]
    %v154 = vld [vmem:[#allocation2 + $0x1d8] sm:$0xff]
    %v155 = vld [vmem:[#allocation2 + $0x1e0] sm:$0xff]
    %v156 = vld [vmem:[#allocation2 + $0x1e8] sm:$0xff]
    %v157 = vld [vmem:[#allocation2 + $0x1f0] sm:$0xff]
    %v158 = vld [vmem:[#allocation2 + $0x1f8] sm:$0xff]
    %v159 = vld [vmem:[#allocation2 + $0x200] sm:$0xff]
    %v160 = vld [vmem:[#allocation2 + $0x208] sm:$0xff]
    %v161 = vld [vmem:[#allocation2 + $0x210] sm:$0xff]
    %v162 = vld [vmem:[#allocation2 + $0x218] sm:$0xff]
    %v163 = vld [vmem:[#allocation2 + $0x220] sm:$0xff]
    %v164 = vld [vmem:[#allocation2 + $0x228] sm:$0xff]
    %v165 = vld [vmem:[#allocation2 + $0x230] sm:$0xff]
    %v166 = vld [vmem:[#allocation2 + $0x238] sm:$0xff]
    %v167 = vld [vmem:[#allocation2 + $0x240] sm:$0xff]
    %v168 = vld [vmem:[#allocation2 + $0x248] sm:$0xff]
    %v169 = vld [vmem:[#allocation2 + $0x250] sm:$0xff]
    %v170 = vld [vmem:[#allocation2 + $0x258] sm:$0xff]
    %v171 = vld [vmem:[#allocation2 + $0x260] sm:$0xff]
    %v172 = vld [vmem:[#allocation2 + $0x268] sm:$0xff]
    %v173 = vld [vmem:[#allocation2 + $0x270] sm:$0xff]
    %v174 = vld [vmem:[#allocation2 + $0x278] sm:$0xff]
    %v175 = vld [vmem:[#allocation2 + $0x280] sm:$0xff]
    %v176 = vld [vmem:[#allocation2 + $0x288] sm:$0xff]
    %v177 = vld [vmem:[#allocation2 + $0x290] sm:$0xff]
    %v178 = vld [vmem:[#allocation2 + $0x298] sm:$0xff]
    %v179 = vld [vmem:[#allocation2 + $0x2a0] sm:$0xff]
    %v180 = vld [vmem:[#allocation2 + $0x2a8] sm:$0xff]
    %v181 = vld [vmem:[#allocation2 + $0x2b0] sm:$0xff]
    %v182 = vld [vmem:[#allocation2 + $0x2b8] sm:$0xff]
    %v183 = vld [vmem:[#allocation2 + $0x2c0] sm:$0xff]
    %v184 = vld [vmem:[#allocation2 + $0x2c8] sm:$0xff]
    %v185 = vld [vmem:[#allocation2 + $0x2d0] sm:$0xff]
    %v186 = vld [vmem:[#allocation2 + $0x2d8] sm:$0xff]
    %v187 = vld [vmem:[#allocation2 + $0x2e0] sm:$0xff]
    %v188 = vld [vmem:[#allocation2 + $0x2e8] sm:$0xff]
    %v189 = vld [vmem:[#allocation2 + $0x2f0] sm:$0xff]
    %v190 = vld [vmem:[#allocation2 + $0x2f8] sm:$0xff]
    %v191 = vld [vmem:[#allocation5] sm:$0xff]
    %v192 = vld [vmem:[#allocation5 + $0x8] sm:$0xff]
    %v193 = vld [vmem:[#allocation5 + $0x10] sm:$0xff]
    %v194 = vld [vmem:[#allocation5 + $0x18] sm:$0xff]
    %v195 = vld [vmem:[#allocation5 + $0x20] sm:$0xff]
    %v196 = vld [vmem:[#allocation5 + $0x28] sm:$0xff]
    %v197 = vld [vmem:[#allocation5 + $0x30] sm:$0xff]
    %v198 = vld [vmem:[#allocation5 + $0x38] sm:$0xff]
    %v199 = vld [vmem:[#allocation5 + $0x40] sm:$0xff]
    %v200 = vld [vmem:[#allocation5 + $0x48] sm:$0xff]
    %v201 = vld [vmem:[#allocation5 + $0x50] sm:$0xff]
    %v202 = vld [vmem:[#allocation5 + $0x58] sm:$0xff]
    %v203 = vld [vmem:[#allocation5 + $0x60] sm:$0xff]
    %v204 = vld [vmem:[#allocation5 + $0x68] sm:$0xff]
    %v205 = vld [vmem:[#allocation5 + $0x70] sm:$0xff]
    %v206 = vld [vmem:[#allocation5 + $0x78] sm:$0xff]
    %v207 = vld [vmem:[#allocation5 + $0x80] sm:$0xff]
    %v208 = vld [vmem:[#allocation5 + $0x88] sm:$0xff]
    %v209 = vld [vmem:[#allocation5 + $0x90] sm:$0xff]
    %v210 = vld [vmem:[#allocation5 + $0x98] sm:$0xff]
    %v211 = vld [vmem:[#allocation5 + $0xa0] sm:$0xff]
    %v212 = vld [vmem:[#allocation5 + $0xa8] sm:$0xff]
    %v213 = vld [vmem:[#allocation5 + $0xb0] sm:$0xff]
    %v214 = vld [vmem:[#allocation5 + $0xb8] sm:$0xff]
    %v215 = vld [vmem:[#allocation5 + $0xc0] sm:$0xff]
    %v216 = vld [vmem:[#allocation5 + $0xc8] sm:$0xff]
    %v217 = vld [vmem:[#allocation5 + $0xd0] sm:$0xff]
    %v218 = vld [vmem:[#allocation5 + $0xd8] sm:$0xff]
    %v219 = vld [vmem:[#allocation5 + $0xe0] sm:$0xff]
    %v220 = vld [vmem:[#allocation5 + $0xe8] sm:$0xff]
    %v221 = vld [vmem:[#allocation5 + $0xf0] sm:$0xff]
    %v222 = vld [vmem:[#allocation5 + $0xf8] sm:$0xff]
    %v223 = vld [vmem:[#allocation5 + $0x100] sm:$0xff]
    %v224 = vld [vmem:[#allocation5 + $0x108] sm:$0xff]
    %v225 = vld [vmem:[#allocation5 + $0x110] sm:$0xff]
    %v226 = vld [vmem:[#allocation5 + $0x118] sm:$0xff]
    %v227 = vld [vmem:[#allocation5 + $0x120] sm:$0xff]
    %v228 = vld [vmem:[#allocation5 + $0x128] sm:$0xff]
    %v229 = vld [vmem:[#allocation5 + $0x130] sm:$0xff]
    %v230 = vld [vmem:[#allocation5 + $0x138] sm:$0xff]
    %v231 = vld [vmem:[#allocation5 + $0x140] sm:$0xff]
    %v232 = vld [vmem:[#allocation5 + $0x148] sm:$0xff]
    %v233 = vld [vmem:[#allocation5 + $0x150] sm:$0xff]
    %v234 = vld [vmem:[#allocation5 + $0x158] sm:$0xff]
    %v235 = vld [vmem:[#allocation5 + $0x160] sm:$0xff]
    %v236 = vld [vmem:[#allocation5 + $0x168] sm:$0xff]
    %v237 = vld [vmem:[#allocation5 + $0x170] sm:$0xff]
    %v238 = vld [vmem:[#allocation5 + $0x178] sm:$0xff]
    %v239 = vld [vmem:[#allocation5 + $0x180] sm:$0xff]
    %v240 = vld [vmem:[#allocation5 + $0x188] sm:$0xff]
    %v241 = vld [vmem:[#allocation5 + $0x190] sm:$0xff]
    %v242 = vld [vmem:[#allocation5 + $0x198] sm:$0xff]
    %v243 = vld [vmem:[#allocation5 + $0x1a0] sm:$0xff]
    %v244 = vld [vmem:[#allocation5 + $0x1a8] sm:$0xff]
    %v245 = vld [vmem:[#allocation5 + $0x1b0] sm:$0xff]
    %v246 = vld [vmem:[#allocation5 + $0x1b8] sm:$0xff]
    %v247 = vld [vmem:[#allocation5 + $0x1c0] sm:$0xff]
    %v248 = vld [vmem:[#allocation5 + $0x1c8] sm:$0xff]
    %v249 = vld [vmem:[#allocation5 + $0x1d0] sm:$0xff]
    %v250 = vld [vmem:[#allocation5 + $0x1d8] sm:$0xff]
    %v251 = vld [vmem:[#allocation5 + $0x1e0] sm:$0xff]
    %v252 = vld [vmem:[#allocation5 + $0x1e8] sm:$0xff]
    %v253 = vld [vmem:[#allocation5 + $0x1f0] sm:$0xff]
    %v254 = vld [vmem:[#allocation5 + $0x1f8] sm:$0xff]
    %v255 = vld [vmem:[#allocation5 + $0x200] sm:$0xff]
    %v256 = vld [vmem:[#allocation5 + $0x208] sm:$0xff]
    %v257 = vld [vmem:[#allocation5 + $0x210] sm:$0xff]
    %v258 = vld [vmem:[#allocation5 + $0x218] sm:$0xff]
    %v259 = vld [vmem:[#allocation5 + $0x220] sm:$0xff]
    %v260 = vld [vmem:[#allocation5 + $0x228] sm:$0xff]
    %v261 = vld [vmem:[#allocation5 + $0x230] sm:$0xff]
    %v262 = vld [vmem:[#allocation5 + $0x238] sm:$0xff]
    %v263 = vld [vmem:[#allocation5 + $0x240] sm:$0xff]
    %v264 = vld [vmem:[#allocation5 + $0x248] sm:$0xff]
    %v265 = vld [vmem:[#allocation5 + $0x250] sm:$0xff]
    %v266 = vld [vmem:[#allocation5 + $0x258] sm:$0xff]
    %v267 = vld [vmem:[#allocation5 + $0x260] sm:$0xff]
    %v268 = vld [vmem:[#allocation5 + $0x268] sm:$0xff]
    %v269 = vld [vmem:[#allocation5 + $0x270] sm:$0xff]
    %v270 = vld [vmem:[#allocation5 + $0x278] sm:$0xff]
    %v271 = vld [vmem:[#allocation5 + $0x280] sm:$0xff]
    %v272 = vld [vmem:[#allocation5 + $0x288] sm:$0xff]
    %v273 = vld [vmem:[#allocation5 + $0x290] sm:$0xff]
    %v274 = vld [vmem:[#allocation5 + $0x298] sm:$0xff]
    %v275 = vld [vmem:[#allocation5 + $0x2a0] sm:$0xff]
    %v276 = vld [vmem:[#allocation5 + $0x2a8] sm:$0xff]
    %v277 = vld [vmem:[#allocation5 + $0x2b0] sm:$0xff]
    %v278 = vld [vmem:[#allocation5 + $0x2b8] sm:$0xff]
    %v279 = vld [vmem:[#allocation5 + $0x2c0] sm:$0xff]
    %v280 = vld [vmem:[#allocation5 + $0x2c8] sm:$0xff]
    %v281 = vld [vmem:[#allocation5 + $0x2d0] sm:$0xff]
    %v282 = vld [vmem:[#allocation5 + $0x2d8] sm:$0xff]
    %v283 = vld [vmem:[#allocation5 + $0x2e0] sm:$0xff]
    %v284 = vld [vmem:[#allocation5 + $0x2e8] sm:$0xff]
    %v285 = vld [vmem:[#allocation5 + $0x2f0] sm:$0xff]
    %v286 = vld [vmem:[#allocation5 + $0x2f8] sm:$0xff]
    %v287 = vld [vmem:[#allocation5 + $0x300] sm:$0xff]
    %v288 = vld [vmem:[#allocation5 + $0x308] sm:$0xff]
    %v289 = vld [vmem:[#allocation5 + $0x310] sm:$0xff]
    %v290 = vld [vmem:[#allocation5 + $0x318] sm:$0xff]
    %v291 = vld [vmem:[#allocation5 + $0x320] sm:$0xff]
    %v292 = vld [vmem:[#allocation5 + $0x328] sm:$0xff]
    %v293 = vld [vmem:[#allocation5 + $0x330] sm:$0xff]
    %v294 = vld [vmem:[#allocation5 + $0x338] sm:$0xff]
    %v295 = vld [vmem:[#allocation5 + $0x340] sm:$0xff]
    %v296 = vld [vmem:[#allocation5 + $0x348] sm:$0xff]
    %v297 = vld [vmem:[#allocation5 + $0x350] sm:$0xff]
    %v298 = vld [vmem:[#allocation5 + $0x358] sm:$0xff]
    %v299 = vld [vmem:[#allocation5 + $0x360] sm:$0xff]
    %v300 = vld [vmem:[#allocation5 + $0x368] sm:$0xff]
    %v301 = vld [vmem:[#allocation5 + $0x370] sm:$0xff]
    %v302 = vld [vmem:[#allocation5 + $0x378] sm:$0xff]
    %v303 = vld [vmem:[#allocation5 + $0x380] sm:$0xff]
    %v304 = vld [vmem:[#allocation5 + $0x388] sm:$0xff]
    %v305 = vld [vmem:[#allocation5 + $0x390] sm:$0xff]
    %v306 = vld [vmem:[#allocation5 + $0x398] sm:$0xff]
    %v307 = vld [vmem:[#allocation5 + $0x3a0] sm:$0xff]
    %v308 = vld [vmem:[#allocation5 + $0x3a8] sm:$0xff]
    %v309 = vld [vmem:[#allocation5 + $0x3b0] sm:$0xff]
    %v310 = vld [vmem:[#allocation5 + $0x3b8] sm:$0xff]
    %v311 = vld [vmem:[#allocation5 + $0x3c0] sm:$0xff]
    %v312 = vld [vmem:[#allocation5 + $0x3c8] sm:$0xff]
    %v313 = vld [vmem:[#allocation5 + $0x3d0] sm:$0xff]
    %v314 = vld [vmem:[#allocation5 + $0x3d8] sm:$0xff]
    %v315 = vld [vmem:[#allocation5 + $0x3e0] sm:$0xff]
    %v316 = vld [vmem:[#allocation5 + $0x3e8] sm:$0xff]
    %v317 = vld [vmem:[#allocation5 + $0x3f0] sm:$0xff]
    %v318 = vld [vmem:[#allocation5 + $0x3f8] sm:$0xff]
    %v319 = vld [vmem:[#allocation5 + $0x400] sm:$0xff]
    %v320 = vld [vmem:[#allocation5 + $0x408] sm:$0xff]
    %v321 = vld [vmem:[#allocation5 + $0x410] sm:$0xff]
    %v322 = vld [vmem:[#allocation5 + $0x418] sm:$0xff]
    %v323 = vld [vmem:[#allocation5 + $0x420] sm:$0xff]
    %v324 = vld [vmem:[#allocation5 + $0x428] sm:$0xff]
    %v325 = vld [vmem:[#allocation5 + $0x430] sm:$0xff]
    %v326 = vld [vmem:[#allocation5 + $0x438] sm:$0xff]
    %v327 = vld [vmem:[#allocation5 + $0x440] sm:$0xff]
    %v328 = vld [vmem:[#allocation5 + $0x448] sm:$0xff]
    %v329 = vld [vmem:[#allocation5 + $0x450] sm:$0xff]
    %v330 = vld [vmem:[#allocation5 + $0x458] sm:$0xff]
    %v331 = vld [vmem:[#allocation5 + $0x460] sm:$0xff]
    %v332 = vld [vmem:[#allocation5 + $0x468] sm:$0xff]
    %v333 = vld [vmem:[#allocation5 + $0x470] sm:$0xff]
    %v334 = vld [vmem:[#allocation5 + $0x478] sm:$0xff]
    %v335 = vld [vmem:[#allocation5 + $0x480] sm:$0xff]
    %v336 = vld [vmem:[#allocation5 + $0x488] sm:$0xff]
    %v337 = vld [vmem:[#allocation5 + $0x490] sm:$0xff]
    %v338 = vld [vmem:[#allocation5 + $0x498] sm:$0xff]
    %v339 = vld [vmem:[#allocation5 + $0x4a0] sm:$0xff]
    %v340 = vld [vmem:[#allocation5 + $0x4a8] sm:$0xff]
    %v341 = vld [vmem:[#allocation5 + $0x4b0] sm:$0xff]
    %v342 = vld [vmem:[#allocation5 + $0x4b8] sm:$0xff]
    %v343 = vld [vmem:[#allocation5 + $0x4c0] sm:$0xff]
    %v344 = vld [vmem:[#allocation5 + $0x4c8] sm:$0xff]
    %v345 = vld [vmem:[#allocation5 + $0x4d0] sm:$0xff]
    %v346 = vld [vmem:[#allocation5 + $0x4d8] sm:$0xff]
    %v347 = vld [vmem:[#allocation5 + $0x4e0] sm:$0xff]
    %v348 = vld [vmem:[#allocation5 + $0x4e8] sm:$0xff]
    %v349 = vld [vmem:[#allocation5 + $0x4f0] sm:$0xff]
    %v350 = vld [vmem:[#allocation5 + $0x4f8] sm:$0xff]
    %v351 = vld [vmem:[#allocation5 + $0x500] sm:$0xff]
    %v352 = vld [vmem:[#allocation5 + $0x508] sm:$0xff]
    %v353 = vld [vmem:[#allocation5 + $0x510] sm:$0xff]
    %v354 = vld [vmem:[#allocation5 + $0x518] sm:$0xff]
    %v355 = vld [vmem:[#allocation5 + $0x520] sm:$0xff]
    %v356 = vld [vmem:[#allocation5 + $0x528] sm:$0xff]
    %v357 = vld [vmem:[#allocation5 + $0x530] sm:$0xff]
    %v358 = vld [vmem:[#allocation5 + $0x538] sm:$0xff]
    %v359 = vld [vmem:[#allocation5 + $0x540] sm:$0xff]
    %v360 = vld [vmem:[#allocation5 + $0x548] sm:$0xff]
    %v361 = vld [vmem:[#allocation5 + $0x550] sm:$0xff]
    %v362 = vld [vmem:[#allocation5 + $0x558] sm:$0xff]
    %v363 = vld [vmem:[#allocation5 + $0x560] sm:$0xff]
    %v364 = vld [vmem:[#allocation5 + $0x568] sm:$0xff]
    %v365 = vld [vmem:[#allocation5 + $0x570] sm:$0xff]
    %v366 = vld [vmem:[#allocation5 + $0x578] sm:$0xff]
    %v367 = vld [vmem:[#allocation5 + $0x580] sm:$0xff]
    %v368 = vld [vmem:[#allocation5 + $0x588] sm:$0xff]
    %v369 = vld [vmem:[#allocation5 + $0x590] sm:$0xff]
    %v370 = vld [vmem:[#allocation5 + $0x598] sm:$0xff]
    %v371 = vld [vmem:[#allocation5 + $0x5a0] sm:$0xff]
    %v372 = vld [vmem:[#allocation5 + $0x5a8] sm:$0xff]
    %v373 = vld [vmem:[#allocation5 + $0x5b0] sm:$0xff]
    %v374 = vld [vmem:[#allocation5 + $0x5b8] sm:$0xff]
    %v375 = vld [vmem:[#allocation5 + $0x5c0] sm:$0xff]
    %v376 = vld [vmem:[#allocation5 + $0x5c8] sm:$0xff]
    %v377 = vld [vmem:[#allocation5 + $0x5d0] sm:$0xff]
    %v378 = vld [vmem:[#allocation5 + $0x5d8] sm:$0xff]
    %v379 = vld [vmem:[#allocation5 + $0x5e0] sm:$0xff]
    %v380 = vld [vmem:[#allocation5 + $0x5e8] sm:$0xff]
    %v381 = vld [vmem:[#allocation5 + $0x5f0] sm:$0xff]
    %v382 = vld [vmem:[#allocation5 + $0x5f8] sm:$0xff]
    %v383 = vld [vmem:[#allocation5 + $0x600] sm:$0xff]
    %v384 = vld [vmem:[#allocation5 + $0x608] sm:$0xff]
    %v385 = vld [vmem:[#allocation5 + $0x610] sm:$0xff]
    %v386 = vld [vmem:[#allocation5 + $0x618] sm:$0xff]
    %v387 = vld [vmem:[#allocation5 + $0x620] sm:$0xff]
    %v388 = vld [vmem:[#allocation5 + $0x628] sm:$0xff]
    %v389 = vld [vmem:[#allocation5 + $0x630] sm:$0xff]
    %v390 = vld [vmem:[#allocation5 + $0x638] sm:$0xff]
    %v391 = vld [vmem:[#allocation5 + $0x640] sm:$0xff]
    %v392 = vld [vmem:[#allocation5 + $0x648] sm:$0xff]
    %v393 = vld [vmem:[#allocation5 + $0x650] sm:$0xff]
    %v394 = vld [vmem:[#allocation5 + $0x658] sm:$0xff]
    %v395 = vld [vmem:[#allocation5 + $0x660] sm:$0xff]
    %v396 = vld [vmem:[#allocation5 + $0x668] sm:$0xff]
    %v397 = vld [vmem:[#allocation5 + $0x670] sm:$0xff]
    %v398 = vld [vmem:[#allocation5 + $0x678] sm:$0xff]
    %v399 = vld [vmem:[#allocation5 + $0x680] sm:$0xff]
    %v400 = vld [vmem:[#allocation5 + $0x688] sm:$0xff]
    %v401 = vld [vmem:[#allocation5 + $0x690] sm:$0xff]
    %v402 = vld [vmem:[#allocation5 + $0x698] sm:$0xff]
    %v403 = vld [vmem:[#allocation5 + $0x6a0] sm:$0xff]
    %v404 = vld [vmem:[#allocation5 + $0x6a8] sm:$0xff]
    %v405 = vld [vmem:[#allocation5 + $0x6b0] sm:$0xff]
    %v406 = vld [vmem:[#allocation5 + $0x6b8] sm:$0xff]
    %v407 = vld [vmem:[#allocation5 + $0x6c0] sm:$0xff]
    %v408 = vld [vmem:[#allocation5 + $0x6c8] sm:$0xff]
    %v409 = vld [vmem:[#allocation5 + $0x6d0] sm:$0xff]
    %v410 = vld [vmem:[#allocation5 + $0x6d8] sm:$0xff]
    %v411 = vld [vmem:[#allocation5 + $0x6e0] sm:$0xff]
    %v412 = vld [vmem:[#allocation5 + $0x6e8] sm:$0xff]
    %v413 = vld [vmem:[#allocation5 + $0x6f0] sm:$0xff]
    %v414 = vld [vmem:[#allocation5 + $0x6f8] sm:$0xff]
    %v415 = vld [vmem:[#allocation5 + $0x700] sm:$0xff]
    %v416 = vld [vmem:[#allocation5 + $0x708] sm:$0xff]
    %v417 = vld [vmem:[#allocation5 + $0x710] sm:$0xff]
    %v418 = vld [vmem:[#allocation5 + $0x718] sm:$0xff]
    %v419 = vld [vmem:[#allocation5 + $0x720] sm:$0xff]
    %v420 = vld [vmem:[#allocation5 + $0x728] sm:$0xff]
    %v421 = vld [vmem:[#allocation5 + $0x730] sm:$0xff]
    %v422 = vld [vmem:[#allocation5 + $0x738] sm:$0xff]
    %v423 = vld [vmem:[#allocation5 + $0x740] sm:$0xff]
    %v424 = vld [vmem:[#allocation5 + $0x748] sm:$0xff]
    %v425 = vld [vmem:[#allocation5 + $0x750] sm:$0xff]
    %v426 = vld [vmem:[#allocation5 + $0x758] sm:$0xff]
    %v427 = vld [vmem:[#allocation5 + $0x760] sm:$0xff]
    %v428 = vld [vmem:[#allocation5 + $0x768] sm:$0xff]
    %v429 = vld [vmem:[#allocation5 + $0x770] sm:$0xff]
    %v430 = vld [vmem:[#allocation5 + $0x778] sm:$0xff]
    %v431 = vld [vmem:[#allocation5 + $0x780] sm:$0xff]
    %v432 = vld [vmem:[#allocation5 + $0x788] sm:$0xff]
    %v433 = vld [vmem:[#allocation5 + $0x790] sm:$0xff]
    %v434 = vld [vmem:[#allocation5 + $0x798] sm:$0xff]
    %v435 = vld [vmem:[#allocation5 + $0x7a0] sm:$0xff]
    %v436 = vld [vmem:[#allocation5 + $0x7a8] sm:$0xff]
    %v437 = vld [vmem:[#allocation5 + $0x7b0] sm:$0xff]
    %v438 = vld [vmem:[#allocation5 + $0x7b8] sm:$0xff]
    %v439 = vld [vmem:[#allocation5 + $0x7c0] sm:$0xff]
    %v440 = vld [vmem:[#allocation5 + $0x7c8] sm:$0xff]
    %v441 = vld [vmem:[#allocation5 + $0x7d0] sm:$0xff]
    %v442 = vld [vmem:[#allocation5 + $0x7d8] sm:$0xff]
    %v443 = vld [vmem:[#allocation5 + $0x7e0] sm:$0xff]
    %v444 = vld [vmem:[#allocation5 + $0x7e8] sm:$0xff]
    %v445 = vld [vmem:[#allocation5 + $0x7f0] sm:$0xff]
    %v446 = vld [vmem:[#allocation5 + $0x7f8] sm:$0xff]
    %v447 = vld [vmem:[#allocation5 + $0x800] sm:$0xff]
    %v448 = vld [vmem:[#allocation5 + $0x808] sm:$0xff]
    %v449 = vld [vmem:[#allocation5 + $0x810] sm:$0xff]
    %v450 = vld [vmem:[#allocation5 + $0x818] sm:$0xff]
    %v451 = vld [vmem:[#allocation5 + $0x820] sm:$0xff]
    %v452 = vld [vmem:[#allocation5 + $0x828] sm:$0xff]
    %v453 = vld [vmem:[#allocation5 + $0x830] sm:$0xff]
    %v454 = vld [vmem:[#allocation5 + $0x838] sm:$0xff]
    %v455 = vld [vmem:[#allocation5 + $0x840] sm:$0xff]
    %v456 = vld [vmem:[#allocation5 + $0x848] sm:$0xff]
    %v457 = vld [vmem:[#allocation5 + $0x850] sm:$0xff]
    %v458 = vld [vmem:[#allocation5 + $0x858] sm:$0xff]
    %v459 = vld [vmem:[#allocation5 + $0x860] sm:$0xff]
    %v460 = vld [vmem:[#allocation5 + $0x868] sm:$0xff]
    %v461 = vld [vmem:[#allocation5 + $0x870] sm:$0xff]
    %v462 = vld [vmem:[#allocation5 + $0x878] sm:$0xff]
    %v463 = vld [vmem:[#allocation5 + $0x880] sm:$0xff]
    %v464 = vld [vmem:[#allocation5 + $0x888] sm:$0xff]
    %v465 = vld [vmem:[#allocation5 + $0x890] sm:$0xff]
    %v466 = vld [vmem:[#allocation5 + $0x898] sm:$0xff]
    %v467 = vld [vmem:[#allocation5 + $0x8a0] sm:$0xff]
    %v468 = vld [vmem:[#allocation5 + $0x8a8] sm:$0xff]
    %v469 = vld [vmem:[#allocation5 + $0x8b0] sm:$0xff]
    %v470 = vld [vmem:[#allocation5 + $0x8b8] sm:$0xff]
    %v471 = vld [vmem:[#allocation5 + $0x8c0] sm:$0xff]
    %v472 = vld [vmem:[#allocation5 + $0x8c8] sm:$0xff]
    %v473 = vld [vmem:[#allocation5 + $0x8d0] sm:$0xff]
    %v474 = vld [vmem:[#allocation5 + $0x8d8] sm:$0xff]
    %v475 = vld [vmem:[#allocation5 + $0x8e0] sm:$0xff]
    %v476 = vld [vmem:[#allocation5 + $0x8e8] sm:$0xff]
    %v477 = vld [vmem:[#allocation5 + $0x8f0] sm:$0xff]
    %v478 = vld [vmem:[#allocation5 + $0x8f8] sm:$0xff]
    %v479 = vld [vmem:[#allocation5 + $0x900] sm:$0xff]
    %v480 = vld [vmem:[#allocation5 + $0x908] sm:$0xff]
    %v481 = vld [vmem:[#allocation5 + $0x910] sm:$0xff]
    %v482 = vld [vmem:[#allocation5 + $0x918] sm:$0xff]
    %v483 = vld [vmem:[#allocation5 + $0x920] sm:$0xff]
    %v484 = vld [vmem:[#allocation5 + $0x928] sm:$0xff]
    %v485 = vld [vmem:[#allocation5 + $0x930] sm:$0xff]
    %v486 = vld [vmem:[#allocation5 + $0x938] sm:$0xff]
    %v487 = vld [vmem:[#allocation5 + $0x940] sm:$0xff]
    %v488 = vld [vmem:[#allocation5 + $0x948] sm:$0xff]
    %v489 = vld [vmem:[#allocation5 + $0x950] sm:$0xff]
    %v490 = vld [vmem:[#allocation5 + $0x958] sm:$0xff]
    %v491 = vld [vmem:[#allocation5 + $0x960] sm:$0xff]
    %v492 = vld [vmem:[#allocation5 + $0x968] sm:$0xff]
    %v493 = vld [vmem:[#allocation5 + $0x970] sm:$0xff]
    %v494 = vld [vmem:[#allocation5 + $0x978] sm:$0xff]
    %v495 = vld [vmem:[#allocation5 + $0x980] sm:$0xff]
    %v496 = vld [vmem:[#allocation5 + $0x988] sm:$0xff]
    %v497 = vld [vmem:[#allocation5 + $0x990] sm:$0xff]
    %v498 = vld [vmem:[#allocation5 + $0x998] sm:$0xff]
    %v499 = vld [vmem:[#allocation5 + $0x9a0] sm:$0xff]
    %v500 = vld [vmem:[#allocation5 + $0x9a8] sm:$0xff]
    %v501 = vld [vmem:[#allocation5 + $0x9b0] sm:$0xff]
    %v502 = vld [vmem:[#allocation5 + $0x9b8] sm:$0xff]
    %v503 = vld [vmem:[#allocation5 + $0x9c0] sm:$0xff]
    %v504 = vld [vmem:[#allocation5 + $0x9c8] sm:$0xff]
    %v505 = vld [vmem:[#allocation5 + $0x9d0] sm:$0xff]
    %v506 = vld [vmem:[#allocation5 + $0x9d8] sm:$0xff]
    %v507 = vld [vmem:[#allocation5 + $0x9e0] sm:$0xff]
    %v508 = vld [vmem:[#allocation5 + $0x9e8] sm:$0xff]
    %v509 = vld [vmem:[#allocation5 + $0x9f0] sm:$0xff]
    %v510 = vld [vmem:[#allocation5 + $0x9f8] sm:$0xff]
    %v511 = vld [vmem:[#allocation5 + $0xa00] sm:$0xff]
    %v512 = vld [vmem:[#allocation5 + $0xa08] sm:$0xff]
    %v513 = vld [vmem:[#allocation5 + $0xa10] sm:$0xff]
    %v514 = vld [vmem:[#allocation5 + $0xa18] sm:$0xff]
    %v515 = vld [vmem:[#allocation5 + $0xa20] sm:$0xff]
    %v516 = vld [vmem:[#allocation5 + $0xa28] sm:$0xff]
    %v517 = vld [vmem:[#allocation5 + $0xa30] sm:$0xff]
    %v518 = vld [vmem:[#allocation5 + $0xa38] sm:$0xff]
    %v519 = vld [vmem:[#allocation5 + $0xa40] sm:$0xff]
    %v520 = vld [vmem:[#allocation5 + $0xa48] sm:$0xff]
    %v521 = vld [vmem:[#allocation5 + $0xa50] sm:$0xff]
    %v522 = vld [vmem:[#allocation5 + $0xa58] sm:$0xff]
    %v523 = vld [vmem:[#allocation5 + $0xa60] sm:$0xff]
    %v524 = vld [vmem:[#allocation5 + $0xa68] sm:$0xff]
    %v525 = vld [vmem:[#allocation5 + $0xa70] sm:$0xff]
    %v526 = vld [vmem:[#allocation5 + $0xa78] sm:$0xff]
    %v527 = vld [vmem:[#allocation5 + $0xa80] sm:$0xff]
    %v528 = vld [vmem:[#allocation5 + $0xa88] sm:$0xff]
    %v529 = vld [vmem:[#allocation5 + $0xa90] sm:$0xff]
    %v530 = vld [vmem:[#allocation5 + $0xa98] sm:$0xff]
    %v531 = vld [vmem:[#allocation5 + $0xaa0] sm:$0xff]
    %v532 = vld [vmem:[#allocation5 + $0xaa8] sm:$0xff]
    %v533 = vld [vmem:[#allocation5 + $0xab0] sm:$0xff]
    %v534 = vld [vmem:[#allocation5 + $0xab8] sm:$0xff]
    %v535 = vld [vmem:[#allocation5 + $0xac0] sm:$0xff]
    %v536 = vld [vmem:[#allocation5 + $0xac8] sm:$0xff]
    %v537 = vld [vmem:[#allocation5 + $0xad0] sm:$0xff]
    %v538 = vld [vmem:[#allocation5 + $0xad8] sm:$0xff]
    %v539 = vld [vmem:[#allocation5 + $0xae0] sm:$0xff]
    %v540 = vld [vmem:[#allocation5 + $0xae8] sm:$0xff]
    %v541 = vld [vmem:[#allocation5 + $0xaf0] sm:$0xff]
    %v542 = vld [vmem:[#allocation5 + $0xaf8] sm:$0xff]
    %v543 = vld [vmem:[#allocation5 + $0xb00] sm:$0xff]
    %v544 = vld [vmem:[#allocation5 + $0xb08] sm:$0xff]
    %v545 = vld [vmem:[#allocation5 + $0xb10] sm:$0xff]
    %v546 = vld [vmem:[#allocation5 + $0xb18] sm:$0xff]
    %v547 = vld [vmem:[#allocation5 + $0xb20] sm:$0xff]
    %v548 = vld [vmem:[#allocation5 + $0xb28] sm:$0xff]
    %v549 = vld [vmem:[#allocation5 + $0xb30] sm:$0xff]
    %v550 = vld [vmem:[#allocation5 + $0xb38] sm:$0xff]
    %v551 = vld [vmem:[#allocation5 + $0xb40] sm:$0xff]
    %v552 = vld [vmem:[#allocation5 + $0xb48] sm:$0xff]
    %v553 = vld [vmem:[#allocation5 + $0xb50] sm:$0xff]
    %v554 = vld [vmem:[#allocation5 + $0xb58] sm:$0xff]
    %v555 = vld [vmem:[#allocation5 + $0xb60] sm:$0xff]
    %v556 = vld [vmem:[#allocation5 + $0xb68] sm:$0xff]
    %v557 = vld [vmem:[#allocation5 + $0xb70] sm:$0xff]
    %v558 = vld [vmem:[#allocation5 + $0xb78] sm:$0xff]
    %v559 = vld [vmem:[#allocation5 + $0xb80] sm:$0xff]
    %v560 = vld [vmem:[#allocation5 + $0xb88] sm:$0xff]
    %v561 = vld [vmem:[#allocation5 + $0xb90] sm:$0xff]
    %v562 = vld [vmem:[#allocation5 + $0xb98] sm:$0xff]
    %v563 = vld [vmem:[#allocation5 + $0xba0] sm:$0xff]
    %v564 = vld [vmem:[#allocation5 + $0xba8] sm:$0xff]
    %v565 = vld [vmem:[#allocation5 + $0xbb0] sm:$0xff]
    %v566 = vld [vmem:[#allocation5 + $0xbb8] sm:$0xff]
    %v567 = vld [vmem:[#allocation5 + $0xbc0] sm:$0xff]
    %v568 = vld [vmem:[#allocation5 + $0xbc8] sm:$0xff]
    %v569 = vld [vmem:[#allocation5 + $0xbd0] sm:$0xff]
    %v570 = vld [vmem:[#allocation5 + $0xbd8] sm:$0xff]
    %v571 = vld [vmem:[#allocation5 + $0xbe0] sm:$0xff]
    %v572 = vld [vmem:[#allocation5 + $0xbe8] sm:$0xff]
    %v573 = vld [vmem:[#allocation5 + $0xbf0] sm:$0xff]
    %v574 = vld [vmem:[#allocation5 + $0xbf8] sm:$0xff]
    %v575 = vld [vmem:[#allocation5 + $0xc00] sm:$0xff]
    %v576 = vld [vmem:[#allocation5 + $0xc08] sm:$0xff]
    %v577 = vld [vmem:[#allocation5 + $0xc10] sm:$0xff]
    %v578 = vld [vmem:[#allocation5 + $0xc18] sm:$0xff]
    %v579 = vld [vmem:[#allocation5 + $0xc20] sm:$0xff]
    %v580 = vld [vmem:[#allocation5 + $0xc28] sm:$0xff]
    %v581 = vld [vmem:[#allocation5 + $0xc30] sm:$0xff]
    %v582 = vld [vmem:[#allocation5 + $0xc38] sm:$0xff]
    %v583 = vld [vmem:[#allocation5 + $0xc40] sm:$0xff]
    %v584 = vld [vmem:[#allocation5 + $0xc48] sm:$0xff]
    %v585 = vld [vmem:[#allocation5 + $0xc50] sm:$0xff]
    %v586 = vld [vmem:[#allocation5 + $0xc58] sm:$0xff]
    %v587 = vld [vmem:[#allocation5 + $0xc60] sm:$0xff]
    %v588 = vld [vmem:[#allocation5 + $0xc68] sm:$0xff]
    %v589 = vld [vmem:[#allocation5 + $0xc70] sm:$0xff]
    %v590 = vld [vmem:[#allocation5 + $0xc78] sm:$0xff]
    %v591 = vld [vmem:[#allocation5 + $0xc80] sm:$0xff]
    %v592 = vld [vmem:[#allocation5 + $0xc88] sm:$0xff]
    %v593 = vld [vmem:[#allocation5 + $0xc90] sm:$0xff]
    %v594 = vld [vmem:[#allocation5 + $0xc98] sm:$0xff]
    %v595 = vld [vmem:[#allocation5 + $0xca0] sm:$0xff]
    %v596 = vld [vmem:[#allocation5 + $0xca8] sm:$0xff]
    %v597 = vld [vmem:[#allocation5 + $0xcb0] sm:$0xff]
    %v598 = vld [vmem:[#allocation5 + $0xcb8] sm:$0xff]
    %v599 = vld [vmem:[#allocation5 + $0xcc0] sm:$0xff]
    %v600 = vld [vmem:[#allocation5 + $0xcc8] sm:$0xff]
    %v601 = vld [vmem:[#allocation5 + $0xcd0] sm:$0xff]
    %v602 = vld [vmem:[#allocation5 + $0xcd8] sm:$0xff]
    %v603 = vld [vmem:[#allocation5 + $0xce0] sm:$0xff]
    %v604 = vld [vmem:[#allocation5 + $0xce8] sm:$0xff]
    %v605 = vld [vmem:[#allocation5 + $0xcf0] sm:$0xff]
    %v606 = vld [vmem:[#allocation5 + $0xcf8] sm:$0xff]
    %v607 = vld [vmem:[#allocation5 + $0xd00] sm:$0xff]
    %v608 = vld [vmem:[#allocation5 + $0xd08] sm:$0xff]
    %v609 = vld [vmem:[#allocation5 + $0xd10] sm:$0xff]
    %v610 = vld [vmem:[#allocation5 + $0xd18] sm:$0xff]
    %v611 = vld [vmem:[#allocation5 + $0xd20] sm:$0xff]
    %v612 = vld [vmem:[#allocation5 + $0xd28] sm:$0xff]
    %v613 = vld [vmem:[#allocation5 + $0xd30] sm:$0xff]
    %v614 = vld [vmem:[#allocation5 + $0xd38] sm:$0xff]
    %v615 = vld [vmem:[#allocation5 + $0xd40] sm:$0xff]
    %v616 = vld [vmem:[#allocation5 + $0xd48] sm:$0xff]
    %v617 = vld [vmem:[#allocation5 + $0xd50] sm:$0xff]
    %v618 = vld [vmem:[#allocation5 + $0xd58] sm:$0xff]
    %v619 = vld [vmem:[#allocation5 + $0xd60] sm:$0xff]
    %v620 = vld [vmem:[#allocation5 + $0xd68] sm:$0xff]
    %v621 = vld [vmem:[#allocation5 + $0xd70] sm:$0xff]
    %v622 = vld [vmem:[#allocation5 + $0xd78] sm:$0xff]
    %v623 = vld [vmem:[#allocation5 + $0xd80] sm:$0xff]
    %v624 = vld [vmem:[#allocation5 + $0xd88] sm:$0xff]
    %v625 = vld [vmem:[#allocation5 + $0xd90] sm:$0xff]
    %v626 = vld [vmem:[#allocation5 + $0xd98] sm:$0xff]
    %v627 = vld [vmem:[#allocation5 + $0xda0] sm:$0xff]
    %v628 = vld [vmem:[#allocation5 + $0xda8] sm:$0xff]
    %v629 = vld [vmem:[#allocation5 + $0xdb0] sm:$0xff]
    %v630 = vld [vmem:[#allocation5 + $0xdb8] sm:$0xff]
    %v631 = vld [vmem:[#allocation5 + $0xdc0] sm:$0xff]
    %v632 = vld [vmem:[#allocation5 + $0xdc8] sm:$0xff]
    %v633 = vld [vmem:[#allocation5 + $0xdd0] sm:$0xff]
    %v634 = vld [vmem:[#allocation5 + $0xdd8] sm:$0xff]
    %v635 = vld [vmem:[#allocation5 + $0xde0] sm:$0xff]
    %v636 = vld [vmem:[#allocation5 + $0xde8] sm:$0xff]
    %v637 = vld [vmem:[#allocation5 + $0xdf0] sm:$0xff]
    %v638 = vld [vmem:[#allocation5 + $0xdf8] sm:$0xff]
    %v639 = vld [vmem:[#allocation5 + $0xe00] sm:$0xff]
    %v640 = vld [vmem:[#allocation5 + $0xe08] sm:$0xff]
    %v641 = vld [vmem:[#allocation5 + $0xe10] sm:$0xff]
    %v642 = vld [vmem:[#allocation5 + $0xe18] sm:$0xff]
    %v643 = vld [vmem:[#allocation5 + $0xe20] sm:$0xff]
    %v644 = vld [vmem:[#allocation5 + $0xe28] sm:$0xff]
    %v645 = vld [vmem:[#allocation5 + $0xe30] sm:$0xff]
    %v646 = vld [vmem:[#allocation5 + $0xe38] sm:$0xff]
    %v647 = vld [vmem:[#allocation5 + $0xe40] sm:$0xff]
    %v648 = vld [vmem:[#allocation5 + $0xe48] sm:$0xff]
    %v649 = vld [vmem:[#allocation5 + $0xe50] sm:$0xff]
    %v650 = vld [vmem:[#allocation5 + $0xe58] sm:$0xff]
    %v651 = vld [vmem:[#allocation5 + $0xe60] sm:$0xff]
    %v652 = vld [vmem:[#allocation5 + $0xe68] sm:$0xff]
    %v653 = vld [vmem:[#allocation5 + $0xe70] sm:$0xff]
    %v654 = vld [vmem:[#allocation5 + $0xe78] sm:$0xff]
    %v655 = vld [vmem:[#allocation5 + $0xe80] sm:$0xff]
    %v656 = vld [vmem:[#allocation5 + $0xe88] sm:$0xff]
    %v657 = vld [vmem:[#allocation5 + $0xe90] sm:$0xff]
    %v658 = vld [vmem:[#allocation5 + $0xe98] sm:$0xff]
    %v659 = vld [vmem:[#allocation5 + $0xea0] sm:$0xff]
    %v660 = vld [vmem:[#allocation5 + $0xea8] sm:$0xff]
    %v661 = vld [vmem:[#allocation5 + $0xeb0] sm:$0xff]
    %v662 = vld [vmem:[#allocation5 + $0xeb8] sm:$0xff]
    %v663 = vld [vmem:[#allocation5 + $0xec0] sm:$0xff]
    %v664 = vld [vmem:[#allocation5 + $0xec8] sm:$0xff]
    %v665 = vld [vmem:[#allocation5 + $0xed0] sm:$0xff]
    %v666 = vld [vmem:[#allocation5 + $0xed8] sm:$0xff]
    %v667 = vld [vmem:[#allocation5 + $0xee0] sm:$0xff]
    %v668 = vld [vmem:[#allocation5 + $0xee8] sm:$0xff]
    %v669 = vld [vmem:[#allocation5 + $0xef0] sm:$0xff]
    %v670 = vld [vmem:[#allocation5 + $0xef8] sm:$0xff]
    %v671 = vld [vmem:[#allocation5 + $0xf00] sm:$0xff]
    %v672 = vld [vmem:[#allocation5 + $0xf08] sm:$0xff]
    %v673 = vld [vmem:[#allocation5 + $0xf10] sm:$0xff]
    %v674 = vld [vmem:[#allocation5 + $0xf18] sm:$0xff]
    %v675 = vld [vmem:[#allocation5 + $0xf20] sm:$0xff]
    %v676 = vld [vmem:[#allocation5 + $0xf28] sm:$0xff]
    %v677 = vld [vmem:[#allocation5 + $0xf30] sm:$0xff]
    %v678 = vld [vmem:[#allocation5 + $0xf38] sm:$0xff]
    %v679 = vld [vmem:[#allocation5 + $0xf40] sm:$0xff]
    %v680 = vld [vmem:[#allocation5 + $0xf48] sm:$0xff]
    %v681 = vld [vmem:[#allocation5 + $0xf50] sm:$0xff]
    %v682 = vld [vmem:[#allocation5 + $0xf58] sm:$0xff]
    %v683 = vld [vmem:[#allocation5 + $0xf60] sm:$0xff]
    %v684 = vld [vmem:[#allocation5 + $0xf68] sm:$0xff]
    %v685 = vld [vmem:[#allocation5 + $0xf70] sm:$0xff]
    %v686 = vld [vmem:[#allocation5 + $0xf78] sm:$0xff]
    %v687 = vld [vmem:[#allocation5 + $0xf80] sm:$0xff]
    %v688 = vld [vmem:[#allocation5 + $0xf88] sm:$0xff]
    %v689 = vld [vmem:[#allocation5 + $0xf90] sm:$0xff]
    %v690 = vld [vmem:[#allocation5 + $0xf98] sm:$0xff]
    %v691 = vld [vmem:[#allocation5 + $0xfa0] sm:$0xff]
    %v692 = vld [vmem:[#allocation5 + $0xfa8] sm:$0xff]
    %v693 = vld [vmem:[#allocation5 + $0xfb0] sm:$0xff]
    %v694 = vld [vmem:[#allocation5 + $0xfb8] sm:$0xff]
    %v695 = vld [vmem:[#allocation5 + $0xfc0] sm:$0xff]
    %v696 = vld [vmem:[#allocation5 + $0xfc8] sm:$0xff]
    %v697 = vld [vmem:[#allocation5 + $0xfd0] sm:$0xff]
    %v698 = vld [vmem:[#allocation5 + $0xfd8] sm:$0xff]
    %v699 = vld [vmem:[#allocation5 + $0xfe0] sm:$0xff]
    %v700 = vld [vmem:[#allocation5 + $0xfe8] sm:$0xff]
    %v701 = vld [vmem:[#allocation5 + $0xff0] sm:$0xff]
    %v702 = vld [vmem:[#allocation5 + $0xff8] sm:$0xff]
    %v703 = vld [vmem:[#allocation5 + $0x1000] sm:$0xff]
    %v704 = vld [vmem:[#allocation5 + $0x1008] sm:$0xff]
    %v705 = vld [vmem:[#allocation5 + $0x1010] sm:$0xff]
    %v706 = vld [vmem:[#allocation5 + $0x1018] sm:$0xff]
    %v707 = vld [vmem:[#allocation5 + $0x1020] sm:$0xff]
    %v708 = vld [vmem:[#allocation5 + $0x1028] sm:$0xff]
    %v709 = vld [vmem:[#allocation5 + $0x1030] sm:$0xff]
    %v710 = vld [vmem:[#allocation5 + $0x1038] sm:$0xff]
    %v711 = vld [vmem:[#allocation5 + $0x1040] sm:$0xff]
    %v712 = vld [vmem:[#allocation5 + $0x1048] sm:$0xff]
    %v713 = vld [vmem:[#allocation5 + $0x1050] sm:$0xff]
    %v714 = vld [vmem:[#allocation5 + $0x1058] sm:$0xff]
    %v715 = vld [vmem:[#allocation5 + $0x1060] sm:$0xff]
    %v716 = vld [vmem:[#allocation5 + $0x1068] sm:$0xff]
    %v717 = vld [vmem:[#allocation5 + $0x1070] sm:$0xff]
    %v718 = vld [vmem:[#allocation5 + $0x1078] sm:$0xff]
    %v719 = vld [vmem:[#allocation5 + $0x1080] sm:$0xff]
    %v720 = vld [vmem:[#allocation5 + $0x1088] sm:$0xff]
    %v721 = vld [vmem:[#allocation5 + $0x1090] sm:$0xff]
    %v722 = vld [vmem:[#allocation5 + $0x1098] sm:$0xff]
    %v723 = vld [vmem:[#allocation5 + $0x10a0] sm:$0xff]
    %v724 = vld [vmem:[#allocation5 + $0x10a8] sm:$0xff]
    %v725 = vld [vmem:[#allocation5 + $0x10b0] sm:$0xff]
    %v726 = vld [vmem:[#allocation5 + $0x10b8] sm:$0xff]
    %v727 = vld [vmem:[#allocation5 + $0x10c0] sm:$0xff]
    %v728 = vld [vmem:[#allocation5 + $0x10c8] sm:$0xff]
    %v729 = vld [vmem:[#allocation5 + $0x10d0] sm:$0xff]
    %v730 = vld [vmem:[#allocation5 + $0x10d8] sm:$0xff]
    %v731 = vld [vmem:[#allocation5 + $0x10e0] sm:$0xff]
    %v732 = vld [vmem:[#allocation5 + $0x10e8] sm:$0xff]
    %v733 = vld [vmem:[#allocation5 + $0x10f0] sm:$0xff]
    %v734 = vld [vmem:[#allocation5 + $0x10f8] sm:$0xff]
    %v735 = vld [vmem:[#allocation5 + $0x1100] sm:$0xff]
    %v736 = vld [vmem:[#allocation5 + $0x1108] sm:$0xff]
    %v737 = vld [vmem:[#allocation5 + $0x1110] sm:$0xff]
    %v738 = vld [vmem:[#allocation5 + $0x1118] sm:$0xff]
    %v739 = vld [vmem:[#allocation5 + $0x1120] sm:$0xff]
    %v740 = vld [vmem:[#allocation5 + $0x1128] sm:$0xff]
    %v741 = vld [vmem:[#allocation5 + $0x1130] sm:$0xff]
    %v742 = vld [vmem:[#allocation5 + $0x1138] sm:$0xff]
    %v743 = vld [vmem:[#allocation5 + $0x1140] sm:$0xff]
    %v744 = vld [vmem:[#allocation5 + $0x1148] sm:$0xff]
    %v745 = vld [vmem:[#allocation5 + $0x1150] sm:$0xff]
    %v746 = vld [vmem:[#allocation5 + $0x1158] sm:$0xff]
    %v747 = vld [vmem:[#allocation5 + $0x1160] sm:$0xff]
    %v748 = vld [vmem:[#allocation5 + $0x1168] sm:$0xff]
    %v749 = vld [vmem:[#allocation5 + $0x1170] sm:$0xff]
    %v750 = vld [vmem:[#allocation5 + $0x1178] sm:$0xff]
    %v751 = vld [vmem:[#allocation5 + $0x1180] sm:$0xff]
    %v752 = vld [vmem:[#allocation5 + $0x1188] sm:$0xff]
    %v753 = vld [vmem:[#allocation5 + $0x1190] sm:$0xff]
    %v754 = vld [vmem:[#allocation5 + $0x1198] sm:$0xff]
    %v755 = vld [vmem:[#allocation5 + $0x11a0] sm:$0xff]
    %v756 = vld [vmem:[#allocation5 + $0x11a8] sm:$0xff]
    %v757 = vld [vmem:[#allocation5 + $0x11b0] sm:$0xff]
    %v758 = vld [vmem:[#allocation5 + $0x11b8] sm:$0xff]
    %v759 = vld [vmem:[#allocation5 + $0x11c0] sm:$0xff]
    %v760 = vld [vmem:[#allocation5 + $0x11c8] sm:$0xff]
    %v761 = vld [vmem:[#allocation5 + $0x11d0] sm:$0xff]
    %v762 = vld [vmem:[#allocation5 + $0x11d8] sm:$0xff]
    %v763 = vld [vmem:[#allocation5 + $0x11e0] sm:$0xff]
    %v764 = vld [vmem:[#allocation5 + $0x11e8] sm:$0xff]
    %v765 = vld [vmem:[#allocation5 + $0x11f0] sm:$0xff]
    %v766 = vld [vmem:[#allocation5 + $0x11f8] sm:$0xff]
    %v767 = vld [vmem:[#allocation7] sm:$0xff]
    %v768 = vld [vmem:[#allocation7 + $0x8] sm:$0xf]
    %v771 = vperm.slane %v767, 0
    %v772 = vperm.slane %v767, 1
    %v773 = vperm.slane %v767, 2
    %v774 = vperm.slane %v767, 3
    %v775 = vperm.slane %v767, 4
    %v776 = vperm.slane %v767, 5
    %v777 = vperm.slane %v767, 6
    %v778 = vperm.slane %v767, 7
    %v779 = vperm.slane %v768, 0
    %v780 = vperm.slane %v768, 1
    %v781 = vperm.slane %v768, 2
    %v782 = vperm.slane %v768, 3
    %795 = vmatpush.msra.mxu0 %v371
    %796 = vmatpush.msra.mxu0 %v359
    %797 = vmatpush.msra.mxu0 %v347
    %798 = vmatpush.msra.mxu0 %v335
    %799 = vmatpush.msra.mxu0 %v323
    %800 = vmatpush.msra.mxu0 %v311
    %801 = vmatpush.msra.mxu0 %v299
    %802 = vmatpush.msra.mxu0 %v287
    %803 = vmatpush.msra.mxu0 %v275
    %804 = vmatpush.msra.mxu0 %v263
    %805 = vmatpush.msra.mxu0 %v251
    %806 = vmatpush.msra.mxu0 %v239
    %807 = vmatpush.msra.mxu0 %v227
    %808 = vmatpush.msra.mxu0 %v215
    %809 = vmatpush.msra.mxu0 %v203
    %810 = vmatpush.msra.mxu0 %v191
    %811 = vmatmul.f32.gmra.mxu0 %v95
    %v812 = vpop.f32.mrf.mxu0
    %v813 = vadd.f32 %v771, %v812
    %814 = vmatmul.f32.gmra.mxu0 %v98
    %v815 = vpop.f32.mrf.mxu0
    %v816 = vadd.f32 %v771, %v815
    %817 = vmatmul.f32.gmra.mxu0 %v101
    %v818 = vpop.f32.mrf.mxu0
    %v819 = vadd.f32 %v771, %v818
    %820 = vmatmul.f32.gmra.mxu0 %v104
    %v821 = vpop.f32.mrf.mxu0
    %v822 = vadd.f32 %v771, %v821
    %823 = vmatmul.f32.gmra.mxu0 %v107
    %v824 = vpop.f32.mrf.mxu0
    %v825 = vadd.f32 %v771, %v824
    %826 = vmatmul.f32.gmra.mxu0 %v110
    %v827 = vpop.f32.mrf.mxu0
    %v828 = vadd.f32 %v771, %v827
    %829 = vmatmul.f32.gmra.mxu0 %v113
    %v830 = vpop.f32.mrf.mxu0
    %v831 = vadd.f32 %v771, %v830
    %832 = vmatmul.f32.gmra.mxu0 %v116
    %v833 = vpop.f32.mrf.mxu0
    %v834 = vadd.f32 %v771, %v833
    %835 = vmatmul.f32.gmra.mxu0 %v119
    %v836 = vpop.f32.mrf.mxu0
    %v837 = vadd.f32 %v771, %v836
    %838 = vmatmul.f32.gmra.mxu0 %v122
    %v839 = vpop.f32.mrf.mxu0
    %v840 = vadd.f32 %v771, %v839
    %841 = vmatmul.f32.gmra.mxu0 %v125
    %v842 = vpop.f32.mrf.mxu0
    %v843 = vadd.f32 %v771, %v842
    %844 = vmatmul.f32.gmra.mxu0 %v128
    %v845 = vpop.f32.mrf.mxu0
    %v846 = vadd.f32 %v771, %v845
    %847 = vmatmul.f32.gmra.mxu0 %v131
    %v848 = vpop.f32.mrf.mxu0
    %v849 = vadd.f32 %v771, %v848
    %850 = vmatmul.f32.gmra.mxu0 %v134
    %v851 = vpop.f32.mrf.mxu0
    %v852 = vadd.f32 %v771, %v851
    %853 = vmatmul.f32.gmra.mxu0 %v137
    %v854 = vpop.f32.mrf.mxu0
    %v855 = vadd.f32 %v771, %v854
    %856 = vmatmul.f32.gmra.mxu0 %v140
    %v857 = vpop.f32.mrf.mxu0
    %v858 = vadd.f32 %v771, %v857
    %859 = vmatmul.f32.gmra.mxu0 %v143
    %v860 = vpop.f32.mrf.mxu0
    %v861 = vadd.f32 %v771, %v860
    %862 = vmatmul.f32.gmra.mxu0 %v146
    %v863 = vpop.f32.mrf.mxu0
    %v864 = vadd.f32 %v771, %v863
    %865 = vmatmul.f32.gmra.mxu0 %v149
    %v866 = vpop.f32.mrf.mxu0
    %v867 = vadd.f32 %v771, %v866
    %868 = vmatmul.f32.gmra.mxu0 %v152
    %v869 = vpop.f32.mrf.mxu0
    %v870 = vadd.f32 %v771, %v869
    %871 = vmatmul.f32.gmra.mxu0 %v155
    %v872 = vpop.f32.mrf.mxu0
    %v873 = vadd.f32 %v771, %v872
    %874 = vmatmul.f32.gmra.mxu0 %v158
    %v875 = vpop.f32.mrf.mxu0
    %v876 = vadd.f32 %v771, %v875
    %877 = vmatmul.f32.gmra.mxu0 %v161
    %v878 = vpop.f32.mrf.mxu0
    %v879 = vadd.f32 %v771, %v878
    %880 = vmatmul.f32.gmra.mxu0 %v164
    %v881 = vpop.f32.mrf.mxu0
    %v882 = vadd.f32 %v771, %v881
    %883 = vmatmul.f32.gmra.mxu0 %v167
    %v884 = vpop.f32.mrf.mxu0
    %v885 = vadd.f32 %v771, %v884
    %886 = vmatmul.f32.gmra.mxu0 %v170
    %v887 = vpop.f32.mrf.mxu0
    %v888 = vadd.f32 %v771, %v887
    %889 = vmatmul.f32.gmra.mxu0 %v173
    %v890 = vpop.f32.mrf.mxu0
    %v891 = vadd.f32 %v771, %v890
    %892 = vmatmul.f32.gmra.mxu0 %v176
    %v893 = vpop.f32.mrf.mxu0
    %v894 = vadd.f32 %v771, %v893
    %895 = vmatmul.f32.gmra.mxu0 %v179
    %v896 = vpop.f32.mrf.mxu0
    %v897 = vadd.f32 %v771, %v896
    %898 = vmatmul.f32.gmra.mxu0 %v182
    %v899 = vpop.f32.mrf.mxu0
    %v900 = vadd.f32 %v771, %v899
    %901 = vmatmul.f32.gmra.mxu0 %v185
    %v902 = vpop.f32.mrf.mxu0
    %v903 = vadd.f32 %v771, %v902
    %904 = vmatmul.f32.gmra.mxu0 %v188
    %v905 = vpop.f32.mrf.mxu0
    %v906 = vadd.f32 %v771, %v905
    %907 = vdwg.mxu0
    %908 = vmatpush.msra.mxu0 %v563
    %909 = vmatpush.msra.mxu0 %v551
    %910 = vmatpush.msra.mxu0 %v539
    %911 = vmatpush.msra.mxu0 %v527
    %912 = vmatpush.msra.mxu0 %v515
    %913 = vmatpush.msra.mxu0 %v503
    %914 = vmatpush.msra.mxu0 %v491
    %915 = vmatpush.msra.mxu0 %v479
    %916 = vmatpush.msra.mxu0 %v467
    %917 = vmatpush.msra.mxu0 %v455
    %918 = vmatpush.msra.mxu0 %v443
    %919 = vmatpush.msra.mxu0 %v431
    %920 = vmatpush.msra.mxu0 %v419
    %921 = vmatpush.msra.mxu0 %v407
    %922 = vmatpush.msra.mxu0 %v395
    %923 = vmatpush.msra.mxu0 %v383
    %924 = vmatmul.f32.gmra.mxu0 %v96
    %v925 = vpop.f32.mrf.mxu0
    %v926 = vadd.f32 %v813, %v925
    %927 = vmatmul.f32.gmra.mxu0 %v99
    %v928 = vpop.f32.mrf.mxu0
    %v929 = vadd.f32 %v816, %v928
    %930 = vmatmul.f32.gmra.mxu0 %v102
    %v931 = vpop.f32.mrf.mxu0
    %v932 = vadd.f32 %v819, %v931
    %933 = vmatmul.f32.gmra.mxu0 %v105
    %v934 = vpop.f32.mrf.mxu0
    %v935 = vadd.f32 %v822, %v934
    %936 = vmatmul.f32.gmra.mxu0 %v108
    %v937 = vpop.f32.mrf.mxu0
    %v938 = vadd.f32 %v825, %v937
    %939 = vmatmul.f32.gmra.mxu0 %v111
    %v940 = vpop.f32.mrf.mxu0
    %v941 = vadd.f32 %v828, %v940
    %942 = vmatmul.f32.gmra.mxu0 %v114
    %v943 = vpop.f32.mrf.mxu0
    %v944 = vadd.f32 %v831, %v943
    %945 = vmatmul.f32.gmra.mxu0 %v117
    %v946 = vpop.f32.mrf.mxu0
    %v947 = vadd.f32 %v834, %v946
    %948 = vmatmul.f32.gmra.mxu0 %v120
    %v949 = vpop.f32.mrf.mxu0
    %v950 = vadd.f32 %v837, %v949
    %951 = vmatmul.f32.gmra.mxu0 %v123
    %v952 = vpop.f32.mrf.mxu0
    %v953 = vadd.f32 %v840, %v952
    %954 = vmatmul.f32.gmra.mxu0 %v126
    %v955 = vpop.f32.mrf.mxu0
    %v956 = vadd.f32 %v843, %v955
    %957 = vmatmul.f32.gmra.mxu0 %v129
    %v958 = vpop.f32.mrf.mxu0
    %v959 = vadd.f32 %v846, %v958
    %960 = vmatmul.f32.gmra.mxu0 %v132
    %v961 = vpop.f32.mrf.mxu0
    %v962 = vadd.f32 %v849, %v961
    %963 = vmatmul.f32.gmra.mxu0 %v135
    %v964 = vpop.f32.mrf.mxu0
    %v965 = vadd.f32 %v852, %v964
    %966 = vmatmul.f32.gmra.mxu0 %v138
    %v967 = vpop.f32.mrf.mxu0
    %v968 = vadd.f32 %v855, %v967
    %969 = vmatmul.f32.gmra.mxu0 %v141
    %v970 = vpop.f32.mrf.mxu0
    %v971 = vadd.f32 %v858, %v970
    %972 = vmatmul.f32.gmra.mxu0 %v144
    %v973 = vpop.f32.mrf.mxu0
    %v974 = vadd.f32 %v861, %v973
    %975 = vmatmul.f32.gmra.mxu0 %v147
    %v976 = vpop.f32.mrf.mxu0
    %v977 = vadd.f32 %v864, %v976
    %978 = vmatmul.f32.gmra.mxu0 %v150
    %v979 = vpop.f32.mrf.mxu0
    %v980 = vadd.f32 %v867, %v979
    %981 = vmatmul.f32.gmra.mxu0 %v153
    %v982 = vpop.f32.mrf.mxu0
    %v983 = vadd.f32 %v870, %v982
    %984 = vmatmul.f32.gmra.mxu0 %v156
    %v985 = vpop.f32.mrf.mxu0
    %v986 = vadd.f32 %v873, %v985
    %987 = vmatmul.f32.gmra.mxu0 %v159
    %v988 = vpop.f32.mrf.mxu0
    %v989 = vadd.f32 %v876, %v988
    %990 = vmatmul.f32.gmra.mxu0 %v162
    %v991 = vpop.f32.mrf.mxu0
    %v992 = vadd.f32 %v879, %v991
    %993 = vmatmul.f32.gmra.mxu0 %v165
    %v994 = vpop.f32.mrf.mxu0
    %v995 = vadd.f32 %v882, %v994
    %996 = vmatmul.f32.gmra.mxu0 %v168
    %v997 = vpop.f32.mrf.mxu0
    %v998 = vadd.f32 %v885, %v997
    %999 = vmatmul.f32.gmra.mxu0 %v171
    %v1000 = vpop.f32.mrf.mxu0
    %v1001 = vadd.f32 %v888, %v1000
    %1002 = vmatmul.f32.gmra.mxu0 %v174
    %v1003 = vpop.f32.mrf.mxu0
    %v1004 = vadd.f32 %v891, %v1003
    %1005 = vmatmul.f32.gmra.mxu0 %v177
    %v1006 = vpop.f32.mrf.mxu0
    %v1007 = vadd.f32 %v894, %v1006
    %1008 = vmatmul.f32.gmra.mxu0 %v180
    %v1009 = vpop.f32.mrf.mxu0
    %v1010 = vadd.f32 %v897, %v1009
    %1011 = vmatmul.f32.gmra.mxu0 %v183
    %v1012 = vpop.f32.mrf.mxu0
    %v1013 = vadd.f32 %v900, %v1012
    %1014 = vmatmul.f32.gmra.mxu0 %v186
    %v1015 = vpop.f32.mrf.mxu0
    %v1016 = vadd.f32 %v903, %v1015
    %1017 = vmatmul.f32.gmra.mxu0 %v189
    %v1018 = vpop.f32.mrf.mxu0
    %v1019 = vadd.f32 %v906, %v1018
    %1020 = vdwg.mxu0
    %1021 = vmatpush.msra.mxu0 %v755
    %1022 = vmatpush.msra.mxu0 %v743
    %1023 = vmatpush.msra.mxu0 %v731
    %1024 = vmatpush.msra.mxu0 %v719
    %1025 = vmatpush.msra.mxu0 %v707
    %1026 = vmatpush.msra.mxu0 %v695
    %1027 = vmatpush.msra.mxu0 %v683
    %1028 = vmatpush.msra.mxu0 %v671
    %1029 = vmatpush.msra.mxu0 %v659
    %1030 = vmatpush.msra.mxu0 %v647
    %1031 = vmatpush.msra.mxu0 %v635
    %1032 = vmatpush.msra.mxu0 %v623
    %1033 = vmatpush.msra.mxu0 %v611
    %1034 = vmatpush.msra.mxu0 %v599
    %1035 = vmatpush.msra.mxu0 %v587
    %1036 = vmatpush.msra.mxu0 %v575
    %1037 = vmatmul.f32.gmra.mxu0 %v97
    %v1038 = vpop.f32.mrf.mxu0
    %v1039 = vadd.f32 %v926, %v1038
    %1040 = vmatmul.f32.gmra.mxu0 %v100
    %v1041 = vpop.f32.mrf.mxu0
    %v1042 = vadd.f32 %v929, %v1041
    %1043 = vmatmul.f32.gmra.mxu0 %v103
    %v1044 = vpop.f32.mrf.mxu0
    %v1045 = vadd.f32 %v932, %v1044
    %1046 = vmatmul.f32.gmra.mxu0 %v106
    %v1047 = vpop.f32.mrf.mxu0
    %v1048 = vadd.f32 %v935, %v1047
    %1049 = vmatmul.f32.gmra.mxu0 %v109
    %v1050 = vpop.f32.mrf.mxu0
    %v1051 = vadd.f32 %v938, %v1050
    %1052 = vmatmul.f32.gmra.mxu0 %v112
    %v1053 = vpop.f32.mrf.mxu0
    %v1054 = vadd.f32 %v941, %v1053
    %1055 = vmatmul.f32.gmra.mxu0 %v115
    %v1056 = vpop.f32.mrf.mxu0
    %v1057 = vadd.f32 %v944, %v1056
    %1058 = vmatmul.f32.gmra.mxu0 %v118
    %v1059 = vpop.f32.mrf.mxu0
    %v1060 = vadd.f32 %v947, %v1059
    %1061 = vmatmul.f32.gmra.mxu0 %v121
    %v1062 = vpop.f32.mrf.mxu0
    %v1063 = vadd.f32 %v950, %v1062
    %1064 = vmatmul.f32.gmra.mxu0 %v124
    %v1065 = vpop.f32.mrf.mxu0
    %v1066 = vadd.f32 %v953, %v1065
    %1067 = vmatmul.f32.gmra.mxu0 %v127
    %v1068 = vpop.f32.mrf.mxu0
    %v1069 = vadd.f32 %v956, %v1068
    %1070 = vmatmul.f32.gmra.mxu0 %v130
    %v1071 = vpop.f32.mrf.mxu0
    %v1072 = vadd.f32 %v959, %v1071
    %1073 = vmatmul.f32.gmra.mxu0 %v133
    %v1074 = vpop.f32.mrf.mxu0
    %v1075 = vadd.f32 %v962, %v1074
    %1076 = vmatmul.f32.gmra.mxu0 %v136
    %v1077 = vpop.f32.mrf.mxu0
    %v1078 = vadd.f32 %v965, %v1077
    %1079 = vmatmul.f32.gmra.mxu0 %v139
    %v1080 = vpop.f32.mrf.mxu0
    %v1081 = vadd.f32 %v968, %v1080
    %1082 = vmatmul.f32.gmra.mxu0 %v142
    %v1083 = vpop.f32.mrf.mxu0
    %v1084 = vadd.f32 %v971, %v1083
    %1085 = vmatmul.f32.gmra.mxu0 %v145
    %v1086 = vpop.f32.mrf.mxu0
    %v1087 = vadd.f32 %v974, %v1086
    %1088 = vmatmul.f32.gmra.mxu0 %v148
    %v1089 = vpop.f32.mrf.mxu0
    %v1090 = vadd.f32 %v977, %v1089
    %1091 = vmatmul.f32.gmra.mxu0 %v151
    %v1092 = vpop.f32.mrf.mxu0
    %v1093 = vadd.f32 %v980, %v1092
    %1094 = vmatmul.f32.gmra.mxu0 %v154
    %v1095 = vpop.f32.mrf.mxu0
    %v1096 = vadd.f32 %v983, %v1095
    %1097 = vmatmul.f32.gmra.mxu0 %v157
    %v1098 = vpop.f32.mrf.mxu0
    %v1099 = vadd.f32 %v986, %v1098
    %1100 = vmatmul.f32.gmra.mxu0 %v160
    %v1101 = vpop.f32.mrf.mxu0
    %v1102 = vadd.f32 %v989, %v1101
    %1103 = vmatmul.f32.gmra.mxu0 %v163
    %v1104 = vpop.f32.mrf.mxu0
    %v1105 = vadd.f32 %v992, %v1104
    %1106 = vmatmul.f32.gmra.mxu0 %v166
    %v1107 = vpop.f32.mrf.mxu0
    %v1108 = vadd.f32 %v995, %v1107
    %1109 = vmatmul.f32.gmra.mxu0 %v169
    %v1110 = vpop.f32.mrf.mxu0
    %v1111 = vadd.f32 %v998, %v1110
    %1112 = vmatmul.f32.gmra.mxu0 %v172
    %v1113 = vpop.f32.mrf.mxu0
    %v1114 = vadd.f32 %v1001, %v1113
    %1115 = vmatmul.f32.gmra.mxu0 %v175
    %v1116 = vpop.f32.mrf.mxu0
    %v1117 = vadd.f32 %v1004, %v1116
    %1118 = vmatmul.f32.gmra.mxu0 %v178
    %v1119 = vpop.f32.mrf.mxu0
    %v1120 = vadd.f32 %v1007, %v1119
    %1121 = vmatmul.f32.gmra.mxu0 %v181
    %v1122 = vpop.f32.mrf.mxu0
    %v1123 = vadd.f32 %v1010, %v1122
    %1124 = vmatmul.f32.gmra.mxu0 %v184
    %v1125 = vpop.f32.mrf.mxu0
    %v1126 = vadd.f32 %v1013, %v1125
    %1127 = vmatmul.f32.gmra.mxu0 %v187
    %v1128 = vpop.f32.mrf.mxu0
    %v1129 = vadd.f32 %v1016, %v1128
    %1130 = vmatmul.f32.gmra.mxu0 %v190
    %v1131 = vpop.f32.mrf.mxu0
    %v1132 = vadd.f32 %v1019, %v1131
    %1133 = vdwg.mxu0
    %1134 = vmatpush.msra.mxu0 %v372
    %1135 = vmatpush.msra.mxu0 %v360
    %1136 = vmatpush.msra.mxu0 %v348
    %1137 = vmatpush.msra.mxu0 %v336
    %1138 = vmatpush.msra.mxu0 %v324
    %1139 = vmatpush.msra.mxu0 %v312
    %1140 = vmatpush.msra.mxu0 %v300
    %1141 = vmatpush.msra.mxu0 %v288
    %1142 = vmatpush.msra.mxu0 %v276
    %1143 = vmatpush.msra.mxu0 %v264
    %1144 = vmatpush.msra.mxu0 %v252
    %1145 = vmatpush.msra.mxu0 %v240
    %1146 = vmatpush.msra.mxu0 %v228
    %1147 = vmatpush.msra.mxu0 %v216
    %1148 = vmatpush.msra.mxu0 %v204
    %1149 = vmatpush.msra.mxu0 %v192
    %1150 = vmatmul.f32.gmra.mxu0 %v95
    %v1151 = vpop.f32.mrf.mxu0
    %v1152 = vadd.f32 %v772, %v1151
    %1153 = vmatmul.f32.gmra.mxu0 %v98
    %v1154 = vpop.f32.mrf.mxu0
    %v1155 = vadd.f32 %v772, %v1154
    %1156 = vmatmul.f32.gmra.mxu0 %v101
    %v1157 = vpop.f32.mrf.mxu0
    %v1158 = vadd.f32 %v772, %v1157
    %1159 = vmatmul.f32.gmra.mxu0 %v104
    %v1160 = vpop.f32.mrf.mxu0
    %v1161 = vadd.f32 %v772, %v1160
    %1162 = vmatmul.f32.gmra.mxu0 %v107
    %v1163 = vpop.f32.mrf.mxu0
    %v1164 = vadd.f32 %v772, %v1163
    %1165 = vmatmul.f32.gmra.mxu0 %v110
    %v1166 = vpop.f32.mrf.mxu0
    %v1167 = vadd.f32 %v772, %v1166
    %1168 = vmatmul.f32.gmra.mxu0 %v113
    %v1169 = vpop.f32.mrf.mxu0
    %v1170 = vadd.f32 %v772, %v1169
    %1171 = vmatmul.f32.gmra.mxu0 %v116
    %v1172 = vpop.f32.mrf.mxu0
    %v1173 = vadd.f32 %v772, %v1172
    %1174 = vmatmul.f32.gmra.mxu0 %v119
    %v1175 = vpop.f32.mrf.mxu0
    %v1176 = vadd.f32 %v772, %v1175
    %1177 = vmatmul.f32.gmra.mxu0 %v122
    %v1178 = vpop.f32.mrf.mxu0
    %v1179 = vadd.f32 %v772, %v1178
    %1180 = vmatmul.f32.gmra.mxu0 %v125
    %v1181 = vpop.f32.mrf.mxu0
    %v1182 = vadd.f32 %v772, %v1181
    %1183 = vmatmul.f32.gmra.mxu0 %v128
    %v1184 = vpop.f32.mrf.mxu0
    %v1185 = vadd.f32 %v772, %v1184
    %1186 = vmatmul.f32.gmra.mxu0 %v131
    %v1187 = vpop.f32.mrf.mxu0
    %v1188 = vadd.f32 %v772, %v1187
    %1189 = vmatmul.f32.gmra.mxu0 %v134
    %v1190 = vpop.f32.mrf.mxu0
    %v1191 = vadd.f32 %v772, %v1190
    %1192 = vmatmul.f32.gmra.mxu0 %v137
    %v1193 = vpop.f32.mrf.mxu0
    %v1194 = vadd.f32 %v772, %v1193
    %1195 = vmatmul.f32.gmra.mxu0 %v140
    %v1196 = vpop.f32.mrf.mxu0
    %v1197 = vadd.f32 %v772, %v1196
    %1198 = vmatmul.f32.gmra.mxu0 %v143
    %v1199 = vpop.f32.mrf.mxu0
    %v1200 = vadd.f32 %v772, %v1199
    %1201 = vmatmul.f32.gmra.mxu0 %v146
    %v1202 = vpop.f32.mrf.mxu0
    %v1203 = vadd.f32 %v772, %v1202
    %1204 = vmatmul.f32.gmra.mxu0 %v149
    %v1205 = vpop.f32.mrf.mxu0
    %v1206 = vadd.f32 %v772, %v1205
    %1207 = vmatmul.f32.gmra.mxu0 %v152
    %v1208 = vpop.f32.mrf.mxu0
    %v1209 = vadd.f32 %v772, %v1208
    %1210 = vmatmul.f32.gmra.mxu0 %v155
    %v1211 = vpop.f32.mrf.mxu0
    %v1212 = vadd.f32 %v772, %v1211
    %1213 = vmatmul.f32.gmra.mxu0 %v158
    %v1214 = vpop.f32.mrf.mxu0
    %v1215 = vadd.f32 %v772, %v1214
    %1216 = vmatmul.f32.gmra.mxu0 %v161
    %v1217 = vpop.f32.mrf.mxu0
    %v1218 = vadd.f32 %v772, %v1217
    %1219 = vmatmul.f32.gmra.mxu0 %v164
    %v1220 = vpop.f32.mrf.mxu0
    %v1221 = vadd.f32 %v772, %v1220
    %1222 = vmatmul.f32.gmra.mxu0 %v167
    %v1223 = vpop.f32.mrf.mxu0
    %v1224 = vadd.f32 %v772, %v1223
    %1225 = vmatmul.f32.gmra.mxu0 %v170
    %v1226 = vpop.f32.mrf.mxu0
    %v1227 = vadd.f32 %v772, %v1226
    %1228 = vmatmul.f32.gmra.mxu0 %v173
    %v1229 = vpop.f32.mrf.mxu0
    %v1230 = vadd.f32 %v772, %v1229
    %1231 = vmatmul.f32.gmra.mxu0 %v176
    %v1232 = vpop.f32.mrf.mxu0
    %v1233 = vadd.f32 %v772, %v1232
    %1234 = vmatmul.f32.gmra.mxu0 %v179
    %v1235 = vpop.f32.mrf.mxu0
    %v1236 = vadd.f32 %v772, %v1235
    %1237 = vmatmul.f32.gmra.mxu0 %v182
    %v1238 = vpop.f32.mrf.mxu0
    %v1239 = vadd.f32 %v772, %v1238
    %1240 = vmatmul.f32.gmra.mxu0 %v185
    %v1241 = vpop.f32.mrf.mxu0
    %v1242 = vadd.f32 %v772, %v1241
    %1243 = vmatmul.f32.gmra.mxu0 %v188
    %v1244 = vpop.f32.mrf.mxu0
    %v1245 = vadd.f32 %v772, %v1244
    %1246 = vdwg.mxu0
    %1247 = vmatpush.msra.mxu0 %v564
    %1248 = vmatpush.msra.mxu0 %v552
    %1249 = vmatpush.msra.mxu0 %v540
    %1250 = vmatpush.msra.mxu0 %v528
    %1251 = vmatpush.msra.mxu0 %v516
    %1252 = vmatpush.msra.mxu0 %v504
    %1253 = vmatpush.msra.mxu0 %v492
    %1254 = vmatpush.msra.mxu0 %v480
    %1255 = vmatpush.msra.mxu0 %v468
    %1256 = vmatpush.msra.mxu0 %v456
    %1257 = vmatpush.msra.mxu0 %v444
    %1258 = vmatpush.msra.mxu0 %v432
    %1259 = vmatpush.msra.mxu0 %v420
    %1260 = vmatpush.msra.mxu0 %v408
    %1261 = vmatpush.msra.mxu0 %v396
    %1262 = vmatpush.msra.mxu0 %v384
    %1263 = vmatmul.f32.gmra.mxu0 %v96
    %v1264 = vpop.f32.mrf.mxu0
    %v1265 = vadd.f32 %v1152, %v1264
    %1266 = vmatmul.f32.gmra.mxu0 %v99
    %v1267 = vpop.f32.mrf.mxu0
    %v1268 = vadd.f32 %v1155, %v1267
    %1269 = vmatmul.f32.gmra.mxu0 %v102
    %v1270 = vpop.f32.mrf.mxu0
    %v1271 = vadd.f32 %v1158, %v1270
    %1272 = vmatmul.f32.gmra.mxu0 %v105
    %v1273 = vpop.f32.mrf.mxu0
    %v1274 = vadd.f32 %v1161, %v1273
    %1275 = vmatmul.f32.gmra.mxu0 %v108
    %v1276 = vpop.f32.mrf.mxu0
    %v1277 = vadd.f32 %v1164, %v1276
    %1278 = vmatmul.f32.gmra.mxu0 %v111
    %v1279 = vpop.f32.mrf.mxu0
    %v1280 = vadd.f32 %v1167, %v1279
    %1281 = vmatmul.f32.gmra.mxu0 %v114
    %v1282 = vpop.f32.mrf.mxu0
    %v1283 = vadd.f32 %v1170, %v1282
    %1284 = vmatmul.f32.gmra.mxu0 %v117
    %v1285 = vpop.f32.mrf.mxu0
    %v1286 = vadd.f32 %v1173, %v1285
    %1287 = vmatmul.f32.gmra.mxu0 %v120
    %v1288 = vpop.f32.mrf.mxu0
    %v1289 = vadd.f32 %v1176, %v1288
    %1290 = vmatmul.f32.gmra.mxu0 %v123
    %v1291 = vpop.f32.mrf.mxu0
    %v1292 = vadd.f32 %v1179, %v1291
    %1293 = vmatmul.f32.gmra.mxu0 %v126
    %v1294 = vpop.f32.mrf.mxu0
    %v1295 = vadd.f32 %v1182, %v1294
    %1296 = vmatmul.f32.gmra.mxu0 %v129
    %v1297 = vpop.f32.mrf.mxu0
    %v1298 = vadd.f32 %v1185, %v1297
    %1299 = vmatmul.f32.gmra.mxu0 %v132
    %v1300 = vpop.f32.mrf.mxu0
    %v1301 = vadd.f32 %v1188, %v1300
    %1302 = vmatmul.f32.gmra.mxu0 %v135
    %v1303 = vpop.f32.mrf.mxu0
    %v1304 = vadd.f32 %v1191, %v1303
    %1305 = vmatmul.f32.gmra.mxu0 %v138
    %v1306 = vpop.f32.mrf.mxu0
    %v1307 = vadd.f32 %v1194, %v1306
    %1308 = vmatmul.f32.gmra.mxu0 %v141
    %v1309 = vpop.f32.mrf.mxu0
    %v1310 = vadd.f32 %v1197, %v1309
    %1311 = vmatmul.f32.gmra.mxu0 %v144
    %v1312 = vpop.f32.mrf.mxu0
    %v1313 = vadd.f32 %v1200, %v1312
    %1314 = vmatmul.f32.gmra.mxu0 %v147
    %v1315 = vpop.f32.mrf.mxu0
    %v1316 = vadd.f32 %v1203, %v1315
    %1317 = vmatmul.f32.gmra.mxu0 %v150
    %v1318 = vpop.f32.mrf.mxu0
    %v1319 = vadd.f32 %v1206, %v1318
    %1320 = vmatmul.f32.gmra.mxu0 %v153
    %v1321 = vpop.f32.mrf.mxu0
    %v1322 = vadd.f32 %v1209, %v1321
    %1323 = vmatmul.f32.gmra.mxu0 %v156
    %v1324 = vpop.f32.mrf.mxu0
    %v1325 = vadd.f32 %v1212, %v1324
    %1326 = vmatmul.f32.gmra.mxu0 %v159
    %v1327 = vpop.f32.mrf.mxu0
    %v1328 = vadd.f32 %v1215, %v1327
    %1329 = vmatmul.f32.gmra.mxu0 %v162
    %v1330 = vpop.f32.mrf.mxu0
    %v1331 = vadd.f32 %v1218, %v1330
    %1332 = vmatmul.f32.gmra.mxu0 %v165
    %v1333 = vpop.f32.mrf.mxu0
    %v1334 = vadd.f32 %v1221, %v1333
    %1335 = vmatmul.f32.gmra.mxu0 %v168
    %v1336 = vpop.f32.mrf.mxu0
    %v1337 = vadd.f32 %v1224, %v1336
    %1338 = vmatmul.f32.gmra.mxu0 %v171
    %v1339 = vpop.f32.mrf.mxu0
    %v1340 = vadd.f32 %v1227, %v1339
    %1341 = vmatmul.f32.gmra.mxu0 %v174
    %v1342 = vpop.f32.mrf.mxu0
    %v1343 = vadd.f32 %v1230, %v1342
    %1344 = vmatmul.f32.gmra.mxu0 %v177
    %v1345 = vpop.f32.mrf.mxu0
    %v1346 = vadd.f32 %v1233, %v1345
    %1347 = vmatmul.f32.gmra.mxu0 %v180
    %v1348 = vpop.f32.mrf.mxu0
    %v1349 = vadd.f32 %v1236, %v1348
    %1350 = vmatmul.f32.gmra.mxu0 %v183
    %v1351 = vpop.f32.mrf.mxu0
    %v1352 = vadd.f32 %v1239, %v1351
    %1353 = vmatmul.f32.gmra.mxu0 %v186
    %v1354 = vpop.f32.mrf.mxu0
    %v1355 = vadd.f32 %v1242, %v1354
    %1356 = vmatmul.f32.gmra.mxu0 %v189
    %v1357 = vpop.f32.mrf.mxu0
    %v1358 = vadd.f32 %v1245, %v1357
    %1359 = vdwg.mxu0
    %1360 = vmatpush.msra.mxu0 %v756
    %1361 = vmatpush.msra.mxu0 %v744
    %1362 = vmatpush.msra.mxu0 %v732
    %1363 = vmatpush.msra.mxu0 %v720
    %1364 = vmatpush.msra.mxu0 %v708
    %1365 = vmatpush.msra.mxu0 %v696
    %1366 = vmatpush.msra.mxu0 %v684
    %1367 = vmatpush.msra.mxu0 %v672
    %1368 = vmatpush.msra.mxu0 %v660
    %1369 = vmatpush.msra.mxu0 %v648
    %1370 = vmatpush.msra.mxu0 %v636
    %1371 = vmatpush.msra.mxu0 %v624
    %1372 = vmatpush.msra.mxu0 %v612
    %1373 = vmatpush.msra.mxu0 %v600
    %1374 = vmatpush.msra.mxu0 %v588
    %1375 = vmatpush.msra.mxu0 %v576
    %1376 = vmatmul.f32.gmra.mxu0 %v97
    %v1377 = vpop.f32.mrf.mxu0
    %v1378 = vadd.f32 %v1265, %v1377
    %1379 = vmatmul.f32.gmra.mxu0 %v100
    %v1380 = vpop.f32.mrf.mxu0
    %v1381 = vadd.f32 %v1268, %v1380
    %1382 = vmatmul.f32.gmra.mxu0 %v103
    %v1383 = vpop.f32.mrf.mxu0
    %v1384 = vadd.f32 %v1271, %v1383
    %1385 = vmatmul.f32.gmra.mxu0 %v106
    %v1386 = vpop.f32.mrf.mxu0
    %v1387 = vadd.f32 %v1274, %v1386
    %1388 = vmatmul.f32.gmra.mxu0 %v109
    %v1389 = vpop.f32.mrf.mxu0
    %v1390 = vadd.f32 %v1277, %v1389
    %1391 = vmatmul.f32.gmra.mxu0 %v112
    %v1392 = vpop.f32.mrf.mxu0
    %v1393 = vadd.f32 %v1280, %v1392
    %1394 = vmatmul.f32.gmra.mxu0 %v115
    %v1395 = vpop.f32.mrf.mxu0
    %v1396 = vadd.f32 %v1283, %v1395
    %1397 = vmatmul.f32.gmra.mxu0 %v118
    %v1398 = vpop.f32.mrf.mxu0
    %v1399 = vadd.f32 %v1286, %v1398
    %1400 = vmatmul.f32.gmra.mxu0 %v121
    %v1401 = vpop.f32.mrf.mxu0
    %v1402 = vadd.f32 %v1289, %v1401
    %1403 = vmatmul.f32.gmra.mxu0 %v124
    %v1404 = vpop.f32.mrf.mxu0
    %v1405 = vadd.f32 %v1292, %v1404
    %1406 = vmatmul.f32.gmra.mxu0 %v127
    %v1407 = vpop.f32.mrf.mxu0
    %v1408 = vadd.f32 %v1295, %v1407
    %1409 = vmatmul.f32.gmra.mxu0 %v130
    %v1410 = vpop.f32.mrf.mxu0
    %v1411 = vadd.f32 %v1298, %v1410
    %1412 = vmatmul.f32.gmra.mxu0 %v133
    %v1413 = vpop.f32.mrf.mxu0
    %v1414 = vadd.f32 %v1301, %v1413
    %1415 = vmatmul.f32.gmra.mxu0 %v136
    %v1416 = vpop.f32.mrf.mxu0
    %v1417 = vadd.f32 %v1304, %v1416
    %1418 = vmatmul.f32.gmra.mxu0 %v139
    %v1419 = vpop.f32.mrf.mxu0
    %v1420 = vadd.f32 %v1307, %v1419
    %1421 = vmatmul.f32.gmra.mxu0 %v142
    %v1422 = vpop.f32.mrf.mxu0
    %v1423 = vadd.f32 %v1310, %v1422
    %1424 = vmatmul.f32.gmra.mxu0 %v145
    %v1425 = vpop.f32.mrf.mxu0
    %v1426 = vadd.f32 %v1313, %v1425
    %1427 = vmatmul.f32.gmra.mxu0 %v148
    %v1428 = vpop.f32.mrf.mxu0
    %v1429 = vadd.f32 %v1316, %v1428
    %1430 = vmatmul.f32.gmra.mxu0 %v151
    %v1431 = vpop.f32.mrf.mxu0
    %v1432 = vadd.f32 %v1319, %v1431
    %1433 = vmatmul.f32.gmra.mxu0 %v154
    %v1434 = vpop.f32.mrf.mxu0
    %v1435 = vadd.f32 %v1322, %v1434
    %1436 = vmatmul.f32.gmra.mxu0 %v157
    %v1437 = vpop.f32.mrf.mxu0
    %v1438 = vadd.f32 %v1325, %v1437
    %1439 = vmatmul.f32.gmra.mxu0 %v160
    %v1440 = vpop.f32.mrf.mxu0
    %v1441 = vadd.f32 %v1328, %v1440
    %1442 = vmatmul.f32.gmra.mxu0 %v163
    %v1443 = vpop.f32.mrf.mxu0
    %v1444 = vadd.f32 %v1331, %v1443
    %1445 = vmatmul.f32.gmra.mxu0 %v166
    %v1446 = vpop.f32.mrf.mxu0
    %v1447 = vadd.f32 %v1334, %v1446
    %1448 = vmatmul.f32.gmra.mxu0 %v169
    %v1449 = vpop.f32.mrf.mxu0
    %v1450 = vadd.f32 %v1337, %v1449
    %1451 = vmatmul.f32.gmra.mxu0 %v172
    %v1452 = vpop.f32.mrf.mxu0
    %v1453 = vadd.f32 %v1340, %v1452
    %1454 = vmatmul.f32.gmra.mxu0 %v175
    %v1455 = vpop.f32.mrf.mxu0
    %v1456 = vadd.f32 %v1343, %v1455
    %1457 = vmatmul.f32.gmra.mxu0 %v178
    %v1458 = vpop.f32.mrf.mxu0
    %v1459 = vadd.f32 %v1346, %v1458
    %1460 = vmatmul.f32.gmra.mxu0 %v181
    %v1461 = vpop.f32.mrf.mxu0
    %v1462 = vadd.f32 %v1349, %v1461
    %1463 = vmatmul.f32.gmra.mxu0 %v184
    %v1464 = vpop.f32.mrf.mxu0
    %v1465 = vadd.f32 %v1352, %v1464
    %1466 = vmatmul.f32.gmra.mxu0 %v187
    %v1467 = vpop.f32.mrf.mxu0
    %v1468 = vadd.f32 %v1355, %v1467
    %1469 = vmatmul.f32.gmra.mxu0 %v190
    %v1470 = vpop.f32.mrf.mxu0
    %v1471 = vadd.f32 %v1358, %v1470
    %1472 = vdwg.mxu0
    %1473 = vmatpush.msra.mxu0 %v373
    %1474 = vmatpush.msra.mxu0 %v361
    %1475 = vmatpush.msra.mxu0 %v349
    %1476 = vmatpush.msra.mxu0 %v337
    %1477 = vmatpush.msra.mxu0 %v325
    %1478 = vmatpush.msra.mxu0 %v313
    %1479 = vmatpush.msra.mxu0 %v301
    %1480 = vmatpush.msra.mxu0 %v289
    %1481 = vmatpush.msra.mxu0 %v277
    %1482 = vmatpush.msra.mxu0 %v265
    %1483 = vmatpush.msra.mxu0 %v253
    %1484 = vmatpush.msra.mxu0 %v241
    %1485 = vmatpush.msra.mxu0 %v229
    %1486 = vmatpush.msra.mxu0 %v217
    %1487 = vmatpush.msra.mxu0 %v205
    %1488 = vmatpush.msra.mxu0 %v193
    %1489 = vmatmul.f32.gmra.mxu0 %v95
    %v1490 = vpop.f32.mrf.mxu0
    %v1491 = vadd.f32 %v773, %v1490
    %1492 = vmatmul.f32.gmra.mxu0 %v98
    %v1493 = vpop.f32.mrf.mxu0
    %v1494 = vadd.f32 %v773, %v1493
    %1495 = vmatmul.f32.gmra.mxu0 %v101
    %v1496 = vpop.f32.mrf.mxu0
    %v1497 = vadd.f32 %v773, %v1496
    %1498 = vmatmul.f32.gmra.mxu0 %v104
    %v1499 = vpop.f32.mrf.mxu0
    %v1500 = vadd.f32 %v773, %v1499
    %1501 = vmatmul.f32.gmra.mxu0 %v107
    %v1502 = vpop.f32.mrf.mxu0
    %v1503 = vadd.f32 %v773, %v1502
    %1504 = vmatmul.f32.gmra.mxu0 %v110
    %v1505 = vpop.f32.mrf.mxu0
    %v1506 = vadd.f32 %v773, %v1505
    %1507 = vmatmul.f32.gmra.mxu0 %v113
    %v1508 = vpop.f32.mrf.mxu0
    %v1509 = vadd.f32 %v773, %v1508
    %1510 = vmatmul.f32.gmra.mxu0 %v116
    %v1511 = vpop.f32.mrf.mxu0
    %v1512 = vadd.f32 %v773, %v1511
    %1513 = vmatmul.f32.gmra.mxu0 %v119
    %v1514 = vpop.f32.mrf.mxu0
    %v1515 = vadd.f32 %v773, %v1514
    %1516 = vmatmul.f32.gmra.mxu0 %v122
    %v1517 = vpop.f32.mrf.mxu0
    %v1518 = vadd.f32 %v773, %v1517
    %1519 = vmatmul.f32.gmra.mxu0 %v125
    %v1520 = vpop.f32.mrf.mxu0
    %v1521 = vadd.f32 %v773, %v1520
    %1522 = vmatmul.f32.gmra.mxu0 %v128
    %v1523 = vpop.f32.mrf.mxu0
    %v1524 = vadd.f32 %v773, %v1523
    %1525 = vmatmul.f32.gmra.mxu0 %v131
    %v1526 = vpop.f32.mrf.mxu0
    %v1527 = vadd.f32 %v773, %v1526
    %1528 = vmatmul.f32.gmra.mxu0 %v134
    %v1529 = vpop.f32.mrf.mxu0
    %v1530 = vadd.f32 %v773, %v1529
    %1531 = vmatmul.f32.gmra.mxu0 %v137
    %v1532 = vpop.f32.mrf.mxu0
    %v1533 = vadd.f32 %v773, %v1532
    %1534 = vmatmul.f32.gmra.mxu0 %v140
    %v1535 = vpop.f32.mrf.mxu0
    %v1536 = vadd.f32 %v773, %v1535
    %1537 = vmatmul.f32.gmra.mxu0 %v143
    %v1538 = vpop.f32.mrf.mxu0
    %v1539 = vadd.f32 %v773, %v1538
    %1540 = vmatmul.f32.gmra.mxu0 %v146
    %v1541 = vpop.f32.mrf.mxu0
    %v1542 = vadd.f32 %v773, %v1541
    %1543 = vmatmul.f32.gmra.mxu0 %v149
    %v1544 = vpop.f32.mrf.mxu0
    %v1545 = vadd.f32 %v773, %v1544
    %1546 = vmatmul.f32.gmra.mxu0 %v152
    %v1547 = vpop.f32.mrf.mxu0
    %v1548 = vadd.f32 %v773, %v1547
    %1549 = vmatmul.f32.gmra.mxu0 %v155
    %v1550 = vpop.f32.mrf.mxu0
    %v1551 = vadd.f32 %v773, %v1550
    %1552 = vmatmul.f32.gmra.mxu0 %v158
    %v1553 = vpop.f32.mrf.mxu0
    %v1554 = vadd.f32 %v773, %v1553
    %1555 = vmatmul.f32.gmra.mxu0 %v161
    %v1556 = vpop.f32.mrf.mxu0
    %v1557 = vadd.f32 %v773, %v1556
    %1558 = vmatmul.f32.gmra.mxu0 %v164
    %v1559 = vpop.f32.mrf.mxu0
    %v1560 = vadd.f32 %v773, %v1559
    %1561 = vmatmul.f32.gmra.mxu0 %v167
    %v1562 = vpop.f32.mrf.mxu0
    %v1563 = vadd.f32 %v773, %v1562
    %1564 = vmatmul.f32.gmra.mxu0 %v170
    %v1565 = vpop.f32.mrf.mxu0
    %v1566 = vadd.f32 %v773, %v1565
    %1567 = vmatmul.f32.gmra.mxu0 %v173
    %v1568 = vpop.f32.mrf.mxu0
    %v1569 = vadd.f32 %v773, %v1568
    %1570 = vmatmul.f32.gmra.mxu0 %v176
    %v1571 = vpop.f32.mrf.mxu0
    %v1572 = vadd.f32 %v773, %v1571
    %1573 = vmatmul.f32.gmra.mxu0 %v179
    %v1574 = vpop.f32.mrf.mxu0
    %v1575 = vadd.f32 %v773, %v1574
    %1576 = vmatmul.f32.gmra.mxu0 %v182
    %v1577 = vpop.f32.mrf.mxu0
    %v1578 = vadd.f32 %v773, %v1577
    %1579 = vmatmul.f32.gmra.mxu0 %v185
    %v1580 = vpop.f32.mrf.mxu0
    %v1581 = vadd.f32 %v773, %v1580
    %1582 = vmatmul.f32.gmra.mxu0 %v188
    %v1583 = vpop.f32.mrf.mxu0
    %v1584 = vadd.f32 %v773, %v1583
    %1585 = vdwg.mxu0
    %1586 = vmatpush.msra.mxu0 %v565
    %1587 = vmatpush.msra.mxu0 %v553
    %1588 = vmatpush.msra.mxu0 %v541
    %1589 = vmatpush.msra.mxu0 %v529
    %1590 = vmatpush.msra.mxu0 %v517
    %1591 = vmatpush.msra.mxu0 %v505
    %1592 = vmatpush.msra.mxu0 %v493
    %1593 = vmatpush.msra.mxu0 %v481
    %1594 = vmatpush.msra.mxu0 %v469
    %1595 = vmatpush.msra.mxu0 %v457
    %1596 = vmatpush.msra.mxu0 %v445
    %1597 = vmatpush.msra.mxu0 %v433
    %1598 = vmatpush.msra.mxu0 %v421
    %1599 = vmatpush.msra.mxu0 %v409
    %1600 = vmatpush.msra.mxu0 %v397
    %1601 = vmatpush.msra.mxu0 %v385
    %1602 = vmatmul.f32.gmra.mxu0 %v96
    %v1603 = vpop.f32.mrf.mxu0
    %v1604 = vadd.f32 %v1491, %v1603
    %1605 = vmatmul.f32.gmra.mxu0 %v99
    %v1606 = vpop.f32.mrf.mxu0
    %v1607 = vadd.f32 %v1494, %v1606
    %1608 = vmatmul.f32.gmra.mxu0 %v102
    %v1609 = vpop.f32.mrf.mxu0
    %v1610 = vadd.f32 %v1497, %v1609
    %1611 = vmatmul.f32.gmra.mxu0 %v105
    %v1612 = vpop.f32.mrf.mxu0
    %v1613 = vadd.f32 %v1500, %v1612
    %1614 = vmatmul.f32.gmra.mxu0 %v108
    %v1615 = vpop.f32.mrf.mxu0
    %v1616 = vadd.f32 %v1503, %v1615
    %1617 = vmatmul.f32.gmra.mxu0 %v111
    %v1618 = vpop.f32.mrf.mxu0
    %v1619 = vadd.f32 %v1506, %v1618
    %1620 = vmatmul.f32.gmra.mxu0 %v114
    %v1621 = vpop.f32.mrf.mxu0
    %v1622 = vadd.f32 %v1509, %v1621
    %1623 = vmatmul.f32.gmra.mxu0 %v117
    %v1624 = vpop.f32.mrf.mxu0
    %v1625 = vadd.f32 %v1512, %v1624
    %1626 = vmatmul.f32.gmra.mxu0 %v120
    %v1627 = vpop.f32.mrf.mxu0
    %v1628 = vadd.f32 %v1515, %v1627
    %1629 = vmatmul.f32.gmra.mxu0 %v123
    %v1630 = vpop.f32.mrf.mxu0
    %v1631 = vadd.f32 %v1518, %v1630
    %1632 = vmatmul.f32.gmra.mxu0 %v126
    %v1633 = vpop.f32.mrf.mxu0
    %v1634 = vadd.f32 %v1521, %v1633
    %1635 = vmatmul.f32.gmra.mxu0 %v129
    %v1636 = vpop.f32.mrf.mxu0
    %v1637 = vadd.f32 %v1524, %v1636
    %1638 = vmatmul.f32.gmra.mxu0 %v132
    %v1639 = vpop.f32.mrf.mxu0
    %v1640 = vadd.f32 %v1527, %v1639
    %1641 = vmatmul.f32.gmra.mxu0 %v135
    %v1642 = vpop.f32.mrf.mxu0
    %v1643 = vadd.f32 %v1530, %v1642
    %1644 = vmatmul.f32.gmra.mxu0 %v138
    %v1645 = vpop.f32.mrf.mxu0
    %v1646 = vadd.f32 %v1533, %v1645
    %1647 = vmatmul.f32.gmra.mxu0 %v141
    %v1648 = vpop.f32.mrf.mxu0
    %v1649 = vadd.f32 %v1536, %v1648
    %1650 = vmatmul.f32.gmra.mxu0 %v144
    %v1651 = vpop.f32.mrf.mxu0
    %v1652 = vadd.f32 %v1539, %v1651
    %1653 = vmatmul.f32.gmra.mxu0 %v147
    %v1654 = vpop.f32.mrf.mxu0
    %v1655 = vadd.f32 %v1542, %v1654
    %1656 = vmatmul.f32.gmra.mxu0 %v150
    %v1657 = vpop.f32.mrf.mxu0
    %v1658 = vadd.f32 %v1545, %v1657
    %1659 = vmatmul.f32.gmra.mxu0 %v153
    %v1660 = vpop.f32.mrf.mxu0
    %v1661 = vadd.f32 %v1548, %v1660
    %1662 = vmatmul.f32.gmra.mxu0 %v156
    %v1663 = vpop.f32.mrf.mxu0
    %v1664 = vadd.f32 %v1551, %v1663
    %1665 = vmatmul.f32.gmra.mxu0 %v159
    %v1666 = vpop.f32.mrf.mxu0
    %v1667 = vadd.f32 %v1554, %v1666
    %1668 = vmatmul.f32.gmra.mxu0 %v162
    %v1669 = vpop.f32.mrf.mxu0
    %v1670 = vadd.f32 %v1557, %v1669
    %1671 = vmatmul.f32.gmra.mxu0 %v165
    %v1672 = vpop.f32.mrf.mxu0
    %v1673 = vadd.f32 %v1560, %v1672
    %1674 = vmatmul.f32.gmra.mxu0 %v168
    %v1675 = vpop.f32.mrf.mxu0
    %v1676 = vadd.f32 %v1563, %v1675
    %1677 = vmatmul.f32.gmra.mxu0 %v171
    %v1678 = vpop.f32.mrf.mxu0
    %v1679 = vadd.f32 %v1566, %v1678
    %1680 = vmatmul.f32.gmra.mxu0 %v174
    %v1681 = vpop.f32.mrf.mxu0
    %v1682 = vadd.f32 %v1569, %v1681
    %1683 = vmatmul.f32.gmra.mxu0 %v177
    %v1684 = vpop.f32.mrf.mxu0
    %v1685 = vadd.f32 %v1572, %v1684
    %1686 = vmatmul.f32.gmra.mxu0 %v180
    %v1687 = vpop.f32.mrf.mxu0
    %v1688 = vadd.f32 %v1575, %v1687
    %1689 = vmatmul.f32.gmra.mxu0 %v183
    %v1690 = vpop.f32.mrf.mxu0
    %v1691 = vadd.f32 %v1578, %v1690
    %1692 = vmatmul.f32.gmra.mxu0 %v186
    %v1693 = vpop.f32.mrf.mxu0
    %v1694 = vadd.f32 %v1581, %v1693
    %1695 = vmatmul.f32.gmra.mxu0 %v189
    %v1696 = vpop.f32.mrf.mxu0
    %v1697 = vadd.f32 %v1584, %v1696
    %1698 = vdwg.mxu0
    %1699 = vmatpush.msra.mxu0 %v757
    %1700 = vmatpush.msra.mxu0 %v745
    %1701 = vmatpush.msra.mxu0 %v733
    %1702 = vmatpush.msra.mxu0 %v721
    %1703 = vmatpush.msra.mxu0 %v709
    %1704 = vmatpush.msra.mxu0 %v697
    %1705 = vmatpush.msra.mxu0 %v685
    %1706 = vmatpush.msra.mxu0 %v673
    %1707 = vmatpush.msra.mxu0 %v661
    %1708 = vmatpush.msra.mxu0 %v649
    %1709 = vmatpush.msra.mxu0 %v637
    %1710 = vmatpush.msra.mxu0 %v625
    %1711 = vmatpush.msra.mxu0 %v613
    %1712 = vmatpush.msra.mxu0 %v601
    %1713 = vmatpush.msra.mxu0 %v589
    %1714 = vmatpush.msra.mxu0 %v577
    %1715 = vmatmul.f32.gmra.mxu0 %v97
    %v1716 = vpop.f32.mrf.mxu0
    %v1717 = vadd.f32 %v1604, %v1716
    %1718 = vmatmul.f32.gmra.mxu0 %v100
    %v1719 = vpop.f32.mrf.mxu0
    %v1720 = vadd.f32 %v1607, %v1719
    %1721 = vmatmul.f32.gmra.mxu0 %v103
    %v1722 = vpop.f32.mrf.mxu0
    %v1723 = vadd.f32 %v1610, %v1722
    %1724 = vmatmul.f32.gmra.mxu0 %v106
    %v1725 = vpop.f32.mrf.mxu0
    %v1726 = vadd.f32 %v1613, %v1725
    %1727 = vmatmul.f32.gmra.mxu0 %v109
    %v1728 = vpop.f32.mrf.mxu0
    %v1729 = vadd.f32 %v1616, %v1728
    %1730 = vmatmul.f32.gmra.mxu0 %v112
    %v1731 = vpop.f32.mrf.mxu0
    %v1732 = vadd.f32 %v1619, %v1731
    %1733 = vmatmul.f32.gmra.mxu0 %v115
    %v1734 = vpop.f32.mrf.mxu0
    %v1735 = vadd.f32 %v1622, %v1734
    %1736 = vmatmul.f32.gmra.mxu0 %v118
    %v1737 = vpop.f32.mrf.mxu0
    %v1738 = vadd.f32 %v1625, %v1737
    %1739 = vmatmul.f32.gmra.mxu0 %v121
    %v1740 = vpop.f32.mrf.mxu0
    %v1741 = vadd.f32 %v1628, %v1740
    %1742 = vmatmul.f32.gmra.mxu0 %v124
    %v1743 = vpop.f32.mrf.mxu0
    %v1744 = vadd.f32 %v1631, %v1743
    %1745 = vmatmul.f32.gmra.mxu0 %v127
    %v1746 = vpop.f32.mrf.mxu0
    %v1747 = vadd.f32 %v1634, %v1746
    %1748 = vmatmul.f32.gmra.mxu0 %v130
    %v1749 = vpop.f32.mrf.mxu0
    %v1750 = vadd.f32 %v1637, %v1749
    %1751 = vmatmul.f32.gmra.mxu0 %v133
    %v1752 = vpop.f32.mrf.mxu0
    %v1753 = vadd.f32 %v1640, %v1752
    %1754 = vmatmul.f32.gmra.mxu0 %v136
    %v1755 = vpop.f32.mrf.mxu0
    %v1756 = vadd.f32 %v1643, %v1755
    %1757 = vmatmul.f32.gmra.mxu0 %v139
    %v1758 = vpop.f32.mrf.mxu0
    %v1759 = vadd.f32 %v1646, %v1758
    %1760 = vmatmul.f32.gmra.mxu0 %v142
    %v1761 = vpop.f32.mrf.mxu0
    %v1762 = vadd.f32 %v1649, %v1761
    %1763 = vmatmul.f32.gmra.mxu0 %v145
    %v1764 = vpop.f32.mrf.mxu0
    %v1765 = vadd.f32 %v1652, %v1764
    %1766 = vmatmul.f32.gmra.mxu0 %v148
    %v1767 = vpop.f32.mrf.mxu0
    %v1768 = vadd.f32 %v1655, %v1767
    %1769 = vmatmul.f32.gmra.mxu0 %v151
    %v1770 = vpop.f32.mrf.mxu0
    %v1771 = vadd.f32 %v1658, %v1770
    %1772 = vmatmul.f32.gmra.mxu0 %v154
    %v1773 = vpop.f32.mrf.mxu0
    %v1774 = vadd.f32 %v1661, %v1773
    %1775 = vmatmul.f32.gmra.mxu0 %v157
    %v1776 = vpop.f32.mrf.mxu0
    %v1777 = vadd.f32 %v1664, %v1776
    %1778 = vmatmul.f32.gmra.mxu0 %v160
    %v1779 = vpop.f32.mrf.mxu0
    %v1780 = vadd.f32 %v1667, %v1779
    %1781 = vmatmul.f32.gmra.mxu0 %v163
    %v1782 = vpop.f32.mrf.mxu0
    %v1783 = vadd.f32 %v1670, %v1782
    %1784 = vmatmul.f32.gmra.mxu0 %v166
    %v1785 = vpop.f32.mrf.mxu0
    %v1786 = vadd.f32 %v1673, %v1785
    %1787 = vmatmul.f32.gmra.mxu0 %v169
    %v1788 = vpop.f32.mrf.mxu0
    %v1789 = vadd.f32 %v1676, %v1788
    %1790 = vmatmul.f32.gmra.mxu0 %v172
    %v1791 = vpop.f32.mrf.mxu0
    %v1792 = vadd.f32 %v1679, %v1791
    %1793 = vmatmul.f32.gmra.mxu0 %v175
    %v1794 = vpop.f32.mrf.mxu0
    %v1795 = vadd.f32 %v1682, %v1794
    %1796 = vmatmul.f32.gmra.mxu0 %v178
    %v1797 = vpop.f32.mrf.mxu0
    %v1798 = vadd.f32 %v1685, %v1797
    %1799 = vmatmul.f32.gmra.mxu0 %v181
    %v1800 = vpop.f32.mrf.mxu0
    %v1801 = vadd.f32 %v1688, %v1800
    %1802 = vmatmul.f32.gmra.mxu0 %v184
    %v1803 = vpop.f32.mrf.mxu0
    %v1804 = vadd.f32 %v1691, %v1803
    %1805 = vmatmul.f32.gmra.mxu0 %v187
    %v1806 = vpop.f32.mrf.mxu0
    %v1807 = vadd.f32 %v1694, %v1806
    %1808 = vmatmul.f32.gmra.mxu0 %v190
    %v1809 = vpop.f32.mrf.mxu0
    %v1810 = vadd.f32 %v1697, %v1809
    %1811 = vdwg.mxu0
    %1812 = vmatpush.msra.mxu0 %v374
    %1813 = vmatpush.msra.mxu0 %v362
    %1814 = vmatpush.msra.mxu0 %v350
    %1815 = vmatpush.msra.mxu0 %v338
    %1816 = vmatpush.msra.mxu0 %v326
    %1817 = vmatpush.msra.mxu0 %v314
    %1818 = vmatpush.msra.mxu0 %v302
    %1819 = vmatpush.msra.mxu0 %v290
    %1820 = vmatpush.msra.mxu0 %v278
    %1821 = vmatpush.msra.mxu0 %v266
    %1822 = vmatpush.msra.mxu0 %v254
    %1823 = vmatpush.msra.mxu0 %v242
    %1824 = vmatpush.msra.mxu0 %v230
    %1825 = vmatpush.msra.mxu0 %v218
    %1826 = vmatpush.msra.mxu0 %v206
    %1827 = vmatpush.msra.mxu0 %v194
    %1828 = vmatmul.f32.gmra.mxu0 %v95
    %v1829 = vpop.f32.mrf.mxu0
    %v1830 = vadd.f32 %v774, %v1829
    %1831 = vmatmul.f32.gmra.mxu0 %v98
    %v1832 = vpop.f32.mrf.mxu0
    %v1833 = vadd.f32 %v774, %v1832
    %1834 = vmatmul.f32.gmra.mxu0 %v101
    %v1835 = vpop.f32.mrf.mxu0
    %v1836 = vadd.f32 %v774, %v1835
    %1837 = vmatmul.f32.gmra.mxu0 %v104
    %v1838 = vpop.f32.mrf.mxu0
    %v1839 = vadd.f32 %v774, %v1838
    %1840 = vmatmul.f32.gmra.mxu0 %v107
    %v1841 = vpop.f32.mrf.mxu0
    %v1842 = vadd.f32 %v774, %v1841
    %1843 = vmatmul.f32.gmra.mxu0 %v110
    %v1844 = vpop.f32.mrf.mxu0
    %v1845 = vadd.f32 %v774, %v1844
    %1846 = vmatmul.f32.gmra.mxu0 %v113
    %v1847 = vpop.f32.mrf.mxu0
    %v1848 = vadd.f32 %v774, %v1847
    %1849 = vmatmul.f32.gmra.mxu0 %v116
    %v1850 = vpop.f32.mrf.mxu0
    %v1851 = vadd.f32 %v774, %v1850
    %1852 = vmatmul.f32.gmra.mxu0 %v119
    %v1853 = vpop.f32.mrf.mxu0
    %v1854 = vadd.f32 %v774, %v1853
    %1855 = vmatmul.f32.gmra.mxu0 %v122
    %v1856 = vpop.f32.mrf.mxu0
    %v1857 = vadd.f32 %v774, %v1856
    %1858 = vmatmul.f32.gmra.mxu0 %v125
    %v1859 = vpop.f32.mrf.mxu0
    %v1860 = vadd.f32 %v774, %v1859
    %1861 = vmatmul.f32.gmra.mxu0 %v128
    %v1862 = vpop.f32.mrf.mxu0
    %v1863 = vadd.f32 %v774, %v1862
    %1864 = vmatmul.f32.gmra.mxu0 %v131
    %v1865 = vpop.f32.mrf.mxu0
    %v1866 = vadd.f32 %v774, %v1865
    %1867 = vmatmul.f32.gmra.mxu0 %v134
    %v1868 = vpop.f32.mrf.mxu0
    %v1869 = vadd.f32 %v774, %v1868
    %1870 = vmatmul.f32.gmra.mxu0 %v137
    %v1871 = vpop.f32.mrf.mxu0
    %v1872 = vadd.f32 %v774, %v1871
    %1873 = vmatmul.f32.gmra.mxu0 %v140
    %v1874 = vpop.f32.mrf.mxu0
    %v1875 = vadd.f32 %v774, %v1874
    %1876 = vmatmul.f32.gmra.mxu0 %v143
    %v1877 = vpop.f32.mrf.mxu0
    %v1878 = vadd.f32 %v774, %v1877
    %1879 = vmatmul.f32.gmra.mxu0 %v146
    %v1880 = vpop.f32.mrf.mxu0
    %v1881 = vadd.f32 %v774, %v1880
    %1882 = vmatmul.f32.gmra.mxu0 %v149
    %v1883 = vpop.f32.mrf.mxu0
    %v1884 = vadd.f32 %v774, %v1883
    %1885 = vmatmul.f32.gmra.mxu0 %v152
    %v1886 = vpop.f32.mrf.mxu0
    %v1887 = vadd.f32 %v774, %v1886
    %1888 = vmatmul.f32.gmra.mxu0 %v155
    %v1889 = vpop.f32.mrf.mxu0
    %v1890 = vadd.f32 %v774, %v1889
    %1891 = vmatmul.f32.gmra.mxu0 %v158
    %v1892 = vpop.f32.mrf.mxu0
    %v1893 = vadd.f32 %v774, %v1892
    %1894 = vmatmul.f32.gmra.mxu0 %v161
    %v1895 = vpop.f32.mrf.mxu0
    %v1896 = vadd.f32 %v774, %v1895
    %1897 = vmatmul.f32.gmra.mxu0 %v164
    %v1898 = vpop.f32.mrf.mxu0
    %v1899 = vadd.f32 %v774, %v1898
    %1900 = vmatmul.f32.gmra.mxu0 %v167
    %v1901 = vpop.f32.mrf.mxu0
    %v1902 = vadd.f32 %v774, %v1901
    %1903 = vmatmul.f32.gmra.mxu0 %v170
    %v1904 = vpop.f32.mrf.mxu0
    %v1905 = vadd.f32 %v774, %v1904
    %1906 = vmatmul.f32.gmra.mxu0 %v173
    %v1907 = vpop.f32.mrf.mxu0
    %v1908 = vadd.f32 %v774, %v1907
    %1909 = vmatmul.f32.gmra.mxu0 %v176
    %v1910 = vpop.f32.mrf.mxu0
    %v1911 = vadd.f32 %v774, %v1910
    %1912 = vmatmul.f32.gmra.mxu0 %v179
    %v1913 = vpop.f32.mrf.mxu0
    %v1914 = vadd.f32 %v774, %v1913
    %1915 = vmatmul.f32.gmra.mxu0 %v182
    %v1916 = vpop.f32.mrf.mxu0
    %v1917 = vadd.f32 %v774, %v1916
    %1918 = vmatmul.f32.gmra.mxu0 %v185
    %v1919 = vpop.f32.mrf.mxu0
    %v1920 = vadd.f32 %v774, %v1919
    %1921 = vmatmul.f32.gmra.mxu0 %v188
    %v1922 = vpop.f32.mrf.mxu0
    %v1923 = vadd.f32 %v774, %v1922
    %1924 = vdwg.mxu0
    %1925 = vmatpush.msra.mxu0 %v566
    %1926 = vmatpush.msra.mxu0 %v554
    %1927 = vmatpush.msra.mxu0 %v542
    %1928 = vmatpush.msra.mxu0 %v530
    %1929 = vmatpush.msra.mxu0 %v518
    %1930 = vmatpush.msra.mxu0 %v506
    %1931 = vmatpush.msra.mxu0 %v494
    %1932 = vmatpush.msra.mxu0 %v482
    %1933 = vmatpush.msra.mxu0 %v470
    %1934 = vmatpush.msra.mxu0 %v458
    %1935 = vmatpush.msra.mxu0 %v446
    %1936 = vmatpush.msra.mxu0 %v434
    %1937 = vmatpush.msra.mxu0 %v422
    %1938 = vmatpush.msra.mxu0 %v410
    %1939 = vmatpush.msra.mxu0 %v398
    %1940 = vmatpush.msra.mxu0 %v386
    %1941 = vmatmul.f32.gmra.mxu0 %v96
    %v1942 = vpop.f32.mrf.mxu0
    %v1943 = vadd.f32 %v1830, %v1942
    %1944 = vmatmul.f32.gmra.mxu0 %v99
    %v1945 = vpop.f32.mrf.mxu0
    %v1946 = vadd.f32 %v1833, %v1945
    %1947 = vmatmul.f32.gmra.mxu0 %v102
    %v1948 = vpop.f32.mrf.mxu0
    %v1949 = vadd.f32 %v1836, %v1948
    %1950 = vmatmul.f32.gmra.mxu0 %v105
    %v1951 = vpop.f32.mrf.mxu0
    %v1952 = vadd.f32 %v1839, %v1951
    %1953 = vmatmul.f32.gmra.mxu0 %v108
    %v1954 = vpop.f32.mrf.mxu0
    %v1955 = vadd.f32 %v1842, %v1954
    %1956 = vmatmul.f32.gmra.mxu0 %v111
    %v1957 = vpop.f32.mrf.mxu0
    %v1958 = vadd.f32 %v1845, %v1957
    %1959 = vmatmul.f32.gmra.mxu0 %v114
    %v1960 = vpop.f32.mrf.mxu0
    %v1961 = vadd.f32 %v1848, %v1960
    %1962 = vmatmul.f32.gmra.mxu0 %v117
    %v1963 = vpop.f32.mrf.mxu0
    %v1964 = vadd.f32 %v1851, %v1963
    %1965 = vmatmul.f32.gmra.mxu0 %v120
    %v1966 = vpop.f32.mrf.mxu0
    %v1967 = vadd.f32 %v1854, %v1966
    %1968 = vmatmul.f32.gmra.mxu0 %v123
    %v1969 = vpop.f32.mrf.mxu0
    %v1970 = vadd.f32 %v1857, %v1969
    %1971 = vmatmul.f32.gmra.mxu0 %v126
    %v1972 = vpop.f32.mrf.mxu0
    %v1973 = vadd.f32 %v1860, %v1972
    %1974 = vmatmul.f32.gmra.mxu0 %v129
    %v1975 = vpop.f32.mrf.mxu0
    %v1976 = vadd.f32 %v1863, %v1975
    %1977 = vmatmul.f32.gmra.mxu0 %v132
    %v1978 = vpop.f32.mrf.mxu0
    %v1979 = vadd.f32 %v1866, %v1978
    %1980 = vmatmul.f32.gmra.mxu0 %v135
    %v1981 = vpop.f32.mrf.mxu0
    %v1982 = vadd.f32 %v1869, %v1981
    %1983 = vmatmul.f32.gmra.mxu0 %v138
    %v1984 = vpop.f32.mrf.mxu0
    %v1985 = vadd.f32 %v1872, %v1984
    %1986 = vmatmul.f32.gmra.mxu0 %v141
    %v1987 = vpop.f32.mrf.mxu0
    %v1988 = vadd.f32 %v1875, %v1987
    %1989 = vmatmul.f32.gmra.mxu0 %v144
    %v1990 = vpop.f32.mrf.mxu0
    %v1991 = vadd.f32 %v1878, %v1990
    %1992 = vmatmul.f32.gmra.mxu0 %v147
    %v1993 = vpop.f32.mrf.mxu0
    %v1994 = vadd.f32 %v1881, %v1993
    %1995 = vmatmul.f32.gmra.mxu0 %v150
    %v1996 = vpop.f32.mrf.mxu0
    %v1997 = vadd.f32 %v1884, %v1996
    %1998 = vmatmul.f32.gmra.mxu0 %v153
    %v1999 = vpop.f32.mrf.mxu0
    %v2000 = vadd.f32 %v1887, %v1999
    %2001 = vmatmul.f32.gmra.mxu0 %v156
    %v2002 = vpop.f32.mrf.mxu0
    %v2003 = vadd.f32 %v1890, %v2002
    %2004 = vmatmul.f32.gmra.mxu0 %v159
    %v2005 = vpop.f32.mrf.mxu0
    %v2006 = vadd.f32 %v1893, %v2005
    %2007 = vmatmul.f32.gmra.mxu0 %v162
    %v2008 = vpop.f32.mrf.mxu0
    %v2009 = vadd.f32 %v1896, %v2008
    %2010 = vmatmul.f32.gmra.mxu0 %v165
    %v2011 = vpop.f32.mrf.mxu0
    %v2012 = vadd.f32 %v1899, %v2011
    %2013 = vmatmul.f32.gmra.mxu0 %v168
    %v2014 = vpop.f32.mrf.mxu0
    %v2015 = vadd.f32 %v1902, %v2014
    %2016 = vmatmul.f32.gmra.mxu0 %v171
    %v2017 = vpop.f32.mrf.mxu0
    %v2018 = vadd.f32 %v1905, %v2017
    %2019 = vmatmul.f32.gmra.mxu0 %v174
    %v2020 = vpop.f32.mrf.mxu0
    %v2021 = vadd.f32 %v1908, %v2020
    %2022 = vmatmul.f32.gmra.mxu0 %v177
    %v2023 = vpop.f32.mrf.mxu0
    %v2024 = vadd.f32 %v1911, %v2023
    %2025 = vmatmul.f32.gmra.mxu0 %v180
    %v2026 = vpop.f32.mrf.mxu0
    %v2027 = vadd.f32 %v1914, %v2026
    %2028 = vmatmul.f32.gmra.mxu0 %v183
    %v2029 = vpop.f32.mrf.mxu0
    %v2030 = vadd.f32 %v1917, %v2029
    %2031 = vmatmul.f32.gmra.mxu0 %v186
    %v2032 = vpop.f32.mrf.mxu0
    %v2033 = vadd.f32 %v1920, %v2032
    %2034 = vmatmul.f32.gmra.mxu0 %v189
    %v2035 = vpop.f32.mrf.mxu0
    %v2036 = vadd.f32 %v1923, %v2035
    %2037 = vdwg.mxu0
    %2038 = vmatpush.msra.mxu0 %v758
    %2039 = vmatpush.msra.mxu0 %v746
    %2040 = vmatpush.msra.mxu0 %v734
    %2041 = vmatpush.msra.mxu0 %v722
    %2042 = vmatpush.msra.mxu0 %v710
    %2043 = vmatpush.msra.mxu0 %v698
    %2044 = vmatpush.msra.mxu0 %v686
    %2045 = vmatpush.msra.mxu0 %v674
    %2046 = vmatpush.msra.mxu0 %v662
    %2047 = vmatpush.msra.mxu0 %v650
    %2048 = vmatpush.msra.mxu0 %v638
    %2049 = vmatpush.msra.mxu0 %v626
    %2050 = vmatpush.msra.mxu0 %v614
    %2051 = vmatpush.msra.mxu0 %v602
    %2052 = vmatpush.msra.mxu0 %v590
    %2053 = vmatpush.msra.mxu0 %v578
    %2054 = vmatmul.f32.gmra.mxu0 %v97
    %v2055 = vpop.f32.mrf.mxu0
    %v2056 = vadd.f32 %v1943, %v2055
    %2057 = vmatmul.f32.gmra.mxu0 %v100
    %v2058 = vpop.f32.mrf.mxu0
    %v2059 = vadd.f32 %v1946, %v2058
    %2060 = vmatmul.f32.gmra.mxu0 %v103
    %v2061 = vpop.f32.mrf.mxu0
    %v2062 = vadd.f32 %v1949, %v2061
    %2063 = vmatmul.f32.gmra.mxu0 %v106
    %v2064 = vpop.f32.mrf.mxu0
    %v2065 = vadd.f32 %v1952, %v2064
    %2066 = vmatmul.f32.gmra.mxu0 %v109
    %v2067 = vpop.f32.mrf.mxu0
    %v2068 = vadd.f32 %v1955, %v2067
    %2069 = vmatmul.f32.gmra.mxu0 %v112
    %v2070 = vpop.f32.mrf.mxu0
    %v2071 = vadd.f32 %v1958, %v2070
    %2072 = vmatmul.f32.gmra.mxu0 %v115
    %v2073 = vpop.f32.mrf.mxu0
    %v2074 = vadd.f32 %v1961, %v2073
    %2075 = vmatmul.f32.gmra.mxu0 %v118
    %v2076 = vpop.f32.mrf.mxu0
    %v2077 = vadd.f32 %v1964, %v2076
    %2078 = vmatmul.f32.gmra.mxu0 %v121
    %v2079 = vpop.f32.mrf.mxu0
    %v2080 = vadd.f32 %v1967, %v2079
    %2081 = vmatmul.f32.gmra.mxu0 %v124
    %v2082 = vpop.f32.mrf.mxu0
    %v2083 = vadd.f32 %v1970, %v2082
    %2084 = vmatmul.f32.gmra.mxu0 %v127
    %v2085 = vpop.f32.mrf.mxu0
    %v2086 = vadd.f32 %v1973, %v2085
    %2087 = vmatmul.f32.gmra.mxu0 %v130
    %v2088 = vpop.f32.mrf.mxu0
    %v2089 = vadd.f32 %v1976, %v2088
    %2090 = vmatmul.f32.gmra.mxu0 %v133
    %v2091 = vpop.f32.mrf.mxu0
    %v2092 = vadd.f32 %v1979, %v2091
    %2093 = vmatmul.f32.gmra.mxu0 %v136
    %v2094 = vpop.f32.mrf.mxu0
    %v2095 = vadd.f32 %v1982, %v2094
    %2096 = vmatmul.f32.gmra.mxu0 %v139
    %v2097 = vpop.f32.mrf.mxu0
    %v2098 = vadd.f32 %v1985, %v2097
    %2099 = vmatmul.f32.gmra.mxu0 %v142
    %v2100 = vpop.f32.mrf.mxu0
    %v2101 = vadd.f32 %v1988, %v2100
    %2102 = vmatmul.f32.gmra.mxu0 %v145
    %v2103 = vpop.f32.mrf.mxu0
    %v2104 = vadd.f32 %v1991, %v2103
    %2105 = vmatmul.f32.gmra.mxu0 %v148
    %v2106 = vpop.f32.mrf.mxu0
    %v2107 = vadd.f32 %v1994, %v2106
    %2108 = vmatmul.f32.gmra.mxu0 %v151
    %v2109 = vpop.f32.mrf.mxu0
    %v2110 = vadd.f32 %v1997, %v2109
    %2111 = vmatmul.f32.gmra.mxu0 %v154
    %v2112 = vpop.f32.mrf.mxu0
    %v2113 = vadd.f32 %v2000, %v2112
    %2114 = vmatmul.f32.gmra.mxu0 %v157
    %v2115 = vpop.f32.mrf.mxu0
    %v2116 = vadd.f32 %v2003, %v2115
    %2117 = vmatmul.f32.gmra.mxu0 %v160
    %v2118 = vpop.f32.mrf.mxu0
    %v2119 = vadd.f32 %v2006, %v2118
    %2120 = vmatmul.f32.gmra.mxu0 %v163
    %v2121 = vpop.f32.mrf.mxu0
    %v2122 = vadd.f32 %v2009, %v2121
    %2123 = vmatmul.f32.gmra.mxu0 %v166
    %v2124 = vpop.f32.mrf.mxu0
    %v2125 = vadd.f32 %v2012, %v2124
    %2126 = vmatmul.f32.gmra.mxu0 %v169
    %v2127 = vpop.f32.mrf.mxu0
    %v2128 = vadd.f32 %v2015, %v2127
    %2129 = vmatmul.f32.gmra.mxu0 %v172
    %v2130 = vpop.f32.mrf.mxu0
    %v2131 = vadd.f32 %v2018, %v2130
    %2132 = vmatmul.f32.gmra.mxu0 %v175
    %v2133 = vpop.f32.mrf.mxu0
    %v2134 = vadd.f32 %v2021, %v2133
    %2135 = vmatmul.f32.gmra.mxu0 %v178
    %v2136 = vpop.f32.mrf.mxu0
    %v2137 = vadd.f32 %v2024, %v2136
    %2138 = vmatmul.f32.gmra.mxu0 %v181
    %v2139 = vpop.f32.mrf.mxu0
    %v2140 = vadd.f32 %v2027, %v2139
    %2141 = vmatmul.f32.gmra.mxu0 %v184
    %v2142 = vpop.f32.mrf.mxu0
    %v2143 = vadd.f32 %v2030, %v2142
    %2144 = vmatmul.f32.gmra.mxu0 %v187
    %v2145 = vpop.f32.mrf.mxu0
    %v2146 = vadd.f32 %v2033, %v2145
    %2147 = vmatmul.f32.gmra.mxu0 %v190
    %v2148 = vpop.f32.mrf.mxu0
    %v2149 = vadd.f32 %v2036, %v2148
    %2150 = vdwg.mxu0
    %2151 = vmatpush.msra.mxu0 %v375
    %2152 = vmatpush.msra.mxu0 %v363
    %2153 = vmatpush.msra.mxu0 %v351
    %2154 = vmatpush.msra.mxu0 %v339
    %2155 = vmatpush.msra.mxu0 %v327
    %2156 = vmatpush.msra.mxu0 %v315
    %2157 = vmatpush.msra.mxu0 %v303
    %2158 = vmatpush.msra.mxu0 %v291
    %2159 = vmatpush.msra.mxu0 %v279
    %2160 = vmatpush.msra.mxu0 %v267
    %2161 = vmatpush.msra.mxu0 %v255
    %2162 = vmatpush.msra.mxu0 %v243
    %2163 = vmatpush.msra.mxu0 %v231
    %2164 = vmatpush.msra.mxu0 %v219
    %2165 = vmatpush.msra.mxu0 %v207
    %2166 = vmatpush.msra.mxu0 %v195
    %2167 = vmatmul.f32.gmra.mxu0 %v95
    %v2168 = vpop.f32.mrf.mxu0
    %v2169 = vadd.f32 %v775, %v2168
    %2170 = vmatmul.f32.gmra.mxu0 %v98
    %v2171 = vpop.f32.mrf.mxu0
    %v2172 = vadd.f32 %v775, %v2171
    %2173 = vmatmul.f32.gmra.mxu0 %v101
    %v2174 = vpop.f32.mrf.mxu0
    %v2175 = vadd.f32 %v775, %v2174
    %2176 = vmatmul.f32.gmra.mxu0 %v104
    %v2177 = vpop.f32.mrf.mxu0
    %v2178 = vadd.f32 %v775, %v2177
    %2179 = vmatmul.f32.gmra.mxu0 %v107
    %v2180 = vpop.f32.mrf.mxu0
    %v2181 = vadd.f32 %v775, %v2180
    %2182 = vmatmul.f32.gmra.mxu0 %v110
    %v2183 = vpop.f32.mrf.mxu0
    %v2184 = vadd.f32 %v775, %v2183
    %2185 = vmatmul.f32.gmra.mxu0 %v113
    %v2186 = vpop.f32.mrf.mxu0
    %v2187 = vadd.f32 %v775, %v2186
    %2188 = vmatmul.f32.gmra.mxu0 %v116
    %v2189 = vpop.f32.mrf.mxu0
    %v2190 = vadd.f32 %v775, %v2189
    %2191 = vmatmul.f32.gmra.mxu0 %v119
    %v2192 = vpop.f32.mrf.mxu0
    %v2193 = vadd.f32 %v775, %v2192
    %2194 = vmatmul.f32.gmra.mxu0 %v122
    %v2195 = vpop.f32.mrf.mxu0
    %v2196 = vadd.f32 %v775, %v2195
    %2197 = vmatmul.f32.gmra.mxu0 %v125
    %v2198 = vpop.f32.mrf.mxu0
    %v2199 = vadd.f32 %v775, %v2198
    %2200 = vmatmul.f32.gmra.mxu0 %v128
    %v2201 = vpop.f32.mrf.mxu0
    %v2202 = vadd.f32 %v775, %v2201
    %2203 = vmatmul.f32.gmra.mxu0 %v131
    %v2204 = vpop.f32.mrf.mxu0
    %v2205 = vadd.f32 %v775, %v2204
    %2206 = vmatmul.f32.gmra.mxu0 %v134
    %v2207 = vpop.f32.mrf.mxu0
    %v2208 = vadd.f32 %v775, %v2207
    %2209 = vmatmul.f32.gmra.mxu0 %v137
    %v2210 = vpop.f32.mrf.mxu0
    %v2211 = vadd.f32 %v775, %v2210
    %2212 = vmatmul.f32.gmra.mxu0 %v140
    %v2213 = vpop.f32.mrf.mxu0
    %v2214 = vadd.f32 %v775, %v2213
    %2215 = vmatmul.f32.gmra.mxu0 %v143
    %v2216 = vpop.f32.mrf.mxu0
    %v2217 = vadd.f32 %v775, %v2216
    %2218 = vmatmul.f32.gmra.mxu0 %v146
    %v2219 = vpop.f32.mrf.mxu0
    %v2220 = vadd.f32 %v775, %v2219
    %2221 = vmatmul.f32.gmra.mxu0 %v149
    %v2222 = vpop.f32.mrf.mxu0
    %v2223 = vadd.f32 %v775, %v2222
    %2224 = vmatmul.f32.gmra.mxu0 %v152
    %v2225 = vpop.f32.mrf.mxu0
    %v2226 = vadd.f32 %v775, %v2225
    %2227 = vmatmul.f32.gmra.mxu0 %v155
    %v2228 = vpop.f32.mrf.mxu0
    %v2229 = vadd.f32 %v775, %v2228
    %2230 = vmatmul.f32.gmra.mxu0 %v158
    %v2231 = vpop.f32.mrf.mxu0
    %v2232 = vadd.f32 %v775, %v2231
    %2233 = vmatmul.f32.gmra.mxu0 %v161
    %v2234 = vpop.f32.mrf.mxu0
    %v2235 = vadd.f32 %v775, %v2234
    %2236 = vmatmul.f32.gmra.mxu0 %v164
    %v2237 = vpop.f32.mrf.mxu0
    %v2238 = vadd.f32 %v775, %v2237
    %2239 = vmatmul.f32.gmra.mxu0 %v167
    %v2240 = vpop.f32.mrf.mxu0
    %v2241 = vadd.f32 %v775, %v2240
    %2242 = vmatmul.f32.gmra.mxu0 %v170
    %v2243 = vpop.f32.mrf.mxu0
    %v2244 = vadd.f32 %v775, %v2243
    %2245 = vmatmul.f32.gmra.mxu0 %v173
    %v2246 = vpop.f32.mrf.mxu0
    %v2247 = vadd.f32 %v775, %v2246
    %2248 = vmatmul.f32.gmra.mxu0 %v176
    %v2249 = vpop.f32.mrf.mxu0
    %v2250 = vadd.f32 %v775, %v2249
    %2251 = vmatmul.f32.gmra.mxu0 %v179
    %v2252 = vpop.f32.mrf.mxu0
    %v2253 = vadd.f32 %v775, %v2252
    %2254 = vmatmul.f32.gmra.mxu0 %v182
    %v2255 = vpop.f32.mrf.mxu0
    %v2256 = vadd.f32 %v775, %v2255
    %2257 = vmatmul.f32.gmra.mxu0 %v185
    %v2258 = vpop.f32.mrf.mxu0
    %v2259 = vadd.f32 %v775, %v2258
    %2260 = vmatmul.f32.gmra.mxu0 %v188
    %v2261 = vpop.f32.mrf.mxu0
    %v2262 = vadd.f32 %v775, %v2261
    %2263 = vdwg.mxu0
    %2264 = vmatpush.msra.mxu0 %v567
    %2265 = vmatpush.msra.mxu0 %v555
    %2266 = vmatpush.msra.mxu0 %v543
    %2267 = vmatpush.msra.mxu0 %v531
    %2268 = vmatpush.msra.mxu0 %v519
    %2269 = vmatpush.msra.mxu0 %v507
    %2270 = vmatpush.msra.mxu0 %v495
    %2271 = vmatpush.msra.mxu0 %v483
    %2272 = vmatpush.msra.mxu0 %v471
    %2273 = vmatpush.msra.mxu0 %v459
    %2274 = vmatpush.msra.mxu0 %v447
    %2275 = vmatpush.msra.mxu0 %v435
    %2276 = vmatpush.msra.mxu0 %v423
    %2277 = vmatpush.msra.mxu0 %v411
    %2278 = vmatpush.msra.mxu0 %v399
    %2279 = vmatpush.msra.mxu0 %v387
    %2280 = vmatmul.f32.gmra.mxu0 %v96
    %v2281 = vpop.f32.mrf.mxu0
    %v2282 = vadd.f32 %v2169, %v2281
    %2283 = vmatmul.f32.gmra.mxu0 %v99
    %v2284 = vpop.f32.mrf.mxu0
    %v2285 = vadd.f32 %v2172, %v2284
    %2286 = vmatmul.f32.gmra.mxu0 %v102
    %v2287 = vpop.f32.mrf.mxu0
    %v2288 = vadd.f32 %v2175, %v2287
    %2289 = vmatmul.f32.gmra.mxu0 %v105
    %v2290 = vpop.f32.mrf.mxu0
    %v2291 = vadd.f32 %v2178, %v2290
    %2292 = vmatmul.f32.gmra.mxu0 %v108
    %v2293 = vpop.f32.mrf.mxu0
    %v2294 = vadd.f32 %v2181, %v2293
    %2295 = vmatmul.f32.gmra.mxu0 %v111
    %v2296 = vpop.f32.mrf.mxu0
    %v2297 = vadd.f32 %v2184, %v2296
    %2298 = vmatmul.f32.gmra.mxu0 %v114
    %v2299 = vpop.f32.mrf.mxu0
    %v2300 = vadd.f32 %v2187, %v2299
    %2301 = vmatmul.f32.gmra.mxu0 %v117
    %v2302 = vpop.f32.mrf.mxu0
    %v2303 = vadd.f32 %v2190, %v2302
    %2304 = vmatmul.f32.gmra.mxu0 %v120
    %v2305 = vpop.f32.mrf.mxu0
    %v2306 = vadd.f32 %v2193, %v2305
    %2307 = vmatmul.f32.gmra.mxu0 %v123
    %v2308 = vpop.f32.mrf.mxu0
    %v2309 = vadd.f32 %v2196, %v2308
    %2310 = vmatmul.f32.gmra.mxu0 %v126
    %v2311 = vpop.f32.mrf.mxu0
    %v2312 = vadd.f32 %v2199, %v2311
    %2313 = vmatmul.f32.gmra.mxu0 %v129
    %v2314 = vpop.f32.mrf.mxu0
    %v2315 = vadd.f32 %v2202, %v2314
    %2316 = vmatmul.f32.gmra.mxu0 %v132
    %v2317 = vpop.f32.mrf.mxu0
    %v2318 = vadd.f32 %v2205, %v2317
    %2319 = vmatmul.f32.gmra.mxu0 %v135
    %v2320 = vpop.f32.mrf.mxu0
    %v2321 = vadd.f32 %v2208, %v2320
    %2322 = vmatmul.f32.gmra.mxu0 %v138
    %v2323 = vpop.f32.mrf.mxu0
    %v2324 = vadd.f32 %v2211, %v2323
    %2325 = vmatmul.f32.gmra.mxu0 %v141
    %v2326 = vpop.f32.mrf.mxu0
    %v2327 = vadd.f32 %v2214, %v2326
    %2328 = vmatmul.f32.gmra.mxu0 %v144
    %v2329 = vpop.f32.mrf.mxu0
    %v2330 = vadd.f32 %v2217, %v2329
    %2331 = vmatmul.f32.gmra.mxu0 %v147
    %v2332 = vpop.f32.mrf.mxu0
    %v2333 = vadd.f32 %v2220, %v2332
    %2334 = vmatmul.f32.gmra.mxu0 %v150
    %v2335 = vpop.f32.mrf.mxu0
    %v2336 = vadd.f32 %v2223, %v2335
    %2337 = vmatmul.f32.gmra.mxu0 %v153
    %v2338 = vpop.f32.mrf.mxu0
    %v2339 = vadd.f32 %v2226, %v2338
    %2340 = vmatmul.f32.gmra.mxu0 %v156
    %v2341 = vpop.f32.mrf.mxu0
    %v2342 = vadd.f32 %v2229, %v2341
    %2343 = vmatmul.f32.gmra.mxu0 %v159
    %v2344 = vpop.f32.mrf.mxu0
    %v2345 = vadd.f32 %v2232, %v2344
    %2346 = vmatmul.f32.gmra.mxu0 %v162
    %v2347 = vpop.f32.mrf.mxu0
    %v2348 = vadd.f32 %v2235, %v2347
    %2349 = vmatmul.f32.gmra.mxu0 %v165
    %v2350 = vpop.f32.mrf.mxu0
    %v2351 = vadd.f32 %v2238, %v2350
    %2352 = vmatmul.f32.gmra.mxu0 %v168
    %v2353 = vpop.f32.mrf.mxu0
    %v2354 = vadd.f32 %v2241, %v2353
    %2355 = vmatmul.f32.gmra.mxu0 %v171
    %v2356 = vpop.f32.mrf.mxu0
    %v2357 = vadd.f32 %v2244, %v2356
    %2358 = vmatmul.f32.gmra.mxu0 %v174
    %v2359 = vpop.f32.mrf.mxu0
    %v2360 = vadd.f32 %v2247, %v2359
    %2361 = vmatmul.f32.gmra.mxu0 %v177
    %v2362 = vpop.f32.mrf.mxu0
    %v2363 = vadd.f32 %v2250, %v2362
    %2364 = vmatmul.f32.gmra.mxu0 %v180
    %v2365 = vpop.f32.mrf.mxu0
    %v2366 = vadd.f32 %v2253, %v2365
    %2367 = vmatmul.f32.gmra.mxu0 %v183
    %v2368 = vpop.f32.mrf.mxu0
    %v2369 = vadd.f32 %v2256, %v2368
    %2370 = vmatmul.f32.gmra.mxu0 %v186
    %v2371 = vpop.f32.mrf.mxu0
    %v2372 = vadd.f32 %v2259, %v2371
    %2373 = vmatmul.f32.gmra.mxu0 %v189
    %v2374 = vpop.f32.mrf.mxu0
    %v2375 = vadd.f32 %v2262, %v2374
    %2376 = vdwg.mxu0
    %2377 = vmatpush.msra.mxu0 %v759
    %2378 = vmatpush.msra.mxu0 %v747
    %2379 = vmatpush.msra.mxu0 %v735
    %2380 = vmatpush.msra.mxu0 %v723
    %2381 = vmatpush.msra.mxu0 %v711
    %2382 = vmatpush.msra.mxu0 %v699
    %2383 = vmatpush.msra.mxu0 %v687
    %2384 = vmatpush.msra.mxu0 %v675
    %2385 = vmatpush.msra.mxu0 %v663
    %2386 = vmatpush.msra.mxu0 %v651
    %2387 = vmatpush.msra.mxu0 %v639
    %2388 = vmatpush.msra.mxu0 %v627
    %2389 = vmatpush.msra.mxu0 %v615
    %2390 = vmatpush.msra.mxu0 %v603
    %2391 = vmatpush.msra.mxu0 %v591
    %2392 = vmatpush.msra.mxu0 %v579
    %2393 = vmatmul.f32.gmra.mxu0 %v97
    %v2394 = vpop.f32.mrf.mxu0
    %v2395 = vadd.f32 %v2282, %v2394
    %2396 = vmatmul.f32.gmra.mxu0 %v100
    %v2397 = vpop.f32.mrf.mxu0
    %v2398 = vadd.f32 %v2285, %v2397
    %2399 = vmatmul.f32.gmra.mxu0 %v103
    %v2400 = vpop.f32.mrf.mxu0
    %v2401 = vadd.f32 %v2288, %v2400
    %2402 = vmatmul.f32.gmra.mxu0 %v106
    %v2403 = vpop.f32.mrf.mxu0
    %v2404 = vadd.f32 %v2291, %v2403
    %2405 = vmatmul.f32.gmra.mxu0 %v109
    %v2406 = vpop.f32.mrf.mxu0
    %v2407 = vadd.f32 %v2294, %v2406
    %2408 = vmatmul.f32.gmra.mxu0 %v112
    %v2409 = vpop.f32.mrf.mxu0
    %v2410 = vadd.f32 %v2297, %v2409
    %2411 = vmatmul.f32.gmra.mxu0 %v115
    %v2412 = vpop.f32.mrf.mxu0
    %v2413 = vadd.f32 %v2300, %v2412
    %2414 = vmatmul.f32.gmra.mxu0 %v118
    %v2415 = vpop.f32.mrf.mxu0
    %v2416 = vadd.f32 %v2303, %v2415
    %2417 = vmatmul.f32.gmra.mxu0 %v121
    %v2418 = vpop.f32.mrf.mxu0
    %v2419 = vadd.f32 %v2306, %v2418
    %2420 = vmatmul.f32.gmra.mxu0 %v124
    %v2421 = vpop.f32.mrf.mxu0
    %v2422 = vadd.f32 %v2309, %v2421
    %2423 = vmatmul.f32.gmra.mxu0 %v127
    %v2424 = vpop.f32.mrf.mxu0
    %v2425 = vadd.f32 %v2312, %v2424
    %2426 = vmatmul.f32.gmra.mxu0 %v130
    %v2427 = vpop.f32.mrf.mxu0
    %v2428 = vadd.f32 %v2315, %v2427
    %2429 = vmatmul.f32.gmra.mxu0 %v133
    %v2430 = vpop.f32.mrf.mxu0
    %v2431 = vadd.f32 %v2318, %v2430
    %2432 = vmatmul.f32.gmra.mxu0 %v136
    %v2433 = vpop.f32.mrf.mxu0
    %v2434 = vadd.f32 %v2321, %v2433
    %2435 = vmatmul.f32.gmra.mxu0 %v139
    %v2436 = vpop.f32.mrf.mxu0
    %v2437 = vadd.f32 %v2324, %v2436
    %2438 = vmatmul.f32.gmra.mxu0 %v142
    %v2439 = vpop.f32.mrf.mxu0
    %v2440 = vadd.f32 %v2327, %v2439
    %2441 = vmatmul.f32.gmra.mxu0 %v145
    %v2442 = vpop.f32.mrf.mxu0
    %v2443 = vadd.f32 %v2330, %v2442
    %2444 = vmatmul.f32.gmra.mxu0 %v148
    %v2445 = vpop.f32.mrf.mxu0
    %v2446 = vadd.f32 %v2333, %v2445
    %2447 = vmatmul.f32.gmra.mxu0 %v151
    %v2448 = vpop.f32.mrf.mxu0
    %v2449 = vadd.f32 %v2336, %v2448
    %2450 = vmatmul.f32.gmra.mxu0 %v154
    %v2451 = vpop.f32.mrf.mxu0
    %v2452 = vadd.f32 %v2339, %v2451
    %2453 = vmatmul.f32.gmra.mxu0 %v157
    %v2454 = vpop.f32.mrf.mxu0
    %v2455 = vadd.f32 %v2342, %v2454
    %2456 = vmatmul.f32.gmra.mxu0 %v160
    %v2457 = vpop.f32.mrf.mxu0
    %v2458 = vadd.f32 %v2345, %v2457
    %2459 = vmatmul.f32.gmra.mxu0 %v163
    %v2460 = vpop.f32.mrf.mxu0
    %v2461 = vadd.f32 %v2348, %v2460
    %2462 = vmatmul.f32.gmra.mxu0 %v166
    %v2463 = vpop.f32.mrf.mxu0
    %v2464 = vadd.f32 %v2351, %v2463
    %2465 = vmatmul.f32.gmra.mxu0 %v169
    %v2466 = vpop.f32.mrf.mxu0
    %v2467 = vadd.f32 %v2354, %v2466
    %2468 = vmatmul.f32.gmra.mxu0 %v172
    %v2469 = vpop.f32.mrf.mxu0
    %v2470 = vadd.f32 %v2357, %v2469
    %2471 = vmatmul.f32.gmra.mxu0 %v175
    %v2472 = vpop.f32.mrf.mxu0
    %v2473 = vadd.f32 %v2360, %v2472
    %2474 = vmatmul.f32.gmra.mxu0 %v178
    %v2475 = vpop.f32.mrf.mxu0
    %v2476 = vadd.f32 %v2363, %v2475
    %2477 = vmatmul.f32.gmra.mxu0 %v181
    %v2478 = vpop.f32.mrf.mxu0
    %v2479 = vadd.f32 %v2366, %v2478
    %2480 = vmatmul.f32.gmra.mxu0 %v184
    %v2481 = vpop.f32.mrf.mxu0
    %v2482 = vadd.f32 %v2369, %v2481
    %2483 = vmatmul.f32.gmra.mxu0 %v187
    %v2484 = vpop.f32.mrf.mxu0
    %v2485 = vadd.f32 %v2372, %v2484
    %2486 = vmatmul.f32.gmra.mxu0 %v190
    %v2487 = vpop.f32.mrf.mxu0
    %v2488 = vadd.f32 %v2375, %v2487
    %2489 = vdwg.mxu0
    %2490 = vmatpush.msra.mxu0 %v376
    %2491 = vmatpush.msra.mxu0 %v364
    %2492 = vmatpush.msra.mxu0 %v352
    %2493 = vmatpush.msra.mxu0 %v340
    %2494 = vmatpush.msra.mxu0 %v328
    %2495 = vmatpush.msra.mxu0 %v316
    %2496 = vmatpush.msra.mxu0 %v304
    %2497 = vmatpush.msra.mxu0 %v292
    %2498 = vmatpush.msra.mxu0 %v280
    %2499 = vmatpush.msra.mxu0 %v268
    %2500 = vmatpush.msra.mxu0 %v256
    %2501 = vmatpush.msra.mxu0 %v244
    %2502 = vmatpush.msra.mxu0 %v232
    %2503 = vmatpush.msra.mxu0 %v220
    %2504 = vmatpush.msra.mxu0 %v208
    %2505 = vmatpush.msra.mxu0 %v196
    %2506 = vmatmul.f32.gmra.mxu0 %v95
    %v2507 = vpop.f32.mrf.mxu0
    %v2508 = vadd.f32 %v776, %v2507
    %2509 = vmatmul.f32.gmra.mxu0 %v98
    %v2510 = vpop.f32.mrf.mxu0
    %v2511 = vadd.f32 %v776, %v2510
    %2512 = vmatmul.f32.gmra.mxu0 %v101
    %v2513 = vpop.f32.mrf.mxu0
    %v2514 = vadd.f32 %v776, %v2513
    %2515 = vmatmul.f32.gmra.mxu0 %v104
    %v2516 = vpop.f32.mrf.mxu0
    %v2517 = vadd.f32 %v776, %v2516
    %2518 = vmatmul.f32.gmra.mxu0 %v107
    %v2519 = vpop.f32.mrf.mxu0
    %v2520 = vadd.f32 %v776, %v2519
    %2521 = vmatmul.f32.gmra.mxu0 %v110
    %v2522 = vpop.f32.mrf.mxu0
    %v2523 = vadd.f32 %v776, %v2522
    %2524 = vmatmul.f32.gmra.mxu0 %v113
    %v2525 = vpop.f32.mrf.mxu0
    %v2526 = vadd.f32 %v776, %v2525
    %2527 = vmatmul.f32.gmra.mxu0 %v116
    %v2528 = vpop.f32.mrf.mxu0
    %v2529 = vadd.f32 %v776, %v2528
    %2530 = vmatmul.f32.gmra.mxu0 %v119
    %v2531 = vpop.f32.mrf.mxu0
    %v2532 = vadd.f32 %v776, %v2531
    %2533 = vmatmul.f32.gmra.mxu0 %v122
    %v2534 = vpop.f32.mrf.mxu0
    %v2535 = vadd.f32 %v776, %v2534
    %2536 = vmatmul.f32.gmra.mxu0 %v125
    %v2537 = vpop.f32.mrf.mxu0
    %v2538 = vadd.f32 %v776, %v2537
    %2539 = vmatmul.f32.gmra.mxu0 %v128
    %v2540 = vpop.f32.mrf.mxu0
    %v2541 = vadd.f32 %v776, %v2540
    %2542 = vmatmul.f32.gmra.mxu0 %v131
    %v2543 = vpop.f32.mrf.mxu0
    %v2544 = vadd.f32 %v776, %v2543
    %2545 = vmatmul.f32.gmra.mxu0 %v134
    %v2546 = vpop.f32.mrf.mxu0
    %v2547 = vadd.f32 %v776, %v2546
    %2548 = vmatmul.f32.gmra.mxu0 %v137
    %v2549 = vpop.f32.mrf.mxu0
    %v2550 = vadd.f32 %v776, %v2549
    %2551 = vmatmul.f32.gmra.mxu0 %v140
    %v2552 = vpop.f32.mrf.mxu0
    %v2553 = vadd.f32 %v776, %v2552
    %2554 = vmatmul.f32.gmra.mxu0 %v143
    %v2555 = vpop.f32.mrf.mxu0
    %v2556 = vadd.f32 %v776, %v2555
    %2557 = vmatmul.f32.gmra.mxu0 %v146
    %v2558 = vpop.f32.mrf.mxu0
    %v2559 = vadd.f32 %v776, %v2558
    %2560 = vmatmul.f32.gmra.mxu0 %v149
    %v2561 = vpop.f32.mrf.mxu0
    %v2562 = vadd.f32 %v776, %v2561
    %2563 = vmatmul.f32.gmra.mxu0 %v152
    %v2564 = vpop.f32.mrf.mxu0
    %v2565 = vadd.f32 %v776, %v2564
    %2566 = vmatmul.f32.gmra.mxu0 %v155
    %v2567 = vpop.f32.mrf.mxu0
    %v2568 = vadd.f32 %v776, %v2567
    %2569 = vmatmul.f32.gmra.mxu0 %v158
    %v2570 = vpop.f32.mrf.mxu0
    %v2571 = vadd.f32 %v776, %v2570
    %2572 = vmatmul.f32.gmra.mxu0 %v161
    %v2573 = vpop.f32.mrf.mxu0
    %v2574 = vadd.f32 %v776, %v2573
    %2575 = vmatmul.f32.gmra.mxu0 %v164
    %v2576 = vpop.f32.mrf.mxu0
    %v2577 = vadd.f32 %v776, %v2576
    %2578 = vmatmul.f32.gmra.mxu0 %v167
    %v2579 = vpop.f32.mrf.mxu0
    %v2580 = vadd.f32 %v776, %v2579
    %2581 = vmatmul.f32.gmra.mxu0 %v170
    %v2582 = vpop.f32.mrf.mxu0
    %v2583 = vadd.f32 %v776, %v2582
    %2584 = vmatmul.f32.gmra.mxu0 %v173
    %v2585 = vpop.f32.mrf.mxu0
    %v2586 = vadd.f32 %v776, %v2585
    %2587 = vmatmul.f32.gmra.mxu0 %v176
    %v2588 = vpop.f32.mrf.mxu0
    %v2589 = vadd.f32 %v776, %v2588
    %2590 = vmatmul.f32.gmra.mxu0 %v179
    %v2591 = vpop.f32.mrf.mxu0
    %v2592 = vadd.f32 %v776, %v2591
    %2593 = vmatmul.f32.gmra.mxu0 %v182
    %v2594 = vpop.f32.mrf.mxu0
    %v2595 = vadd.f32 %v776, %v2594
    %2596 = vmatmul.f32.gmra.mxu0 %v185
    %v2597 = vpop.f32.mrf.mxu0
    %v2598 = vadd.f32 %v776, %v2597
    %2599 = vmatmul.f32.gmra.mxu0 %v188
    %v2600 = vpop.f32.mrf.mxu0
    %v2601 = vadd.f32 %v776, %v2600
    %2602 = vdwg.mxu0
    %2603 = vmatpush.msra.mxu0 %v568
    %2604 = vmatpush.msra.mxu0 %v556
    %2605 = vmatpush.msra.mxu0 %v544
    %2606 = vmatpush.msra.mxu0 %v532
    %2607 = vmatpush.msra.mxu0 %v520
    %2608 = vmatpush.msra.mxu0 %v508
    %2609 = vmatpush.msra.mxu0 %v496
    %2610 = vmatpush.msra.mxu0 %v484
    %2611 = vmatpush.msra.mxu0 %v472
    %2612 = vmatpush.msra.mxu0 %v460
    %2613 = vmatpush.msra.mxu0 %v448
    %2614 = vmatpush.msra.mxu0 %v436
    %2615 = vmatpush.msra.mxu0 %v424
    %2616 = vmatpush.msra.mxu0 %v412
    %2617 = vmatpush.msra.mxu0 %v400
    %2618 = vmatpush.msra.mxu0 %v388
    %2619 = vmatmul.f32.gmra.mxu0 %v96
    %v2620 = vpop.f32.mrf.mxu0
    %v2621 = vadd.f32 %v2508, %v2620
    %2622 = vmatmul.f32.gmra.mxu0 %v99
    %v2623 = vpop.f32.mrf.mxu0
    %v2624 = vadd.f32 %v2511, %v2623
    %2625 = vmatmul.f32.gmra.mxu0 %v102
    %v2626 = vpop.f32.mrf.mxu0
    %v2627 = vadd.f32 %v2514, %v2626
    %2628 = vmatmul.f32.gmra.mxu0 %v105
    %v2629 = vpop.f32.mrf.mxu0
    %v2630 = vadd.f32 %v2517, %v2629
    %2631 = vmatmul.f32.gmra.mxu0 %v108
    %v2632 = vpop.f32.mrf.mxu0
    %v2633 = vadd.f32 %v2520, %v2632
    %2634 = vmatmul.f32.gmra.mxu0 %v111
    %v2635 = vpop.f32.mrf.mxu0
    %v2636 = vadd.f32 %v2523, %v2635
    %2637 = vmatmul.f32.gmra.mxu0 %v114
    %v2638 = vpop.f32.mrf.mxu0
    %v2639 = vadd.f32 %v2526, %v2638
    %2640 = vmatmul.f32.gmra.mxu0 %v117
    %v2641 = vpop.f32.mrf.mxu0
    %v2642 = vadd.f32 %v2529, %v2641
    %2643 = vmatmul.f32.gmra.mxu0 %v120
    %v2644 = vpop.f32.mrf.mxu0
    %v2645 = vadd.f32 %v2532, %v2644
    %2646 = vmatmul.f32.gmra.mxu0 %v123
    %v2647 = vpop.f32.mrf.mxu0
    %v2648 = vadd.f32 %v2535, %v2647
    %2649 = vmatmul.f32.gmra.mxu0 %v126
    %v2650 = vpop.f32.mrf.mxu0
    %v2651 = vadd.f32 %v2538, %v2650
    %2652 = vmatmul.f32.gmra.mxu0 %v129
    %v2653 = vpop.f32.mrf.mxu0
    %v2654 = vadd.f32 %v2541, %v2653
    %2655 = vmatmul.f32.gmra.mxu0 %v132
    %v2656 = vpop.f32.mrf.mxu0
    %v2657 = vadd.f32 %v2544, %v2656
    %2658 = vmatmul.f32.gmra.mxu0 %v135
    %v2659 = vpop.f32.mrf.mxu0
    %v2660 = vadd.f32 %v2547, %v2659
    %2661 = vmatmul.f32.gmra.mxu0 %v138
    %v2662 = vpop.f32.mrf.mxu0
    %v2663 = vadd.f32 %v2550, %v2662
    %2664 = vmatmul.f32.gmra.mxu0 %v141
    %v2665 = vpop.f32.mrf.mxu0
    %v2666 = vadd.f32 %v2553, %v2665
    %2667 = vmatmul.f32.gmra.mxu0 %v144
    %v2668 = vpop.f32.mrf.mxu0
    %v2669 = vadd.f32 %v2556, %v2668
    %2670 = vmatmul.f32.gmra.mxu0 %v147
    %v2671 = vpop.f32.mrf.mxu0
    %v2672 = vadd.f32 %v2559, %v2671
    %2673 = vmatmul.f32.gmra.mxu0 %v150
    %v2674 = vpop.f32.mrf.mxu0
    %v2675 = vadd.f32 %v2562, %v2674
    %2676 = vmatmul.f32.gmra.mxu0 %v153
    %v2677 = vpop.f32.mrf.mxu0
    %v2678 = vadd.f32 %v2565, %v2677
    %2679 = vmatmul.f32.gmra.mxu0 %v156
    %v2680 = vpop.f32.mrf.mxu0
    %v2681 = vadd.f32 %v2568, %v2680
    %2682 = vmatmul.f32.gmra.mxu0 %v159
    %v2683 = vpop.f32.mrf.mxu0
    %v2684 = vadd.f32 %v2571, %v2683
    %2685 = vmatmul.f32.gmra.mxu0 %v162
    %v2686 = vpop.f32.mrf.mxu0
    %v2687 = vadd.f32 %v2574, %v2686
    %2688 = vmatmul.f32.gmra.mxu0 %v165
    %v2689 = vpop.f32.mrf.mxu0
    %v2690 = vadd.f32 %v2577, %v2689
    %2691 = vmatmul.f32.gmra.mxu0 %v168
    %v2692 = vpop.f32.mrf.mxu0
    %v2693 = vadd.f32 %v2580, %v2692
    %2694 = vmatmul.f32.gmra.mxu0 %v171
    %v2695 = vpop.f32.mrf.mxu0
    %v2696 = vadd.f32 %v2583, %v2695
    %2697 = vmatmul.f32.gmra.mxu0 %v174
    %v2698 = vpop.f32.mrf.mxu0
    %v2699 = vadd.f32 %v2586, %v2698
    %2700 = vmatmul.f32.gmra.mxu0 %v177
    %v2701 = vpop.f32.mrf.mxu0
    %v2702 = vadd.f32 %v2589, %v2701
    %2703 = vmatmul.f32.gmra.mxu0 %v180
    %v2704 = vpop.f32.mrf.mxu0
    %v2705 = vadd.f32 %v2592, %v2704
    %2706 = vmatmul.f32.gmra.mxu0 %v183
    %v2707 = vpop.f32.mrf.mxu0
    %v2708 = vadd.f32 %v2595, %v2707
    %2709 = vmatmul.f32.gmra.mxu0 %v186
    %v2710 = vpop.f32.mrf.mxu0
    %v2711 = vadd.f32 %v2598, %v2710
    %2712 = vmatmul.f32.gmra.mxu0 %v189
    %v2713 = vpop.f32.mrf.mxu0
    %v2714 = vadd.f32 %v2601, %v2713
    %2715 = vdwg.mxu0
    %2716 = vmatpush.msra.mxu0 %v760
    %2717 = vmatpush.msra.mxu0 %v748
    %2718 = vmatpush.msra.mxu0 %v736
    %2719 = vmatpush.msra.mxu0 %v724
    %2720 = vmatpush.msra.mxu0 %v712
    %2721 = vmatpush.msra.mxu0 %v700
    %2722 = vmatpush.msra.mxu0 %v688
    %2723 = vmatpush.msra.mxu0 %v676
    %2724 = vmatpush.msra.mxu0 %v664
    %2725 = vmatpush.msra.mxu0 %v652
    %2726 = vmatpush.msra.mxu0 %v640
    %2727 = vmatpush.msra.mxu0 %v628
    %2728 = vmatpush.msra.mxu0 %v616
    %2729 = vmatpush.msra.mxu0 %v604
    %2730 = vmatpush.msra.mxu0 %v592
    %2731 = vmatpush.msra.mxu0 %v580
    %2732 = vmatmul.f32.gmra.mxu0 %v97
    %v2733 = vpop.f32.mrf.mxu0
    %v2734 = vadd.f32 %v2621, %v2733
    %2735 = vmatmul.f32.gmra.mxu0 %v100
    %v2736 = vpop.f32.mrf.mxu0
    %v2737 = vadd.f32 %v2624, %v2736
    %2738 = vmatmul.f32.gmra.mxu0 %v103
    %v2739 = vpop.f32.mrf.mxu0
    %v2740 = vadd.f32 %v2627, %v2739
    %2741 = vmatmul.f32.gmra.mxu0 %v106
    %v2742 = vpop.f32.mrf.mxu0
    %v2743 = vadd.f32 %v2630, %v2742
    %2744 = vmatmul.f32.gmra.mxu0 %v109
    %v2745 = vpop.f32.mrf.mxu0
    %v2746 = vadd.f32 %v2633, %v2745
    %2747 = vmatmul.f32.gmra.mxu0 %v112
    %v2748 = vpop.f32.mrf.mxu0
    %v2749 = vadd.f32 %v2636, %v2748
    %2750 = vmatmul.f32.gmra.mxu0 %v115
    %v2751 = vpop.f32.mrf.mxu0
    %v2752 = vadd.f32 %v2639, %v2751
    %2753 = vmatmul.f32.gmra.mxu0 %v118
    %v2754 = vpop.f32.mrf.mxu0
    %v2755 = vadd.f32 %v2642, %v2754
    %2756 = vmatmul.f32.gmra.mxu0 %v121
    %v2757 = vpop.f32.mrf.mxu0
    %v2758 = vadd.f32 %v2645, %v2757
    %2759 = vmatmul.f32.gmra.mxu0 %v124
    %v2760 = vpop.f32.mrf.mxu0
    %v2761 = vadd.f32 %v2648, %v2760
    %2762 = vmatmul.f32.gmra.mxu0 %v127
    %v2763 = vpop.f32.mrf.mxu0
    %v2764 = vadd.f32 %v2651, %v2763
    %2765 = vmatmul.f32.gmra.mxu0 %v130
    %v2766 = vpop.f32.mrf.mxu0
    %v2767 = vadd.f32 %v2654, %v2766
    %2768 = vmatmul.f32.gmra.mxu0 %v133
    %v2769 = vpop.f32.mrf.mxu0
    %v2770 = vadd.f32 %v2657, %v2769
    %2771 = vmatmul.f32.gmra.mxu0 %v136
    %v2772 = vpop.f32.mrf.mxu0
    %v2773 = vadd.f32 %v2660, %v2772
    %2774 = vmatmul.f32.gmra.mxu0 %v139
    %v2775 = vpop.f32.mrf.mxu0
    %v2776 = vadd.f32 %v2663, %v2775
    %2777 = vmatmul.f32.gmra.mxu0 %v142
    %v2778 = vpop.f32.mrf.mxu0
    %v2779 = vadd.f32 %v2666, %v2778
    %2780 = vmatmul.f32.gmra.mxu0 %v145
    %v2781 = vpop.f32.mrf.mxu0
    %v2782 = vadd.f32 %v2669, %v2781
    %2783 = vmatmul.f32.gmra.mxu0 %v148
    %v2784 = vpop.f32.mrf.mxu0
    %v2785 = vadd.f32 %v2672, %v2784
    %2786 = vmatmul.f32.gmra.mxu0 %v151
    %v2787 = vpop.f32.mrf.mxu0
    %v2788 = vadd.f32 %v2675, %v2787
    %2789 = vmatmul.f32.gmra.mxu0 %v154
    %v2790 = vpop.f32.mrf.mxu0
    %v2791 = vadd.f32 %v2678, %v2790
    %2792 = vmatmul.f32.gmra.mxu0 %v157
    %v2793 = vpop.f32.mrf.mxu0
    %v2794 = vadd.f32 %v2681, %v2793
    %2795 = vmatmul.f32.gmra.mxu0 %v160
    %v2796 = vpop.f32.mrf.mxu0
    %v2797 = vadd.f32 %v2684, %v2796
    %2798 = vmatmul.f32.gmra.mxu0 %v163
    %v2799 = vpop.f32.mrf.mxu0
    %v2800 = vadd.f32 %v2687, %v2799
    %2801 = vmatmul.f32.gmra.mxu0 %v166
    %v2802 = vpop.f32.mrf.mxu0
    %v2803 = vadd.f32 %v2690, %v2802
    %2804 = vmatmul.f32.gmra.mxu0 %v169
    %v2805 = vpop.f32.mrf.mxu0
    %v2806 = vadd.f32 %v2693, %v2805
    %2807 = vmatmul.f32.gmra.mxu0 %v172
    %v2808 = vpop.f32.mrf.mxu0
    %v2809 = vadd.f32 %v2696, %v2808
    %2810 = vmatmul.f32.gmra.mxu0 %v175
    %v2811 = vpop.f32.mrf.mxu0
    %v2812 = vadd.f32 %v2699, %v2811
    %2813 = vmatmul.f32.gmra.mxu0 %v178
    %v2814 = vpop.f32.mrf.mxu0
    %v2815 = vadd.f32 %v2702, %v2814
    %2816 = vmatmul.f32.gmra.mxu0 %v181
    %v2817 = vpop.f32.mrf.mxu0
    %v2818 = vadd.f32 %v2705, %v2817
    %2819 = vmatmul.f32.gmra.mxu0 %v184
    %v2820 = vpop.f32.mrf.mxu0
    %v2821 = vadd.f32 %v2708, %v2820
    %2822 = vmatmul.f32.gmra.mxu0 %v187
    %v2823 = vpop.f32.mrf.mxu0
    %v2824 = vadd.f32 %v2711, %v2823
    %2825 = vmatmul.f32.gmra.mxu0 %v190
    %v2826 = vpop.f32.mrf.mxu0
    %v2827 = vadd.f32 %v2714, %v2826
    %2828 = vdwg.mxu0
    %2829 = vmatpush.msra.mxu0 %v377
    %2830 = vmatpush.msra.mxu0 %v365
    %2831 = vmatpush.msra.mxu0 %v353
    %2832 = vmatpush.msra.mxu0 %v341
    %2833 = vmatpush.msra.mxu0 %v329
    %2834 = vmatpush.msra.mxu0 %v317
    %2835 = vmatpush.msra.mxu0 %v305
    %2836 = vmatpush.msra.mxu0 %v293
    %2837 = vmatpush.msra.mxu0 %v281
    %2838 = vmatpush.msra.mxu0 %v269
    %2839 = vmatpush.msra.mxu0 %v257
    %2840 = vmatpush.msra.mxu0 %v245
    %2841 = vmatpush.msra.mxu0 %v233
    %2842 = vmatpush.msra.mxu0 %v221
    %2843 = vmatpush.msra.mxu0 %v209
    %2844 = vmatpush.msra.mxu0 %v197
    %2845 = vmatmul.f32.gmra.mxu0 %v95
    %v2846 = vpop.f32.mrf.mxu0
    %v2847 = vadd.f32 %v777, %v2846
    %2848 = vmatmul.f32.gmra.mxu0 %v98
    %v2849 = vpop.f32.mrf.mxu0
    %v2850 = vadd.f32 %v777, %v2849
    %2851 = vmatmul.f32.gmra.mxu0 %v101
    %v2852 = vpop.f32.mrf.mxu0
    %v2853 = vadd.f32 %v777, %v2852
    %2854 = vmatmul.f32.gmra.mxu0 %v104
    %v2855 = vpop.f32.mrf.mxu0
    %v2856 = vadd.f32 %v777, %v2855
    %2857 = vmatmul.f32.gmra.mxu0 %v107
    %v2858 = vpop.f32.mrf.mxu0
    %v2859 = vadd.f32 %v777, %v2858
    %2860 = vmatmul.f32.gmra.mxu0 %v110
    %v2861 = vpop.f32.mrf.mxu0
    %v2862 = vadd.f32 %v777, %v2861
    %2863 = vmatmul.f32.gmra.mxu0 %v113
    %v2864 = vpop.f32.mrf.mxu0
    %v2865 = vadd.f32 %v777, %v2864
    %2866 = vmatmul.f32.gmra.mxu0 %v116
    %v2867 = vpop.f32.mrf.mxu0
    %v2868 = vadd.f32 %v777, %v2867
    %2869 = vmatmul.f32.gmra.mxu0 %v119
    %v2870 = vpop.f32.mrf.mxu0
    %v2871 = vadd.f32 %v777, %v2870
    %2872 = vmatmul.f32.gmra.mxu0 %v122
    %v2873 = vpop.f32.mrf.mxu0
    %v2874 = vadd.f32 %v777, %v2873
    %2875 = vmatmul.f32.gmra.mxu0 %v125
    %v2876 = vpop.f32.mrf.mxu0
    %v2877 = vadd.f32 %v777, %v2876
    %2878 = vmatmul.f32.gmra.mxu0 %v128
    %v2879 = vpop.f32.mrf.mxu0
    %v2880 = vadd.f32 %v777, %v2879
    %2881 = vmatmul.f32.gmra.mxu0 %v131
    %v2882 = vpop.f32.mrf.mxu0
    %v2883 = vadd.f32 %v777, %v2882
    %2884 = vmatmul.f32.gmra.mxu0 %v134
    %v2885 = vpop.f32.mrf.mxu0
    %v2886 = vadd.f32 %v777, %v2885
    %2887 = vmatmul.f32.gmra.mxu0 %v137
    %v2888 = vpop.f32.mrf.mxu0
    %v2889 = vadd.f32 %v777, %v2888
    %2890 = vmatmul.f32.gmra.mxu0 %v140
    %v2891 = vpop.f32.mrf.mxu0
    %v2892 = vadd.f32 %v777, %v2891
    %2893 = vmatmul.f32.gmra.mxu0 %v143
    %v2894 = vpop.f32.mrf.mxu0
    %v2895 = vadd.f32 %v777, %v2894
    %2896 = vmatmul.f32.gmra.mxu0 %v146
    %v2897 = vpop.f32.mrf.mxu0
    %v2898 = vadd.f32 %v777, %v2897
    %2899 = vmatmul.f32.gmra.mxu0 %v149
    %v2900 = vpop.f32.mrf.mxu0
    %v2901 = vadd.f32 %v777, %v2900
    %2902 = vmatmul.f32.gmra.mxu0 %v152
    %v2903 = vpop.f32.mrf.mxu0
    %v2904 = vadd.f32 %v777, %v2903
    %2905 = vmatmul.f32.gmra.mxu0 %v155
    %v2906 = vpop.f32.mrf.mxu0
    %v2907 = vadd.f32 %v777, %v2906
    %2908 = vmatmul.f32.gmra.mxu0 %v158
    %v2909 = vpop.f32.mrf.mxu0
    %v2910 = vadd.f32 %v777, %v2909
    %2911 = vmatmul.f32.gmra.mxu0 %v161
    %v2912 = vpop.f32.mrf.mxu0
    %v2913 = vadd.f32 %v777, %v2912
    %2914 = vmatmul.f32.gmra.mxu0 %v164
    %v2915 = vpop.f32.mrf.mxu0
    %v2916 = vadd.f32 %v777, %v2915
    %2917 = vmatmul.f32.gmra.mxu0 %v167
    %v2918 = vpop.f32.mrf.mxu0
    %v2919 = vadd.f32 %v777, %v2918
    %2920 = vmatmul.f32.gmra.mxu0 %v170
    %v2921 = vpop.f32.mrf.mxu0
    %v2922 = vadd.f32 %v777, %v2921
    %2923 = vmatmul.f32.gmra.mxu0 %v173
    %v2924 = vpop.f32.mrf.mxu0
    %v2925 = vadd.f32 %v777, %v2924
    %2926 = vmatmul.f32.gmra.mxu0 %v176
    %v2927 = vpop.f32.mrf.mxu0
    %v2928 = vadd.f32 %v777, %v2927
    %2929 = vmatmul.f32.gmra.mxu0 %v179
    %v2930 = vpop.f32.mrf.mxu0
    %v2931 = vadd.f32 %v777, %v2930
    %2932 = vmatmul.f32.gmra.mxu0 %v182
    %v2933 = vpop.f32.mrf.mxu0
    %v2934 = vadd.f32 %v777, %v2933
    %2935 = vmatmul.f32.gmra.mxu0 %v185
    %v2936 = vpop.f32.mrf.mxu0
    %v2937 = vadd.f32 %v777, %v2936
    %2938 = vmatmul.f32.gmra.mxu0 %v188
    %v2939 = vpop.f32.mrf.mxu0
    %v2940 = vadd.f32 %v777, %v2939
    %2941 = vdwg.mxu0
    %2942 = vmatpush.msra.mxu0 %v569
    %2943 = vmatpush.msra.mxu0 %v557
    %2944 = vmatpush.msra.mxu0 %v545
    %2945 = vmatpush.msra.mxu0 %v533
    %2946 = vmatpush.msra.mxu0 %v521
    %2947 = vmatpush.msra.mxu0 %v509
    %2948 = vmatpush.msra.mxu0 %v497
    %2949 = vmatpush.msra.mxu0 %v485
    %2950 = vmatpush.msra.mxu0 %v473
    %2951 = vmatpush.msra.mxu0 %v461
    %2952 = vmatpush.msra.mxu0 %v449
    %2953 = vmatpush.msra.mxu0 %v437
    %2954 = vmatpush.msra.mxu0 %v425
    %2955 = vmatpush.msra.mxu0 %v413
    %2956 = vmatpush.msra.mxu0 %v401
    %2957 = vmatpush.msra.mxu0 %v389
    %2958 = vmatmul.f32.gmra.mxu0 %v96
    %v2959 = vpop.f32.mrf.mxu0
    %v2960 = vadd.f32 %v2847, %v2959
    %2961 = vmatmul.f32.gmra.mxu0 %v99
    %v2962 = vpop.f32.mrf.mxu0
    %v2963 = vadd.f32 %v2850, %v2962
    %2964 = vmatmul.f32.gmra.mxu0 %v102
    %v2965 = vpop.f32.mrf.mxu0
    %v2966 = vadd.f32 %v2853, %v2965
    %2967 = vmatmul.f32.gmra.mxu0 %v105
    %v2968 = vpop.f32.mrf.mxu0
    %v2969 = vadd.f32 %v2856, %v2968
    %2970 = vmatmul.f32.gmra.mxu0 %v108
    %v2971 = vpop.f32.mrf.mxu0
    %v2972 = vadd.f32 %v2859, %v2971
    %2973 = vmatmul.f32.gmra.mxu0 %v111
    %v2974 = vpop.f32.mrf.mxu0
    %v2975 = vadd.f32 %v2862, %v2974
    %2976 = vmatmul.f32.gmra.mxu0 %v114
    %v2977 = vpop.f32.mrf.mxu0
    %v2978 = vadd.f32 %v2865, %v2977
    %2979 = vmatmul.f32.gmra.mxu0 %v117
    %v2980 = vpop.f32.mrf.mxu0
    %v2981 = vadd.f32 %v2868, %v2980
    %2982 = vmatmul.f32.gmra.mxu0 %v120
    %v2983 = vpop.f32.mrf.mxu0
    %v2984 = vadd.f32 %v2871, %v2983
    %2985 = vmatmul.f32.gmra.mxu0 %v123
    %v2986 = vpop.f32.mrf.mxu0
    %v2987 = vadd.f32 %v2874, %v2986
    %2988 = vmatmul.f32.gmra.mxu0 %v126
    %v2989 = vpop.f32.mrf.mxu0
    %v2990 = vadd.f32 %v2877, %v2989
    %2991 = vmatmul.f32.gmra.mxu0 %v129
    %v2992 = vpop.f32.mrf.mxu0
    %v2993 = vadd.f32 %v2880, %v2992
    %2994 = vmatmul.f32.gmra.mxu0 %v132
    %v2995 = vpop.f32.mrf.mxu0
    %v2996 = vadd.f32 %v2883, %v2995
    %2997 = vmatmul.f32.gmra.mxu0 %v135
    %v2998 = vpop.f32.mrf.mxu0
    %v2999 = vadd.f32 %v2886, %v2998
    %3000 = vmatmul.f32.gmra.mxu0 %v138
    %v3001 = vpop.f32.mrf.mxu0
    %v3002 = vadd.f32 %v2889, %v3001
    %3003 = vmatmul.f32.gmra.mxu0 %v141
    %v3004 = vpop.f32.mrf.mxu0
    %v3005 = vadd.f32 %v2892, %v3004
    %3006 = vmatmul.f32.gmra.mxu0 %v144
    %v3007 = vpop.f32.mrf.mxu0
    %v3008 = vadd.f32 %v2895, %v3007
    %3009 = vmatmul.f32.gmra.mxu0 %v147
    %v3010 = vpop.f32.mrf.mxu0
    %v3011 = vadd.f32 %v2898, %v3010
    %3012 = vmatmul.f32.gmra.mxu0 %v150
    %v3013 = vpop.f32.mrf.mxu0
    %v3014 = vadd.f32 %v2901, %v3013
    %3015 = vmatmul.f32.gmra.mxu0 %v153
    %v3016 = vpop.f32.mrf.mxu0
    %v3017 = vadd.f32 %v2904, %v3016
    %3018 = vmatmul.f32.gmra.mxu0 %v156
    %v3019 = vpop.f32.mrf.mxu0
    %v3020 = vadd.f32 %v2907, %v3019
    %3021 = vmatmul.f32.gmra.mxu0 %v159
    %v3022 = vpop.f32.mrf.mxu0
    %v3023 = vadd.f32 %v2910, %v3022
    %3024 = vmatmul.f32.gmra.mxu0 %v162
    %v3025 = vpop.f32.mrf.mxu0
    %v3026 = vadd.f32 %v2913, %v3025
    %3027 = vmatmul.f32.gmra.mxu0 %v165
    %v3028 = vpop.f32.mrf.mxu0
    %v3029 = vadd.f32 %v2916, %v3028
    %3030 = vmatmul.f32.gmra.mxu0 %v168
    %v3031 = vpop.f32.mrf.mxu0
    %v3032 = vadd.f32 %v2919, %v3031
    %3033 = vmatmul.f32.gmra.mxu0 %v171
    %v3034 = vpop.f32.mrf.mxu0
    %v3035 = vadd.f32 %v2922, %v3034
    %3036 = vmatmul.f32.gmra.mxu0 %v174
    %v3037 = vpop.f32.mrf.mxu0
    %v3038 = vadd.f32 %v2925, %v3037
    %3039 = vmatmul.f32.gmra.mxu0 %v177
    %v3040 = vpop.f32.mrf.mxu0
    %v3041 = vadd.f32 %v2928, %v3040
    %3042 = vmatmul.f32.gmra.mxu0 %v180
    %v3043 = vpop.f32.mrf.mxu0
    %v3044 = vadd.f32 %v2931, %v3043
    %3045 = vmatmul.f32.gmra.mxu0 %v183
    %v3046 = vpop.f32.mrf.mxu0
    %v3047 = vadd.f32 %v2934, %v3046
    %3048 = vmatmul.f32.gmra.mxu0 %v186
    %v3049 = vpop.f32.mrf.mxu0
    %v3050 = vadd.f32 %v2937, %v3049
    %3051 = vmatmul.f32.gmra.mxu0 %v189
    %v3052 = vpop.f32.mrf.mxu0
    %v3053 = vadd.f32 %v2940, %v3052
    %3054 = vdwg.mxu0
    %3055 = vmatpush.msra.mxu0 %v761
    %3056 = vmatpush.msra.mxu0 %v749
    %3057 = vmatpush.msra.mxu0 %v737
    %3058 = vmatpush.msra.mxu0 %v725
    %3059 = vmatpush.msra.mxu0 %v713
    %3060 = vmatpush.msra.mxu0 %v701
    %3061 = vmatpush.msra.mxu0 %v689
    %3062 = vmatpush.msra.mxu0 %v677
    %3063 = vmatpush.msra.mxu0 %v665
    %3064 = vmatpush.msra.mxu0 %v653
    %3065 = vmatpush.msra.mxu0 %v641
    %3066 = vmatpush.msra.mxu0 %v629
    %3067 = vmatpush.msra.mxu0 %v617
    %3068 = vmatpush.msra.mxu0 %v605
    %3069 = vmatpush.msra.mxu0 %v593
    %3070 = vmatpush.msra.mxu0 %v581
    %3071 = vmatmul.f32.gmra.mxu0 %v97
    %v3072 = vpop.f32.mrf.mxu0
    %v3073 = vadd.f32 %v2960, %v3072
    %3074 = vmatmul.f32.gmra.mxu0 %v100
    %v3075 = vpop.f32.mrf.mxu0
    %v3076 = vadd.f32 %v2963, %v3075
    %3077 = vmatmul.f32.gmra.mxu0 %v103
    %v3078 = vpop.f32.mrf.mxu0
    %v3079 = vadd.f32 %v2966, %v3078
    %3080 = vmatmul.f32.gmra.mxu0 %v106
    %v3081 = vpop.f32.mrf.mxu0
    %v3082 = vadd.f32 %v2969, %v3081
    %3083 = vmatmul.f32.gmra.mxu0 %v109
    %v3084 = vpop.f32.mrf.mxu0
    %v3085 = vadd.f32 %v2972, %v3084
    %3086 = vmatmul.f32.gmra.mxu0 %v112
    %v3087 = vpop.f32.mrf.mxu0
    %v3088 = vadd.f32 %v2975, %v3087
    %3089 = vmatmul.f32.gmra.mxu0 %v115
    %v3090 = vpop.f32.mrf.mxu0
    %v3091 = vadd.f32 %v2978, %v3090
    %3092 = vmatmul.f32.gmra.mxu0 %v118
    %v3093 = vpop.f32.mrf.mxu0
    %v3094 = vadd.f32 %v2981, %v3093
    %3095 = vmatmul.f32.gmra.mxu0 %v121
    %v3096 = vpop.f32.mrf.mxu0
    %v3097 = vadd.f32 %v2984, %v3096
    %3098 = vmatmul.f32.gmra.mxu0 %v124
    %v3099 = vpop.f32.mrf.mxu0
    %v3100 = vadd.f32 %v2987, %v3099
    %3101 = vmatmul.f32.gmra.mxu0 %v127
    %v3102 = vpop.f32.mrf.mxu0
    %v3103 = vadd.f32 %v2990, %v3102
    %3104 = vmatmul.f32.gmra.mxu0 %v130
    %v3105 = vpop.f32.mrf.mxu0
    %v3106 = vadd.f32 %v2993, %v3105
    %3107 = vmatmul.f32.gmra.mxu0 %v133
    %v3108 = vpop.f32.mrf.mxu0
    %v3109 = vadd.f32 %v2996, %v3108
    %3110 = vmatmul.f32.gmra.mxu0 %v136
    %v3111 = vpop.f32.mrf.mxu0
    %v3112 = vadd.f32 %v2999, %v3111
    %3113 = vmatmul.f32.gmra.mxu0 %v139
    %v3114 = vpop.f32.mrf.mxu0
    %v3115 = vadd.f32 %v3002, %v3114
    %3116 = vmatmul.f32.gmra.mxu0 %v142
    %v3117 = vpop.f32.mrf.mxu0
    %v3118 = vadd.f32 %v3005, %v3117
    %3119 = vmatmul.f32.gmra.mxu0 %v145
    %v3120 = vpop.f32.mrf.mxu0
    %v3121 = vadd.f32 %v3008, %v3120
    %3122 = vmatmul.f32.gmra.mxu0 %v148
    %v3123 = vpop.f32.mrf.mxu0
    %v3124 = vadd.f32 %v3011, %v3123
    %3125 = vmatmul.f32.gmra.mxu0 %v151
    %v3126 = vpop.f32.mrf.mxu0
    %v3127 = vadd.f32 %v3014, %v3126
    %3128 = vmatmul.f32.gmra.mxu0 %v154
    %v3129 = vpop.f32.mrf.mxu0
    %v3130 = vadd.f32 %v3017, %v3129
    %3131 = vmatmul.f32.gmra.mxu0 %v157
    %v3132 = vpop.f32.mrf.mxu0
    %v3133 = vadd.f32 %v3020, %v3132
    %3134 = vmatmul.f32.gmra.mxu0 %v160
    %v3135 = vpop.f32.mrf.mxu0
    %v3136 = vadd.f32 %v3023, %v3135
    %3137 = vmatmul.f32.gmra.mxu0 %v163
    %v3138 = vpop.f32.mrf.mxu0
    %v3139 = vadd.f32 %v3026, %v3138
    %3140 = vmatmul.f32.gmra.mxu0 %v166
    %v3141 = vpop.f32.mrf.mxu0
    %v3142 = vadd.f32 %v3029, %v3141
    %3143 = vmatmul.f32.gmra.mxu0 %v169
    %v3144 = vpop.f32.mrf.mxu0
    %v3145 = vadd.f32 %v3032, %v3144
    %3146 = vmatmul.f32.gmra.mxu0 %v172
    %v3147 = vpop.f32.mrf.mxu0
    %v3148 = vadd.f32 %v3035, %v3147
    %3149 = vmatmul.f32.gmra.mxu0 %v175
    %v3150 = vpop.f32.mrf.mxu0
    %v3151 = vadd.f32 %v3038, %v3150
    %3152 = vmatmul.f32.gmra.mxu0 %v178
    %v3153 = vpop.f32.mrf.mxu0
    %v3154 = vadd.f32 %v3041, %v3153
    %3155 = vmatmul.f32.gmra.mxu0 %v181
    %v3156 = vpop.f32.mrf.mxu0
    %v3157 = vadd.f32 %v3044, %v3156
    %3158 = vmatmul.f32.gmra.mxu0 %v184
    %v3159 = vpop.f32.mrf.mxu0
    %v3160 = vadd.f32 %v3047, %v3159
    %3161 = vmatmul.f32.gmra.mxu0 %v187
    %v3162 = vpop.f32.mrf.mxu0
    %v3163 = vadd.f32 %v3050, %v3162
    %3164 = vmatmul.f32.gmra.mxu0 %v190
    %v3165 = vpop.f32.mrf.mxu0
    %v3166 = vadd.f32 %v3053, %v3165
    %3167 = vdwg.mxu0
    %3168 = vmatpush.msra.mxu0 %v378
    %3169 = vmatpush.msra.mxu0 %v366
    %3170 = vmatpush.msra.mxu0 %v354
    %3171 = vmatpush.msra.mxu0 %v342
    %3172 = vmatpush.msra.mxu0 %v330
    %3173 = vmatpush.msra.mxu0 %v318
    %3174 = vmatpush.msra.mxu0 %v306
    %3175 = vmatpush.msra.mxu0 %v294
    %3176 = vmatpush.msra.mxu0 %v282
    %3177 = vmatpush.msra.mxu0 %v270
    %3178 = vmatpush.msra.mxu0 %v258
    %3179 = vmatpush.msra.mxu0 %v246
    %3180 = vmatpush.msra.mxu0 %v234
    %3181 = vmatpush.msra.mxu0 %v222
    %3182 = vmatpush.msra.mxu0 %v210
    %3183 = vmatpush.msra.mxu0 %v198
    %3184 = vmatmul.f32.gmra.mxu0 %v95
    %v3185 = vpop.f32.mrf.mxu0
    %v3186 = vadd.f32 %v778, %v3185
    %3187 = vmatmul.f32.gmra.mxu0 %v98
    %v3188 = vpop.f32.mrf.mxu0
    %v3189 = vadd.f32 %v778, %v3188
    %3190 = vmatmul.f32.gmra.mxu0 %v101
    %v3191 = vpop.f32.mrf.mxu0
    %v3192 = vadd.f32 %v778, %v3191
    %3193 = vmatmul.f32.gmra.mxu0 %v104
    %v3194 = vpop.f32.mrf.mxu0
    %v3195 = vadd.f32 %v778, %v3194
    %3196 = vmatmul.f32.gmra.mxu0 %v107
    %v3197 = vpop.f32.mrf.mxu0
    %v3198 = vadd.f32 %v778, %v3197
    %3199 = vmatmul.f32.gmra.mxu0 %v110
    %v3200 = vpop.f32.mrf.mxu0
    %v3201 = vadd.f32 %v778, %v3200
    %3202 = vmatmul.f32.gmra.mxu0 %v113
    %v3203 = vpop.f32.mrf.mxu0
    %v3204 = vadd.f32 %v778, %v3203
    %3205 = vmatmul.f32.gmra.mxu0 %v116
    %v3206 = vpop.f32.mrf.mxu0
    %v3207 = vadd.f32 %v778, %v3206
    %3208 = vmatmul.f32.gmra.mxu0 %v119
    %v3209 = vpop.f32.mrf.mxu0
    %v3210 = vadd.f32 %v778, %v3209
    %3211 = vmatmul.f32.gmra.mxu0 %v122
    %v3212 = vpop.f32.mrf.mxu0
    %v3213 = vadd.f32 %v778, %v3212
    %3214 = vmatmul.f32.gmra.mxu0 %v125
    %v3215 = vpop.f32.mrf.mxu0
    %v3216 = vadd.f32 %v778, %v3215
    %3217 = vmatmul.f32.gmra.mxu0 %v128
    %v3218 = vpop.f32.mrf.mxu0
    %v3219 = vadd.f32 %v778, %v3218
    %3220 = vmatmul.f32.gmra.mxu0 %v131
    %v3221 = vpop.f32.mrf.mxu0
    %v3222 = vadd.f32 %v778, %v3221
    %3223 = vmatmul.f32.gmra.mxu0 %v134
    %v3224 = vpop.f32.mrf.mxu0
    %v3225 = vadd.f32 %v778, %v3224
    %3226 = vmatmul.f32.gmra.mxu0 %v137
    %v3227 = vpop.f32.mrf.mxu0
    %v3228 = vadd.f32 %v778, %v3227
    %3229 = vmatmul.f32.gmra.mxu0 %v140
    %v3230 = vpop.f32.mrf.mxu0
    %v3231 = vadd.f32 %v778, %v3230
    %3232 = vmatmul.f32.gmra.mxu0 %v143
    %v3233 = vpop.f32.mrf.mxu0
    %v3234 = vadd.f32 %v778, %v3233
    %3235 = vmatmul.f32.gmra.mxu0 %v146
    %v3236 = vpop.f32.mrf.mxu0
    %v3237 = vadd.f32 %v778, %v3236
    %3238 = vmatmul.f32.gmra.mxu0 %v149
    %v3239 = vpop.f32.mrf.mxu0
    %v3240 = vadd.f32 %v778, %v3239
    %3241 = vmatmul.f32.gmra.mxu0 %v152
    %v3242 = vpop.f32.mrf.mxu0
    %v3243 = vadd.f32 %v778, %v3242
    %3244 = vmatmul.f32.gmra.mxu0 %v155
    %v3245 = vpop.f32.mrf.mxu0
    %v3246 = vadd.f32 %v778, %v3245
    %3247 = vmatmul.f32.gmra.mxu0 %v158
    %v3248 = vpop.f32.mrf.mxu0
    %v3249 = vadd.f32 %v778, %v3248
    %3250 = vmatmul.f32.gmra.mxu0 %v161
    %v3251 = vpop.f32.mrf.mxu0
    %v3252 = vadd.f32 %v778, %v3251
    %3253 = vmatmul.f32.gmra.mxu0 %v164
    %v3254 = vpop.f32.mrf.mxu0
    %v3255 = vadd.f32 %v778, %v3254
    %3256 = vmatmul.f32.gmra.mxu0 %v167
    %v3257 = vpop.f32.mrf.mxu0
    %v3258 = vadd.f32 %v778, %v3257
    %3259 = vmatmul.f32.gmra.mxu0 %v170
    %v3260 = vpop.f32.mrf.mxu0
    %v3261 = vadd.f32 %v778, %v3260
    %3262 = vmatmul.f32.gmra.mxu0 %v173
    %v3263 = vpop.f32.mrf.mxu0
    %v3264 = vadd.f32 %v778, %v3263
    %3265 = vmatmul.f32.gmra.mxu0 %v176
    %v3266 = vpop.f32.mrf.mxu0
    %v3267 = vadd.f32 %v778, %v3266
    %3268 = vmatmul.f32.gmra.mxu0 %v179
    %v3269 = vpop.f32.mrf.mxu0
    %v3270 = vadd.f32 %v778, %v3269
    %3271 = vmatmul.f32.gmra.mxu0 %v182
    %v3272 = vpop.f32.mrf.mxu0
    %v3273 = vadd.f32 %v778, %v3272
    %3274 = vmatmul.f32.gmra.mxu0 %v185
    %v3275 = vpop.f32.mrf.mxu0
    %v3276 = vadd.f32 %v778, %v3275
    %3277 = vmatmul.f32.gmra.mxu0 %v188
    %v3278 = vpop.f32.mrf.mxu0
    %v3279 = vadd.f32 %v778, %v3278
    %3280 = vdwg.mxu0
    %3281 = vmatpush.msra.mxu0 %v570
    %3282 = vmatpush.msra.mxu0 %v558
    %3283 = vmatpush.msra.mxu0 %v546
    %3284 = vmatpush.msra.mxu0 %v534
    %3285 = vmatpush.msra.mxu0 %v522
    %3286 = vmatpush.msra.mxu0 %v510
    %3287 = vmatpush.msra.mxu0 %v498
    %3288 = vmatpush.msra.mxu0 %v486
    %3289 = vmatpush.msra.mxu0 %v474
    %3290 = vmatpush.msra.mxu0 %v462
    %3291 = vmatpush.msra.mxu0 %v450
    %3292 = vmatpush.msra.mxu0 %v438
    %3293 = vmatpush.msra.mxu0 %v426
    %3294 = vmatpush.msra.mxu0 %v414
    %3295 = vmatpush.msra.mxu0 %v402
    %3296 = vmatpush.msra.mxu0 %v390
    %3297 = vmatmul.f32.gmra.mxu0 %v96
    %v3298 = vpop.f32.mrf.mxu0
    %v3299 = vadd.f32 %v3186, %v3298
    %3300 = vmatmul.f32.gmra.mxu0 %v99
    %v3301 = vpop.f32.mrf.mxu0
    %v3302 = vadd.f32 %v3189, %v3301
    %3303 = vmatmul.f32.gmra.mxu0 %v102
    %v3304 = vpop.f32.mrf.mxu0
    %v3305 = vadd.f32 %v3192, %v3304
    %3306 = vmatmul.f32.gmra.mxu0 %v105
    %v3307 = vpop.f32.mrf.mxu0
    %v3308 = vadd.f32 %v3195, %v3307
    %3309 = vmatmul.f32.gmra.mxu0 %v108
    %v3310 = vpop.f32.mrf.mxu0
    %v3311 = vadd.f32 %v3198, %v3310
    %3312 = vmatmul.f32.gmra.mxu0 %v111
    %v3313 = vpop.f32.mrf.mxu0
    %v3314 = vadd.f32 %v3201, %v3313
    %3315 = vmatmul.f32.gmra.mxu0 %v114
    %v3316 = vpop.f32.mrf.mxu0
    %v3317 = vadd.f32 %v3204, %v3316
    %3318 = vmatmul.f32.gmra.mxu0 %v117
    %v3319 = vpop.f32.mrf.mxu0
    %v3320 = vadd.f32 %v3207, %v3319
    %3321 = vmatmul.f32.gmra.mxu0 %v120
    %v3322 = vpop.f32.mrf.mxu0
    %v3323 = vadd.f32 %v3210, %v3322
    %3324 = vmatmul.f32.gmra.mxu0 %v123
    %v3325 = vpop.f32.mrf.mxu0
    %v3326 = vadd.f32 %v3213, %v3325
    %3327 = vmatmul.f32.gmra.mxu0 %v126
    %v3328 = vpop.f32.mrf.mxu0
    %v3329 = vadd.f32 %v3216, %v3328
    %3330 = vmatmul.f32.gmra.mxu0 %v129
    %v3331 = vpop.f32.mrf.mxu0
    %v3332 = vadd.f32 %v3219, %v3331
    %3333 = vmatmul.f32.gmra.mxu0 %v132
    %v3334 = vpop.f32.mrf.mxu0
    %v3335 = vadd.f32 %v3222, %v3334
    %3336 = vmatmul.f32.gmra.mxu0 %v135
    %v3337 = vpop.f32.mrf.mxu0
    %v3338 = vadd.f32 %v3225, %v3337
    %3339 = vmatmul.f32.gmra.mxu0 %v138
    %v3340 = vpop.f32.mrf.mxu0
    %v3341 = vadd.f32 %v3228, %v3340
    %3342 = vmatmul.f32.gmra.mxu0 %v141
    %v3343 = vpop.f32.mrf.mxu0
    %v3344 = vadd.f32 %v3231, %v3343
    %3345 = vmatmul.f32.gmra.mxu0 %v144
    %v3346 = vpop.f32.mrf.mxu0
    %v3347 = vadd.f32 %v3234, %v3346
    %3348 = vmatmul.f32.gmra.mxu0 %v147
    %v3349 = vpop.f32.mrf.mxu0
    %v3350 = vadd.f32 %v3237, %v3349
    %3351 = vmatmul.f32.gmra.mxu0 %v150
    %v3352 = vpop.f32.mrf.mxu0
    %v3353 = vadd.f32 %v3240, %v3352
    %3354 = vmatmul.f32.gmra.mxu0 %v153
    %v3355 = vpop.f32.mrf.mxu0
    %v3356 = vadd.f32 %v3243, %v3355
    %3357 = vmatmul.f32.gmra.mxu0 %v156
    %v3358 = vpop.f32.mrf.mxu0
    %v3359 = vadd.f32 %v3246, %v3358
    %3360 = vmatmul.f32.gmra.mxu0 %v159
    %v3361 = vpop.f32.mrf.mxu0
    %v3362 = vadd.f32 %v3249, %v3361
    %3363 = vmatmul.f32.gmra.mxu0 %v162
    %v3364 = vpop.f32.mrf.mxu0
    %v3365 = vadd.f32 %v3252, %v3364
    %3366 = vmatmul.f32.gmra.mxu0 %v165
    %v3367 = vpop.f32.mrf.mxu0
    %v3368 = vadd.f32 %v3255, %v3367
    %3369 = vmatmul.f32.gmra.mxu0 %v168
    %v3370 = vpop.f32.mrf.mxu0
    %v3371 = vadd.f32 %v3258, %v3370
    %3372 = vmatmul.f32.gmra.mxu0 %v171
    %v3373 = vpop.f32.mrf.mxu0
    %v3374 = vadd.f32 %v3261, %v3373
    %3375 = vmatmul.f32.gmra.mxu0 %v174
    %v3376 = vpop.f32.mrf.mxu0
    %v3377 = vadd.f32 %v3264, %v3376
    %3378 = vmatmul.f32.gmra.mxu0 %v177
    %v3379 = vpop.f32.mrf.mxu0
    %v3380 = vadd.f32 %v3267, %v3379
    %3381 = vmatmul.f32.gmra.mxu0 %v180
    %v3382 = vpop.f32.mrf.mxu0
    %v3383 = vadd.f32 %v3270, %v3382
    %3384 = vmatmul.f32.gmra.mxu0 %v183
    %v3385 = vpop.f32.mrf.mxu0
    %v3386 = vadd.f32 %v3273, %v3385
    %3387 = vmatmul.f32.gmra.mxu0 %v186
    %v3388 = vpop.f32.mrf.mxu0
    %v3389 = vadd.f32 %v3276, %v3388
    %3390 = vmatmul.f32.gmra.mxu0 %v189
    %v3391 = vpop.f32.mrf.mxu0
    %v3392 = vadd.f32 %v3279, %v3391
    %3393 = vdwg.mxu0
    %3394 = vmatpush.msra.mxu0 %v762
    %3395 = vmatpush.msra.mxu0 %v750
    %3396 = vmatpush.msra.mxu0 %v738
    %3397 = vmatpush.msra.mxu0 %v726
    %3398 = vmatpush.msra.mxu0 %v714
    %3399 = vmatpush.msra.mxu0 %v702
    %3400 = vmatpush.msra.mxu0 %v690
    %3401 = vmatpush.msra.mxu0 %v678
    %3402 = vmatpush.msra.mxu0 %v666
    %3403 = vmatpush.msra.mxu0 %v654
    %3404 = vmatpush.msra.mxu0 %v642
    %3405 = vmatpush.msra.mxu0 %v630
    %3406 = vmatpush.msra.mxu0 %v618
    %3407 = vmatpush.msra.mxu0 %v606
    %3408 = vmatpush.msra.mxu0 %v594
    %3409 = vmatpush.msra.mxu0 %v582
    %3410 = vmatmul.f32.gmra.mxu0 %v97
    %v3411 = vpop.f32.mrf.mxu0
    %v3412 = vadd.f32 %v3299, %v3411
    %3413 = vmatmul.f32.gmra.mxu0 %v100
    %v3414 = vpop.f32.mrf.mxu0
    %v3415 = vadd.f32 %v3302, %v3414
    %3416 = vmatmul.f32.gmra.mxu0 %v103
    %v3417 = vpop.f32.mrf.mxu0
    %v3418 = vadd.f32 %v3305, %v3417
    %3419 = vmatmul.f32.gmra.mxu0 %v106
    %v3420 = vpop.f32.mrf.mxu0
    %v3421 = vadd.f32 %v3308, %v3420
    %3422 = vmatmul.f32.gmra.mxu0 %v109
    %v3423 = vpop.f32.mrf.mxu0
    %v3424 = vadd.f32 %v3311, %v3423
    %3425 = vmatmul.f32.gmra.mxu0 %v112
    %v3426 = vpop.f32.mrf.mxu0
    %v3427 = vadd.f32 %v3314, %v3426
    %3428 = vmatmul.f32.gmra.mxu0 %v115
    %v3429 = vpop.f32.mrf.mxu0
    %v3430 = vadd.f32 %v3317, %v3429
    %3431 = vmatmul.f32.gmra.mxu0 %v118
    %v3432 = vpop.f32.mrf.mxu0
    %v3433 = vadd.f32 %v3320, %v3432
    %3434 = vmatmul.f32.gmra.mxu0 %v121
    %v3435 = vpop.f32.mrf.mxu0
    %v3436 = vadd.f32 %v3323, %v3435
    %3437 = vmatmul.f32.gmra.mxu0 %v124
    %v3438 = vpop.f32.mrf.mxu0
    %v3439 = vadd.f32 %v3326, %v3438
    %3440 = vmatmul.f32.gmra.mxu0 %v127
    %v3441 = vpop.f32.mrf.mxu0
    %v3442 = vadd.f32 %v3329, %v3441
    %3443 = vmatmul.f32.gmra.mxu0 %v130
    %v3444 = vpop.f32.mrf.mxu0
    %v3445 = vadd.f32 %v3332, %v3444
    %3446 = vmatmul.f32.gmra.mxu0 %v133
    %v3447 = vpop.f32.mrf.mxu0
    %v3448 = vadd.f32 %v3335, %v3447
    %3449 = vmatmul.f32.gmra.mxu0 %v136
    %v3450 = vpop.f32.mrf.mxu0
    %v3451 = vadd.f32 %v3338, %v3450
    %3452 = vmatmul.f32.gmra.mxu0 %v139
    %v3453 = vpop.f32.mrf.mxu0
    %v3454 = vadd.f32 %v3341, %v3453
    %3455 = vmatmul.f32.gmra.mxu0 %v142
    %v3456 = vpop.f32.mrf.mxu0
    %v3457 = vadd.f32 %v3344, %v3456
    %3458 = vmatmul.f32.gmra.mxu0 %v145
    %v3459 = vpop.f32.mrf.mxu0
    %v3460 = vadd.f32 %v3347, %v3459
    %3461 = vmatmul.f32.gmra.mxu0 %v148
    %v3462 = vpop.f32.mrf.mxu0
    %v3463 = vadd.f32 %v3350, %v3462
    %3464 = vmatmul.f32.gmra.mxu0 %v151
    %v3465 = vpop.f32.mrf.mxu0
    %v3466 = vadd.f32 %v3353, %v3465
    %3467 = vmatmul.f32.gmra.mxu0 %v154
    %v3468 = vpop.f32.mrf.mxu0
    %v3469 = vadd.f32 %v3356, %v3468
    %3470 = vmatmul.f32.gmra.mxu0 %v157
    %v3471 = vpop.f32.mrf.mxu0
    %v3472 = vadd.f32 %v3359, %v3471
    %3473 = vmatmul.f32.gmra.mxu0 %v160
    %v3474 = vpop.f32.mrf.mxu0
    %v3475 = vadd.f32 %v3362, %v3474
    %3476 = vmatmul.f32.gmra.mxu0 %v163
    %v3477 = vpop.f32.mrf.mxu0
    %v3478 = vadd.f32 %v3365, %v3477
    %3479 = vmatmul.f32.gmra.mxu0 %v166
    %v3480 = vpop.f32.mrf.mxu0
    %v3481 = vadd.f32 %v3368, %v3480
    %3482 = vmatmul.f32.gmra.mxu0 %v169
    %v3483 = vpop.f32.mrf.mxu0
    %v3484 = vadd.f32 %v3371, %v3483
    %3485 = vmatmul.f32.gmra.mxu0 %v172
    %v3486 = vpop.f32.mrf.mxu0
    %v3487 = vadd.f32 %v3374, %v3486
    %3488 = vmatmul.f32.gmra.mxu0 %v175
    %v3489 = vpop.f32.mrf.mxu0
    %v3490 = vadd.f32 %v3377, %v3489
    %3491 = vmatmul.f32.gmra.mxu0 %v178
    %v3492 = vpop.f32.mrf.mxu0
    %v3493 = vadd.f32 %v3380, %v3492
    %3494 = vmatmul.f32.gmra.mxu0 %v181
    %v3495 = vpop.f32.mrf.mxu0
    %v3496 = vadd.f32 %v3383, %v3495
    %3497 = vmatmul.f32.gmra.mxu0 %v184
    %v3498 = vpop.f32.mrf.mxu0
    %v3499 = vadd.f32 %v3386, %v3498
    %3500 = vmatmul.f32.gmra.mxu0 %v187
    %v3501 = vpop.f32.mrf.mxu0
    %v3502 = vadd.f32 %v3389, %v3501
    %3503 = vmatmul.f32.gmra.mxu0 %v190
    %v3504 = vpop.f32.mrf.mxu0
    %v3505 = vadd.f32 %v3392, %v3504
    %3506 = vdwg.mxu0
    %3507 = vmatpush.msra.mxu0 %v379
    %3508 = vmatpush.msra.mxu0 %v367
    %3509 = vmatpush.msra.mxu0 %v355
    %3510 = vmatpush.msra.mxu0 %v343
    %3511 = vmatpush.msra.mxu0 %v331
    %3512 = vmatpush.msra.mxu0 %v319
    %3513 = vmatpush.msra.mxu0 %v307
    %3514 = vmatpush.msra.mxu0 %v295
    %3515 = vmatpush.msra.mxu0 %v283
    %3516 = vmatpush.msra.mxu0 %v271
    %3517 = vmatpush.msra.mxu0 %v259
    %3518 = vmatpush.msra.mxu0 %v247
    %3519 = vmatpush.msra.mxu0 %v235
    %3520 = vmatpush.msra.mxu0 %v223
    %3521 = vmatpush.msra.mxu0 %v211
    %3522 = vmatpush.msra.mxu0 %v199
    %3523 = vmatmul.f32.gmra.mxu0 %v95
    %v3524 = vpop.f32.mrf.mxu0
    %v3525 = vadd.f32 %v779, %v3524
    %3526 = vmatmul.f32.gmra.mxu0 %v98
    %v3527 = vpop.f32.mrf.mxu0
    %v3528 = vadd.f32 %v779, %v3527
    %3529 = vmatmul.f32.gmra.mxu0 %v101
    %v3530 = vpop.f32.mrf.mxu0
    %v3531 = vadd.f32 %v779, %v3530
    %3532 = vmatmul.f32.gmra.mxu0 %v104
    %v3533 = vpop.f32.mrf.mxu0
    %v3534 = vadd.f32 %v779, %v3533
    %3535 = vmatmul.f32.gmra.mxu0 %v107
    %v3536 = vpop.f32.mrf.mxu0
    %v3537 = vadd.f32 %v779, %v3536
    %3538 = vmatmul.f32.gmra.mxu0 %v110
    %v3539 = vpop.f32.mrf.mxu0
    %v3540 = vadd.f32 %v779, %v3539
    %3541 = vmatmul.f32.gmra.mxu0 %v113
    %v3542 = vpop.f32.mrf.mxu0
    %v3543 = vadd.f32 %v779, %v3542
    %3544 = vmatmul.f32.gmra.mxu0 %v116
    %v3545 = vpop.f32.mrf.mxu0
    %v3546 = vadd.f32 %v779, %v3545
    %3547 = vmatmul.f32.gmra.mxu0 %v119
    %v3548 = vpop.f32.mrf.mxu0
    %v3549 = vadd.f32 %v779, %v3548
    %3550 = vmatmul.f32.gmra.mxu0 %v122
    %v3551 = vpop.f32.mrf.mxu0
    %v3552 = vadd.f32 %v779, %v3551
    %3553 = vmatmul.f32.gmra.mxu0 %v125
    %v3554 = vpop.f32.mrf.mxu0
    %v3555 = vadd.f32 %v779, %v3554
    %3556 = vmatmul.f32.gmra.mxu0 %v128
    %v3557 = vpop.f32.mrf.mxu0
    %v3558 = vadd.f32 %v779, %v3557
    %3559 = vmatmul.f32.gmra.mxu0 %v131
    %v3560 = vpop.f32.mrf.mxu0
    %v3561 = vadd.f32 %v779, %v3560
    %3562 = vmatmul.f32.gmra.mxu0 %v134
    %v3563 = vpop.f32.mrf.mxu0
    %v3564 = vadd.f32 %v779, %v3563
    %3565 = vmatmul.f32.gmra.mxu0 %v137
    %v3566 = vpop.f32.mrf.mxu0
    %v3567 = vadd.f32 %v779, %v3566
    %3568 = vmatmul.f32.gmra.mxu0 %v140
    %v3569 = vpop.f32.mrf.mxu0
    %v3570 = vadd.f32 %v779, %v3569
    %3571 = vmatmul.f32.gmra.mxu0 %v143
    %v3572 = vpop.f32.mrf.mxu0
    %v3573 = vadd.f32 %v779, %v3572
    %3574 = vmatmul.f32.gmra.mxu0 %v146
    %v3575 = vpop.f32.mrf.mxu0
    %v3576 = vadd.f32 %v779, %v3575
    %3577 = vmatmul.f32.gmra.mxu0 %v149
    %v3578 = vpop.f32.mrf.mxu0
    %v3579 = vadd.f32 %v779, %v3578
    %3580 = vmatmul.f32.gmra.mxu0 %v152
    %v3581 = vpop.f32.mrf.mxu0
    %v3582 = vadd.f32 %v779, %v3581
    %3583 = vmatmul.f32.gmra.mxu0 %v155
    %v3584 = vpop.f32.mrf.mxu0
    %v3585 = vadd.f32 %v779, %v3584
    %3586 = vmatmul.f32.gmra.mxu0 %v158
    %v3587 = vpop.f32.mrf.mxu0
    %v3588 = vadd.f32 %v779, %v3587
    %3589 = vmatmul.f32.gmra.mxu0 %v161
    %v3590 = vpop.f32.mrf.mxu0
    %v3591 = vadd.f32 %v779, %v3590
    %3592 = vmatmul.f32.gmra.mxu0 %v164
    %v3593 = vpop.f32.mrf.mxu0
    %v3594 = vadd.f32 %v779, %v3593
    %3595 = vmatmul.f32.gmra.mxu0 %v167
    %v3596 = vpop.f32.mrf.mxu0
    %v3597 = vadd.f32 %v779, %v3596
    %3598 = vmatmul.f32.gmra.mxu0 %v170
    %v3599 = vpop.f32.mrf.mxu0
    %v3600 = vadd.f32 %v779, %v3599
    %3601 = vmatmul.f32.gmra.mxu0 %v173
    %v3602 = vpop.f32.mrf.mxu0
    %v3603 = vadd.f32 %v779, %v3602
    %3604 = vmatmul.f32.gmra.mxu0 %v176
    %v3605 = vpop.f32.mrf.mxu0
    %v3606 = vadd.f32 %v779, %v3605
    %3607 = vmatmul.f32.gmra.mxu0 %v179
    %v3608 = vpop.f32.mrf.mxu0
    %v3609 = vadd.f32 %v779, %v3608
    %3610 = vmatmul.f32.gmra.mxu0 %v182
    %v3611 = vpop.f32.mrf.mxu0
    %v3612 = vadd.f32 %v779, %v3611
    %3613 = vmatmul.f32.gmra.mxu0 %v185
    %v3614 = vpop.f32.mrf.mxu0
    %v3615 = vadd.f32 %v779, %v3614
    %3616 = vmatmul.f32.gmra.mxu0 %v188
    %v3617 = vpop.f32.mrf.mxu0
    %v3618 = vadd.f32 %v779, %v3617
    %3619 = vdwg.mxu0
    %3620 = vmatpush.msra.mxu0 %v571
    %3621 = vmatpush.msra.mxu0 %v559
    %3622 = vmatpush.msra.mxu0 %v547
    %3623 = vmatpush.msra.mxu0 %v535
    %3624 = vmatpush.msra.mxu0 %v523
    %3625 = vmatpush.msra.mxu0 %v511
    %3626 = vmatpush.msra.mxu0 %v499
    %3627 = vmatpush.msra.mxu0 %v487
    %3628 = vmatpush.msra.mxu0 %v475
    %3629 = vmatpush.msra.mxu0 %v463
    %3630 = vmatpush.msra.mxu0 %v451
    %3631 = vmatpush.msra.mxu0 %v439
    %3632 = vmatpush.msra.mxu0 %v427
    %3633 = vmatpush.msra.mxu0 %v415
    %3634 = vmatpush.msra.mxu0 %v403
    %3635 = vmatpush.msra.mxu0 %v391
    %3636 = vmatmul.f32.gmra.mxu0 %v96
    %v3637 = vpop.f32.mrf.mxu0
    %v3638 = vadd.f32 %v3525, %v3637
    %3639 = vmatmul.f32.gmra.mxu0 %v99
    %v3640 = vpop.f32.mrf.mxu0
    %v3641 = vadd.f32 %v3528, %v3640
    %3642 = vmatmul.f32.gmra.mxu0 %v102
    %v3643 = vpop.f32.mrf.mxu0
    %v3644 = vadd.f32 %v3531, %v3643
    %3645 = vmatmul.f32.gmra.mxu0 %v105
    %v3646 = vpop.f32.mrf.mxu0
    %v3647 = vadd.f32 %v3534, %v3646
    %3648 = vmatmul.f32.gmra.mxu0 %v108
    %v3649 = vpop.f32.mrf.mxu0
    %v3650 = vadd.f32 %v3537, %v3649
    %3651 = vmatmul.f32.gmra.mxu0 %v111
    %v3652 = vpop.f32.mrf.mxu0
    %v3653 = vadd.f32 %v3540, %v3652
    %3654 = vmatmul.f32.gmra.mxu0 %v114
    %v3655 = vpop.f32.mrf.mxu0
    %v3656 = vadd.f32 %v3543, %v3655
    %3657 = vmatmul.f32.gmra.mxu0 %v117
    %v3658 = vpop.f32.mrf.mxu0
    %v3659 = vadd.f32 %v3546, %v3658
    %3660 = vmatmul.f32.gmra.mxu0 %v120
    %v3661 = vpop.f32.mrf.mxu0
    %v3662 = vadd.f32 %v3549, %v3661
    %3663 = vmatmul.f32.gmra.mxu0 %v123
    %v3664 = vpop.f32.mrf.mxu0
    %v3665 = vadd.f32 %v3552, %v3664
    %3666 = vmatmul.f32.gmra.mxu0 %v126
    %v3667 = vpop.f32.mrf.mxu0
    %v3668 = vadd.f32 %v3555, %v3667
    %3669 = vmatmul.f32.gmra.mxu0 %v129
    %v3670 = vpop.f32.mrf.mxu0
    %v3671 = vadd.f32 %v3558, %v3670
    %3672 = vmatmul.f32.gmra.mxu0 %v132
    %v3673 = vpop.f32.mrf.mxu0
    %v3674 = vadd.f32 %v3561, %v3673
    %3675 = vmatmul.f32.gmra.mxu0 %v135
    %v3676 = vpop.f32.mrf.mxu0
    %v3677 = vadd.f32 %v3564, %v3676
    %3678 = vmatmul.f32.gmra.mxu0 %v138
    %v3679 = vpop.f32.mrf.mxu0
    %v3680 = vadd.f32 %v3567, %v3679
    %3681 = vmatmul.f32.gmra.mxu0 %v141
    %v3682 = vpop.f32.mrf.mxu0
    %v3683 = vadd.f32 %v3570, %v3682
    %3684 = vmatmul.f32.gmra.mxu0 %v144
    %v3685 = vpop.f32.mrf.mxu0
    %v3686 = vadd.f32 %v3573, %v3685
    %3687 = vmatmul.f32.gmra.mxu0 %v147
    %v3688 = vpop.f32.mrf.mxu0
    %v3689 = vadd.f32 %v3576, %v3688
    %3690 = vmatmul.f32.gmra.mxu0 %v150
    %v3691 = vpop.f32.mrf.mxu0
    %v3692 = vadd.f32 %v3579, %v3691
    %3693 = vmatmul.f32.gmra.mxu0 %v153
    %v3694 = vpop.f32.mrf.mxu0
    %v3695 = vadd.f32 %v3582, %v3694
    %3696 = vmatmul.f32.gmra.mxu0 %v156
    %v3697 = vpop.f32.mrf.mxu0
    %v3698 = vadd.f32 %v3585, %v3697
    %3699 = vmatmul.f32.gmra.mxu0 %v159
    %v3700 = vpop.f32.mrf.mxu0
    %v3701 = vadd.f32 %v3588, %v3700
    %3702 = vmatmul.f32.gmra.mxu0 %v162
    %v3703 = vpop.f32.mrf.mxu0
    %v3704 = vadd.f32 %v3591, %v3703
    %3705 = vmatmul.f32.gmra.mxu0 %v165
    %v3706 = vpop.f32.mrf.mxu0
    %v3707 = vadd.f32 %v3594, %v3706
    %3708 = vmatmul.f32.gmra.mxu0 %v168
    %v3709 = vpop.f32.mrf.mxu0
    %v3710 = vadd.f32 %v3597, %v3709
    %3711 = vmatmul.f32.gmra.mxu0 %v171
    %v3712 = vpop.f32.mrf.mxu0
    %v3713 = vadd.f32 %v3600, %v3712
    %3714 = vmatmul.f32.gmra.mxu0 %v174
    %v3715 = vpop.f32.mrf.mxu0
    %v3716 = vadd.f32 %v3603, %v3715
    %3717 = vmatmul.f32.gmra.mxu0 %v177
    %v3718 = vpop.f32.mrf.mxu0
    %v3719 = vadd.f32 %v3606, %v3718
    %3720 = vmatmul.f32.gmra.mxu0 %v180
    %v3721 = vpop.f32.mrf.mxu0
    %v3722 = vadd.f32 %v3609, %v3721
    %3723 = vmatmul.f32.gmra.mxu0 %v183
    %v3724 = vpop.f32.mrf.mxu0
    %v3725 = vadd.f32 %v3612, %v3724
    %3726 = vmatmul.f32.gmra.mxu0 %v186
    %v3727 = vpop.f32.mrf.mxu0
    %v3728 = vadd.f32 %v3615, %v3727
    %3729 = vmatmul.f32.gmra.mxu0 %v189
    %v3730 = vpop.f32.mrf.mxu0
    %v3731 = vadd.f32 %v3618, %v3730
    %3732 = vdwg.mxu0
    %3733 = vmatpush.msra.mxu0 %v763
    %3734 = vmatpush.msra.mxu0 %v751
    %3735 = vmatpush.msra.mxu0 %v739
    %3736 = vmatpush.msra.mxu0 %v727
    %3737 = vmatpush.msra.mxu0 %v715
    %3738 = vmatpush.msra.mxu0 %v703
    %3739 = vmatpush.msra.mxu0 %v691
    %3740 = vmatpush.msra.mxu0 %v679
    %3741 = vmatpush.msra.mxu0 %v667
    %3742 = vmatpush.msra.mxu0 %v655
    %3743 = vmatpush.msra.mxu0 %v643
    %3744 = vmatpush.msra.mxu0 %v631
    %3745 = vmatpush.msra.mxu0 %v619
    %3746 = vmatpush.msra.mxu0 %v607
    %3747 = vmatpush.msra.mxu0 %v595
    %3748 = vmatpush.msra.mxu0 %v583
    %3749 = vmatmul.f32.gmra.mxu0 %v97
    %v3750 = vpop.f32.mrf.mxu0
    %v3751 = vadd.f32 %v3638, %v3750
    %3752 = vmatmul.f32.gmra.mxu0 %v100
    %v3753 = vpop.f32.mrf.mxu0
    %v3754 = vadd.f32 %v3641, %v3753
    %3755 = vmatmul.f32.gmra.mxu0 %v103
    %v3756 = vpop.f32.mrf.mxu0
    %v3757 = vadd.f32 %v3644, %v3756
    %3758 = vmatmul.f32.gmra.mxu0 %v106
    %v3759 = vpop.f32.mrf.mxu0
    %v3760 = vadd.f32 %v3647, %v3759
    %3761 = vmatmul.f32.gmra.mxu0 %v109
    %v3762 = vpop.f32.mrf.mxu0
    %v3763 = vadd.f32 %v3650, %v3762
    %3764 = vmatmul.f32.gmra.mxu0 %v112
    %v3765 = vpop.f32.mrf.mxu0
    %v3766 = vadd.f32 %v3653, %v3765
    %3767 = vmatmul.f32.gmra.mxu0 %v115
    %v3768 = vpop.f32.mrf.mxu0
    %v3769 = vadd.f32 %v3656, %v3768
    %3770 = vmatmul.f32.gmra.mxu0 %v118
    %v3771 = vpop.f32.mrf.mxu0
    %v3772 = vadd.f32 %v3659, %v3771
    %3773 = vmatmul.f32.gmra.mxu0 %v121
    %v3774 = vpop.f32.mrf.mxu0
    %v3775 = vadd.f32 %v3662, %v3774
    %3776 = vmatmul.f32.gmra.mxu0 %v124
    %v3777 = vpop.f32.mrf.mxu0
    %v3778 = vadd.f32 %v3665, %v3777
    %3779 = vmatmul.f32.gmra.mxu0 %v127
    %v3780 = vpop.f32.mrf.mxu0
    %v3781 = vadd.f32 %v3668, %v3780
    %3782 = vmatmul.f32.gmra.mxu0 %v130
    %v3783 = vpop.f32.mrf.mxu0
    %v3784 = vadd.f32 %v3671, %v3783
    %3785 = vmatmul.f32.gmra.mxu0 %v133
    %v3786 = vpop.f32.mrf.mxu0
    %v3787 = vadd.f32 %v3674, %v3786
    %3788 = vmatmul.f32.gmra.mxu0 %v136
    %v3789 = vpop.f32.mrf.mxu0
    %v3790 = vadd.f32 %v3677, %v3789
    %3791 = vmatmul.f32.gmra.mxu0 %v139
    %v3792 = vpop.f32.mrf.mxu0
    %v3793 = vadd.f32 %v3680, %v3792
    %3794 = vmatmul.f32.gmra.mxu0 %v142
    %v3795 = vpop.f32.mrf.mxu0
    %v3796 = vadd.f32 %v3683, %v3795
    %3797 = vmatmul.f32.gmra.mxu0 %v145
    %v3798 = vpop.f32.mrf.mxu0
    %v3799 = vadd.f32 %v3686, %v3798
    %3800 = vmatmul.f32.gmra.mxu0 %v148
    %v3801 = vpop.f32.mrf.mxu0
    %v3802 = vadd.f32 %v3689, %v3801
    %3803 = vmatmul.f32.gmra.mxu0 %v151
    %v3804 = vpop.f32.mrf.mxu0
    %v3805 = vadd.f32 %v3692, %v3804
    %3806 = vmatmul.f32.gmra.mxu0 %v154
    %v3807 = vpop.f32.mrf.mxu0
    %v3808 = vadd.f32 %v3695, %v3807
    %3809 = vmatmul.f32.gmra.mxu0 %v157
    %v3810 = vpop.f32.mrf.mxu0
    %v3811 = vadd.f32 %v3698, %v3810
    %3812 = vmatmul.f32.gmra.mxu0 %v160
    %v3813 = vpop.f32.mrf.mxu0
    %v3814 = vadd.f32 %v3701, %v3813
    %3815 = vmatmul.f32.gmra.mxu0 %v163
    %v3816 = vpop.f32.mrf.mxu0
    %v3817 = vadd.f32 %v3704, %v3816
    %3818 = vmatmul.f32.gmra.mxu0 %v166
    %v3819 = vpop.f32.mrf.mxu0
    %v3820 = vadd.f32 %v3707, %v3819
    %3821 = vmatmul.f32.gmra.mxu0 %v169
    %v3822 = vpop.f32.mrf.mxu0
    %v3823 = vadd.f32 %v3710, %v3822
    %3824 = vmatmul.f32.gmra.mxu0 %v172
    %v3825 = vpop.f32.mrf.mxu0
    %v3826 = vadd.f32 %v3713, %v3825
    %3827 = vmatmul.f32.gmra.mxu0 %v175
    %v3828 = vpop.f32.mrf.mxu0
    %v3829 = vadd.f32 %v3716, %v3828
    %3830 = vmatmul.f32.gmra.mxu0 %v178
    %v3831 = vpop.f32.mrf.mxu0
    %v3832 = vadd.f32 %v3719, %v3831
    %3833 = vmatmul.f32.gmra.mxu0 %v181
    %v3834 = vpop.f32.mrf.mxu0
    %v3835 = vadd.f32 %v3722, %v3834
    %3836 = vmatmul.f32.gmra.mxu0 %v184
    %v3837 = vpop.f32.mrf.mxu0
    %v3838 = vadd.f32 %v3725, %v3837
    %3839 = vmatmul.f32.gmra.mxu0 %v187
    %v3840 = vpop.f32.mrf.mxu0
    %v3841 = vadd.f32 %v3728, %v3840
    %3842 = vmatmul.f32.gmra.mxu0 %v190
    %v3843 = vpop.f32.mrf.mxu0
    %v3844 = vadd.f32 %v3731, %v3843
    %3845 = vdwg.mxu0
    %3846 = vmatpush.msra.mxu0 %v380
    %3847 = vmatpush.msra.mxu0 %v368
    %3848 = vmatpush.msra.mxu0 %v356
    %3849 = vmatpush.msra.mxu0 %v344
    %3850 = vmatpush.msra.mxu0 %v332
    %3851 = vmatpush.msra.mxu0 %v320
    %3852 = vmatpush.msra.mxu0 %v308
    %3853 = vmatpush.msra.mxu0 %v296
    %3854 = vmatpush.msra.mxu0 %v284
    %3855 = vmatpush.msra.mxu0 %v272
    %3856 = vmatpush.msra.mxu0 %v260
    %3857 = vmatpush.msra.mxu0 %v248
    %3858 = vmatpush.msra.mxu0 %v236
    %3859 = vmatpush.msra.mxu0 %v224
    %3860 = vmatpush.msra.mxu0 %v212
    %3861 = vmatpush.msra.mxu0 %v200
    %3862 = vmatmul.f32.gmra.mxu0 %v95
    %v3863 = vpop.f32.mrf.mxu0
    %v3864 = vadd.f32 %v780, %v3863
    %3865 = vmatmul.f32.gmra.mxu0 %v98
    %v3866 = vpop.f32.mrf.mxu0
    %v3867 = vadd.f32 %v780, %v3866
    %3868 = vmatmul.f32.gmra.mxu0 %v101
    %v3869 = vpop.f32.mrf.mxu0
    %v3870 = vadd.f32 %v780, %v3869
    %3871 = vmatmul.f32.gmra.mxu0 %v104
    %v3872 = vpop.f32.mrf.mxu0
    %v3873 = vadd.f32 %v780, %v3872
    %3874 = vmatmul.f32.gmra.mxu0 %v107
    %v3875 = vpop.f32.mrf.mxu0
    %v3876 = vadd.f32 %v780, %v3875
    %3877 = vmatmul.f32.gmra.mxu0 %v110
    %v3878 = vpop.f32.mrf.mxu0
    %v3879 = vadd.f32 %v780, %v3878
    %3880 = vmatmul.f32.gmra.mxu0 %v113
    %v3881 = vpop.f32.mrf.mxu0
    %v3882 = vadd.f32 %v780, %v3881
    %3883 = vmatmul.f32.gmra.mxu0 %v116
    %v3884 = vpop.f32.mrf.mxu0
    %v3885 = vadd.f32 %v780, %v3884
    %3886 = vmatmul.f32.gmra.mxu0 %v119
    %v3887 = vpop.f32.mrf.mxu0
    %v3888 = vadd.f32 %v780, %v3887
    %3889 = vmatmul.f32.gmra.mxu0 %v122
    %v3890 = vpop.f32.mrf.mxu0
    %v3891 = vadd.f32 %v780, %v3890
    %3892 = vmatmul.f32.gmra.mxu0 %v125
    %v3893 = vpop.f32.mrf.mxu0
    %v3894 = vadd.f32 %v780, %v3893
    %3895 = vmatmul.f32.gmra.mxu0 %v128
    %v3896 = vpop.f32.mrf.mxu0
    %v3897 = vadd.f32 %v780, %v3896
    %3898 = vmatmul.f32.gmra.mxu0 %v131
    %v3899 = vpop.f32.mrf.mxu0
    %v3900 = vadd.f32 %v780, %v3899
    %3901 = vmatmul.f32.gmra.mxu0 %v134
    %v3902 = vpop.f32.mrf.mxu0
    %v3903 = vadd.f32 %v780, %v3902
    %3904 = vmatmul.f32.gmra.mxu0 %v137
    %v3905 = vpop.f32.mrf.mxu0
    %v3906 = vadd.f32 %v780, %v3905
    %3907 = vmatmul.f32.gmra.mxu0 %v140
    %v3908 = vpop.f32.mrf.mxu0
    %v3909 = vadd.f32 %v780, %v3908
    %3910 = vmatmul.f32.gmra.mxu0 %v143
    %v3911 = vpop.f32.mrf.mxu0
    %v3912 = vadd.f32 %v780, %v3911
    %3913 = vmatmul.f32.gmra.mxu0 %v146
    %v3914 = vpop.f32.mrf.mxu0
    %v3915 = vadd.f32 %v780, %v3914
    %3916 = vmatmul.f32.gmra.mxu0 %v149
    %v3917 = vpop.f32.mrf.mxu0
    %v3918 = vadd.f32 %v780, %v3917
    %3919 = vmatmul.f32.gmra.mxu0 %v152
    %v3920 = vpop.f32.mrf.mxu0
    %v3921 = vadd.f32 %v780, %v3920
    %3922 = vmatmul.f32.gmra.mxu0 %v155
    %v3923 = vpop.f32.mrf.mxu0
    %v3924 = vadd.f32 %v780, %v3923
    %3925 = vmatmul.f32.gmra.mxu0 %v158
    %v3926 = vpop.f32.mrf.mxu0
    %v3927 = vadd.f32 %v780, %v3926
    %3928 = vmatmul.f32.gmra.mxu0 %v161
    %v3929 = vpop.f32.mrf.mxu0
    %v3930 = vadd.f32 %v780, %v3929
    %3931 = vmatmul.f32.gmra.mxu0 %v164
    %v3932 = vpop.f32.mrf.mxu0
    %v3933 = vadd.f32 %v780, %v3932
    %3934 = vmatmul.f32.gmra.mxu0 %v167
    %v3935 = vpop.f32.mrf.mxu0
    %v3936 = vadd.f32 %v780, %v3935
    %3937 = vmatmul.f32.gmra.mxu0 %v170
    %v3938 = vpop.f32.mrf.mxu0
    %v3939 = vadd.f32 %v780, %v3938
    %3940 = vmatmul.f32.gmra.mxu0 %v173
    %v3941 = vpop.f32.mrf.mxu0
    %v3942 = vadd.f32 %v780, %v3941
    %3943 = vmatmul.f32.gmra.mxu0 %v176
    %v3944 = vpop.f32.mrf.mxu0
    %v3945 = vadd.f32 %v780, %v3944
    %3946 = vmatmul.f32.gmra.mxu0 %v179
    %v3947 = vpop.f32.mrf.mxu0
    %v3948 = vadd.f32 %v780, %v3947
    %3949 = vmatmul.f32.gmra.mxu0 %v182
    %v3950 = vpop.f32.mrf.mxu0
    %v3951 = vadd.f32 %v780, %v3950
    %3952 = vmatmul.f32.gmra.mxu0 %v185
    %v3953 = vpop.f32.mrf.mxu0
    %v3954 = vadd.f32 %v780, %v3953
    %3955 = vmatmul.f32.gmra.mxu0 %v188
    %v3956 = vpop.f32.mrf.mxu0
    %v3957 = vadd.f32 %v780, %v3956
    %3958 = vdwg.mxu0
    %3959 = vmatpush.msra.mxu0 %v572
    %3960 = vmatpush.msra.mxu0 %v560
    %3961 = vmatpush.msra.mxu0 %v548
    %3962 = vmatpush.msra.mxu0 %v536
    %3963 = vmatpush.msra.mxu0 %v524
    %3964 = vmatpush.msra.mxu0 %v512
    %3965 = vmatpush.msra.mxu0 %v500
    %3966 = vmatpush.msra.mxu0 %v488
    %3967 = vmatpush.msra.mxu0 %v476
    %3968 = vmatpush.msra.mxu0 %v464
    %3969 = vmatpush.msra.mxu0 %v452
    %3970 = vmatpush.msra.mxu0 %v440
    %3971 = vmatpush.msra.mxu0 %v428
    %3972 = vmatpush.msra.mxu0 %v416
    %3973 = vmatpush.msra.mxu0 %v404
    %3974 = vmatpush.msra.mxu0 %v392
    %3975 = vmatmul.f32.gmra.mxu0 %v96
    %v3976 = vpop.f32.mrf.mxu0
    %v3977 = vadd.f32 %v3864, %v3976
    %3978 = vmatmul.f32.gmra.mxu0 %v99
    %v3979 = vpop.f32.mrf.mxu0
    %v3980 = vadd.f32 %v3867, %v3979
    %3981 = vmatmul.f32.gmra.mxu0 %v102
    %v3982 = vpop.f32.mrf.mxu0
    %v3983 = vadd.f32 %v3870, %v3982
    %3984 = vmatmul.f32.gmra.mxu0 %v105
    %v3985 = vpop.f32.mrf.mxu0
    %v3986 = vadd.f32 %v3873, %v3985
    %3987 = vmatmul.f32.gmra.mxu0 %v108
    %v3988 = vpop.f32.mrf.mxu0
    %v3989 = vadd.f32 %v3876, %v3988
    %3990 = vmatmul.f32.gmra.mxu0 %v111
    %v3991 = vpop.f32.mrf.mxu0
    %v3992 = vadd.f32 %v3879, %v3991
    %3993 = vmatmul.f32.gmra.mxu0 %v114
    %v3994 = vpop.f32.mrf.mxu0
    %v3995 = vadd.f32 %v3882, %v3994
    %3996 = vmatmul.f32.gmra.mxu0 %v117
    %v3997 = vpop.f32.mrf.mxu0
    %v3998 = vadd.f32 %v3885, %v3997
    %3999 = vmatmul.f32.gmra.mxu0 %v120
    %v4000 = vpop.f32.mrf.mxu0
    %v4001 = vadd.f32 %v3888, %v4000
    %4002 = vmatmul.f32.gmra.mxu0 %v123
    %v4003 = vpop.f32.mrf.mxu0
    %v4004 = vadd.f32 %v3891, %v4003
    %4005 = vmatmul.f32.gmra.mxu0 %v126
    %v4006 = vpop.f32.mrf.mxu0
    %v4007 = vadd.f32 %v3894, %v4006
    %4008 = vmatmul.f32.gmra.mxu0 %v129
    %v4009 = vpop.f32.mrf.mxu0
    %v4010 = vadd.f32 %v3897, %v4009
    %4011 = vmatmul.f32.gmra.mxu0 %v132
    %v4012 = vpop.f32.mrf.mxu0
    %v4013 = vadd.f32 %v3900, %v4012
    %4014 = vmatmul.f32.gmra.mxu0 %v135
    %v4015 = vpop.f32.mrf.mxu0
    %v4016 = vadd.f32 %v3903, %v4015
    %4017 = vmatmul.f32.gmra.mxu0 %v138
    %v4018 = vpop.f32.mrf.mxu0
    %v4019 = vadd.f32 %v3906, %v4018
    %4020 = vmatmul.f32.gmra.mxu0 %v141
    %v4021 = vpop.f32.mrf.mxu0
    %v4022 = vadd.f32 %v3909, %v4021
    %4023 = vmatmul.f32.gmra.mxu0 %v144
    %v4024 = vpop.f32.mrf.mxu0
    %v4025 = vadd.f32 %v3912, %v4024
    %4026 = vmatmul.f32.gmra.mxu0 %v147
    %v4027 = vpop.f32.mrf.mxu0
    %v4028 = vadd.f32 %v3915, %v4027
    %4029 = vmatmul.f32.gmra.mxu0 %v150
    %v4030 = vpop.f32.mrf.mxu0
    %v4031 = vadd.f32 %v3918, %v4030
    %4032 = vmatmul.f32.gmra.mxu0 %v153
    %v4033 = vpop.f32.mrf.mxu0
    %v4034 = vadd.f32 %v3921, %v4033
    %4035 = vmatmul.f32.gmra.mxu0 %v156
    %v4036 = vpop.f32.mrf.mxu0
    %v4037 = vadd.f32 %v3924, %v4036
    %4038 = vmatmul.f32.gmra.mxu0 %v159
    %v4039 = vpop.f32.mrf.mxu0
    %v4040 = vadd.f32 %v3927, %v4039
    %4041 = vmatmul.f32.gmra.mxu0 %v162
    %v4042 = vpop.f32.mrf.mxu0
    %v4043 = vadd.f32 %v3930, %v4042
    %4044 = vmatmul.f32.gmra.mxu0 %v165
    %v4045 = vpop.f32.mrf.mxu0
    %v4046 = vadd.f32 %v3933, %v4045
    %4047 = vmatmul.f32.gmra.mxu0 %v168
    %v4048 = vpop.f32.mrf.mxu0
    %v4049 = vadd.f32 %v3936, %v4048
    %4050 = vmatmul.f32.gmra.mxu0 %v171
    %v4051 = vpop.f32.mrf.mxu0
    %v4052 = vadd.f32 %v3939, %v4051
    %4053 = vmatmul.f32.gmra.mxu0 %v174
    %v4054 = vpop.f32.mrf.mxu0
    %v4055 = vadd.f32 %v3942, %v4054
    %4056 = vmatmul.f32.gmra.mxu0 %v177
    %v4057 = vpop.f32.mrf.mxu0
    %v4058 = vadd.f32 %v3945, %v4057
    %4059 = vmatmul.f32.gmra.mxu0 %v180
    %v4060 = vpop.f32.mrf.mxu0
    %v4061 = vadd.f32 %v3948, %v4060
    %4062 = vmatmul.f32.gmra.mxu0 %v183
    %v4063 = vpop.f32.mrf.mxu0
    %v4064 = vadd.f32 %v3951, %v4063
    %4065 = vmatmul.f32.gmra.mxu0 %v186
    %v4066 = vpop.f32.mrf.mxu0
    %v4067 = vadd.f32 %v3954, %v4066
    %4068 = vmatmul.f32.gmra.mxu0 %v189
    %v4069 = vpop.f32.mrf.mxu0
    %v4070 = vadd.f32 %v3957, %v4069
    %4071 = vdwg.mxu0
    %4072 = vmatpush.msra.mxu0 %v764
    %4073 = vmatpush.msra.mxu0 %v752
    %4074 = vmatpush.msra.mxu0 %v740
    %4075 = vmatpush.msra.mxu0 %v728
    %4076 = vmatpush.msra.mxu0 %v716
    %4077 = vmatpush.msra.mxu0 %v704
    %4078 = vmatpush.msra.mxu0 %v692
    %4079 = vmatpush.msra.mxu0 %v680
    %4080 = vmatpush.msra.mxu0 %v668
    %4081 = vmatpush.msra.mxu0 %v656
    %4082 = vmatpush.msra.mxu0 %v644
    %4083 = vmatpush.msra.mxu0 %v632
    %4084 = vmatpush.msra.mxu0 %v620
    %4085 = vmatpush.msra.mxu0 %v608
    %4086 = vmatpush.msra.mxu0 %v596
    %4087 = vmatpush.msra.mxu0 %v584
    %4088 = vmatmul.f32.gmra.mxu0 %v97
    %v4089 = vpop.f32.mrf.mxu0
    %v4090 = vadd.f32 %v3977, %v4089
    %4091 = vmatmul.f32.gmra.mxu0 %v100
    %v4092 = vpop.f32.mrf.mxu0
    %v4093 = vadd.f32 %v3980, %v4092
    %4094 = vmatmul.f32.gmra.mxu0 %v103
    %v4095 = vpop.f32.mrf.mxu0
    %v4096 = vadd.f32 %v3983, %v4095
    %4097 = vmatmul.f32.gmra.mxu0 %v106
    %v4098 = vpop.f32.mrf.mxu0
    %v4099 = vadd.f32 %v3986, %v4098
    %4100 = vmatmul.f32.gmra.mxu0 %v109
    %v4101 = vpop.f32.mrf.mxu0
    %v4102 = vadd.f32 %v3989, %v4101
    %4103 = vmatmul.f32.gmra.mxu0 %v112
    %v4104 = vpop.f32.mrf.mxu0
    %v4105 = vadd.f32 %v3992, %v4104
    %4106 = vmatmul.f32.gmra.mxu0 %v115
    %v4107 = vpop.f32.mrf.mxu0
    %v4108 = vadd.f32 %v3995, %v4107
    %4109 = vmatmul.f32.gmra.mxu0 %v118
    %v4110 = vpop.f32.mrf.mxu0
    %v4111 = vadd.f32 %v3998, %v4110
    %4112 = vmatmul.f32.gmra.mxu0 %v121
    %v4113 = vpop.f32.mrf.mxu0
    %v4114 = vadd.f32 %v4001, %v4113
    %4115 = vmatmul.f32.gmra.mxu0 %v124
    %v4116 = vpop.f32.mrf.mxu0
    %v4117 = vadd.f32 %v4004, %v4116
    %4118 = vmatmul.f32.gmra.mxu0 %v127
    %v4119 = vpop.f32.mrf.mxu0
    %v4120 = vadd.f32 %v4007, %v4119
    %4121 = vmatmul.f32.gmra.mxu0 %v130
    %v4122 = vpop.f32.mrf.mxu0
    %v4123 = vadd.f32 %v4010, %v4122
    %4124 = vmatmul.f32.gmra.mxu0 %v133
    %v4125 = vpop.f32.mrf.mxu0
    %v4126 = vadd.f32 %v4013, %v4125
    %4127 = vmatmul.f32.gmra.mxu0 %v136
    %v4128 = vpop.f32.mrf.mxu0
    %v4129 = vadd.f32 %v4016, %v4128
    %4130 = vmatmul.f32.gmra.mxu0 %v139
    %v4131 = vpop.f32.mrf.mxu0
    %v4132 = vadd.f32 %v4019, %v4131
    %4133 = vmatmul.f32.gmra.mxu0 %v142
    %v4134 = vpop.f32.mrf.mxu0
    %v4135 = vadd.f32 %v4022, %v4134
    %4136 = vmatmul.f32.gmra.mxu0 %v145
    %v4137 = vpop.f32.mrf.mxu0
    %v4138 = vadd.f32 %v4025, %v4137
    %4139 = vmatmul.f32.gmra.mxu0 %v148
    %v4140 = vpop.f32.mrf.mxu0
    %v4141 = vadd.f32 %v4028, %v4140
    %4142 = vmatmul.f32.gmra.mxu0 %v151
    %v4143 = vpop.f32.mrf.mxu0
    %v4144 = vadd.f32 %v4031, %v4143
    %4145 = vmatmul.f32.gmra.mxu0 %v154
    %v4146 = vpop.f32.mrf.mxu0
    %v4147 = vadd.f32 %v4034, %v4146
    %4148 = vmatmul.f32.gmra.mxu0 %v157
    %v4149 = vpop.f32.mrf.mxu0
    %v4150 = vadd.f32 %v4037, %v4149
    %4151 = vmatmul.f32.gmra.mxu0 %v160
    %v4152 = vpop.f32.mrf.mxu0
    %v4153 = vadd.f32 %v4040, %v4152
    %4154 = vmatmul.f32.gmra.mxu0 %v163
    %v4155 = vpop.f32.mrf.mxu0
    %v4156 = vadd.f32 %v4043, %v4155
    %4157 = vmatmul.f32.gmra.mxu0 %v166
    %v4158 = vpop.f32.mrf.mxu0
    %v4159 = vadd.f32 %v4046, %v4158
    %4160 = vmatmul.f32.gmra.mxu0 %v169
    %v4161 = vpop.f32.mrf.mxu0
    %v4162 = vadd.f32 %v4049, %v4161
    %4163 = vmatmul.f32.gmra.mxu0 %v172
    %v4164 = vpop.f32.mrf.mxu0
    %v4165 = vadd.f32 %v4052, %v4164
    %4166 = vmatmul.f32.gmra.mxu0 %v175
    %v4167 = vpop.f32.mrf.mxu0
    %v4168 = vadd.f32 %v4055, %v4167
    %4169 = vmatmul.f32.gmra.mxu0 %v178
    %v4170 = vpop.f32.mrf.mxu0
    %v4171 = vadd.f32 %v4058, %v4170
    %4172 = vmatmul.f32.gmra.mxu0 %v181
    %v4173 = vpop.f32.mrf.mxu0
    %v4174 = vadd.f32 %v4061, %v4173
    %4175 = vmatmul.f32.gmra.mxu0 %v184
    %v4176 = vpop.f32.mrf.mxu0
    %v4177 = vadd.f32 %v4064, %v4176
    %4178 = vmatmul.f32.gmra.mxu0 %v187
    %v4179 = vpop.f32.mrf.mxu0
    %v4180 = vadd.f32 %v4067, %v4179
    %4181 = vmatmul.f32.gmra.mxu0 %v190
    %v4182 = vpop.f32.mrf.mxu0
    %v4183 = vadd.f32 %v4070, %v4182
    %4184 = vdwg.mxu0
    %4185 = vmatpush.msra.mxu0 %v381
    %4186 = vmatpush.msra.mxu0 %v369
    %4187 = vmatpush.msra.mxu0 %v357
    %4188 = vmatpush.msra.mxu0 %v345
    %4189 = vmatpush.msra.mxu0 %v333
    %4190 = vmatpush.msra.mxu0 %v321
    %4191 = vmatpush.msra.mxu0 %v309
    %4192 = vmatpush.msra.mxu0 %v297
    %4193 = vmatpush.msra.mxu0 %v285
    %4194 = vmatpush.msra.mxu0 %v273
    %4195 = vmatpush.msra.mxu0 %v261
    %4196 = vmatpush.msra.mxu0 %v249
    %4197 = vmatpush.msra.mxu0 %v237
    %4198 = vmatpush.msra.mxu0 %v225
    %4199 = vmatpush.msra.mxu0 %v213
    %4200 = vmatpush.msra.mxu0 %v201
    %4201 = vmatmul.f32.gmra.mxu0 %v95
    %v4202 = vpop.f32.mrf.mxu0
    %v4203 = vadd.f32 %v781, %v4202
    %4204 = vmatmul.f32.gmra.mxu0 %v98
    %v4205 = vpop.f32.mrf.mxu0
    %v4206 = vadd.f32 %v781, %v4205
    %4207 = vmatmul.f32.gmra.mxu0 %v101
    %v4208 = vpop.f32.mrf.mxu0
    %v4209 = vadd.f32 %v781, %v4208
    %4210 = vmatmul.f32.gmra.mxu0 %v104
    %v4211 = vpop.f32.mrf.mxu0
    %v4212 = vadd.f32 %v781, %v4211
    %4213 = vmatmul.f32.gmra.mxu0 %v107
    %v4214 = vpop.f32.mrf.mxu0
    %v4215 = vadd.f32 %v781, %v4214
    %4216 = vmatmul.f32.gmra.mxu0 %v110
    %v4217 = vpop.f32.mrf.mxu0
    %v4218 = vadd.f32 %v781, %v4217
    %4219 = vmatmul.f32.gmra.mxu0 %v113
    %v4220 = vpop.f32.mrf.mxu0
    %v4221 = vadd.f32 %v781, %v4220
    %4222 = vmatmul.f32.gmra.mxu0 %v116
    %v4223 = vpop.f32.mrf.mxu0
    %v4224 = vadd.f32 %v781, %v4223
    %4225 = vmatmul.f32.gmra.mxu0 %v119
    %v4226 = vpop.f32.mrf.mxu0
    %v4227 = vadd.f32 %v781, %v4226
    %4228 = vmatmul.f32.gmra.mxu0 %v122
    %v4229 = vpop.f32.mrf.mxu0
    %v4230 = vadd.f32 %v781, %v4229
    %4231 = vmatmul.f32.gmra.mxu0 %v125
    %v4232 = vpop.f32.mrf.mxu0
    %v4233 = vadd.f32 %v781, %v4232
    %4234 = vmatmul.f32.gmra.mxu0 %v128
    %v4235 = vpop.f32.mrf.mxu0
    %v4236 = vadd.f32 %v781, %v4235
    %4237 = vmatmul.f32.gmra.mxu0 %v131
    %v4238 = vpop.f32.mrf.mxu0
    %v4239 = vadd.f32 %v781, %v4238
    %4240 = vmatmul.f32.gmra.mxu0 %v134
    %v4241 = vpop.f32.mrf.mxu0
    %v4242 = vadd.f32 %v781, %v4241
    %4243 = vmatmul.f32.gmra.mxu0 %v137
    %v4244 = vpop.f32.mrf.mxu0
    %v4245 = vadd.f32 %v781, %v4244
    %4246 = vmatmul.f32.gmra.mxu0 %v140
    %v4247 = vpop.f32.mrf.mxu0
    %v4248 = vadd.f32 %v781, %v4247
    %4249 = vmatmul.f32.gmra.mxu0 %v143
    %v4250 = vpop.f32.mrf.mxu0
    %v4251 = vadd.f32 %v781, %v4250
    %4252 = vmatmul.f32.gmra.mxu0 %v146
    %v4253 = vpop.f32.mrf.mxu0
    %v4254 = vadd.f32 %v781, %v4253
    %4255 = vmatmul.f32.gmra.mxu0 %v149
    %v4256 = vpop.f32.mrf.mxu0
    %v4257 = vadd.f32 %v781, %v4256
    %4258 = vmatmul.f32.gmra.mxu0 %v152
    %v4259 = vpop.f32.mrf.mxu0
    %v4260 = vadd.f32 %v781, %v4259
    %4261 = vmatmul.f32.gmra.mxu0 %v155
    %v4262 = vpop.f32.mrf.mxu0
    %v4263 = vadd.f32 %v781, %v4262
    %4264 = vmatmul.f32.gmra.mxu0 %v158
    %v4265 = vpop.f32.mrf.mxu0
    %v4266 = vadd.f32 %v781, %v4265
    %4267 = vmatmul.f32.gmra.mxu0 %v161
    %v4268 = vpop.f32.mrf.mxu0
    %v4269 = vadd.f32 %v781, %v4268
    %4270 = vmatmul.f32.gmra.mxu0 %v164
    %v4271 = vpop.f32.mrf.mxu0
    %v4272 = vadd.f32 %v781, %v4271
    %4273 = vmatmul.f32.gmra.mxu0 %v167
    %v4274 = vpop.f32.mrf.mxu0
    %v4275 = vadd.f32 %v781, %v4274
    %4276 = vmatmul.f32.gmra.mxu0 %v170
    %v4277 = vpop.f32.mrf.mxu0
    %v4278 = vadd.f32 %v781, %v4277
    %4279 = vmatmul.f32.gmra.mxu0 %v173
    %v4280 = vpop.f32.mrf.mxu0
    %v4281 = vadd.f32 %v781, %v4280
    %4282 = vmatmul.f32.gmra.mxu0 %v176
    %v4283 = vpop.f32.mrf.mxu0
    %v4284 = vadd.f32 %v781, %v4283
    %4285 = vmatmul.f32.gmra.mxu0 %v179
    %v4286 = vpop.f32.mrf.mxu0
    %v4287 = vadd.f32 %v781, %v4286
    %4288 = vmatmul.f32.gmra.mxu0 %v182
    %v4289 = vpop.f32.mrf.mxu0
    %v4290 = vadd.f32 %v781, %v4289
    %4291 = vmatmul.f32.gmra.mxu0 %v185
    %v4292 = vpop.f32.mrf.mxu0
    %v4293 = vadd.f32 %v781, %v4292
    %4294 = vmatmul.f32.gmra.mxu0 %v188
    %v4295 = vpop.f32.mrf.mxu0
    %v4296 = vadd.f32 %v781, %v4295
    %4297 = vdwg.mxu0
    %4298 = vmatpush.msra.mxu0 %v573
    %4299 = vmatpush.msra.mxu0 %v561
    %4300 = vmatpush.msra.mxu0 %v549
    %4301 = vmatpush.msra.mxu0 %v537
    %4302 = vmatpush.msra.mxu0 %v525
    %4303 = vmatpush.msra.mxu0 %v513
    %4304 = vmatpush.msra.mxu0 %v501
    %4305 = vmatpush.msra.mxu0 %v489
    %4306 = vmatpush.msra.mxu0 %v477
    %4307 = vmatpush.msra.mxu0 %v465
    %4308 = vmatpush.msra.mxu0 %v453
    %4309 = vmatpush.msra.mxu0 %v441
    %4310 = vmatpush.msra.mxu0 %v429
    %4311 = vmatpush.msra.mxu0 %v417
    %4312 = vmatpush.msra.mxu0 %v405
    %4313 = vmatpush.msra.mxu0 %v393
    %4314 = vmatmul.f32.gmra.mxu0 %v96
    %v4315 = vpop.f32.mrf.mxu0
    %v4316 = vadd.f32 %v4203, %v4315
    %4317 = vmatmul.f32.gmra.mxu0 %v99
    %v4318 = vpop.f32.mrf.mxu0
    %v4319 = vadd.f32 %v4206, %v4318
    %4320 = vmatmul.f32.gmra.mxu0 %v102
    %v4321 = vpop.f32.mrf.mxu0
    %v4322 = vadd.f32 %v4209, %v4321
    %4323 = vmatmul.f32.gmra.mxu0 %v105
    %v4324 = vpop.f32.mrf.mxu0
    %v4325 = vadd.f32 %v4212, %v4324
    %4326 = vmatmul.f32.gmra.mxu0 %v108
    %v4327 = vpop.f32.mrf.mxu0
    %v4328 = vadd.f32 %v4215, %v4327
    %4329 = vmatmul.f32.gmra.mxu0 %v111
    %v4330 = vpop.f32.mrf.mxu0
    %v4331 = vadd.f32 %v4218, %v4330
    %4332 = vmatmul.f32.gmra.mxu0 %v114
    %v4333 = vpop.f32.mrf.mxu0
    %v4334 = vadd.f32 %v4221, %v4333
    %4335 = vmatmul.f32.gmra.mxu0 %v117
    %v4336 = vpop.f32.mrf.mxu0
    %v4337 = vadd.f32 %v4224, %v4336
    %4338 = vmatmul.f32.gmra.mxu0 %v120
    %v4339 = vpop.f32.mrf.mxu0
    %v4340 = vadd.f32 %v4227, %v4339
    %4341 = vmatmul.f32.gmra.mxu0 %v123
    %v4342 = vpop.f32.mrf.mxu0
    %v4343 = vadd.f32 %v4230, %v4342
    %4344 = vmatmul.f32.gmra.mxu0 %v126
    %v4345 = vpop.f32.mrf.mxu0
    %v4346 = vadd.f32 %v4233, %v4345
    %4347 = vmatmul.f32.gmra.mxu0 %v129
    %v4348 = vpop.f32.mrf.mxu0
    %v4349 = vadd.f32 %v4236, %v4348
    %4350 = vmatmul.f32.gmra.mxu0 %v132
    %v4351 = vpop.f32.mrf.mxu0
    %v4352 = vadd.f32 %v4239, %v4351
    %4353 = vmatmul.f32.gmra.mxu0 %v135
    %v4354 = vpop.f32.mrf.mxu0
    %v4355 = vadd.f32 %v4242, %v4354
    %4356 = vmatmul.f32.gmra.mxu0 %v138
    %v4357 = vpop.f32.mrf.mxu0
    %v4358 = vadd.f32 %v4245, %v4357
    %4359 = vmatmul.f32.gmra.mxu0 %v141
    %v4360 = vpop.f32.mrf.mxu0
    %v4361 = vadd.f32 %v4248, %v4360
    %4362 = vmatmul.f32.gmra.mxu0 %v144
    %v4363 = vpop.f32.mrf.mxu0
    %v4364 = vadd.f32 %v4251, %v4363
    %4365 = vmatmul.f32.gmra.mxu0 %v147
    %v4366 = vpop.f32.mrf.mxu0
    %v4367 = vadd.f32 %v4254, %v4366
    %4368 = vmatmul.f32.gmra.mxu0 %v150
    %v4369 = vpop.f32.mrf.mxu0
    %v4370 = vadd.f32 %v4257, %v4369
    %4371 = vmatmul.f32.gmra.mxu0 %v153
    %v4372 = vpop.f32.mrf.mxu0
    %v4373 = vadd.f32 %v4260, %v4372
    %4374 = vmatmul.f32.gmra.mxu0 %v156
    %v4375 = vpop.f32.mrf.mxu0
    %v4376 = vadd.f32 %v4263, %v4375
    %4377 = vmatmul.f32.gmra.mxu0 %v159
    %v4378 = vpop.f32.mrf.mxu0
    %v4379 = vadd.f32 %v4266, %v4378
    %4380 = vmatmul.f32.gmra.mxu0 %v162
    %v4381 = vpop.f32.mrf.mxu0
    %v4382 = vadd.f32 %v4269, %v4381
    %4383 = vmatmul.f32.gmra.mxu0 %v165
    %v4384 = vpop.f32.mrf.mxu0
    %v4385 = vadd.f32 %v4272, %v4384
    %4386 = vmatmul.f32.gmra.mxu0 %v168
    %v4387 = vpop.f32.mrf.mxu0
    %v4388 = vadd.f32 %v4275, %v4387
    %4389 = vmatmul.f32.gmra.mxu0 %v171
    %v4390 = vpop.f32.mrf.mxu0
    %v4391 = vadd.f32 %v4278, %v4390
    %4392 = vmatmul.f32.gmra.mxu0 %v174
    %v4393 = vpop.f32.mrf.mxu0
    %v4394 = vadd.f32 %v4281, %v4393
    %4395 = vmatmul.f32.gmra.mxu0 %v177
    %v4396 = vpop.f32.mrf.mxu0
    %v4397 = vadd.f32 %v4284, %v4396
    %4398 = vmatmul.f32.gmra.mxu0 %v180
    %v4399 = vpop.f32.mrf.mxu0
    %v4400 = vadd.f32 %v4287, %v4399
    %4401 = vmatmul.f32.gmra.mxu0 %v183
    %v4402 = vpop.f32.mrf.mxu0
    %v4403 = vadd.f32 %v4290, %v4402
    %4404 = vmatmul.f32.gmra.mxu0 %v186
    %v4405 = vpop.f32.mrf.mxu0
    %v4406 = vadd.f32 %v4293, %v4405
    %4407 = vmatmul.f32.gmra.mxu0 %v189
    %v4408 = vpop.f32.mrf.mxu0
    %v4409 = vadd.f32 %v4296, %v4408
    %4410 = vdwg.mxu0
    %4411 = vmatpush.msra.mxu0 %v765
    %4412 = vmatpush.msra.mxu0 %v753
    %4413 = vmatpush.msra.mxu0 %v741
    %4414 = vmatpush.msra.mxu0 %v729
    %4415 = vmatpush.msra.mxu0 %v717
    %4416 = vmatpush.msra.mxu0 %v705
    %4417 = vmatpush.msra.mxu0 %v693
    %4418 = vmatpush.msra.mxu0 %v681
    %4419 = vmatpush.msra.mxu0 %v669
    %4420 = vmatpush.msra.mxu0 %v657
    %4421 = vmatpush.msra.mxu0 %v645
    %4422 = vmatpush.msra.mxu0 %v633
    %4423 = vmatpush.msra.mxu0 %v621
    %4424 = vmatpush.msra.mxu0 %v609
    %4425 = vmatpush.msra.mxu0 %v597
    %4426 = vmatpush.msra.mxu0 %v585
    %4427 = vmatmul.f32.gmra.mxu0 %v97
    %v4428 = vpop.f32.mrf.mxu0
    %v4429 = vadd.f32 %v4316, %v4428
    %4430 = vmatmul.f32.gmra.mxu0 %v100
    %v4431 = vpop.f32.mrf.mxu0
    %v4432 = vadd.f32 %v4319, %v4431
    %4433 = vmatmul.f32.gmra.mxu0 %v103
    %v4434 = vpop.f32.mrf.mxu0
    %v4435 = vadd.f32 %v4322, %v4434
    %4436 = vmatmul.f32.gmra.mxu0 %v106
    %v4437 = vpop.f32.mrf.mxu0
    %v4438 = vadd.f32 %v4325, %v4437
    %4439 = vmatmul.f32.gmra.mxu0 %v109
    %v4440 = vpop.f32.mrf.mxu0
    %v4441 = vadd.f32 %v4328, %v4440
    %4442 = vmatmul.f32.gmra.mxu0 %v112
    %v4443 = vpop.f32.mrf.mxu0
    %v4444 = vadd.f32 %v4331, %v4443
    %4445 = vmatmul.f32.gmra.mxu0 %v115
    %v4446 = vpop.f32.mrf.mxu0
    %v4447 = vadd.f32 %v4334, %v4446
    %4448 = vmatmul.f32.gmra.mxu0 %v118
    %v4449 = vpop.f32.mrf.mxu0
    %v4450 = vadd.f32 %v4337, %v4449
    %4451 = vmatmul.f32.gmra.mxu0 %v121
    %v4452 = vpop.f32.mrf.mxu0
    %v4453 = vadd.f32 %v4340, %v4452
    %4454 = vmatmul.f32.gmra.mxu0 %v124
    %v4455 = vpop.f32.mrf.mxu0
    %v4456 = vadd.f32 %v4343, %v4455
    %4457 = vmatmul.f32.gmra.mxu0 %v127
    %v4458 = vpop.f32.mrf.mxu0
    %v4459 = vadd.f32 %v4346, %v4458
    %4460 = vmatmul.f32.gmra.mxu0 %v130
    %v4461 = vpop.f32.mrf.mxu0
    %v4462 = vadd.f32 %v4349, %v4461
    %4463 = vmatmul.f32.gmra.mxu0 %v133
    %v4464 = vpop.f32.mrf.mxu0
    %v4465 = vadd.f32 %v4352, %v4464
    %4466 = vmatmul.f32.gmra.mxu0 %v136
    %v4467 = vpop.f32.mrf.mxu0
    %v4468 = vadd.f32 %v4355, %v4467
    %4469 = vmatmul.f32.gmra.mxu0 %v139
    %v4470 = vpop.f32.mrf.mxu0
    %v4471 = vadd.f32 %v4358, %v4470
    %4472 = vmatmul.f32.gmra.mxu0 %v142
    %v4473 = vpop.f32.mrf.mxu0
    %v4474 = vadd.f32 %v4361, %v4473
    %4475 = vmatmul.f32.gmra.mxu0 %v145
    %v4476 = vpop.f32.mrf.mxu0
    %v4477 = vadd.f32 %v4364, %v4476
    %4478 = vmatmul.f32.gmra.mxu0 %v148
    %v4479 = vpop.f32.mrf.mxu0
    %v4480 = vadd.f32 %v4367, %v4479
    %4481 = vmatmul.f32.gmra.mxu0 %v151
    %v4482 = vpop.f32.mrf.mxu0
    %v4483 = vadd.f32 %v4370, %v4482
    %4484 = vmatmul.f32.gmra.mxu0 %v154
    %v4485 = vpop.f32.mrf.mxu0
    %v4486 = vadd.f32 %v4373, %v4485
    %4487 = vmatmul.f32.gmra.mxu0 %v157
    %v4488 = vpop.f32.mrf.mxu0
    %v4489 = vadd.f32 %v4376, %v4488
    %4490 = vmatmul.f32.gmra.mxu0 %v160
    %v4491 = vpop.f32.mrf.mxu0
    %v4492 = vadd.f32 %v4379, %v4491
    %4493 = vmatmul.f32.gmra.mxu0 %v163
    %v4494 = vpop.f32.mrf.mxu0
    %v4495 = vadd.f32 %v4382, %v4494
    %4496 = vmatmul.f32.gmra.mxu0 %v166
    %v4497 = vpop.f32.mrf.mxu0
    %v4498 = vadd.f32 %v4385, %v4497
    %4499 = vmatmul.f32.gmra.mxu0 %v169
    %v4500 = vpop.f32.mrf.mxu0
    %v4501 = vadd.f32 %v4388, %v4500
    %4502 = vmatmul.f32.gmra.mxu0 %v172
    %v4503 = vpop.f32.mrf.mxu0
    %v4504 = vadd.f32 %v4391, %v4503
    %4505 = vmatmul.f32.gmra.mxu0 %v175
    %v4506 = vpop.f32.mrf.mxu0
    %v4507 = vadd.f32 %v4394, %v4506
    %4508 = vmatmul.f32.gmra.mxu0 %v178
    %v4509 = vpop.f32.mrf.mxu0
    %v4510 = vadd.f32 %v4397, %v4509
    %4511 = vmatmul.f32.gmra.mxu0 %v181
    %v4512 = vpop.f32.mrf.mxu0
    %v4513 = vadd.f32 %v4400, %v4512
    %4514 = vmatmul.f32.gmra.mxu0 %v184
    %v4515 = vpop.f32.mrf.mxu0
    %v4516 = vadd.f32 %v4403, %v4515
    %4517 = vmatmul.f32.gmra.mxu0 %v187
    %v4518 = vpop.f32.mrf.mxu0
    %v4519 = vadd.f32 %v4406, %v4518
    %4520 = vmatmul.f32.gmra.mxu0 %v190
    %v4521 = vpop.f32.mrf.mxu0
    %v4522 = vadd.f32 %v4409, %v4521
    %4523 = vdwg.mxu0
    %4524 = vmatpush.msra.mxu0 %v382
    %4525 = vmatpush.msra.mxu0 %v370
    %4526 = vmatpush.msra.mxu0 %v358
    %4527 = vmatpush.msra.mxu0 %v346
    %4528 = vmatpush.msra.mxu0 %v334
    %4529 = vmatpush.msra.mxu0 %v322
    %4530 = vmatpush.msra.mxu0 %v310
    %4531 = vmatpush.msra.mxu0 %v298
    %4532 = vmatpush.msra.mxu0 %v286
    %4533 = vmatpush.msra.mxu0 %v274
    %4534 = vmatpush.msra.mxu0 %v262
    %4535 = vmatpush.msra.mxu0 %v250
    %4536 = vmatpush.msra.mxu0 %v238
    %4537 = vmatpush.msra.mxu0 %v226
    %4538 = vmatpush.msra.mxu0 %v214
    %4539 = vmatpush.msra.mxu0 %v202
    %4540 = vmatmul.f32.gmra.mxu0 %v95
    %v4541 = vpop.f32.mrf.mxu0
    %v4542 = vadd.f32 %v782, %v4541
    %4543 = vmatmul.f32.gmra.mxu0 %v98
    %v4544 = vpop.f32.mrf.mxu0
    %v4545 = vadd.f32 %v782, %v4544
    %4546 = vmatmul.f32.gmra.mxu0 %v101
    %v4547 = vpop.f32.mrf.mxu0
    %v4548 = vadd.f32 %v782, %v4547
    %4549 = vmatmul.f32.gmra.mxu0 %v104
    %v4550 = vpop.f32.mrf.mxu0
    %v4551 = vadd.f32 %v782, %v4550
    %4552 = vmatmul.f32.gmra.mxu0 %v107
    %v4553 = vpop.f32.mrf.mxu0
    %v4554 = vadd.f32 %v782, %v4553
    %4555 = vmatmul.f32.gmra.mxu0 %v110
    %v4556 = vpop.f32.mrf.mxu0
    %v4557 = vadd.f32 %v782, %v4556
    %4558 = vmatmul.f32.gmra.mxu0 %v113
    %v4559 = vpop.f32.mrf.mxu0
    %v4560 = vadd.f32 %v782, %v4559
    %4561 = vmatmul.f32.gmra.mxu0 %v116
    %v4562 = vpop.f32.mrf.mxu0
    %v4563 = vadd.f32 %v782, %v4562
    %4564 = vmatmul.f32.gmra.mxu0 %v119
    %v4565 = vpop.f32.mrf.mxu0
    %v4566 = vadd.f32 %v782, %v4565
    %4567 = vmatmul.f32.gmra.mxu0 %v122
    %v4568 = vpop.f32.mrf.mxu0
    %v4569 = vadd.f32 %v782, %v4568
    %4570 = vmatmul.f32.gmra.mxu0 %v125
    %v4571 = vpop.f32.mrf.mxu0
    %v4572 = vadd.f32 %v782, %v4571
    %4573 = vmatmul.f32.gmra.mxu0 %v128
    %v4574 = vpop.f32.mrf.mxu0
    %v4575 = vadd.f32 %v782, %v4574
    %4576 = vmatmul.f32.gmra.mxu0 %v131
    %v4577 = vpop.f32.mrf.mxu0
    %v4578 = vadd.f32 %v782, %v4577
    %4579 = vmatmul.f32.gmra.mxu0 %v134
    %v4580 = vpop.f32.mrf.mxu0
    %v4581 = vadd.f32 %v782, %v4580
    %4582 = vmatmul.f32.gmra.mxu0 %v137
    %v4583 = vpop.f32.mrf.mxu0
    %v4584 = vadd.f32 %v782, %v4583
    %4585 = vmatmul.f32.gmra.mxu0 %v140
    %v4586 = vpop.f32.mrf.mxu0
    %v4587 = vadd.f32 %v782, %v4586
    %4588 = vmatmul.f32.gmra.mxu0 %v143
    %v4589 = vpop.f32.mrf.mxu0
    %v4590 = vadd.f32 %v782, %v4589
    %4591 = vmatmul.f32.gmra.mxu0 %v146
    %v4592 = vpop.f32.mrf.mxu0
    %v4593 = vadd.f32 %v782, %v4592
    %4594 = vmatmul.f32.gmra.mxu0 %v149
    %v4595 = vpop.f32.mrf.mxu0
    %v4596 = vadd.f32 %v782, %v4595
    %4597 = vmatmul.f32.gmra.mxu0 %v152
    %v4598 = vpop.f32.mrf.mxu0
    %v4599 = vadd.f32 %v782, %v4598
    %4600 = vmatmul.f32.gmra.mxu0 %v155
    %v4601 = vpop.f32.mrf.mxu0
    %v4602 = vadd.f32 %v782, %v4601
    %4603 = vmatmul.f32.gmra.mxu0 %v158
    %v4604 = vpop.f32.mrf.mxu0
    %v4605 = vadd.f32 %v782, %v4604
    %4606 = vmatmul.f32.gmra.mxu0 %v161
    %v4607 = vpop.f32.mrf.mxu0
    %v4608 = vadd.f32 %v782, %v4607
    %4609 = vmatmul.f32.gmra.mxu0 %v164
    %v4610 = vpop.f32.mrf.mxu0
    %v4611 = vadd.f32 %v782, %v4610
    %4612 = vmatmul.f32.gmra.mxu0 %v167
    %v4613 = vpop.f32.mrf.mxu0
    %v4614 = vadd.f32 %v782, %v4613
    %4615 = vmatmul.f32.gmra.mxu0 %v170
    %v4616 = vpop.f32.mrf.mxu0
    %v4617 = vadd.f32 %v782, %v4616
    %4618 = vmatmul.f32.gmra.mxu0 %v173
    %v4619 = vpop.f32.mrf.mxu0
    %v4620 = vadd.f32 %v782, %v4619
    %4621 = vmatmul.f32.gmra.mxu0 %v176
    %v4622 = vpop.f32.mrf.mxu0
    %v4623 = vadd.f32 %v782, %v4622
    %4624 = vmatmul.f32.gmra.mxu0 %v179
    %v4625 = vpop.f32.mrf.mxu0
    %v4626 = vadd.f32 %v782, %v4625
    %4627 = vmatmul.f32.gmra.mxu0 %v182
    %v4628 = vpop.f32.mrf.mxu0
    %v4629 = vadd.f32 %v782, %v4628
    %4630 = vmatmul.f32.gmra.mxu0 %v185
    %v4631 = vpop.f32.mrf.mxu0
    %v4632 = vadd.f32 %v782, %v4631
    %4633 = vmatmul.f32.gmra.mxu0 %v188
    %v4634 = vpop.f32.mrf.mxu0
    %v4635 = vadd.f32 %v782, %v4634
    %4636 = vdwg.mxu0
    %4637 = vmatpush.msra.mxu0 %v574
    %4638 = vmatpush.msra.mxu0 %v562
    %4639 = vmatpush.msra.mxu0 %v550
    %4640 = vmatpush.msra.mxu0 %v538
    %4641 = vmatpush.msra.mxu0 %v526
    %4642 = vmatpush.msra.mxu0 %v514
    %4643 = vmatpush.msra.mxu0 %v502
    %4644 = vmatpush.msra.mxu0 %v490
    %4645 = vmatpush.msra.mxu0 %v478
    %4646 = vmatpush.msra.mxu0 %v466
    %4647 = vmatpush.msra.mxu0 %v454
    %4648 = vmatpush.msra.mxu0 %v442
    %4649 = vmatpush.msra.mxu0 %v430
    %4650 = vmatpush.msra.mxu0 %v418
    %4651 = vmatpush.msra.mxu0 %v406
    %4652 = vmatpush.msra.mxu0 %v394
    %4653 = vmatmul.f32.gmra.mxu0 %v96
    %v4654 = vpop.f32.mrf.mxu0
    %v4655 = vadd.f32 %v4542, %v4654
    %4656 = vmatmul.f32.gmra.mxu0 %v99
    %v4657 = vpop.f32.mrf.mxu0
    %v4658 = vadd.f32 %v4545, %v4657
    %4659 = vmatmul.f32.gmra.mxu0 %v102
    %v4660 = vpop.f32.mrf.mxu0
    %v4661 = vadd.f32 %v4548, %v4660
    %4662 = vmatmul.f32.gmra.mxu0 %v105
    %v4663 = vpop.f32.mrf.mxu0
    %v4664 = vadd.f32 %v4551, %v4663
    %4665 = vmatmul.f32.gmra.mxu0 %v108
    %v4666 = vpop.f32.mrf.mxu0
    %v4667 = vadd.f32 %v4554, %v4666
    %4668 = vmatmul.f32.gmra.mxu0 %v111
    %v4669 = vpop.f32.mrf.mxu0
    %v4670 = vadd.f32 %v4557, %v4669
    %4671 = vmatmul.f32.gmra.mxu0 %v114
    %v4672 = vpop.f32.mrf.mxu0
    %v4673 = vadd.f32 %v4560, %v4672
    %4674 = vmatmul.f32.gmra.mxu0 %v117
    %v4675 = vpop.f32.mrf.mxu0
    %v4676 = vadd.f32 %v4563, %v4675
    %4677 = vmatmul.f32.gmra.mxu0 %v120
    %v4678 = vpop.f32.mrf.mxu0
    %v4679 = vadd.f32 %v4566, %v4678
    %4680 = vmatmul.f32.gmra.mxu0 %v123
    %v4681 = vpop.f32.mrf.mxu0
    %v4682 = vadd.f32 %v4569, %v4681
    %4683 = vmatmul.f32.gmra.mxu0 %v126
    %v4684 = vpop.f32.mrf.mxu0
    %v4685 = vadd.f32 %v4572, %v4684
    %4686 = vmatmul.f32.gmra.mxu0 %v129
    %v4687 = vpop.f32.mrf.mxu0
    %v4688 = vadd.f32 %v4575, %v4687
    %4689 = vmatmul.f32.gmra.mxu0 %v132
    %v4690 = vpop.f32.mrf.mxu0
    %v4691 = vadd.f32 %v4578, %v4690
    %4692 = vmatmul.f32.gmra.mxu0 %v135
    %v4693 = vpop.f32.mrf.mxu0
    %v4694 = vadd.f32 %v4581, %v4693
    %4695 = vmatmul.f32.gmra.mxu0 %v138
    %v4696 = vpop.f32.mrf.mxu0
    %v4697 = vadd.f32 %v4584, %v4696
    %4698 = vmatmul.f32.gmra.mxu0 %v141
    %v4699 = vpop.f32.mrf.mxu0
    %v4700 = vadd.f32 %v4587, %v4699
    %4701 = vmatmul.f32.gmra.mxu0 %v144
    %v4702 = vpop.f32.mrf.mxu0
    %v4703 = vadd.f32 %v4590, %v4702
    %4704 = vmatmul.f32.gmra.mxu0 %v147
    %v4705 = vpop.f32.mrf.mxu0
    %v4706 = vadd.f32 %v4593, %v4705
    %4707 = vmatmul.f32.gmra.mxu0 %v150
    %v4708 = vpop.f32.mrf.mxu0
    %v4709 = vadd.f32 %v4596, %v4708
    %4710 = vmatmul.f32.gmra.mxu0 %v153
    %v4711 = vpop.f32.mrf.mxu0
    %v4712 = vadd.f32 %v4599, %v4711
    %4713 = vmatmul.f32.gmra.mxu0 %v156
    %v4714 = vpop.f32.mrf.mxu0
    %v4715 = vadd.f32 %v4602, %v4714
    %4716 = vmatmul.f32.gmra.mxu0 %v159
    %v4717 = vpop.f32.mrf.mxu0
    %v4718 = vadd.f32 %v4605, %v4717
    %4719 = vmatmul.f32.gmra.mxu0 %v162
    %v4720 = vpop.f32.mrf.mxu0
    %v4721 = vadd.f32 %v4608, %v4720
    %4722 = vmatmul.f32.gmra.mxu0 %v165
    %v4723 = vpop.f32.mrf.mxu0
    %v4724 = vadd.f32 %v4611, %v4723
    %4725 = vmatmul.f32.gmra.mxu0 %v168
    %v4726 = vpop.f32.mrf.mxu0
    %v4727 = vadd.f32 %v4614, %v4726
    %4728 = vmatmul.f32.gmra.mxu0 %v171
    %v4729 = vpop.f32.mrf.mxu0
    %v4730 = vadd.f32 %v4617, %v4729
    %4731 = vmatmul.f32.gmra.mxu0 %v174
    %v4732 = vpop.f32.mrf.mxu0
    %v4733 = vadd.f32 %v4620, %v4732
    %4734 = vmatmul.f32.gmra.mxu0 %v177
    %v4735 = vpop.f32.mrf.mxu0
    %v4736 = vadd.f32 %v4623, %v4735
    %4737 = vmatmul.f32.gmra.mxu0 %v180
    %v4738 = vpop.f32.mrf.mxu0
    %v4739 = vadd.f32 %v4626, %v4738
    %4740 = vmatmul.f32.gmra.mxu0 %v183
    %v4741 = vpop.f32.mrf.mxu0
    %v4742 = vadd.f32 %v4629, %v4741
    %4743 = vmatmul.f32.gmra.mxu0 %v186
    %v4744 = vpop.f32.mrf.mxu0
    %v4745 = vadd.f32 %v4632, %v4744
    %4746 = vmatmul.f32.gmra.mxu0 %v189
    %v4747 = vpop.f32.mrf.mxu0
    %v4748 = vadd.f32 %v4635, %v4747
    %4749 = vdwg.mxu0
    %4750 = vmatpush.msra.mxu0 %v766
    %4751 = vmatpush.msra.mxu0 %v754
    %4752 = vmatpush.msra.mxu0 %v742
    %4753 = vmatpush.msra.mxu0 %v730
    %4754 = vmatpush.msra.mxu0 %v718
    %4755 = vmatpush.msra.mxu0 %v706
    %4756 = vmatpush.msra.mxu0 %v694
    %4757 = vmatpush.msra.mxu0 %v682
    %4758 = vmatpush.msra.mxu0 %v670
    %4759 = vmatpush.msra.mxu0 %v658
    %4760 = vmatpush.msra.mxu0 %v646
    %4761 = vmatpush.msra.mxu0 %v634
    %4762 = vmatpush.msra.mxu0 %v622
    %4763 = vmatpush.msra.mxu0 %v610
    %4764 = vmatpush.msra.mxu0 %v598
    %4765 = vmatpush.msra.mxu0 %v586
    %4766 = vmatmul.f32.gmra.mxu0 %v97
    %v4767 = vpop.f32.mrf.mxu0
    %v4768 = vadd.f32 %v4655, %v4767
    %4769 = vmatmul.f32.gmra.mxu0 %v100
    %v4770 = vpop.f32.mrf.mxu0
    %v4771 = vadd.f32 %v4658, %v4770
    %4772 = vmatmul.f32.gmra.mxu0 %v103
    %v4773 = vpop.f32.mrf.mxu0
    %v4774 = vadd.f32 %v4661, %v4773
    %4775 = vmatmul.f32.gmra.mxu0 %v106
    %v4776 = vpop.f32.mrf.mxu0
    %v4777 = vadd.f32 %v4664, %v4776
    %4778 = vmatmul.f32.gmra.mxu0 %v109
    %v4779 = vpop.f32.mrf.mxu0
    %v4780 = vadd.f32 %v4667, %v4779
    %4781 = vmatmul.f32.gmra.mxu0 %v112
    %v4782 = vpop.f32.mrf.mxu0
    %v4783 = vadd.f32 %v4670, %v4782
    %4784 = vmatmul.f32.gmra.mxu0 %v115
    %v4785 = vpop.f32.mrf.mxu0
    %v4786 = vadd.f32 %v4673, %v4785
    %4787 = vmatmul.f32.gmra.mxu0 %v118
    %v4788 = vpop.f32.mrf.mxu0
    %v4789 = vadd.f32 %v4676, %v4788
    %4790 = vmatmul.f32.gmra.mxu0 %v121
    %v4791 = vpop.f32.mrf.mxu0
    %v4792 = vadd.f32 %v4679, %v4791
    %4793 = vmatmul.f32.gmra.mxu0 %v124
    %v4794 = vpop.f32.mrf.mxu0
    %v4795 = vadd.f32 %v4682, %v4794
    %4796 = vmatmul.f32.gmra.mxu0 %v127
    %v4797 = vpop.f32.mrf.mxu0
    %v4798 = vadd.f32 %v4685, %v4797
    %4799 = vmatmul.f32.gmra.mxu0 %v130
    %v4800 = vpop.f32.mrf.mxu0
    %v4801 = vadd.f32 %v4688, %v4800
    %4802 = vmatmul.f32.gmra.mxu0 %v133
    %v4803 = vpop.f32.mrf.mxu0
    %v4804 = vadd.f32 %v4691, %v4803
    %4805 = vmatmul.f32.gmra.mxu0 %v136
    %v4806 = vpop.f32.mrf.mxu0
    %v4807 = vadd.f32 %v4694, %v4806
    %4808 = vmatmul.f32.gmra.mxu0 %v139
    %v4809 = vpop.f32.mrf.mxu0
    %v4810 = vadd.f32 %v4697, %v4809
    %4811 = vmatmul.f32.gmra.mxu0 %v142
    %v4812 = vpop.f32.mrf.mxu0
    %v4813 = vadd.f32 %v4700, %v4812
    %4814 = vmatmul.f32.gmra.mxu0 %v145
    %v4815 = vpop.f32.mrf.mxu0
    %v4816 = vadd.f32 %v4703, %v4815
    %4817 = vmatmul.f32.gmra.mxu0 %v148
    %v4818 = vpop.f32.mrf.mxu0
    %v4819 = vadd.f32 %v4706, %v4818
    %4820 = vmatmul.f32.gmra.mxu0 %v151
    %v4821 = vpop.f32.mrf.mxu0
    %v4822 = vadd.f32 %v4709, %v4821
    %4823 = vmatmul.f32.gmra.mxu0 %v154
    %v4824 = vpop.f32.mrf.mxu0
    %v4825 = vadd.f32 %v4712, %v4824
    %4826 = vmatmul.f32.gmra.mxu0 %v157
    %v4827 = vpop.f32.mrf.mxu0
    %v4828 = vadd.f32 %v4715, %v4827
    %4829 = vmatmul.f32.gmra.mxu0 %v160
    %v4830 = vpop.f32.mrf.mxu0
    %v4831 = vadd.f32 %v4718, %v4830
    %4832 = vmatmul.f32.gmra.mxu0 %v163
    %v4833 = vpop.f32.mrf.mxu0
    %v4834 = vadd.f32 %v4721, %v4833
    %4835 = vmatmul.f32.gmra.mxu0 %v166
    %v4836 = vpop.f32.mrf.mxu0
    %v4837 = vadd.f32 %v4724, %v4836
    %4838 = vmatmul.f32.gmra.mxu0 %v169
    %v4839 = vpop.f32.mrf.mxu0
    %v4840 = vadd.f32 %v4727, %v4839
    %4841 = vmatmul.f32.gmra.mxu0 %v172
    %v4842 = vpop.f32.mrf.mxu0
    %v4843 = vadd.f32 %v4730, %v4842
    %4844 = vmatmul.f32.gmra.mxu0 %v175
    %v4845 = vpop.f32.mrf.mxu0
    %v4846 = vadd.f32 %v4733, %v4845
    %4847 = vmatmul.f32.gmra.mxu0 %v178
    %v4848 = vpop.f32.mrf.mxu0
    %v4849 = vadd.f32 %v4736, %v4848
    %4850 = vmatmul.f32.gmra.mxu0 %v181
    %v4851 = vpop.f32.mrf.mxu0
    %v4852 = vadd.f32 %v4739, %v4851
    %4853 = vmatmul.f32.gmra.mxu0 %v184
    %v4854 = vpop.f32.mrf.mxu0
    %v4855 = vadd.f32 %v4742, %v4854
    %4856 = vmatmul.f32.gmra.mxu0 %v187
    %v4857 = vpop.f32.mrf.mxu0
    %v4858 = vadd.f32 %v4745, %v4857
    %4859 = vmatmul.f32.gmra.mxu0 %v190
    %v4860 = vpop.f32.mrf.mxu0
    %v4861 = vadd.f32 %v4748, %v4860
    %4862 = vdwg.mxu0
    %v4863 = vmax.f32 %v1039, 0.0
    %v4864 = vmax.f32 %v1378, 0.0
    %v4865 = vmax.f32 %v1717, 0.0
    %v4866 = vmax.f32 %v2056, 0.0
    %v4867 = vmax.f32 %v2395, 0.0
    %v4868 = vmax.f32 %v2734, 0.0
    %v4869 = vmax.f32 %v3073, 0.0
    %v4870 = vmax.f32 %v3412, 0.0
    %v4871 = vmax.f32 %v3751, 0.0
    %v4872 = vmax.f32 %v4090, 0.0
    %v4873 = vmax.f32 %v4429, 0.0
    %v4874 = vmax.f32 %v4768, 0.0
    %v4875 = vmax.f32 %v1042, 0.0
    %v4876 = vmax.f32 %v1381, 0.0
    %v4877 = vmax.f32 %v1720, 0.0
    %v4878 = vmax.f32 %v2059, 0.0
    %v4879 = vmax.f32 %v2398, 0.0
    %v4880 = vmax.f32 %v2737, 0.0
    %v4881 = vmax.f32 %v3076, 0.0
    %v4882 = vmax.f32 %v3415, 0.0
    %v4883 = vmax.f32 %v3754, 0.0
    %v4884 = vmax.f32 %v4093, 0.0
    %v4885 = vmax.f32 %v4432, 0.0
    %v4886 = vmax.f32 %v4771, 0.0
    %v4887 = vmax.f32 %v1045, 0.0
    %v4888 = vmax.f32 %v1384, 0.0
    %v4889 = vmax.f32 %v1723, 0.0
    %v4890 = vmax.f32 %v2062, 0.0
    %v4891 = vmax.f32 %v2401, 0.0
    %v4892 = vmax.f32 %v2740, 0.0
    %v4893 = vmax.f32 %v3079, 0.0
    %v4894 = vmax.f32 %v3418, 0.0
    %v4895 = vmax.f32 %v3757, 0.0
    %v4896 = vmax.f32 %v4096, 0.0
    %v4897 = vmax.f32 %v4435, 0.0
    %v4898 = vmax.f32 %v4774, 0.0
    %v4899 = vmax.f32 %v1048, 0.0
    %v4900 = vmax.f32 %v1387, 0.0
    %v4901 = vmax.f32 %v1726, 0.0
    %v4902 = vmax.f32 %v2065, 0.0
    %v4903 = vmax.f32 %v2404, 0.0
    %v4904 = vmax.f32 %v2743, 0.0
    %v4905 = vmax.f32 %v3082, 0.0
    %v4906 = vmax.f32 %v3421, 0.0
    %v4907 = vmax.f32 %v3760, 0.0
    %v4908 = vmax.f32 %v4099, 0.0
    %v4909 = vmax.f32 %v4438, 0.0
    %v4910 = vmax.f32 %v4777, 0.0
    %v4911 = vmax.f32 %v1051, 0.0
    %v4912 = vmax.f32 %v1390, 0.0
    %v4913 = vmax.f32 %v1729, 0.0
    %v4914 = vmax.f32 %v2068, 0.0
    %v4915 = vmax.f32 %v2407, 0.0
    %v4916 = vmax.f32 %v2746, 0.0
    %v4917 = vmax.f32 %v3085, 0.0
    %v4918 = vmax.f32 %v3424, 0.0
    %v4919 = vmax.f32 %v3763, 0.0
    %v4920 = vmax.f32 %v4102, 0.0
    %v4921 = vmax.f32 %v4441, 0.0
    %v4922 = vmax.f32 %v4780, 0.0
    %v4923 = vmax.f32 %v1054, 0.0
    %v4924 = vmax.f32 %v1393, 0.0
    %v4925 = vmax.f32 %v1732, 0.0
    %v4926 = vmax.f32 %v2071, 0.0
    %v4927 = vmax.f32 %v2410, 0.0
    %v4928 = vmax.f32 %v2749, 0.0
    %v4929 = vmax.f32 %v3088, 0.0
    %v4930 = vmax.f32 %v3427, 0.0
    %v4931 = vmax.f32 %v3766, 0.0
    %v4932 = vmax.f32 %v4105, 0.0
    %v4933 = vmax.f32 %v4444, 0.0
    %v4934 = vmax.f32 %v4783, 0.0
    %v4935 = vmax.f32 %v1057, 0.0
    %v4936 = vmax.f32 %v1396, 0.0
    %v4937 = vmax.f32 %v1735, 0.0
    %v4938 = vmax.f32 %v2074, 0.0
    %v4939 = vmax.f32 %v2413, 0.0
    %v4940 = vmax.f32 %v2752, 0.0
    %v4941 = vmax.f32 %v3091, 0.0
    %v4942 = vmax.f32 %v3430, 0.0
    %v4943 = vmax.f32 %v3769, 0.0
    %v4944 = vmax.f32 %v4108, 0.0
    %v4945 = vmax.f32 %v4447, 0.0
    %v4946 = vmax.f32 %v4786, 0.0
    %v4947 = vmax.f32 %v1060, 0.0
    %v4948 = vmax.f32 %v1399, 0.0
    %v4949 = vmax.f32 %v1738, 0.0
    %v4950 = vmax.f32 %v2077, 0.0
    %v4951 = vmax.f32 %v2416, 0.0
    %v4952 = vmax.f32 %v2755, 0.0
    %v4953 = vmax.f32 %v3094, 0.0
    %v4954 = vmax.f32 %v3433, 0.0
    %v4955 = vmax.f32 %v3772, 0.0
    %v4956 = vmax.f32 %v4111, 0.0
    %v4957 = vmax.f32 %v4450, 0.0
    %v4958 = vmax.f32 %v4789, 0.0
    %v4959 = vmax.f32 %v1063, 0.0
    %v4960 = vmax.f32 %v1402, 0.0
    %v4961 = vmax.f32 %v1741, 0.0
    %v4962 = vmax.f32 %v2080, 0.0
    %v4963 = vmax.f32 %v2419, 0.0
    %v4964 = vmax.f32 %v2758, 0.0
    %v4965 = vmax.f32 %v3097, 0.0
    %v4966 = vmax.f32 %v3436, 0.0
    %v4967 = vmax.f32 %v3775, 0.0
    %v4968 = vmax.f32 %v4114, 0.0
    %v4969 = vmax.f32 %v4453, 0.0
    %v4970 = vmax.f32 %v4792, 0.0
    %v4971 = vmax.f32 %v1066, 0.0
    %v4972 = vmax.f32 %v1405, 0.0
    %v4973 = vmax.f32 %v1744, 0.0
    %v4974 = vmax.f32 %v2083, 0.0
    %v4975 = vmax.f32 %v2422, 0.0
    %v4976 = vmax.f32 %v2761, 0.0
    %v4977 = vmax.f32 %v3100, 0.0
    %v4978 = vmax.f32 %v3439, 0.0
    %v4979 = vmax.f32 %v3778, 0.0
    %v4980 = vmax.f32 %v4117, 0.0
    %v4981 = vmax.f32 %v4456, 0.0
    %v4982 = vmax.f32 %v4795, 0.0
    %v4983 = vmax.f32 %v1069, 0.0
    %v4984 = vmax.f32 %v1408, 0.0
    %v4985 = vmax.f32 %v1747, 0.0
    %v4986 = vmax.f32 %v2086, 0.0
    %v4987 = vmax.f32 %v2425, 0.0
    %v4988 = vmax.f32 %v2764, 0.0
    %v4989 = vmax.f32 %v3103, 0.0
    %v4990 = vmax.f32 %v3442, 0.0
    %v4991 = vmax.f32 %v3781, 0.0
    %v4992 = vmax.f32 %v4120, 0.0
    %v4993 = vmax.f32 %v4459, 0.0
    %v4994 = vmax.f32 %v4798, 0.0
    %v4995 = vmax.f32 %v1072, 0.0
    %v4996 = vmax.f32 %v1411, 0.0
    %v4997 = vmax.f32 %v1750, 0.0
    %v4998 = vmax.f32 %v2089, 0.0
    %v4999 = vmax.f32 %v2428, 0.0
    %v5000 = vmax.f32 %v2767, 0.0
    %v5001 = vmax.f32 %v3106, 0.0
    %v5002 = vmax.f32 %v3445, 0.0
    %v5003 = vmax.f32 %v3784, 0.0
    %v5004 = vmax.f32 %v4123, 0.0
    %v5005 = vmax.f32 %v4462, 0.0
    %v5006 = vmax.f32 %v4801, 0.0
    %v5007 = vmax.f32 %v1075, 0.0
    %v5008 = vmax.f32 %v1414, 0.0
    %v5009 = vmax.f32 %v1753, 0.0
    %v5010 = vmax.f32 %v2092, 0.0
    %v5011 = vmax.f32 %v2431, 0.0
    %v5012 = vmax.f32 %v2770, 0.0
    %v5013 = vmax.f32 %v3109, 0.0
    %v5014 = vmax.f32 %v3448, 0.0
    %v5015 = vmax.f32 %v3787, 0.0
    %v5016 = vmax.f32 %v4126, 0.0
    %v5017 = vmax.f32 %v4465, 0.0
    %v5018 = vmax.f32 %v4804, 0.0
    %v5019 = vmax.f32 %v1078, 0.0
    %v5020 = vmax.f32 %v1417, 0.0
    %v5021 = vmax.f32 %v1756, 0.0
    %v5022 = vmax.f32 %v2095, 0.0
    %v5023 = vmax.f32 %v2434, 0.0
    %v5024 = vmax.f32 %v2773, 0.0
    %v5025 = vmax.f32 %v3112, 0.0
    %v5026 = vmax.f32 %v3451, 0.0
    %v5027 = vmax.f32 %v3790, 0.0
    %v5028 = vmax.f32 %v4129, 0.0
    %v5029 = vmax.f32 %v4468, 0.0
    %v5030 = vmax.f32 %v4807, 0.0
    %v5031 = vmax.f32 %v1081, 0.0
    %v5032 = vmax.f32 %v1420, 0.0
    %v5033 = vmax.f32 %v1759, 0.0
    %v5034 = vmax.f32 %v2098, 0.0
    %v5035 = vmax.f32 %v2437, 0.0
    %v5036 = vmax.f32 %v2776, 0.0
    %v5037 = vmax.f32 %v3115, 0.0
    %v5038 = vmax.f32 %v3454, 0.0
    %v5039 = vmax.f32 %v3793, 0.0
    %v5040 = vmax.f32 %v4132, 0.0
    %v5041 = vmax.f32 %v4471, 0.0
    %v5042 = vmax.f32 %v4810, 0.0
    %v5043 = vmax.f32 %v1084, 0.0
    %v5044 = vmax.f32 %v1423, 0.0
    %v5045 = vmax.f32 %v1762, 0.0
    %v5046 = vmax.f32 %v2101, 0.0
    %v5047 = vmax.f32 %v2440, 0.0
    %v5048 = vmax.f32 %v2779, 0.0
    %v5049 = vmax.f32 %v3118, 0.0
    %v5050 = vmax.f32 %v3457, 0.0
    %v5051 = vmax.f32 %v3796, 0.0
    %v5052 = vmax.f32 %v4135, 0.0
    %v5053 = vmax.f32 %v4474, 0.0
    %v5054 = vmax.f32 %v4813, 0.0
    %v5055 = vmax.f32 %v1087, 0.0
    %v5056 = vmax.f32 %v1426, 0.0
    %v5057 = vmax.f32 %v1765, 0.0
    %v5058 = vmax.f32 %v2104, 0.0
    %v5059 = vmax.f32 %v2443, 0.0
    %v5060 = vmax.f32 %v2782, 0.0
    %v5061 = vmax.f32 %v3121, 0.0
    %v5062 = vmax.f32 %v3460, 0.0
    %v5063 = vmax.f32 %v3799, 0.0
    %v5064 = vmax.f32 %v4138, 0.0
    %v5065 = vmax.f32 %v4477, 0.0
    %v5066 = vmax.f32 %v4816, 0.0
    %v5067 = vmax.f32 %v1090, 0.0
    %v5068 = vmax.f32 %v1429, 0.0
    %v5069 = vmax.f32 %v1768, 0.0
    %v5070 = vmax.f32 %v2107, 0.0
    %v5071 = vmax.f32 %v2446, 0.0
    %v5072 = vmax.f32 %v2785, 0.0
    %v5073 = vmax.f32 %v3124, 0.0
    %v5074 = vmax.f32 %v3463, 0.0
    %v5075 = vmax.f32 %v3802, 0.0
    %v5076 = vmax.f32 %v4141, 0.0
    %v5077 = vmax.f32 %v4480, 0.0
    %v5078 = vmax.f32 %v4819, 0.0
    %v5079 = vmax.f32 %v1093, 0.0
    %v5080 = vmax.f32 %v1432, 0.0
    %v5081 = vmax.f32 %v1771, 0.0
    %v5082 = vmax.f32 %v2110, 0.0
    %v5083 = vmax.f32 %v2449, 0.0
    %v5084 = vmax.f32 %v2788, 0.0
    %v5085 = vmax.f32 %v3127, 0.0
    %v5086 = vmax.f32 %v3466, 0.0
    %v5087 = vmax.f32 %v3805, 0.0
    %v5088 = vmax.f32 %v4144, 0.0
    %v5089 = vmax.f32 %v4483, 0.0
    %v5090 = vmax.f32 %v4822, 0.0
    %v5091 = vmax.f32 %v1096, 0.0
    %v5092 = vmax.f32 %v1435, 0.0
    %v5093 = vmax.f32 %v1774, 0.0
    %v5094 = vmax.f32 %v2113, 0.0
    %v5095 = vmax.f32 %v2452, 0.0
    %v5096 = vmax.f32 %v2791, 0.0
    %v5097 = vmax.f32 %v3130, 0.0
    %v5098 = vmax.f32 %v3469, 0.0
    %v5099 = vmax.f32 %v3808, 0.0
    %v5100 = vmax.f32 %v4147, 0.0
    %v5101 = vmax.f32 %v4486, 0.0
    %v5102 = vmax.f32 %v4825, 0.0
    %v5103 = vmax.f32 %v1099, 0.0
    %v5104 = vmax.f32 %v1438, 0.0
    %v5105 = vmax.f32 %v1777, 0.0
    %v5106 = vmax.f32 %v2116, 0.0
    %v5107 = vmax.f32 %v2455, 0.0
    %v5108 = vmax.f32 %v2794, 0.0
    %v5109 = vmax.f32 %v3133, 0.0
    %v5110 = vmax.f32 %v3472, 0.0
    %v5111 = vmax.f32 %v3811, 0.0
    %v5112 = vmax.f32 %v4150, 0.0
    %v5113 = vmax.f32 %v4489, 0.0
    %v5114 = vmax.f32 %v4828, 0.0
    %v5115 = vmax.f32 %v1102, 0.0
    %v5116 = vmax.f32 %v1441, 0.0
    %v5117 = vmax.f32 %v1780, 0.0
    %v5118 = vmax.f32 %v2119, 0.0
    %v5119 = vmax.f32 %v2458, 0.0
    %v5120 = vmax.f32 %v2797, 0.0
    %v5121 = vmax.f32 %v3136, 0.0
    %v5122 = vmax.f32 %v3475, 0.0
    %v5123 = vmax.f32 %v3814, 0.0
    %v5124 = vmax.f32 %v4153, 0.0
    %v5125 = vmax.f32 %v4492, 0.0
    %v5126 = vmax.f32 %v4831, 0.0
    %v5127 = vmax.f32 %v1105, 0.0
    %v5128 = vmax.f32 %v1444, 0.0
    %v5129 = vmax.f32 %v1783, 0.0
    %v5130 = vmax.f32 %v2122, 0.0
    %v5131 = vmax.f32 %v2461, 0.0
    %v5132 = vmax.f32 %v2800, 0.0
    %v5133 = vmax.f32 %v3139, 0.0
    %v5134 = vmax.f32 %v3478, 0.0
    %v5135 = vmax.f32 %v3817, 0.0
    %v5136 = vmax.f32 %v4156, 0.0
    %v5137 = vmax.f32 %v4495, 0.0
    %v5138 = vmax.f32 %v4834, 0.0
    %v5139 = vmax.f32 %v1108, 0.0
    %v5140 = vmax.f32 %v1447, 0.0
    %v5141 = vmax.f32 %v1786, 0.0
    %v5142 = vmax.f32 %v2125, 0.0
    %v5143 = vmax.f32 %v2464, 0.0
    %v5144 = vmax.f32 %v2803, 0.0
    %v5145 = vmax.f32 %v3142, 0.0
    %v5146 = vmax.f32 %v3481, 0.0
    %v5147 = vmax.f32 %v3820, 0.0
    %v5148 = vmax.f32 %v4159, 0.0
    %v5149 = vmax.f32 %v4498, 0.0
    %v5150 = vmax.f32 %v4837, 0.0
    %v5151 = vmax.f32 %v1111, 0.0
    %v5152 = vmax.f32 %v1450, 0.0
    %v5153 = vmax.f32 %v1789, 0.0
    %v5154 = vmax.f32 %v2128, 0.0
    %v5155 = vmax.f32 %v2467, 0.0
    %v5156 = vmax.f32 %v2806, 0.0
    %v5157 = vmax.f32 %v3145, 0.0
    %v5158 = vmax.f32 %v3484, 0.0
    %v5159 = vmax.f32 %v3823, 0.0
    %v5160 = vmax.f32 %v4162, 0.0
    %v5161 = vmax.f32 %v4501, 0.0
    %v5162 = vmax.f32 %v4840, 0.0
    %v5163 = vmax.f32 %v1114, 0.0
    %v5164 = vmax.f32 %v1453, 0.0
    %v5165 = vmax.f32 %v1792, 0.0
    %v5166 = vmax.f32 %v2131, 0.0
    %v5167 = vmax.f32 %v2470, 0.0
    %v5168 = vmax.f32 %v2809, 0.0
    %v5169 = vmax.f32 %v3148, 0.0
    %v5170 = vmax.f32 %v3487, 0.0
    %v5171 = vmax.f32 %v3826, 0.0
    %v5172 = vmax.f32 %v4165, 0.0
    %v5173 = vmax.f32 %v4504, 0.0
    %v5174 = vmax.f32 %v4843, 0.0
    %v5175 = vmax.f32 %v1117, 0.0
    %v5176 = vmax.f32 %v1456, 0.0
    %v5177 = vmax.f32 %v1795, 0.0
    %v5178 = vmax.f32 %v2134, 0.0
    %v5179 = vmax.f32 %v2473, 0.0
    %v5180 = vmax.f32 %v2812, 0.0
    %v5181 = vmax.f32 %v3151, 0.0
    %v5182 = vmax.f32 %v3490, 0.0
    %v5183 = vmax.f32 %v3829, 0.0
    %v5184 = vmax.f32 %v4168, 0.0
    %v5185 = vmax.f32 %v4507, 0.0
    %v5186 = vmax.f32 %v4846, 0.0
    %v5187 = vmax.f32 %v1120, 0.0
    %v5188 = vmax.f32 %v1459, 0.0
    %v5189 = vmax.f32 %v1798, 0.0
    %v5190 = vmax.f32 %v2137, 0.0
    %v5191 = vmax.f32 %v2476, 0.0
    %v5192 = vmax.f32 %v2815, 0.0
    %v5193 = vmax.f32 %v3154, 0.0
    %v5194 = vmax.f32 %v3493, 0.0
    %v5195 = vmax.f32 %v3832, 0.0
    %v5196 = vmax.f32 %v4171, 0.0
    %v5197 = vmax.f32 %v4510, 0.0
    %v5198 = vmax.f32 %v4849, 0.0
    %v5199 = vmax.f32 %v1123, 0.0
    %v5200 = vmax.f32 %v1462, 0.0
    %v5201 = vmax.f32 %v1801, 0.0
    %v5202 = vmax.f32 %v2140, 0.0
    %v5203 = vmax.f32 %v2479, 0.0
    %v5204 = vmax.f32 %v2818, 0.0
    %v5205 = vmax.f32 %v3157, 0.0
    %v5206 = vmax.f32 %v3496, 0.0
    %v5207 = vmax.f32 %v3835, 0.0
    %v5208 = vmax.f32 %v4174, 0.0
    %v5209 = vmax.f32 %v4513, 0.0
    %v5210 = vmax.f32 %v4852, 0.0
    %v5211 = vmax.f32 %v1126, 0.0
    %v5212 = vmax.f32 %v1465, 0.0
    %v5213 = vmax.f32 %v1804, 0.0
    %v5214 = vmax.f32 %v2143, 0.0
    %v5215 = vmax.f32 %v2482, 0.0
    %v5216 = vmax.f32 %v2821, 0.0
    %v5217 = vmax.f32 %v3160, 0.0
    %v5218 = vmax.f32 %v3499, 0.0
    %v5219 = vmax.f32 %v3838, 0.0
    %v5220 = vmax.f32 %v4177, 0.0
    %v5221 = vmax.f32 %v4516, 0.0
    %v5222 = vmax.f32 %v4855, 0.0
    %v5223 = vmax.f32 %v1129, 0.0
    %v5224 = vmax.f32 %v1468, 0.0
    %v5225 = vmax.f32 %v1807, 0.0
    %v5226 = vmax.f32 %v2146, 0.0
    %v5227 = vmax.f32 %v2485, 0.0
    %v5228 = vmax.f32 %v2824, 0.0
    %v5229 = vmax.f32 %v3163, 0.0
    %v5230 = vmax.f32 %v3502, 0.0
    %v5231 = vmax.f32 %v3841, 0.0
    %v5232 = vmax.f32 %v4180, 0.0
    %v5233 = vmax.f32 %v4519, 0.0
    %v5234 = vmax.f32 %v4858, 0.0
    %v5235 = vmax.f32 %v1132, 0.0
    %v5236 = vmax.f32 %v1471, 0.0
    %v5237 = vmax.f32 %v1810, 0.0
    %v5238 = vmax.f32 %v2149, 0.0
    %v5239 = vmax.f32 %v2488, 0.0
    %v5240 = vmax.f32 %v2827, 0.0
    %v5241 = vmax.f32 %v3166, 0.0
    %v5242 = vmax.f32 %v3505, 0.0
    %v5243 = vmax.f32 %v3844, 0.0
    %v5244 = vmax.f32 %v4183, 0.0
    %v5245 = vmax.f32 %v4522, 0.0
    %v5246 = vmax.f32 %v4861, 0.0
    %v5247 = vld [vmem:[#allocation8] sm:$0xff]
    %v5248 = vld [vmem:[#allocation8 + $0x8] sm:$0xff]
    %v5249 = vld [vmem:[#allocation8 + $0x10] sm:$0xff]
    %v5250 = vld [vmem:[#allocation8 + $0x18] sm:$0xff]
    %v5251 = vld [vmem:[#allocation8 + $0x20] sm:$0xff]
    %v5252 = vld [vmem:[#allocation8 + $0x28] sm:$0xff]
    %v5253 = vld [vmem:[#allocation8 + $0x30] sm:$0xff]
    %v5254 = vld [vmem:[#allocation8 + $0x38] sm:$0xff]
    %v5255 = vld [vmem:[#allocation8 + $0x40] sm:$0xff]
    %v5256 = vld [vmem:[#allocation8 + $0x48] sm:$0xff]
    %v5257 = vld [vmem:[#allocation8 + $0x50] sm:$0xff]
    %v5258 = vld [vmem:[#allocation8 + $0x58] sm:$0xff]
    %v5259 = vld [vmem:[#allocation8 + $0x60] sm:$0xff]
    %v5260 = vld [vmem:[#allocation8 + $0x68] sm:$0xff]
    %v5261 = vld [vmem:[#allocation8 + $0x70] sm:$0xff]
    %v5262 = vld [vmem:[#allocation8 + $0x78] sm:$0xff]
    %v5263 = vld [vmem:[#allocation8 + $0x80] sm:$0xff]
    %v5264 = vld [vmem:[#allocation8 + $0x88] sm:$0xff]
    %v5265 = vld [vmem:[#allocation8 + $0x90] sm:$0xff]
    %v5266 = vld [vmem:[#allocation8 + $0x98] sm:$0xff]
    %v5267 = vld [vmem:[#allocation8 + $0xa0] sm:$0xff]
    %v5268 = vld [vmem:[#allocation8 + $0xa8] sm:$0xff]
    %v5269 = vld [vmem:[#allocation8 + $0xb0] sm:$0xff]
    %v5270 = vld [vmem:[#allocation8 + $0xb8] sm:$0xff]
    %v5271 = vld [vmem:[#allocation8 + $0xc0] sm:$0xff]
    %v5272 = vld [vmem:[#allocation8 + $0xc8] sm:$0xff]
    %v5273 = vld [vmem:[#allocation8 + $0xd0] sm:$0xff]
    %v5274 = vld [vmem:[#allocation8 + $0xd8] sm:$0xff]
    %v5275 = vld [vmem:[#allocation8 + $0xe0] sm:$0xff]
    %v5276 = vld [vmem:[#allocation8 + $0xe8] sm:$0xff]
    %v5277 = vld [vmem:[#allocation8 + $0xf0] sm:$0xff]
    %v5278 = vld [vmem:[#allocation8 + $0xf8] sm:$0xff]
    %v5279 = vld [vmem:[#allocation8 + $0x100] sm:$0xff]
    %v5280 = vld [vmem:[#allocation8 + $0x108] sm:$0xff]
    %v5281 = vld [vmem:[#allocation8 + $0x110] sm:$0xff]
    %v5282 = vld [vmem:[#allocation8 + $0x118] sm:$0xff]
    %v5283 = vld [vmem:[#allocation8 + $0x120] sm:$0xff]
    %v5284 = vld [vmem:[#allocation8 + $0x128] sm:$0xff]
    %v5285 = vld [vmem:[#allocation8 + $0x130] sm:$0xff]
    %v5286 = vld [vmem:[#allocation8 + $0x138] sm:$0xff]
    %v5287 = vld [vmem:[#allocation8 + $0x140] sm:$0xff]
    %v5288 = vld [vmem:[#allocation8 + $0x148] sm:$0xff]
    %v5289 = vld [vmem:[#allocation8 + $0x150] sm:$0xff]
    %v5290 = vld [vmem:[#allocation8 + $0x158] sm:$0xff]
    %v5291 = vld [vmem:[#allocation8 + $0x160] sm:$0xff]
    %v5292 = vld [vmem:[#allocation8 + $0x168] sm:$0xff]
    %v5293 = vld [vmem:[#allocation8 + $0x170] sm:$0xff]
    %v5294 = vld [vmem:[#allocation8 + $0x178] sm:$0xff]
    %v5295 = vld [vmem:[#allocation8 + $0x180] sm:$0xff]
    %v5296 = vld [vmem:[#allocation8 + $0x188] sm:$0xff]
    %v5297 = vld [vmem:[#allocation8 + $0x190] sm:$0xff]
    %v5298 = vld [vmem:[#allocation8 + $0x198] sm:$0xff]
    %v5299 = vld [vmem:[#allocation8 + $0x1a0] sm:$0xff]
    %v5300 = vld [vmem:[#allocation8 + $0x1a8] sm:$0xff]
    %v5301 = vld [vmem:[#allocation8 + $0x1b0] sm:$0xff]
    %v5302 = vld [vmem:[#allocation8 + $0x1b8] sm:$0xff]
    %v5303 = vld [vmem:[#allocation8 + $0x1c0] sm:$0xff]
    %v5304 = vld [vmem:[#allocation8 + $0x1c8] sm:$0xff]
    %v5305 = vld [vmem:[#allocation8 + $0x1d0] sm:$0xff]
    %v5306 = vld [vmem:[#allocation8 + $0x1d8] sm:$0xff]
    %v5307 = vld [vmem:[#allocation8 + $0x1e0] sm:$0xff]
    %v5308 = vld [vmem:[#allocation8 + $0x1e8] sm:$0xff]
    %v5309 = vld [vmem:[#allocation8 + $0x1f0] sm:$0xff]
    %v5310 = vld [vmem:[#allocation8 + $0x1f8] sm:$0xff]
    %v5311 = vld [vmem:[#allocation8 + $0x200] sm:$0xff]
    %v5312 = vld [vmem:[#allocation8 + $0x208] sm:$0xff]
    %v5313 = vld [vmem:[#allocation8 + $0x210] sm:$0xff]
    %v5314 = vld [vmem:[#allocation8 + $0x218] sm:$0xff]
    %v5315 = vld [vmem:[#allocation8 + $0x220] sm:$0xff]
    %v5316 = vld [vmem:[#allocation8 + $0x228] sm:$0xff]
    %v5317 = vld [vmem:[#allocation8 + $0x230] sm:$0xff]
    %v5318 = vld [vmem:[#allocation8 + $0x238] sm:$0xff]
    %v5319 = vld [vmem:[#allocation8 + $0x240] sm:$0xff]
    %v5320 = vld [vmem:[#allocation8 + $0x248] sm:$0xff]
    %v5321 = vld [vmem:[#allocation8 + $0x250] sm:$0xff]
    %v5322 = vld [vmem:[#allocation8 + $0x258] sm:$0xff]
    %v5323 = vld [vmem:[#allocation8 + $0x260] sm:$0xff]
    %v5324 = vld [vmem:[#allocation8 + $0x268] sm:$0xff]
    %v5325 = vld [vmem:[#allocation8 + $0x270] sm:$0xff]
    %v5326 = vld [vmem:[#allocation8 + $0x278] sm:$0xff]
    %v5327 = vld [vmem:[#allocation8 + $0x280] sm:$0xff]
    %v5328 = vld [vmem:[#allocation8 + $0x288] sm:$0xff]
    %v5329 = vld [vmem:[#allocation8 + $0x290] sm:$0xff]
    %v5330 = vld [vmem:[#allocation8 + $0x298] sm:$0xff]
    %v5331 = vld [vmem:[#allocation8 + $0x2a0] sm:$0xff]
    %v5332 = vld [vmem:[#allocation8 + $0x2a8] sm:$0xff]
    %v5333 = vld [vmem:[#allocation8 + $0x2b0] sm:$0xff]
    %v5334 = vld [vmem:[#allocation8 + $0x2b8] sm:$0xff]
    %v5335 = vld [vmem:[#allocation8 + $0x2c0] sm:$0xff]
    %v5336 = vld [vmem:[#allocation8 + $0x2c8] sm:$0xff]
    %v5337 = vld [vmem:[#allocation8 + $0x2d0] sm:$0xff]
    %v5338 = vld [vmem:[#allocation8 + $0x2d8] sm:$0xff]
    %v5339 = vld [vmem:[#allocation8 + $0x2e0] sm:$0xff]
    %v5340 = vld [vmem:[#allocation8 + $0x2e8] sm:$0xff]
    %v5341 = vld [vmem:[#allocation8 + $0x2f0] sm:$0xff]
    %v5342 = vld [vmem:[#allocation8 + $0x2f8] sm:$0xff]
    %v5343 = vld [vmem:[#allocation8 + $0x300] sm:$0xff]
    %v5344 = vld [vmem:[#allocation8 + $0x308] sm:$0xff]
    %v5345 = vld [vmem:[#allocation8 + $0x310] sm:$0xff]
    %v5346 = vld [vmem:[#allocation8 + $0x318] sm:$0xff]
    %v5347 = vld [vmem:[#allocation8 + $0x320] sm:$0xff]
    %v5348 = vld [vmem:[#allocation8 + $0x328] sm:$0xff]
    %v5349 = vld [vmem:[#allocation8 + $0x330] sm:$0xff]
    %v5350 = vld [vmem:[#allocation8 + $0x338] sm:$0xff]
    %v5351 = vld [vmem:[#allocation8 + $0x340] sm:$0xff]
    %v5352 = vld [vmem:[#allocation8 + $0x348] sm:$0xff]
    %v5353 = vld [vmem:[#allocation8 + $0x350] sm:$0xff]
    %v5354 = vld [vmem:[#allocation8 + $0x358] sm:$0xff]
    %v5355 = vld [vmem:[#allocation8 + $0x360] sm:$0xff]
    %v5356 = vld [vmem:[#allocation8 + $0x368] sm:$0xff]
    %v5357 = vld [vmem:[#allocation8 + $0x370] sm:$0xff]
    %v5358 = vld [vmem:[#allocation8 + $0x378] sm:$0xff]
    %v5359 = vld [vmem:[#allocation8 + $0x380] sm:$0xff]
    %v5360 = vld [vmem:[#allocation8 + $0x388] sm:$0xff]
    %v5361 = vld [vmem:[#allocation8 + $0x390] sm:$0xff]
    %v5362 = vld [vmem:[#allocation8 + $0x398] sm:$0xff]
    %v5363 = vld [vmem:[#allocation8 + $0x3a0] sm:$0xff]
    %v5364 = vld [vmem:[#allocation8 + $0x3a8] sm:$0xff]
    %v5365 = vld [vmem:[#allocation8 + $0x3b0] sm:$0xff]
    %v5366 = vld [vmem:[#allocation8 + $0x3b8] sm:$0xff]
    %v5367 = vld [vmem:[#allocation8 + $0x3c0] sm:$0xff]
    %v5368 = vld [vmem:[#allocation8 + $0x3c8] sm:$0xff]
    %v5369 = vld [vmem:[#allocation8 + $0x3d0] sm:$0xff]
    %v5370 = vld [vmem:[#allocation8 + $0x3d8] sm:$0xff]
    %v5371 = vld [vmem:[#allocation8 + $0x3e0] sm:$0xff]
    %v5372 = vld [vmem:[#allocation8 + $0x3e8] sm:$0xff]
    %v5373 = vld [vmem:[#allocation8 + $0x3f0] sm:$0xff]
    %v5374 = vld [vmem:[#allocation8 + $0x3f8] sm:$0xff]
    %v5375 = vld [vmem:[#allocation8 + $0x400] sm:$0xff]
    %v5376 = vld [vmem:[#allocation8 + $0x408] sm:$0xff]
    %v5377 = vld [vmem:[#allocation8 + $0x410] sm:$0xff]
    %v5378 = vld [vmem:[#allocation8 + $0x418] sm:$0xff]
    %v5379 = vld [vmem:[#allocation8 + $0x420] sm:$0xff]
    %v5380 = vld [vmem:[#allocation8 + $0x428] sm:$0xff]
    %v5381 = vld [vmem:[#allocation8 + $0x430] sm:$0xff]
    %v5382 = vld [vmem:[#allocation8 + $0x438] sm:$0xff]
    %v5383 = vld [vmem:[#allocation8 + $0x440] sm:$0xff]
    %v5384 = vld [vmem:[#allocation8 + $0x448] sm:$0xff]
    %v5385 = vld [vmem:[#allocation8 + $0x450] sm:$0xff]
    %v5386 = vld [vmem:[#allocation8 + $0x458] sm:$0xff]
    %v5387 = vld [vmem:[#allocation8 + $0x460] sm:$0xff]
    %v5388 = vld [vmem:[#allocation8 + $0x468] sm:$0xff]
    %v5389 = vld [vmem:[#allocation8 + $0x470] sm:$0xff]
    %v5390 = vld [vmem:[#allocation8 + $0x478] sm:$0xff]
    %v5391 = vld [vmem:[#allocation8 + $0x480] sm:$0xff]
    %v5392 = vld [vmem:[#allocation8 + $0x488] sm:$0xff]
    %v5393 = vld [vmem:[#allocation8 + $0x490] sm:$0xff]
    %v5394 = vld [vmem:[#allocation8 + $0x498] sm:$0xff]
    %v5395 = vld [vmem:[#allocation8 + $0x4a0] sm:$0xff]
    %v5396 = vld [vmem:[#allocation8 + $0x4a8] sm:$0xff]
    %v5397 = vld [vmem:[#allocation8 + $0x4b0] sm:$0xff]
    %v5398 = vld [vmem:[#allocation8 + $0x4b8] sm:$0xff]
    %v5399 = vld [vmem:[#allocation8 + $0x4c0] sm:$0xff]
    %v5400 = vld [vmem:[#allocation8 + $0x4c8] sm:$0xff]
    %v5401 = vld [vmem:[#allocation8 + $0x4d0] sm:$0xff]
    %v5402 = vld [vmem:[#allocation8 + $0x4d8] sm:$0xff]
    %v5403 = vld [vmem:[#allocation8 + $0x4e0] sm:$0xff]
    %v5404 = vld [vmem:[#allocation8 + $0x4e8] sm:$0xff]
    %v5405 = vld [vmem:[#allocation8 + $0x4f0] sm:$0xff]
    %v5406 = vld [vmem:[#allocation8 + $0x4f8] sm:$0xff]
    %v5407 = vld [vmem:[#allocation8 + $0x500] sm:$0xff]
    %v5408 = vld [vmem:[#allocation8 + $0x508] sm:$0xff]
    %v5409 = vld [vmem:[#allocation8 + $0x510] sm:$0xff]
    %v5410 = vld [vmem:[#allocation8 + $0x518] sm:$0xff]
    %v5411 = vld [vmem:[#allocation8 + $0x520] sm:$0xff]
    %v5412 = vld [vmem:[#allocation8 + $0x528] sm:$0xff]
    %v5413 = vld [vmem:[#allocation8 + $0x530] sm:$0xff]
    %v5414 = vld [vmem:[#allocation8 + $0x538] sm:$0xff]
    %v5415 = vld [vmem:[#allocation8 + $0x540] sm:$0xff]
    %v5416 = vld [vmem:[#allocation8 + $0x548] sm:$0xff]
    %v5417 = vld [vmem:[#allocation8 + $0x550] sm:$0xff]
    %v5418 = vld [vmem:[#allocation8 + $0x558] sm:$0xff]
    %v5419 = vld [vmem:[#allocation8 + $0x560] sm:$0xff]
    %v5420 = vld [vmem:[#allocation8 + $0x568] sm:$0xff]
    %v5421 = vld [vmem:[#allocation8 + $0x570] sm:$0xff]
    %v5422 = vld [vmem:[#allocation8 + $0x578] sm:$0xff]
    %v5423 = vld [vmem:[#allocation8 + $0x580] sm:$0xff]
    %v5424 = vld [vmem:[#allocation8 + $0x588] sm:$0xff]
    %v5425 = vld [vmem:[#allocation8 + $0x590] sm:$0xff]
    %v5426 = vld [vmem:[#allocation8 + $0x598] sm:$0xff]
    %v5427 = vld [vmem:[#allocation8 + $0x5a0] sm:$0xff]
    %v5428 = vld [vmem:[#allocation8 + $0x5a8] sm:$0xff]
    %v5429 = vld [vmem:[#allocation8 + $0x5b0] sm:$0xff]
    %v5430 = vld [vmem:[#allocation8 + $0x5b8] sm:$0xff]
    %v5431 = vld [vmem:[#allocation8 + $0x5c0] sm:$0xff]
    %v5432 = vld [vmem:[#allocation8 + $0x5c8] sm:$0xff]
    %v5433 = vld [vmem:[#allocation8 + $0x5d0] sm:$0xff]
    %v5434 = vld [vmem:[#allocation8 + $0x5d8] sm:$0xff]
    %v5435 = vld [vmem:[#allocation8 + $0x5e0] sm:$0xff]
    %v5436 = vld [vmem:[#allocation8 + $0x5e8] sm:$0xff]
    %v5437 = vld [vmem:[#allocation8 + $0x5f0] sm:$0xff]
    %v5438 = vld [vmem:[#allocation8 + $0x5f8] sm:$0xff]
    %v5439 = vld [vmem:[#allocation8 + $0x600] sm:$0xff]
    %v5440 = vld [vmem:[#allocation8 + $0x608] sm:$0xff]
    %v5441 = vld [vmem:[#allocation8 + $0x610] sm:$0xff]
    %v5442 = vld [vmem:[#allocation8 + $0x618] sm:$0xff]
    %v5443 = vld [vmem:[#allocation8 + $0x620] sm:$0xff]
    %v5444 = vld [vmem:[#allocation8 + $0x628] sm:$0xff]
    %v5445 = vld [vmem:[#allocation8 + $0x630] sm:$0xff]
    %v5446 = vld [vmem:[#allocation8 + $0x638] sm:$0xff]
    %v5447 = vld [vmem:[#allocation8 + $0x640] sm:$0xff]
    %v5448 = vld [vmem:[#allocation8 + $0x648] sm:$0xff]
    %v5449 = vld [vmem:[#allocation8 + $0x650] sm:$0xff]
    %v5450 = vld [vmem:[#allocation8 + $0x658] sm:$0xff]
    %v5451 = vld [vmem:[#allocation8 + $0x660] sm:$0xff]
    %v5452 = vld [vmem:[#allocation8 + $0x668] sm:$0xff]
    %v5453 = vld [vmem:[#allocation8 + $0x670] sm:$0xff]
    %v5454 = vld [vmem:[#allocation8 + $0x678] sm:$0xff]
    %v5455 = vld [vmem:[#allocation8 + $0x680] sm:$0xff]
    %v5456 = vld [vmem:[#allocation8 + $0x688] sm:$0xff]
    %v5457 = vld [vmem:[#allocation8 + $0x690] sm:$0xff]
    %v5458 = vld [vmem:[#allocation8 + $0x698] sm:$0xff]
    %v5459 = vld [vmem:[#allocation8 + $0x6a0] sm:$0xff]
    %v5460 = vld [vmem:[#allocation8 + $0x6a8] sm:$0xff]
    %v5461 = vld [vmem:[#allocation8 + $0x6b0] sm:$0xff]
    %v5462 = vld [vmem:[#allocation8 + $0x6b8] sm:$0xff]
    %v5463 = vld [vmem:[#allocation8 + $0x6c0] sm:$0xff]
    %v5464 = vld [vmem:[#allocation8 + $0x6c8] sm:$0xff]
    %v5465 = vld [vmem:[#allocation8 + $0x6d0] sm:$0xff]
    %v5466 = vld [vmem:[#allocation8 + $0x6d8] sm:$0xff]
    %v5467 = vld [vmem:[#allocation8 + $0x6e0] sm:$0xff]
    %v5468 = vld [vmem:[#allocation8 + $0x6e8] sm:$0xff]
    %v5469 = vld [vmem:[#allocation8 + $0x6f0] sm:$0xff]
    %v5470 = vld [vmem:[#allocation8 + $0x6f8] sm:$0xff]
    %v5471 = vld [vmem:[#allocation8 + $0x700] sm:$0xff]
    %v5472 = vld [vmem:[#allocation8 + $0x708] sm:$0xff]
    %v5473 = vld [vmem:[#allocation8 + $0x710] sm:$0xff]
    %v5474 = vld [vmem:[#allocation8 + $0x718] sm:$0xff]
    %v5475 = vld [vmem:[#allocation8 + $0x720] sm:$0xff]
    %v5476 = vld [vmem:[#allocation8 + $0x728] sm:$0xff]
    %v5477 = vld [vmem:[#allocation8 + $0x730] sm:$0xff]
    %v5478 = vld [vmem:[#allocation8 + $0x738] sm:$0xff]
    %v5479 = vld [vmem:[#allocation8 + $0x740] sm:$0xff]
    %v5480 = vld [vmem:[#allocation8 + $0x748] sm:$0xff]
    %v5481 = vld [vmem:[#allocation8 + $0x750] sm:$0xff]
    %v5482 = vld [vmem:[#allocation8 + $0x758] sm:$0xff]
    %v5483 = vld [vmem:[#allocation8 + $0x760] sm:$0xff]
    %v5484 = vld [vmem:[#allocation8 + $0x768] sm:$0xff]
    %v5485 = vld [vmem:[#allocation8 + $0x770] sm:$0xff]
    %v5486 = vld [vmem:[#allocation8 + $0x778] sm:$0xff]
    %v5487 = vld [vmem:[#allocation8 + $0x780] sm:$0xff]
    %v5488 = vld [vmem:[#allocation8 + $0x788] sm:$0xff]
    %v5489 = vld [vmem:[#allocation8 + $0x790] sm:$0xff]
    %v5490 = vld [vmem:[#allocation8 + $0x798] sm:$0xff]
    %v5491 = vld [vmem:[#allocation8 + $0x7a0] sm:$0xff]
    %v5492 = vld [vmem:[#allocation8 + $0x7a8] sm:$0xff]
    %v5493 = vld [vmem:[#allocation8 + $0x7b0] sm:$0xff]
    %v5494 = vld [vmem:[#allocation8 + $0x7b8] sm:$0xff]
    %v5495 = vld [vmem:[#allocation8 + $0x7c0] sm:$0xff]
    %v5496 = vld [vmem:[#allocation8 + $0x7c8] sm:$0xff]
    %v5497 = vld [vmem:[#allocation8 + $0x7d0] sm:$0xff]
    %v5498 = vld [vmem:[#allocation8 + $0x7d8] sm:$0xff]
    %v5499 = vld [vmem:[#allocation8 + $0x7e0] sm:$0xff]
    %v5500 = vld [vmem:[#allocation8 + $0x7e8] sm:$0xff]
    %v5501 = vld [vmem:[#allocation8 + $0x7f0] sm:$0xff]
    %v5502 = vld [vmem:[#allocation8 + $0x7f8] sm:$0xff]
    %v5503 = vld [vmem:[#allocation8 + $0x800] sm:$0xff]
    %v5504 = vld [vmem:[#allocation8 + $0x808] sm:$0xff]
    %v5505 = vld [vmem:[#allocation8 + $0x810] sm:$0xff]
    %v5506 = vld [vmem:[#allocation8 + $0x818] sm:$0xff]
    %v5507 = vld [vmem:[#allocation8 + $0x820] sm:$0xff]
    %v5508 = vld [vmem:[#allocation8 + $0x828] sm:$0xff]
    %v5509 = vld [vmem:[#allocation8 + $0x830] sm:$0xff]
    %v5510 = vld [vmem:[#allocation8 + $0x838] sm:$0xff]
    %v5511 = vld [vmem:[#allocation8 + $0x840] sm:$0xff]
    %v5512 = vld [vmem:[#allocation8 + $0x848] sm:$0xff]
    %v5513 = vld [vmem:[#allocation8 + $0x850] sm:$0xff]
    %v5514 = vld [vmem:[#allocation8 + $0x858] sm:$0xff]
    %v5515 = vld [vmem:[#allocation8 + $0x860] sm:$0xff]
    %v5516 = vld [vmem:[#allocation8 + $0x868] sm:$0xff]
    %v5517 = vld [vmem:[#allocation8 + $0x870] sm:$0xff]
    %v5518 = vld [vmem:[#allocation8 + $0x878] sm:$0xff]
    %v5519 = vld [vmem:[#allocation8 + $0x880] sm:$0xff]
    %v5520 = vld [vmem:[#allocation8 + $0x888] sm:$0xff]
    %v5521 = vld [vmem:[#allocation8 + $0x890] sm:$0xff]
    %v5522 = vld [vmem:[#allocation8 + $0x898] sm:$0xff]
    %v5523 = vld [vmem:[#allocation8 + $0x8a0] sm:$0xff]
    %v5524 = vld [vmem:[#allocation8 + $0x8a8] sm:$0xff]
    %v5525 = vld [vmem:[#allocation8 + $0x8b0] sm:$0xff]
    %v5526 = vld [vmem:[#allocation8 + $0x8b8] sm:$0xff]
    %v5527 = vld [vmem:[#allocation8 + $0x8c0] sm:$0xff]
    %v5528 = vld [vmem:[#allocation8 + $0x8c8] sm:$0xff]
    %v5529 = vld [vmem:[#allocation8 + $0x8d0] sm:$0xff]
    %v5530 = vld [vmem:[#allocation8 + $0x8d8] sm:$0xff]
    %v5531 = vld [vmem:[#allocation8 + $0x8e0] sm:$0xff]
    %v5532 = vld [vmem:[#allocation8 + $0x8e8] sm:$0xff]
    %v5533 = vld [vmem:[#allocation8 + $0x8f0] sm:$0xff]
    %v5534 = vld [vmem:[#allocation8 + $0x8f8] sm:$0xff]
    %v5535 = vld [vmem:[#allocation8 + $0x900] sm:$0xff]
    %v5536 = vld [vmem:[#allocation8 + $0x908] sm:$0xff]
    %v5537 = vld [vmem:[#allocation8 + $0x910] sm:$0xff]
    %v5538 = vld [vmem:[#allocation8 + $0x918] sm:$0xff]
    %v5539 = vld [vmem:[#allocation8 + $0x920] sm:$0xff]
    %v5540 = vld [vmem:[#allocation8 + $0x928] sm:$0xff]
    %v5541 = vld [vmem:[#allocation8 + $0x930] sm:$0xff]
    %v5542 = vld [vmem:[#allocation8 + $0x938] sm:$0xff]
    %v5543 = vld [vmem:[#allocation8 + $0x940] sm:$0xff]
    %v5544 = vld [vmem:[#allocation8 + $0x948] sm:$0xff]
    %v5545 = vld [vmem:[#allocation8 + $0x950] sm:$0xff]
    %v5546 = vld [vmem:[#allocation8 + $0x958] sm:$0xff]
    %v5547 = vld [vmem:[#allocation8 + $0x960] sm:$0xff]
    %v5548 = vld [vmem:[#allocation8 + $0x968] sm:$0xff]
    %v5549 = vld [vmem:[#allocation8 + $0x970] sm:$0xff]
    %v5550 = vld [vmem:[#allocation8 + $0x978] sm:$0xff]
    %v5551 = vld [vmem:[#allocation8 + $0x980] sm:$0xff]
    %v5552 = vld [vmem:[#allocation8 + $0x988] sm:$0xff]
    %v5553 = vld [vmem:[#allocation8 + $0x990] sm:$0xff]
    %v5554 = vld [vmem:[#allocation8 + $0x998] sm:$0xff]
    %v5555 = vld [vmem:[#allocation8 + $0x9a0] sm:$0xff]
    %v5556 = vld [vmem:[#allocation8 + $0x9a8] sm:$0xff]
    %v5557 = vld [vmem:[#allocation8 + $0x9b0] sm:$0xff]
    %v5558 = vld [vmem:[#allocation8 + $0x9b8] sm:$0xff]
    %v5559 = vld [vmem:[#allocation8 + $0x9c0] sm:$0xff]
    %v5560 = vld [vmem:[#allocation8 + $0x9c8] sm:$0xff]
    %v5561 = vld [vmem:[#allocation8 + $0x9d0] sm:$0xff]
    %v5562 = vld [vmem:[#allocation8 + $0x9d8] sm:$0xff]
    %v5563 = vld [vmem:[#allocation8 + $0x9e0] sm:$0xff]
    %v5564 = vld [vmem:[#allocation8 + $0x9e8] sm:$0xff]
    %v5565 = vld [vmem:[#allocation8 + $0x9f0] sm:$0xff]
    %v5566 = vld [vmem:[#allocation8 + $0x9f8] sm:$0xff]
    %v5567 = vld [vmem:[#allocation8 + $0xa00] sm:$0xff]
    %v5568 = vld [vmem:[#allocation8 + $0xa08] sm:$0xff]
    %v5569 = vld [vmem:[#allocation8 + $0xa10] sm:$0xff]
    %v5570 = vld [vmem:[#allocation8 + $0xa18] sm:$0xff]
    %v5571 = vld [vmem:[#allocation8 + $0xa20] sm:$0xff]
    %v5572 = vld [vmem:[#allocation8 + $0xa28] sm:$0xff]
    %v5573 = vld [vmem:[#allocation8 + $0xa30] sm:$0xff]
    %v5574 = vld [vmem:[#allocation8 + $0xa38] sm:$0xff]
    %v5575 = vld [vmem:[#allocation8 + $0xa40] sm:$0xff]
    %v5576 = vld [vmem:[#allocation8 + $0xa48] sm:$0xff]
    %v5577 = vld [vmem:[#allocation8 + $0xa50] sm:$0xff]
    %v5578 = vld [vmem:[#allocation8 + $0xa58] sm:$0xff]
    %v5579 = vld [vmem:[#allocation8 + $0xa60] sm:$0xff]
    %v5580 = vld [vmem:[#allocation8 + $0xa68] sm:$0xff]
    %v5581 = vld [vmem:[#allocation8 + $0xa70] sm:$0xff]
    %v5582 = vld [vmem:[#allocation8 + $0xa78] sm:$0xff]
    %v5583 = vld [vmem:[#allocation8 + $0xa80] sm:$0xff]
    %v5584 = vld [vmem:[#allocation8 + $0xa88] sm:$0xff]
    %v5585 = vld [vmem:[#allocation8 + $0xa90] sm:$0xff]
    %v5586 = vld [vmem:[#allocation8 + $0xa98] sm:$0xff]
    %v5587 = vld [vmem:[#allocation8 + $0xaa0] sm:$0xff]
    %v5588 = vld [vmem:[#allocation8 + $0xaa8] sm:$0xff]
    %v5589 = vld [vmem:[#allocation8 + $0xab0] sm:$0xff]
    %v5590 = vld [vmem:[#allocation8 + $0xab8] sm:$0xff]
    %v5591 = vld [vmem:[#allocation8 + $0xac0] sm:$0xff]
    %v5592 = vld [vmem:[#allocation8 + $0xac8] sm:$0xff]
    %v5593 = vld [vmem:[#allocation8 + $0xad0] sm:$0xff]
    %v5594 = vld [vmem:[#allocation8 + $0xad8] sm:$0xff]
    %v5595 = vld [vmem:[#allocation8 + $0xae0] sm:$0xff]
    %v5596 = vld [vmem:[#allocation8 + $0xae8] sm:$0xff]
    %v5597 = vld [vmem:[#allocation8 + $0xaf0] sm:$0xff]
    %v5598 = vld [vmem:[#allocation8 + $0xaf8] sm:$0xff]
    %v5599 = vld [vmem:[#allocation8 + $0xb00] sm:$0xff]
    %v5600 = vld [vmem:[#allocation8 + $0xb08] sm:$0xff]
    %v5601 = vld [vmem:[#allocation8 + $0xb10] sm:$0xff]
    %v5602 = vld [vmem:[#allocation8 + $0xb18] sm:$0xff]
    %v5603 = vld [vmem:[#allocation8 + $0xb20] sm:$0xff]
    %v5604 = vld [vmem:[#allocation8 + $0xb28] sm:$0xff]
    %v5605 = vld [vmem:[#allocation8 + $0xb30] sm:$0xff]
    %v5606 = vld [vmem:[#allocation8 + $0xb38] sm:$0xff]
    %v5607 = vld [vmem:[#allocation8 + $0xb40] sm:$0xff]
    %v5608 = vld [vmem:[#allocation8 + $0xb48] sm:$0xff]
    %v5609 = vld [vmem:[#allocation8 + $0xb50] sm:$0xff]
    %v5610 = vld [vmem:[#allocation8 + $0xb58] sm:$0xff]
    %v5611 = vld [vmem:[#allocation8 + $0xb60] sm:$0xff]
    %v5612 = vld [vmem:[#allocation8 + $0xb68] sm:$0xff]
    %v5613 = vld [vmem:[#allocation8 + $0xb70] sm:$0xff]
    %v5614 = vld [vmem:[#allocation8 + $0xb78] sm:$0xff]
    %v5615 = vld [vmem:[#allocation8 + $0xb80] sm:$0xff]
    %v5616 = vld [vmem:[#allocation8 + $0xb88] sm:$0xff]
    %v5617 = vld [vmem:[#allocation8 + $0xb90] sm:$0xff]
    %v5618 = vld [vmem:[#allocation8 + $0xb98] sm:$0xff]
    %v5619 = vld [vmem:[#allocation8 + $0xba0] sm:$0xff]
    %v5620 = vld [vmem:[#allocation8 + $0xba8] sm:$0xff]
    %v5621 = vld [vmem:[#allocation8 + $0xbb0] sm:$0xff]
    %v5622 = vld [vmem:[#allocation8 + $0xbb8] sm:$0xff]
    %v5623 = vld [vmem:[#allocation8 + $0xbc0] sm:$0xff]
    %v5624 = vld [vmem:[#allocation8 + $0xbc8] sm:$0xff]
    %v5625 = vld [vmem:[#allocation8 + $0xbd0] sm:$0xff]
    %v5626 = vld [vmem:[#allocation8 + $0xbd8] sm:$0xff]
    %v5627 = vld [vmem:[#allocation8 + $0xbe0] sm:$0xff]
    %v5628 = vld [vmem:[#allocation8 + $0xbe8] sm:$0xff]
    %v5629 = vld [vmem:[#allocation8 + $0xbf0] sm:$0xff]
    %v5630 = vld [vmem:[#allocation8 + $0xbf8] sm:$0xff]
    %v5631 = vld [vmem:[#allocation8 + $0xc00] sm:$0xff]
    %v5632 = vld [vmem:[#allocation8 + $0xc08] sm:$0xff]
    %v5633 = vld [vmem:[#allocation8 + $0xc10] sm:$0xff]
    %v5634 = vld [vmem:[#allocation8 + $0xc18] sm:$0xff]
    %v5635 = vld [vmem:[#allocation8 + $0xc20] sm:$0xff]
    %v5636 = vld [vmem:[#allocation8 + $0xc28] sm:$0xff]
    %v5637 = vld [vmem:[#allocation8 + $0xc30] sm:$0xff]
    %v5638 = vld [vmem:[#allocation8 + $0xc38] sm:$0xff]
    %v5639 = vld [vmem:[#allocation8 + $0xc40] sm:$0xff]
    %v5640 = vld [vmem:[#allocation8 + $0xc48] sm:$0xff]
    %v5641 = vld [vmem:[#allocation8 + $0xc50] sm:$0xff]
    %v5642 = vld [vmem:[#allocation8 + $0xc58] sm:$0xff]
    %v5643 = vld [vmem:[#allocation8 + $0xc60] sm:$0xff]
    %v5644 = vld [vmem:[#allocation8 + $0xc68] sm:$0xff]
    %v5645 = vld [vmem:[#allocation8 + $0xc70] sm:$0xff]
    %v5646 = vld [vmem:[#allocation8 + $0xc78] sm:$0xff]
    %v5647 = vld [vmem:[#allocation8 + $0xc80] sm:$0xff]
    %v5648 = vld [vmem:[#allocation8 + $0xc88] sm:$0xff]
    %v5649 = vld [vmem:[#allocation8 + $0xc90] sm:$0xff]
    %v5650 = vld [vmem:[#allocation8 + $0xc98] sm:$0xff]
    %v5651 = vld [vmem:[#allocation8 + $0xca0] sm:$0xff]
    %v5652 = vld [vmem:[#allocation8 + $0xca8] sm:$0xff]
    %v5653 = vld [vmem:[#allocation8 + $0xcb0] sm:$0xff]
    %v5654 = vld [vmem:[#allocation8 + $0xcb8] sm:$0xff]
    %v5655 = vld [vmem:[#allocation8 + $0xcc0] sm:$0xff]
    %v5656 = vld [vmem:[#allocation8 + $0xcc8] sm:$0xff]
    %v5657 = vld [vmem:[#allocation8 + $0xcd0] sm:$0xff]
    %v5658 = vld [vmem:[#allocation8 + $0xcd8] sm:$0xff]
    %v5659 = vld [vmem:[#allocation8 + $0xce0] sm:$0xff]
    %v5660 = vld [vmem:[#allocation8 + $0xce8] sm:$0xff]
    %v5661 = vld [vmem:[#allocation8 + $0xcf0] sm:$0xff]
    %v5662 = vld [vmem:[#allocation8 + $0xcf8] sm:$0xff]
    %v5663 = vld [vmem:[#allocation8 + $0xd00] sm:$0xff]
    %v5664 = vld [vmem:[#allocation8 + $0xd08] sm:$0xff]
    %v5665 = vld [vmem:[#allocation8 + $0xd10] sm:$0xff]
    %v5666 = vld [vmem:[#allocation8 + $0xd18] sm:$0xff]
    %v5667 = vld [vmem:[#allocation8 + $0xd20] sm:$0xff]
    %v5668 = vld [vmem:[#allocation8 + $0xd28] sm:$0xff]
    %v5669 = vld [vmem:[#allocation8 + $0xd30] sm:$0xff]
    %v5670 = vld [vmem:[#allocation8 + $0xd38] sm:$0xff]
    %v5671 = vld [vmem:[#allocation8 + $0xd40] sm:$0xff]
    %v5672 = vld [vmem:[#allocation8 + $0xd48] sm:$0xff]
    %v5673 = vld [vmem:[#allocation8 + $0xd50] sm:$0xff]
    %v5674 = vld [vmem:[#allocation8 + $0xd58] sm:$0xff]
    %v5675 = vld [vmem:[#allocation8 + $0xd60] sm:$0xff]
    %v5676 = vld [vmem:[#allocation8 + $0xd68] sm:$0xff]
    %v5677 = vld [vmem:[#allocation8 + $0xd70] sm:$0xff]
    %v5678 = vld [vmem:[#allocation8 + $0xd78] sm:$0xff]
    %v5679 = vld [vmem:[#allocation8 + $0xd80] sm:$0xff]
    %v5680 = vld [vmem:[#allocation8 + $0xd88] sm:$0xff]
    %v5681 = vld [vmem:[#allocation8 + $0xd90] sm:$0xff]
    %v5682 = vld [vmem:[#allocation8 + $0xd98] sm:$0xff]
    %v5683 = vld [vmem:[#allocation8 + $0xda0] sm:$0xff]
    %v5684 = vld [vmem:[#allocation8 + $0xda8] sm:$0xff]
    %v5685 = vld [vmem:[#allocation8 + $0xdb0] sm:$0xff]
    %v5686 = vld [vmem:[#allocation8 + $0xdb8] sm:$0xff]
    %v5687 = vld [vmem:[#allocation8 + $0xdc0] sm:$0xff]
    %v5688 = vld [vmem:[#allocation8 + $0xdc8] sm:$0xff]
    %v5689 = vld [vmem:[#allocation8 + $0xdd0] sm:$0xff]
    %v5690 = vld [vmem:[#allocation8 + $0xdd8] sm:$0xff]
    %v5691 = vld [vmem:[#allocation8 + $0xde0] sm:$0xff]
    %v5692 = vld [vmem:[#allocation8 + $0xde8] sm:$0xff]
    %v5693 = vld [vmem:[#allocation8 + $0xdf0] sm:$0xff]
    %v5694 = vld [vmem:[#allocation8 + $0xdf8] sm:$0xff]
    %v5695 = vld [vmem:[#allocation8 + $0xe00] sm:$0xff]
    %v5696 = vld [vmem:[#allocation8 + $0xe08] sm:$0xff]
    %v5697 = vld [vmem:[#allocation8 + $0xe10] sm:$0xff]
    %v5698 = vld [vmem:[#allocation8 + $0xe18] sm:$0xff]
    %v5699 = vld [vmem:[#allocation8 + $0xe20] sm:$0xff]
    %v5700 = vld [vmem:[#allocation8 + $0xe28] sm:$0xff]
    %v5701 = vld [vmem:[#allocation8 + $0xe30] sm:$0xff]
    %v5702 = vld [vmem:[#allocation8 + $0xe38] sm:$0xff]
    %v5703 = vld [vmem:[#allocation8 + $0xe40] sm:$0xff]
    %v5704 = vld [vmem:[#allocation8 + $0xe48] sm:$0xff]
    %v5705 = vld [vmem:[#allocation8 + $0xe50] sm:$0xff]
    %v5706 = vld [vmem:[#allocation8 + $0xe58] sm:$0xff]
    %v5707 = vld [vmem:[#allocation8 + $0xe60] sm:$0xff]
    %v5708 = vld [vmem:[#allocation8 + $0xe68] sm:$0xff]
    %v5709 = vld [vmem:[#allocation8 + $0xe70] sm:$0xff]
    %v5710 = vld [vmem:[#allocation8 + $0xe78] sm:$0xff]
    %v5711 = vld [vmem:[#allocation8 + $0xe80] sm:$0xff]
    %v5712 = vld [vmem:[#allocation8 + $0xe88] sm:$0xff]
    %v5713 = vld [vmem:[#allocation8 + $0xe90] sm:$0xff]
    %v5714 = vld [vmem:[#allocation8 + $0xe98] sm:$0xff]
    %v5715 = vld [vmem:[#allocation8 + $0xea0] sm:$0xff]
    %v5716 = vld [vmem:[#allocation8 + $0xea8] sm:$0xff]
    %v5717 = vld [vmem:[#allocation8 + $0xeb0] sm:$0xff]
    %v5718 = vld [vmem:[#allocation8 + $0xeb8] sm:$0xff]
    %v5719 = vld [vmem:[#allocation8 + $0xec0] sm:$0xff]
    %v5720 = vld [vmem:[#allocation8 + $0xec8] sm:$0xff]
    %v5721 = vld [vmem:[#allocation8 + $0xed0] sm:$0xff]
    %v5722 = vld [vmem:[#allocation8 + $0xed8] sm:$0xff]
    %v5723 = vld [vmem:[#allocation8 + $0xee0] sm:$0xff]
    %v5724 = vld [vmem:[#allocation8 + $0xee8] sm:$0xff]
    %v5725 = vld [vmem:[#allocation8 + $0xef0] sm:$0xff]
    %v5726 = vld [vmem:[#allocation8 + $0xef8] sm:$0xff]
    %v5727 = vld [vmem:[#allocation8 + $0xf00] sm:$0xff]
    %v5728 = vld [vmem:[#allocation8 + $0xf08] sm:$0xff]
    %v5729 = vld [vmem:[#allocation8 + $0xf10] sm:$0xff]
    %v5730 = vld [vmem:[#allocation8 + $0xf18] sm:$0xff]
    %v5731 = vld [vmem:[#allocation8 + $0xf20] sm:$0xff]
    %v5732 = vld [vmem:[#allocation8 + $0xf28] sm:$0xff]
    %v5733 = vld [vmem:[#allocation8 + $0xf30] sm:$0xff]
    %v5734 = vld [vmem:[#allocation8 + $0xf38] sm:$0xff]
    %v5735 = vld [vmem:[#allocation8 + $0xf40] sm:$0xff]
    %v5736 = vld [vmem:[#allocation8 + $0xf48] sm:$0xff]
    %v5737 = vld [vmem:[#allocation8 + $0xf50] sm:$0xff]
    %v5738 = vld [vmem:[#allocation8 + $0xf58] sm:$0xff]
    %v5739 = vld [vmem:[#allocation8 + $0xf60] sm:$0xff]
    %v5740 = vld [vmem:[#allocation8 + $0xf68] sm:$0xff]
    %v5741 = vld [vmem:[#allocation8 + $0xf70] sm:$0xff]
    %v5742 = vld [vmem:[#allocation8 + $0xf78] sm:$0xff]
    %v5743 = vld [vmem:[#allocation8 + $0xf80] sm:$0xff]
    %v5744 = vld [vmem:[#allocation8 + $0xf88] sm:$0xff]
    %v5745 = vld [vmem:[#allocation8 + $0xf90] sm:$0xff]
    %v5746 = vld [vmem:[#allocation8 + $0xf98] sm:$0xff]
    %v5747 = vld [vmem:[#allocation8 + $0xfa0] sm:$0xff]
    %v5748 = vld [vmem:[#allocation8 + $0xfa8] sm:$0xff]
    %v5749 = vld [vmem:[#allocation8 + $0xfb0] sm:$0xff]
    %v5750 = vld [vmem:[#allocation8 + $0xfb8] sm:$0xff]
    %v5751 = vld [vmem:[#allocation8 + $0xfc0] sm:$0xff]
    %v5752 = vld [vmem:[#allocation8 + $0xfc8] sm:$0xff]
    %v5753 = vld [vmem:[#allocation8 + $0xfd0] sm:$0xff]
    %v5754 = vld [vmem:[#allocation8 + $0xfd8] sm:$0xff]
    %v5755 = vld [vmem:[#allocation8 + $0xfe0] sm:$0xff]
    %v5756 = vld [vmem:[#allocation8 + $0xfe8] sm:$0xff]
    %v5757 = vld [vmem:[#allocation8 + $0xff0] sm:$0xff]
    %v5758 = vld [vmem:[#allocation8 + $0xff8] sm:$0xff]
    %v5759 = vld [vmem:[#allocation8 + $0x1000] sm:$0xff]
    %v5760 = vld [vmem:[#allocation8 + $0x1008] sm:$0xff]
    %v5761 = vld [vmem:[#allocation8 + $0x1010] sm:$0xff]
    %v5762 = vld [vmem:[#allocation8 + $0x1018] sm:$0xff]
    %v5763 = vld [vmem:[#allocation8 + $0x1020] sm:$0xff]
    %v5764 = vld [vmem:[#allocation8 + $0x1028] sm:$0xff]
    %v5765 = vld [vmem:[#allocation8 + $0x1030] sm:$0xff]
    %v5766 = vld [vmem:[#allocation8 + $0x1038] sm:$0xff]
    %v5767 = vld [vmem:[#allocation8 + $0x1040] sm:$0xff]
    %v5768 = vld [vmem:[#allocation8 + $0x1048] sm:$0xff]
    %v5769 = vld [vmem:[#allocation8 + $0x1050] sm:$0xff]
    %v5770 = vld [vmem:[#allocation8 + $0x1058] sm:$0xff]
    %v5771 = vld [vmem:[#allocation8 + $0x1060] sm:$0xff]
    %v5772 = vld [vmem:[#allocation8 + $0x1068] sm:$0xff]
    %v5773 = vld [vmem:[#allocation8 + $0x1070] sm:$0xff]
    %v5774 = vld [vmem:[#allocation8 + $0x1078] sm:$0xff]
    %v5775 = vld [vmem:[#allocation8 + $0x1080] sm:$0xff]
    %v5776 = vld [vmem:[#allocation8 + $0x1088] sm:$0xff]
    %v5777 = vld [vmem:[#allocation8 + $0x1090] sm:$0xff]
    %v5778 = vld [vmem:[#allocation8 + $0x1098] sm:$0xff]
    %v5779 = vld [vmem:[#allocation8 + $0x10a0] sm:$0xff]
    %v5780 = vld [vmem:[#allocation8 + $0x10a8] sm:$0xff]
    %v5781 = vld [vmem:[#allocation8 + $0x10b0] sm:$0xff]
    %v5782 = vld [vmem:[#allocation8 + $0x10b8] sm:$0xff]
    %v5783 = vld [vmem:[#allocation8 + $0x10c0] sm:$0xff]
    %v5784 = vld [vmem:[#allocation8 + $0x10c8] sm:$0xff]
    %v5785 = vld [vmem:[#allocation8 + $0x10d0] sm:$0xff]
    %v5786 = vld [vmem:[#allocation8 + $0x10d8] sm:$0xff]
    %v5787 = vld [vmem:[#allocation8 + $0x10e0] sm:$0xff]
    %v5788 = vld [vmem:[#allocation8 + $0x10e8] sm:$0xff]
    %v5789 = vld [vmem:[#allocation8 + $0x10f0] sm:$0xff]
    %v5790 = vld [vmem:[#allocation8 + $0x10f8] sm:$0xff]
    %v5791 = vld [vmem:[#allocation8 + $0x1100] sm:$0xff]
    %v5792 = vld [vmem:[#allocation8 + $0x1108] sm:$0xff]
    %v5793 = vld [vmem:[#allocation8 + $0x1110] sm:$0xff]
    %v5794 = vld [vmem:[#allocation8 + $0x1118] sm:$0xff]
    %v5795 = vld [vmem:[#allocation8 + $0x1120] sm:$0xff]
    %v5796 = vld [vmem:[#allocation8 + $0x1128] sm:$0xff]
    %v5797 = vld [vmem:[#allocation8 + $0x1130] sm:$0xff]
    %v5798 = vld [vmem:[#allocation8 + $0x1138] sm:$0xff]
    %v5799 = vld [vmem:[#allocation8 + $0x1140] sm:$0xff]
    %v5800 = vld [vmem:[#allocation8 + $0x1148] sm:$0xff]
    %v5801 = vld [vmem:[#allocation8 + $0x1150] sm:$0xff]
    %v5802 = vld [vmem:[#allocation8 + $0x1158] sm:$0xff]
    %v5803 = vld [vmem:[#allocation8 + $0x1160] sm:$0xff]
    %v5804 = vld [vmem:[#allocation8 + $0x1168] sm:$0xff]
    %v5805 = vld [vmem:[#allocation8 + $0x1170] sm:$0xff]
    %v5806 = vld [vmem:[#allocation8 + $0x1178] sm:$0xff]
    %v5807 = vld [vmem:[#allocation8 + $0x1180] sm:$0xff]
    %v5808 = vld [vmem:[#allocation8 + $0x1188] sm:$0xff]
    %v5809 = vld [vmem:[#allocation8 + $0x1190] sm:$0xff]
    %v5810 = vld [vmem:[#allocation8 + $0x1198] sm:$0xff]
    %v5811 = vld [vmem:[#allocation8 + $0x11a0] sm:$0xff]
    %v5812 = vld [vmem:[#allocation8 + $0x11a8] sm:$0xff]
    %v5813 = vld [vmem:[#allocation8 + $0x11b0] sm:$0xff]
    %v5814 = vld [vmem:[#allocation8 + $0x11b8] sm:$0xff]
    %v5815 = vld [vmem:[#allocation8 + $0x11c0] sm:$0xff]
    %v5816 = vld [vmem:[#allocation8 + $0x11c8] sm:$0xff]
    %v5817 = vld [vmem:[#allocation8 + $0x11d0] sm:$0xff]
    %v5818 = vld [vmem:[#allocation8 + $0x11d8] sm:$0xff]
    %v5819 = vld [vmem:[#allocation8 + $0x11e0] sm:$0xff]
    %v5820 = vld [vmem:[#allocation8 + $0x11e8] sm:$0xff]
    %v5821 = vld [vmem:[#allocation8 + $0x11f0] sm:$0xff]
    %v5822 = vld [vmem:[#allocation8 + $0x11f8] sm:$0xff]
    %v5823 = vld [vmem:[#allocation10] sm:$0x7]
    %v5825 = vperm.slane %v5823, 0
    %v5826 = vperm.slane %v5823, 1
    %v5827 = vperm.slane %v5823, 2
    %5831 = vmatpush.msra.mxu0 %v5292
    %5832 = vmatpush.msra.mxu0 %v5289
    %5833 = vmatpush.msra.mxu0 %v5286
    %5834 = vmatpush.msra.mxu0 %v5283
    %5835 = vmatpush.msra.mxu0 %v5280
    %5836 = vmatpush.msra.mxu0 %v5277
    %5837 = vmatpush.msra.mxu0 %v5274
    %5838 = vmatpush.msra.mxu0 %v5271
    %5839 = vmatpush.msra.mxu0 %v5268
    %5840 = vmatpush.msra.mxu0 %v5265
    %5841 = vmatpush.msra.mxu0 %v5262
    %5842 = vmatpush.msra.mxu0 %v5259
    %5843 = vmatpush.msra.mxu0 %v5256
    %5844 = vmatpush.msra.mxu0 %v5253
    %5845 = vmatpush.msra.mxu0 %v5250
    %5846 = vmatpush.msra.mxu0 %v5247
    %5847 = vmatmul.f32.gmra.mxu0 %v4863
    %v5848 = vpop.f32.mrf.mxu0
    %v5849 = vadd.f32 %v5825, %v5848
    %5850 = vmatmul.f32.gmra.mxu0 %v4875
    %v5851 = vpop.f32.mrf.mxu0
    %v5852 = vadd.f32 %v5825, %v5851
    %5853 = vmatmul.f32.gmra.mxu0 %v4887
    %v5854 = vpop.f32.mrf.mxu0
    %v5855 = vadd.f32 %v5825, %v5854
    %5856 = vmatmul.f32.gmra.mxu0 %v4899
    %v5857 = vpop.f32.mrf.mxu0
    %v5858 = vadd.f32 %v5825, %v5857
    %5859 = vmatmul.f32.gmra.mxu0 %v4911
    %v5860 = vpop.f32.mrf.mxu0
    %v5861 = vadd.f32 %v5825, %v5860
    %5862 = vmatmul.f32.gmra.mxu0 %v4923
    %v5863 = vpop.f32.mrf.mxu0
    %v5864 = vadd.f32 %v5825, %v5863
    %5865 = vmatmul.f32.gmra.mxu0 %v4935
    %v5866 = vpop.f32.mrf.mxu0
    %v5867 = vadd.f32 %v5825, %v5866
    %5868 = vmatmul.f32.gmra.mxu0 %v4947
    %v5869 = vpop.f32.mrf.mxu0
    %v5870 = vadd.f32 %v5825, %v5869
    %5871 = vmatmul.f32.gmra.mxu0 %v4959
    %v5872 = vpop.f32.mrf.mxu0
    %v5873 = vadd.f32 %v5825, %v5872
    %5874 = vmatmul.f32.gmra.mxu0 %v4971
    %v5875 = vpop.f32.mrf.mxu0
    %v5876 = vadd.f32 %v5825, %v5875
    %5877 = vmatmul.f32.gmra.mxu0 %v4983
    %v5878 = vpop.f32.mrf.mxu0
    %v5879 = vadd.f32 %v5825, %v5878
    %5880 = vmatmul.f32.gmra.mxu0 %v4995
    %v5881 = vpop.f32.mrf.mxu0
    %v5882 = vadd.f32 %v5825, %v5881
    %5883 = vmatmul.f32.gmra.mxu0 %v5007
    %v5884 = vpop.f32.mrf.mxu0
    %v5885 = vadd.f32 %v5825, %v5884
    %5886 = vmatmul.f32.gmra.mxu0 %v5019
    %v5887 = vpop.f32.mrf.mxu0
    %v5888 = vadd.f32 %v5825, %v5887
    %5889 = vmatmul.f32.gmra.mxu0 %v5031
    %v5890 = vpop.f32.mrf.mxu0
    %v5891 = vadd.f32 %v5825, %v5890
    %5892 = vmatmul.f32.gmra.mxu0 %v5043
    %v5893 = vpop.f32.mrf.mxu0
    %v5894 = vadd.f32 %v5825, %v5893
    %5895 = vmatmul.f32.gmra.mxu0 %v5055
    %v5896 = vpop.f32.mrf.mxu0
    %v5897 = vadd.f32 %v5825, %v5896
    %5898 = vmatmul.f32.gmra.mxu0 %v5067
    %v5899 = vpop.f32.mrf.mxu0
    %v5900 = vadd.f32 %v5825, %v5899
    %5901 = vmatmul.f32.gmra.mxu0 %v5079
    %v5902 = vpop.f32.mrf.mxu0
    %v5903 = vadd.f32 %v5825, %v5902
    %5904 = vmatmul.f32.gmra.mxu0 %v5091
    %v5905 = vpop.f32.mrf.mxu0
    %v5906 = vadd.f32 %v5825, %v5905
    %5907 = vmatmul.f32.gmra.mxu0 %v5103
    %v5908 = vpop.f32.mrf.mxu0
    %v5909 = vadd.f32 %v5825, %v5908
    %5910 = vmatmul.f32.gmra.mxu0 %v5115
    %v5911 = vpop.f32.mrf.mxu0
    %v5912 = vadd.f32 %v5825, %v5911
    %5913 = vmatmul.f32.gmra.mxu0 %v5127
    %v5914 = vpop.f32.mrf.mxu0
    %v5915 = vadd.f32 %v5825, %v5914
    %5916 = vmatmul.f32.gmra.mxu0 %v5139
    %v5917 = vpop.f32.mrf.mxu0
    %v5918 = vadd.f32 %v5825, %v5917
    %5919 = vmatmul.f32.gmra.mxu0 %v5151
    %v5920 = vpop.f32.mrf.mxu0
    %v5921 = vadd.f32 %v5825, %v5920
    %5922 = vmatmul.f32.gmra.mxu0 %v5163
    %v5923 = vpop.f32.mrf.mxu0
    %v5924 = vadd.f32 %v5825, %v5923
    %5925 = vmatmul.f32.gmra.mxu0 %v5175
    %v5926 = vpop.f32.mrf.mxu0
    %v5927 = vadd.f32 %v5825, %v5926
    %5928 = vmatmul.f32.gmra.mxu0 %v5187
    %v5929 = vpop.f32.mrf.mxu0
    %v5930 = vadd.f32 %v5825, %v5929
    %5931 = vmatmul.f32.gmra.mxu0 %v5199
    %v5932 = vpop.f32.mrf.mxu0
    %v5933 = vadd.f32 %v5825, %v5932
    %5934 = vmatmul.f32.gmra.mxu0 %v5211
    %v5935 = vpop.f32.mrf.mxu0
    %v5936 = vadd.f32 %v5825, %v5935
    %5937 = vmatmul.f32.gmra.mxu0 %v5223
    %v5938 = vpop.f32.mrf.mxu0
    %v5939 = vadd.f32 %v5825, %v5938
    %5940 = vmatmul.f32.gmra.mxu0 %v5235
    %v5941 = vpop.f32.mrf.mxu0
    %v5942 = vadd.f32 %v5825, %v5941
    %5943 = vdwg.mxu0
    %5944 = vmatpush.msra.mxu0 %v5340
    %5945 = vmatpush.msra.mxu0 %v5337
    %5946 = vmatpush.msra.mxu0 %v5334
    %5947 = vmatpush.msra.mxu0 %v5331
    %5948 = vmatpush.msra.mxu0 %v5328
    %5949 = vmatpush.msra.mxu0 %v5325
    %5950 = vmatpush.msra.mxu0 %v5322
    %5951 = vmatpush.msra.mxu0 %v5319
    %5952 = vmatpush.msra.mxu0 %v5316
    %5953 = vmatpush.msra.mxu0 %v5313
    %5954 = vmatpush.msra.mxu0 %v5310
    %5955 = vmatpush.msra.mxu0 %v5307
    %5956 = vmatpush.msra.mxu0 %v5304
    %5957 = vmatpush.msra.mxu0 %v5301
    %5958 = vmatpush.msra.mxu0 %v5298
    %5959 = vmatpush.msra.mxu0 %v5295
    %5960 = vmatmul.f32.gmra.mxu0 %v4864
    %v5961 = vpop.f32.mrf.mxu0
    %v5962 = vadd.f32 %v5849, %v5961
    %5963 = vmatmul.f32.gmra.mxu0 %v4876
    %v5964 = vpop.f32.mrf.mxu0
    %v5965 = vadd.f32 %v5852, %v5964
    %5966 = vmatmul.f32.gmra.mxu0 %v4888
    %v5967 = vpop.f32.mrf.mxu0
    %v5968 = vadd.f32 %v5855, %v5967
    %5969 = vmatmul.f32.gmra.mxu0 %v4900
    %v5970 = vpop.f32.mrf.mxu0
    %v5971 = vadd.f32 %v5858, %v5970
    %5972 = vmatmul.f32.gmra.mxu0 %v4912
    %v5973 = vpop.f32.mrf.mxu0
    %v5974 = vadd.f32 %v5861, %v5973
    %5975 = vmatmul.f32.gmra.mxu0 %v4924
    %v5976 = vpop.f32.mrf.mxu0
    %v5977 = vadd.f32 %v5864, %v5976
    %5978 = vmatmul.f32.gmra.mxu0 %v4936
    %v5979 = vpop.f32.mrf.mxu0
    %v5980 = vadd.f32 %v5867, %v5979
    %5981 = vmatmul.f32.gmra.mxu0 %v4948
    %v5982 = vpop.f32.mrf.mxu0
    %v5983 = vadd.f32 %v5870, %v5982
    %5984 = vmatmul.f32.gmra.mxu0 %v4960
    %v5985 = vpop.f32.mrf.mxu0
    %v5986 = vadd.f32 %v5873, %v5985
    %5987 = vmatmul.f32.gmra.mxu0 %v4972
    %v5988 = vpop.f32.mrf.mxu0
    %v5989 = vadd.f32 %v5876, %v5988
    %5990 = vmatmul.f32.gmra.mxu0 %v4984
    %v5991 = vpop.f32.mrf.mxu0
    %v5992 = vadd.f32 %v5879, %v5991
    %5993 = vmatmul.f32.gmra.mxu0 %v4996
    %v5994 = vpop.f32.mrf.mxu0
    %v5995 = vadd.f32 %v5882, %v5994
    %5996 = vmatmul.f32.gmra.mxu0 %v5008
    %v5997 = vpop.f32.mrf.mxu0
    %v5998 = vadd.f32 %v5885, %v5997
    %5999 = vmatmul.f32.gmra.mxu0 %v5020
    %v6000 = vpop.f32.mrf.mxu0
    %v6001 = vadd.f32 %v5888, %v6000
    %6002 = vmatmul.f32.gmra.mxu0 %v5032
    %v6003 = vpop.f32.mrf.mxu0
    %v6004 = vadd.f32 %v5891, %v6003
    %6005 = vmatmul.f32.gmra.mxu0 %v5044
    %v6006 = vpop.f32.mrf.mxu0
    %v6007 = vadd.f32 %v5894, %v6006
    %6008 = vmatmul.f32.gmra.mxu0 %v5056
    %v6009 = vpop.f32.mrf.mxu0
    %v6010 = vadd.f32 %v5897, %v6009
    %6011 = vmatmul.f32.gmra.mxu0 %v5068
    %v6012 = vpop.f32.mrf.mxu0
    %v6013 = vadd.f32 %v5900, %v6012
    %6014 = vmatmul.f32.gmra.mxu0 %v5080
    %v6015 = vpop.f32.mrf.mxu0
    %v6016 = vadd.f32 %v5903, %v6015
    %6017 = vmatmul.f32.gmra.mxu0 %v5092
    %v6018 = vpop.f32.mrf.mxu0
    %v6019 = vadd.f32 %v5906, %v6018
    %6020 = vmatmul.f32.gmra.mxu0 %v5104
    %v6021 = vpop.f32.mrf.mxu0
    %v6022 = vadd.f32 %v5909, %v6021
    %6023 = vmatmul.f32.gmra.mxu0 %v5116
    %v6024 = vpop.f32.mrf.mxu0
    %v6025 = vadd.f32 %v5912, %v6024
    %6026 = vmatmul.f32.gmra.mxu0 %v5128
    %v6027 = vpop.f32.mrf.mxu0
    %v6028 = vadd.f32 %v5915, %v6027
    %6029 = vmatmul.f32.gmra.mxu0 %v5140
    %v6030 = vpop.f32.mrf.mxu0
    %v6031 = vadd.f32 %v5918, %v6030
    %6032 = vmatmul.f32.gmra.mxu0 %v5152
    %v6033 = vpop.f32.mrf.mxu0
    %v6034 = vadd.f32 %v5921, %v6033
    %6035 = vmatmul.f32.gmra.mxu0 %v5164
    %v6036 = vpop.f32.mrf.mxu0
    %v6037 = vadd.f32 %v5924, %v6036
    %6038 = vmatmul.f32.gmra.mxu0 %v5176
    %v6039 = vpop.f32.mrf.mxu0
    %v6040 = vadd.f32 %v5927, %v6039
    %6041 = vmatmul.f32.gmra.mxu0 %v5188
    %v6042 = vpop.f32.mrf.mxu0
    %v6043 = vadd.f32 %v5930, %v6042
    %6044 = vmatmul.f32.gmra.mxu0 %v5200
    %v6045 = vpop.f32.mrf.mxu0
    %v6046 = vadd.f32 %v5933, %v6045
    %6047 = vmatmul.f32.gmra.mxu0 %v5212
    %v6048 = vpop.f32.mrf.mxu0
    %v6049 = vadd.f32 %v5936, %v6048
    %6050 = vmatmul.f32.gmra.mxu0 %v5224
    %v6051 = vpop.f32.mrf.mxu0
    %v6052 = vadd.f32 %v5939, %v6051
    %6053 = vmatmul.f32.gmra.mxu0 %v5236
    %v6054 = vpop.f32.mrf.mxu0
    %v6055 = vadd.f32 %v5942, %v6054
    %6056 = vdwg.mxu0
    %6057 = vmatpush.msra.mxu0 %v5388
    %6058 = vmatpush.msra.mxu0 %v5385
    %6059 = vmatpush.msra.mxu0 %v5382
    %6060 = vmatpush.msra.mxu0 %v5379
    %6061 = vmatpush.msra.mxu0 %v5376
    %6062 = vmatpush.msra.mxu0 %v5373
    %6063 = vmatpush.msra.mxu0 %v5370
    %6064 = vmatpush.msra.mxu0 %v5367
    %6065 = vmatpush.msra.mxu0 %v5364
    %6066 = vmatpush.msra.mxu0 %v5361
    %6067 = vmatpush.msra.mxu0 %v5358
    %6068 = vmatpush.msra.mxu0 %v5355
    %6069 = vmatpush.msra.mxu0 %v5352
    %6070 = vmatpush.msra.mxu0 %v5349
    %6071 = vmatpush.msra.mxu0 %v5346
    %6072 = vmatpush.msra.mxu0 %v5343
    %6073 = vmatmul.f32.gmra.mxu0 %v4865
    %v6074 = vpop.f32.mrf.mxu0
    %v6075 = vadd.f32 %v5962, %v6074
    %6076 = vmatmul.f32.gmra.mxu0 %v4877
    %v6077 = vpop.f32.mrf.mxu0
    %v6078 = vadd.f32 %v5965, %v6077
    %6079 = vmatmul.f32.gmra.mxu0 %v4889
    %v6080 = vpop.f32.mrf.mxu0
    %v6081 = vadd.f32 %v5968, %v6080
    %6082 = vmatmul.f32.gmra.mxu0 %v4901
    %v6083 = vpop.f32.mrf.mxu0
    %v6084 = vadd.f32 %v5971, %v6083
    %6085 = vmatmul.f32.gmra.mxu0 %v4913
    %v6086 = vpop.f32.mrf.mxu0
    %v6087 = vadd.f32 %v5974, %v6086
    %6088 = vmatmul.f32.gmra.mxu0 %v4925
    %v6089 = vpop.f32.mrf.mxu0
    %v6090 = vadd.f32 %v5977, %v6089
    %6091 = vmatmul.f32.gmra.mxu0 %v4937
    %v6092 = vpop.f32.mrf.mxu0
    %v6093 = vadd.f32 %v5980, %v6092
    %6094 = vmatmul.f32.gmra.mxu0 %v4949
    %v6095 = vpop.f32.mrf.mxu0
    %v6096 = vadd.f32 %v5983, %v6095
    %6097 = vmatmul.f32.gmra.mxu0 %v4961
    %v6098 = vpop.f32.mrf.mxu0
    %v6099 = vadd.f32 %v5986, %v6098
    %6100 = vmatmul.f32.gmra.mxu0 %v4973
    %v6101 = vpop.f32.mrf.mxu0
    %v6102 = vadd.f32 %v5989, %v6101
    %6103 = vmatmul.f32.gmra.mxu0 %v4985
    %v6104 = vpop.f32.mrf.mxu0
    %v6105 = vadd.f32 %v5992, %v6104
    %6106 = vmatmul.f32.gmra.mxu0 %v4997
    %v6107 = vpop.f32.mrf.mxu0
    %v6108 = vadd.f32 %v5995, %v6107
    %6109 = vmatmul.f32.gmra.mxu0 %v5009
    %v6110 = vpop.f32.mrf.mxu0
    %v6111 = vadd.f32 %v5998, %v6110
    %6112 = vmatmul.f32.gmra.mxu0 %v5021
    %v6113 = vpop.f32.mrf.mxu0
    %v6114 = vadd.f32 %v6001, %v6113
    %6115 = vmatmul.f32.gmra.mxu0 %v5033
    %v6116 = vpop.f32.mrf.mxu0
    %v6117 = vadd.f32 %v6004, %v6116
    %6118 = vmatmul.f32.gmra.mxu0 %v5045
    %v6119 = vpop.f32.mrf.mxu0
    %v6120 = vadd.f32 %v6007, %v6119
    %6121 = vmatmul.f32.gmra.mxu0 %v5057
    %v6122 = vpop.f32.mrf.mxu0
    %v6123 = vadd.f32 %v6010, %v6122
    %6124 = vmatmul.f32.gmra.mxu0 %v5069
    %v6125 = vpop.f32.mrf.mxu0
    %v6126 = vadd.f32 %v6013, %v6125
    %6127 = vmatmul.f32.gmra.mxu0 %v5081
    %v6128 = vpop.f32.mrf.mxu0
    %v6129 = vadd.f32 %v6016, %v6128
    %6130 = vmatmul.f32.gmra.mxu0 %v5093
    %v6131 = vpop.f32.mrf.mxu0
    %v6132 = vadd.f32 %v6019, %v6131
    %6133 = vmatmul.f32.gmra.mxu0 %v5105
    %v6134 = vpop.f32.mrf.mxu0
    %v6135 = vadd.f32 %v6022, %v6134
    %6136 = vmatmul.f32.gmra.mxu0 %v5117
    %v6137 = vpop.f32.mrf.mxu0
    %v6138 = vadd.f32 %v6025, %v6137
    %6139 = vmatmul.f32.gmra.mxu0 %v5129
    %v6140 = vpop.f32.mrf.mxu0
    %v6141 = vadd.f32 %v6028, %v6140
    %6142 = vmatmul.f32.gmra.mxu0 %v5141
    %v6143 = vpop.f32.mrf.mxu0
    %v6144 = vadd.f32 %v6031, %v6143
    %6145 = vmatmul.f32.gmra.mxu0 %v5153
    %v6146 = vpop.f32.mrf.mxu0
    %v6147 = vadd.f32 %v6034, %v6146
    %6148 = vmatmul.f32.gmra.mxu0 %v5165
    %v6149 = vpop.f32.mrf.mxu0
    %v6150 = vadd.f32 %v6037, %v6149
    %6151 = vmatmul.f32.gmra.mxu0 %v5177
    %v6152 = vpop.f32.mrf.mxu0
    %v6153 = vadd.f32 %v6040, %v6152
    %6154 = vmatmul.f32.gmra.mxu0 %v5189
    %v6155 = vpop.f32.mrf.mxu0
    %v6156 = vadd.f32 %v6043, %v6155
    %6157 = vmatmul.f32.gmra.mxu0 %v5201
    %v6158 = vpop.f32.mrf.mxu0
    %v6159 = vadd.f32 %v6046, %v6158
    %6160 = vmatmul.f32.gmra.mxu0 %v5213
    %v6161 = vpop.f32.mrf.mxu0
    %v6162 = vadd.f32 %v6049, %v6161
    %6163 = vmatmul.f32.gmra.mxu0 %v5225
    %v6164 = vpop.f32.mrf.mxu0
    %v6165 = vadd.f32 %v6052, %v6164
    %6166 = vmatmul.f32.gmra.mxu0 %v5237
    %v6167 = vpop.f32.mrf.mxu0
    %v6168 = vadd.f32 %v6055, %v6167
    %6169 = vdwg.mxu0
    %6170 = vmatpush.msra.mxu0 %v5436
    %6171 = vmatpush.msra.mxu0 %v5433
    %6172 = vmatpush.msra.mxu0 %v5430
    %6173 = vmatpush.msra.mxu0 %v5427
    %6174 = vmatpush.msra.mxu0 %v5424
    %6175 = vmatpush.msra.mxu0 %v5421
    %6176 = vmatpush.msra.mxu0 %v5418
    %6177 = vmatpush.msra.mxu0 %v5415
    %6178 = vmatpush.msra.mxu0 %v5412
    %6179 = vmatpush.msra.mxu0 %v5409
    %6180 = vmatpush.msra.mxu0 %v5406
    %6181 = vmatpush.msra.mxu0 %v5403
    %6182 = vmatpush.msra.mxu0 %v5400
    %6183 = vmatpush.msra.mxu0 %v5397
    %6184 = vmatpush.msra.mxu0 %v5394
    %6185 = vmatpush.msra.mxu0 %v5391
    %6186 = vmatmul.f32.gmra.mxu0 %v4866
    %v6187 = vpop.f32.mrf.mxu0
    %v6188 = vadd.f32 %v6075, %v6187
    %6189 = vmatmul.f32.gmra.mxu0 %v4878
    %v6190 = vpop.f32.mrf.mxu0
    %v6191 = vadd.f32 %v6078, %v6190
    %6192 = vmatmul.f32.gmra.mxu0 %v4890
    %v6193 = vpop.f32.mrf.mxu0
    %v6194 = vadd.f32 %v6081, %v6193
    %6195 = vmatmul.f32.gmra.mxu0 %v4902
    %v6196 = vpop.f32.mrf.mxu0
    %v6197 = vadd.f32 %v6084, %v6196
    %6198 = vmatmul.f32.gmra.mxu0 %v4914
    %v6199 = vpop.f32.mrf.mxu0
    %v6200 = vadd.f32 %v6087, %v6199
    %6201 = vmatmul.f32.gmra.mxu0 %v4926
    %v6202 = vpop.f32.mrf.mxu0
    %v6203 = vadd.f32 %v6090, %v6202
    %6204 = vmatmul.f32.gmra.mxu0 %v4938
    %v6205 = vpop.f32.mrf.mxu0
    %v6206 = vadd.f32 %v6093, %v6205
    %6207 = vmatmul.f32.gmra.mxu0 %v4950
    %v6208 = vpop.f32.mrf.mxu0
    %v6209 = vadd.f32 %v6096, %v6208
    %6210 = vmatmul.f32.gmra.mxu0 %v4962
    %v6211 = vpop.f32.mrf.mxu0
    %v6212 = vadd.f32 %v6099, %v6211
    %6213 = vmatmul.f32.gmra.mxu0 %v4974
    %v6214 = vpop.f32.mrf.mxu0
    %v6215 = vadd.f32 %v6102, %v6214
    %6216 = vmatmul.f32.gmra.mxu0 %v4986
    %v6217 = vpop.f32.mrf.mxu0
    %v6218 = vadd.f32 %v6105, %v6217
    %6219 = vmatmul.f32.gmra.mxu0 %v4998
    %v6220 = vpop.f32.mrf.mxu0
    %v6221 = vadd.f32 %v6108, %v6220
    %6222 = vmatmul.f32.gmra.mxu0 %v5010
    %v6223 = vpop.f32.mrf.mxu0
    %v6224 = vadd.f32 %v6111, %v6223
    %6225 = vmatmul.f32.gmra.mxu0 %v5022
    %v6226 = vpop.f32.mrf.mxu0
    %v6227 = vadd.f32 %v6114, %v6226
    %6228 = vmatmul.f32.gmra.mxu0 %v5034
    %v6229 = vpop.f32.mrf.mxu0
    %v6230 = vadd.f32 %v6117, %v6229
    %6231 = vmatmul.f32.gmra.mxu0 %v5046
    %v6232 = vpop.f32.mrf.mxu0
    %v6233 = vadd.f32 %v6120, %v6232
    %6234 = vmatmul.f32.gmra.mxu0 %v5058
    %v6235 = vpop.f32.mrf.mxu0
    %v6236 = vadd.f32 %v6123, %v6235
    %6237 = vmatmul.f32.gmra.mxu0 %v5070
    %v6238 = vpop.f32.mrf.mxu0
    %v6239 = vadd.f32 %v6126, %v6238
    %6240 = vmatmul.f32.gmra.mxu0 %v5082
    %v6241 = vpop.f32.mrf.mxu0
    %v6242 = vadd.f32 %v6129, %v6241
    %6243 = vmatmul.f32.gmra.mxu0 %v5094
    %v6244 = vpop.f32.mrf.mxu0
    %v6245 = vadd.f32 %v6132, %v6244
    %6246 = vmatmul.f32.gmra.mxu0 %v5106
    %v6247 = vpop.f32.mrf.mxu0
    %v6248 = vadd.f32 %v6135, %v6247
    %6249 = vmatmul.f32.gmra.mxu0 %v5118
    %v6250 = vpop.f32.mrf.mxu0
    %v6251 = vadd.f32 %v6138, %v6250
    %6252 = vmatmul.f32.gmra.mxu0 %v5130
    %v6253 = vpop.f32.mrf.mxu0
    %v6254 = vadd.f32 %v6141, %v6253
    %6255 = vmatmul.f32.gmra.mxu0 %v5142
    %v6256 = vpop.f32.mrf.mxu0
    %v6257 = vadd.f32 %v6144, %v6256
    %6258 = vmatmul.f32.gmra.mxu0 %v5154
    %v6259 = vpop.f32.mrf.mxu0
    %v6260 = vadd.f32 %v6147, %v6259
    %6261 = vmatmul.f32.gmra.mxu0 %v5166
    %v6262 = vpop.f32.mrf.mxu0
    %v6263 = vadd.f32 %v6150, %v6262
    %6264 = vmatmul.f32.gmra.mxu0 %v5178
    %v6265 = vpop.f32.mrf.mxu0
    %v6266 = vadd.f32 %v6153, %v6265
    %6267 = vmatmul.f32.gmra.mxu0 %v5190
    %v6268 = vpop.f32.mrf.mxu0
    %v6269 = vadd.f32 %v6156, %v6268
    %6270 = vmatmul.f32.gmra.mxu0 %v5202
    %v6271 = vpop.f32.mrf.mxu0
    %v6272 = vadd.f32 %v6159, %v6271
    %6273 = vmatmul.f32.gmra.mxu0 %v5214
    %v6274 = vpop.f32.mrf.mxu0
    %v6275 = vadd.f32 %v6162, %v6274
    %6276 = vmatmul.f32.gmra.mxu0 %v5226
    %v6277 = vpop.f32.mrf.mxu0
    %v6278 = vadd.f32 %v6165, %v6277
    %6279 = vmatmul.f32.gmra.mxu0 %v5238
    %v6280 = vpop.f32.mrf.mxu0
    %v6281 = vadd.f32 %v6168, %v6280
    %6282 = vdwg.mxu0
    %6283 = vmatpush.msra.mxu0 %v5484
    %6284 = vmatpush.msra.mxu0 %v5481
    %6285 = vmatpush.msra.mxu0 %v5478
    %6286 = vmatpush.msra.mxu0 %v5475
    %6287 = vmatpush.msra.mxu0 %v5472
    %6288 = vmatpush.msra.mxu0 %v5469
    %6289 = vmatpush.msra.mxu0 %v5466
    %6290 = vmatpush.msra.mxu0 %v5463
    %6291 = vmatpush.msra.mxu0 %v5460
    %6292 = vmatpush.msra.mxu0 %v5457
    %6293 = vmatpush.msra.mxu0 %v5454
    %6294 = vmatpush.msra.mxu0 %v5451
    %6295 = vmatpush.msra.mxu0 %v5448
    %6296 = vmatpush.msra.mxu0 %v5445
    %6297 = vmatpush.msra.mxu0 %v5442
    %6298 = vmatpush.msra.mxu0 %v5439
    %6299 = vmatmul.f32.gmra.mxu0 %v4867
    %v6300 = vpop.f32.mrf.mxu0
    %v6301 = vadd.f32 %v6188, %v6300
    %6302 = vmatmul.f32.gmra.mxu0 %v4879
    %v6303 = vpop.f32.mrf.mxu0
    %v6304 = vadd.f32 %v6191, %v6303
    %6305 = vmatmul.f32.gmra.mxu0 %v4891
    %v6306 = vpop.f32.mrf.mxu0
    %v6307 = vadd.f32 %v6194, %v6306
    %6308 = vmatmul.f32.gmra.mxu0 %v4903
    %v6309 = vpop.f32.mrf.mxu0
    %v6310 = vadd.f32 %v6197, %v6309
    %6311 = vmatmul.f32.gmra.mxu0 %v4915
    %v6312 = vpop.f32.mrf.mxu0
    %v6313 = vadd.f32 %v6200, %v6312
    %6314 = vmatmul.f32.gmra.mxu0 %v4927
    %v6315 = vpop.f32.mrf.mxu0
    %v6316 = vadd.f32 %v6203, %v6315
    %6317 = vmatmul.f32.gmra.mxu0 %v4939
    %v6318 = vpop.f32.mrf.mxu0
    %v6319 = vadd.f32 %v6206, %v6318
    %6320 = vmatmul.f32.gmra.mxu0 %v4951
    %v6321 = vpop.f32.mrf.mxu0
    %v6322 = vadd.f32 %v6209, %v6321
    %6323 = vmatmul.f32.gmra.mxu0 %v4963
    %v6324 = vpop.f32.mrf.mxu0
    %v6325 = vadd.f32 %v6212, %v6324
    %6326 = vmatmul.f32.gmra.mxu0 %v4975
    %v6327 = vpop.f32.mrf.mxu0
    %v6328 = vadd.f32 %v6215, %v6327
    %6329 = vmatmul.f32.gmra.mxu0 %v4987
    %v6330 = vpop.f32.mrf.mxu0
    %v6331 = vadd.f32 %v6218, %v6330
    %6332 = vmatmul.f32.gmra.mxu0 %v4999
    %v6333 = vpop.f32.mrf.mxu0
    %v6334 = vadd.f32 %v6221, %v6333
    %6335 = vmatmul.f32.gmra.mxu0 %v5011
    %v6336 = vpop.f32.mrf.mxu0
    %v6337 = vadd.f32 %v6224, %v6336
    %6338 = vmatmul.f32.gmra.mxu0 %v5023
    %v6339 = vpop.f32.mrf.mxu0
    %v6340 = vadd.f32 %v6227, %v6339
    %6341 = vmatmul.f32.gmra.mxu0 %v5035
    %v6342 = vpop.f32.mrf.mxu0
    %v6343 = vadd.f32 %v6230, %v6342
    %6344 = vmatmul.f32.gmra.mxu0 %v5047
    %v6345 = vpop.f32.mrf.mxu0
    %v6346 = vadd.f32 %v6233, %v6345
    %6347 = vmatmul.f32.gmra.mxu0 %v5059
    %v6348 = vpop.f32.mrf.mxu0
    %v6349 = vadd.f32 %v6236, %v6348
    %6350 = vmatmul.f32.gmra.mxu0 %v5071
    %v6351 = vpop.f32.mrf.mxu0
    %v6352 = vadd.f32 %v6239, %v6351
    %6353 = vmatmul.f32.gmra.mxu0 %v5083
    %v6354 = vpop.f32.mrf.mxu0
    %v6355 = vadd.f32 %v6242, %v6354
    %6356 = vmatmul.f32.gmra.mxu0 %v5095
    %v6357 = vpop.f32.mrf.mxu0
    %v6358 = vadd.f32 %v6245, %v6357
    %6359 = vmatmul.f32.gmra.mxu0 %v5107
    %v6360 = vpop.f32.mrf.mxu0
    %v6361 = vadd.f32 %v6248, %v6360
    %6362 = vmatmul.f32.gmra.mxu0 %v5119
    %v6363 = vpop.f32.mrf.mxu0
    %v6364 = vadd.f32 %v6251, %v6363
    %6365 = vmatmul.f32.gmra.mxu0 %v5131
    %v6366 = vpop.f32.mrf.mxu0
    %v6367 = vadd.f32 %v6254, %v6366
    %6368 = vmatmul.f32.gmra.mxu0 %v5143
    %v6369 = vpop.f32.mrf.mxu0
    %v6370 = vadd.f32 %v6257, %v6369
    %6371 = vmatmul.f32.gmra.mxu0 %v5155
    %v6372 = vpop.f32.mrf.mxu0
    %v6373 = vadd.f32 %v6260, %v6372
    %6374 = vmatmul.f32.gmra.mxu0 %v5167
    %v6375 = vpop.f32.mrf.mxu0
    %v6376 = vadd.f32 %v6263, %v6375
    %6377 = vmatmul.f32.gmra.mxu0 %v5179
    %v6378 = vpop.f32.mrf.mxu0
    %v6379 = vadd.f32 %v6266, %v6378
    %6380 = vmatmul.f32.gmra.mxu0 %v5191
    %v6381 = vpop.f32.mrf.mxu0
    %v6382 = vadd.f32 %v6269, %v6381
    %6383 = vmatmul.f32.gmra.mxu0 %v5203
    %v6384 = vpop.f32.mrf.mxu0
    %v6385 = vadd.f32 %v6272, %v6384
    %6386 = vmatmul.f32.gmra.mxu0 %v5215
    %v6387 = vpop.f32.mrf.mxu0
    %v6388 = vadd.f32 %v6275, %v6387
    %6389 = vmatmul.f32.gmra.mxu0 %v5227
    %v6390 = vpop.f32.mrf.mxu0
    %v6391 = vadd.f32 %v6278, %v6390
    %6392 = vmatmul.f32.gmra.mxu0 %v5239
    %v6393 = vpop.f32.mrf.mxu0
    %v6394 = vadd.f32 %v6281, %v6393
    %6395 = vdwg.mxu0
    %6396 = vmatpush.msra.mxu0 %v5532
    %6397 = vmatpush.msra.mxu0 %v5529
    %6398 = vmatpush.msra.mxu0 %v5526
    %6399 = vmatpush.msra.mxu0 %v5523
    %6400 = vmatpush.msra.mxu0 %v5520
    %6401 = vmatpush.msra.mxu0 %v5517
    %6402 = vmatpush.msra.mxu0 %v5514
    %6403 = vmatpush.msra.mxu0 %v5511
    %6404 = vmatpush.msra.mxu0 %v5508
    %6405 = vmatpush.msra.mxu0 %v5505
    %6406 = vmatpush.msra.mxu0 %v5502
    %6407 = vmatpush.msra.mxu0 %v5499
    %6408 = vmatpush.msra.mxu0 %v5496
    %6409 = vmatpush.msra.mxu0 %v5493
    %6410 = vmatpush.msra.mxu0 %v5490
    %6411 = vmatpush.msra.mxu0 %v5487
    %6412 = vmatmul.f32.gmra.mxu0 %v4868
    %v6413 = vpop.f32.mrf.mxu0
    %v6414 = vadd.f32 %v6301, %v6413
    %6415 = vmatmul.f32.gmra.mxu0 %v4880
    %v6416 = vpop.f32.mrf.mxu0
    %v6417 = vadd.f32 %v6304, %v6416
    %6418 = vmatmul.f32.gmra.mxu0 %v4892
    %v6419 = vpop.f32.mrf.mxu0
    %v6420 = vadd.f32 %v6307, %v6419
    %6421 = vmatmul.f32.gmra.mxu0 %v4904
    %v6422 = vpop.f32.mrf.mxu0
    %v6423 = vadd.f32 %v6310, %v6422
    %6424 = vmatmul.f32.gmra.mxu0 %v4916
    %v6425 = vpop.f32.mrf.mxu0
    %v6426 = vadd.f32 %v6313, %v6425
    %6427 = vmatmul.f32.gmra.mxu0 %v4928
    %v6428 = vpop.f32.mrf.mxu0
    %v6429 = vadd.f32 %v6316, %v6428
    %6430 = vmatmul.f32.gmra.mxu0 %v4940
    %v6431 = vpop.f32.mrf.mxu0
    %v6432 = vadd.f32 %v6319, %v6431
    %6433 = vmatmul.f32.gmra.mxu0 %v4952
    %v6434 = vpop.f32.mrf.mxu0
    %v6435 = vadd.f32 %v6322, %v6434
    %6436 = vmatmul.f32.gmra.mxu0 %v4964
    %v6437 = vpop.f32.mrf.mxu0
    %v6438 = vadd.f32 %v6325, %v6437
    %6439 = vmatmul.f32.gmra.mxu0 %v4976
    %v6440 = vpop.f32.mrf.mxu0
    %v6441 = vadd.f32 %v6328, %v6440
    %6442 = vmatmul.f32.gmra.mxu0 %v4988
    %v6443 = vpop.f32.mrf.mxu0
    %v6444 = vadd.f32 %v6331, %v6443
    %6445 = vmatmul.f32.gmra.mxu0 %v5000
    %v6446 = vpop.f32.mrf.mxu0
    %v6447 = vadd.f32 %v6334, %v6446
    %6448 = vmatmul.f32.gmra.mxu0 %v5012
    %v6449 = vpop.f32.mrf.mxu0
    %v6450 = vadd.f32 %v6337, %v6449
    %6451 = vmatmul.f32.gmra.mxu0 %v5024
    %v6452 = vpop.f32.mrf.mxu0
    %v6453 = vadd.f32 %v6340, %v6452
    %6454 = vmatmul.f32.gmra.mxu0 %v5036
    %v6455 = vpop.f32.mrf.mxu0
    %v6456 = vadd.f32 %v6343, %v6455
    %6457 = vmatmul.f32.gmra.mxu0 %v5048
    %v6458 = vpop.f32.mrf.mxu0
    %v6459 = vadd.f32 %v6346, %v6458
    %6460 = vmatmul.f32.gmra.mxu0 %v5060
    %v6461 = vpop.f32.mrf.mxu0
    %v6462 = vadd.f32 %v6349, %v6461
    %6463 = vmatmul.f32.gmra.mxu0 %v5072
    %v6464 = vpop.f32.mrf.mxu0
    %v6465 = vadd.f32 %v6352, %v6464
    %6466 = vmatmul.f32.gmra.mxu0 %v5084
    %v6467 = vpop.f32.mrf.mxu0
    %v6468 = vadd.f32 %v6355, %v6467
    %6469 = vmatmul.f32.gmra.mxu0 %v5096
    %v6470 = vpop.f32.mrf.mxu0
    %v6471 = vadd.f32 %v6358, %v6470
    %6472 = vmatmul.f32.gmra.mxu0 %v5108
    %v6473 = vpop.f32.mrf.mxu0
    %v6474 = vadd.f32 %v6361, %v6473
    %6475 = vmatmul.f32.gmra.mxu0 %v5120
    %v6476 = vpop.f32.mrf.mxu0
    %v6477 = vadd.f32 %v6364, %v6476
    %6478 = vmatmul.f32.gmra.mxu0 %v5132
    %v6479 = vpop.f32.mrf.mxu0
    %v6480 = vadd.f32 %v6367, %v6479
    %6481 = vmatmul.f32.gmra.mxu0 %v5144
    %v6482 = vpop.f32.mrf.mxu0
    %v6483 = vadd.f32 %v6370, %v6482
    %6484 = vmatmul.f32.gmra.mxu0 %v5156
    %v6485 = vpop.f32.mrf.mxu0
    %v6486 = vadd.f32 %v6373, %v6485
    %6487 = vmatmul.f32.gmra.mxu0 %v5168
    %v6488 = vpop.f32.mrf.mxu0
    %v6489 = vadd.f32 %v6376, %v6488
    %6490 = vmatmul.f32.gmra.mxu0 %v5180
    %v6491 = vpop.f32.mrf.mxu0
    %v6492 = vadd.f32 %v6379, %v6491
    %6493 = vmatmul.f32.gmra.mxu0 %v5192
    %v6494 = vpop.f32.mrf.mxu0
    %v6495 = vadd.f32 %v6382, %v6494
    %6496 = vmatmul.f32.gmra.mxu0 %v5204
    %v6497 = vpop.f32.mrf.mxu0
    %v6498 = vadd.f32 %v6385, %v6497
    %6499 = vmatmul.f32.gmra.mxu0 %v5216
    %v6500 = vpop.f32.mrf.mxu0
    %v6501 = vadd.f32 %v6388, %v6500
    %6502 = vmatmul.f32.gmra.mxu0 %v5228
    %v6503 = vpop.f32.mrf.mxu0
    %v6504 = vadd.f32 %v6391, %v6503
    %6505 = vmatmul.f32.gmra.mxu0 %v5240
    %v6506 = vpop.f32.mrf.mxu0
    %v6507 = vadd.f32 %v6394, %v6506
    %6508 = vdwg.mxu0
    %6509 = vmatpush.msra.mxu0 %v5580
    %6510 = vmatpush.msra.mxu0 %v5577
    %6511 = vmatpush.msra.mxu0 %v5574
    %6512 = vmatpush.msra.mxu0 %v5571
    %6513 = vmatpush.msra.mxu0 %v5568
    %6514 = vmatpush.msra.mxu0 %v5565
    %6515 = vmatpush.msra.mxu0 %v5562
    %6516 = vmatpush.msra.mxu0 %v5559
    %6517 = vmatpush.msra.mxu0 %v5556
    %6518 = vmatpush.msra.mxu0 %v5553
    %6519 = vmatpush.msra.mxu0 %v5550
    %6520 = vmatpush.msra.mxu0 %v5547
    %6521 = vmatpush.msra.mxu0 %v5544
    %6522 = vmatpush.msra.mxu0 %v5541
    %6523 = vmatpush.msra.mxu0 %v5538
    %6524 = vmatpush.msra.mxu0 %v5535
    %6525 = vmatmul.f32.gmra.mxu0 %v4869
    %v6526 = vpop.f32.mrf.mxu0
    %v6527 = vadd.f32 %v6414, %v6526
    %6528 = vmatmul.f32.gmra.mxu0 %v4881
    %v6529 = vpop.f32.mrf.mxu0
    %v6530 = vadd.f32 %v6417, %v6529
    %6531 = vmatmul.f32.gmra.mxu0 %v4893
    %v6532 = vpop.f32.mrf.mxu0
    %v6533 = vadd.f32 %v6420, %v6532
    %6534 = vmatmul.f32.gmra.mxu0 %v4905
    %v6535 = vpop.f32.mrf.mxu0
    %v6536 = vadd.f32 %v6423, %v6535
    %6537 = vmatmul.f32.gmra.mxu0 %v4917
    %v6538 = vpop.f32.mrf.mxu0
    %v6539 = vadd.f32 %v6426, %v6538
    %6540 = vmatmul.f32.gmra.mxu0 %v4929
    %v6541 = vpop.f32.mrf.mxu0
    %v6542 = vadd.f32 %v6429, %v6541
    %6543 = vmatmul.f32.gmra.mxu0 %v4941
    %v6544 = vpop.f32.mrf.mxu0
    %v6545 = vadd.f32 %v6432, %v6544
    %6546 = vmatmul.f32.gmra.mxu0 %v4953
    %v6547 = vpop.f32.mrf.mxu0
    %v6548 = vadd.f32 %v6435, %v6547
    %6549 = vmatmul.f32.gmra.mxu0 %v4965
    %v6550 = vpop.f32.mrf.mxu0
    %v6551 = vadd.f32 %v6438, %v6550
    %6552 = vmatmul.f32.gmra.mxu0 %v4977
    %v6553 = vpop.f32.mrf.mxu0
    %v6554 = vadd.f32 %v6441, %v6553
    %6555 = vmatmul.f32.gmra.mxu0 %v4989
    %v6556 = vpop.f32.mrf.mxu0
    %v6557 = vadd.f32 %v6444, %v6556
    %6558 = vmatmul.f32.gmra.mxu0 %v5001
    %v6559 = vpop.f32.mrf.mxu0
    %v6560 = vadd.f32 %v6447, %v6559
    %6561 = vmatmul.f32.gmra.mxu0 %v5013
    %v6562 = vpop.f32.mrf.mxu0
    %v6563 = vadd.f32 %v6450, %v6562
    %6564 = vmatmul.f32.gmra.mxu0 %v5025
    %v6565 = vpop.f32.mrf.mxu0
    %v6566 = vadd.f32 %v6453, %v6565
    %6567 = vmatmul.f32.gmra.mxu0 %v5037
    %v6568 = vpop.f32.mrf.mxu0
    %v6569 = vadd.f32 %v6456, %v6568
    %6570 = vmatmul.f32.gmra.mxu0 %v5049
    %v6571 = vpop.f32.mrf.mxu0
    %v6572 = vadd.f32 %v6459, %v6571
    %6573 = vmatmul.f32.gmra.mxu0 %v5061
    %v6574 = vpop.f32.mrf.mxu0
    %v6575 = vadd.f32 %v6462, %v6574
    %6576 = vmatmul.f32.gmra.mxu0 %v5073
    %v6577 = vpop.f32.mrf.mxu0
    %v6578 = vadd.f32 %v6465, %v6577
    %6579 = vmatmul.f32.gmra.mxu0 %v5085
    %v6580 = vpop.f32.mrf.mxu0
    %v6581 = vadd.f32 %v6468, %v6580
    %6582 = vmatmul.f32.gmra.mxu0 %v5097
    %v6583 = vpop.f32.mrf.mxu0
    %v6584 = vadd.f32 %v6471, %v6583
    %6585 = vmatmul.f32.gmra.mxu0 %v5109
    %v6586 = vpop.f32.mrf.mxu0
    %v6587 = vadd.f32 %v6474, %v6586
    %6588 = vmatmul.f32.gmra.mxu0 %v5121
    %v6589 = vpop.f32.mrf.mxu0
    %v6590 = vadd.f32 %v6477, %v6589
    %6591 = vmatmul.f32.gmra.mxu0 %v5133
    %v6592 = vpop.f32.mrf.mxu0
    %v6593 = vadd.f32 %v6480, %v6592
    %6594 = vmatmul.f32.gmra.mxu0 %v5145
    %v6595 = vpop.f32.mrf.mxu0
    %v6596 = vadd.f32 %v6483, %v6595
    %6597 = vmatmul.f32.gmra.mxu0 %v5157
    %v6598 = vpop.f32.mrf.mxu0
    %v6599 = vadd.f32 %v6486, %v6598
    %6600 = vmatmul.f32.gmra.mxu0 %v5169
    %v6601 = vpop.f32.mrf.mxu0
    %v6602 = vadd.f32 %v6489, %v6601
    %6603 = vmatmul.f32.gmra.mxu0 %v5181
    %v6604 = vpop.f32.mrf.mxu0
    %v6605 = vadd.f32 %v6492, %v6604
    %6606 = vmatmul.f32.gmra.mxu0 %v5193
    %v6607 = vpop.f32.mrf.mxu0
    %v6608 = vadd.f32 %v6495, %v6607
    %6609 = vmatmul.f32.gmra.mxu0 %v5205
    %v6610 = vpop.f32.mrf.mxu0
    %v6611 = vadd.f32 %v6498, %v6610
    %6612 = vmatmul.f32.gmra.mxu0 %v5217
    %v6613 = vpop.f32.mrf.mxu0
    %v6614 = vadd.f32 %v6501, %v6613
    %6615 = vmatmul.f32.gmra.mxu0 %v5229
    %v6616 = vpop.f32.mrf.mxu0
    %v6617 = vadd.f32 %v6504, %v6616
    %6618 = vmatmul.f32.gmra.mxu0 %v5241
    %v6619 = vpop.f32.mrf.mxu0
    %v6620 = vadd.f32 %v6507, %v6619
    %6621 = vdwg.mxu0
    %6622 = vmatpush.msra.mxu0 %v5628
    %6623 = vmatpush.msra.mxu0 %v5625
    %6624 = vmatpush.msra.mxu0 %v5622
    %6625 = vmatpush.msra.mxu0 %v5619
    %6626 = vmatpush.msra.mxu0 %v5616
    %6627 = vmatpush.msra.mxu0 %v5613
    %6628 = vmatpush.msra.mxu0 %v5610
    %6629 = vmatpush.msra.mxu0 %v5607
    %6630 = vmatpush.msra.mxu0 %v5604
    %6631 = vmatpush.msra.mxu0 %v5601
    %6632 = vmatpush.msra.mxu0 %v5598
    %6633 = vmatpush.msra.mxu0 %v5595
    %6634 = vmatpush.msra.mxu0 %v5592
    %6635 = vmatpush.msra.mxu0 %v5589
    %6636 = vmatpush.msra.mxu0 %v5586
    %6637 = vmatpush.msra.mxu0 %v5583
    %6638 = vmatmul.f32.gmra.mxu0 %v4870
    %v6639 = vpop.f32.mrf.mxu0
    %v6640 = vadd.f32 %v6527, %v6639
    %6641 = vmatmul.f32.gmra.mxu0 %v4882
    %v6642 = vpop.f32.mrf.mxu0
    %v6643 = vadd.f32 %v6530, %v6642
    %6644 = vmatmul.f32.gmra.mxu0 %v4894
    %v6645 = vpop.f32.mrf.mxu0
    %v6646 = vadd.f32 %v6533, %v6645
    %6647 = vmatmul.f32.gmra.mxu0 %v4906
    %v6648 = vpop.f32.mrf.mxu0
    %v6649 = vadd.f32 %v6536, %v6648
    %6650 = vmatmul.f32.gmra.mxu0 %v4918
    %v6651 = vpop.f32.mrf.mxu0
    %v6652 = vadd.f32 %v6539, %v6651
    %6653 = vmatmul.f32.gmra.mxu0 %v4930
    %v6654 = vpop.f32.mrf.mxu0
    %v6655 = vadd.f32 %v6542, %v6654
    %6656 = vmatmul.f32.gmra.mxu0 %v4942
    %v6657 = vpop.f32.mrf.mxu0
    %v6658 = vadd.f32 %v6545, %v6657
    %6659 = vmatmul.f32.gmra.mxu0 %v4954
    %v6660 = vpop.f32.mrf.mxu0
    %v6661 = vadd.f32 %v6548, %v6660
    %6662 = vmatmul.f32.gmra.mxu0 %v4966
    %v6663 = vpop.f32.mrf.mxu0
    %v6664 = vadd.f32 %v6551, %v6663
    %6665 = vmatmul.f32.gmra.mxu0 %v4978
    %v6666 = vpop.f32.mrf.mxu0
    %v6667 = vadd.f32 %v6554, %v6666
    %6668 = vmatmul.f32.gmra.mxu0 %v4990
    %v6669 = vpop.f32.mrf.mxu0
    %v6670 = vadd.f32 %v6557, %v6669
    %6671 = vmatmul.f32.gmra.mxu0 %v5002
    %v6672 = vpop.f32.mrf.mxu0
    %v6673 = vadd.f32 %v6560, %v6672
    %6674 = vmatmul.f32.gmra.mxu0 %v5014
    %v6675 = vpop.f32.mrf.mxu0
    %v6676 = vadd.f32 %v6563, %v6675
    %6677 = vmatmul.f32.gmra.mxu0 %v5026
    %v6678 = vpop.f32.mrf.mxu0
    %v6679 = vadd.f32 %v6566, %v6678
    %6680 = vmatmul.f32.gmra.mxu0 %v5038
    %v6681 = vpop.f32.mrf.mxu0
    %v6682 = vadd.f32 %v6569, %v6681
    %6683 = vmatmul.f32.gmra.mxu0 %v5050
    %v6684 = vpop.f32.mrf.mxu0
    %v6685 = vadd.f32 %v6572, %v6684
    %6686 = vmatmul.f32.gmra.mxu0 %v5062
    %v6687 = vpop.f32.mrf.mxu0
    %v6688 = vadd.f32 %v6575, %v6687
    %6689 = vmatmul.f32.gmra.mxu0 %v5074
    %v6690 = vpop.f32.mrf.mxu0
    %v6691 = vadd.f32 %v6578, %v6690
    %6692 = vmatmul.f32.gmra.mxu0 %v5086
    %v6693 = vpop.f32.mrf.mxu0
    %v6694 = vadd.f32 %v6581, %v6693
    %6695 = vmatmul.f32.gmra.mxu0 %v5098
    %v6696 = vpop.f32.mrf.mxu0
    %v6697 = vadd.f32 %v6584, %v6696
    %6698 = vmatmul.f32.gmra.mxu0 %v5110
    %v6699 = vpop.f32.mrf.mxu0
    %v6700 = vadd.f32 %v6587, %v6699
    %6701 = vmatmul.f32.gmra.mxu0 %v5122
    %v6702 = vpop.f32.mrf.mxu0
    %v6703 = vadd.f32 %v6590, %v6702
    %6704 = vmatmul.f32.gmra.mxu0 %v5134
    %v6705 = vpop.f32.mrf.mxu0
    %v6706 = vadd.f32 %v6593, %v6705
    %6707 = vmatmul.f32.gmra.mxu0 %v5146
    %v6708 = vpop.f32.mrf.mxu0
    %v6709 = vadd.f32 %v6596, %v6708
    %6710 = vmatmul.f32.gmra.mxu0 %v5158
    %v6711 = vpop.f32.mrf.mxu0
    %v6712 = vadd.f32 %v6599, %v6711
    %6713 = vmatmul.f32.gmra.mxu0 %v5170
    %v6714 = vpop.f32.mrf.mxu0
    %v6715 = vadd.f32 %v6602, %v6714
    %6716 = vmatmul.f32.gmra.mxu0 %v5182
    %v6717 = vpop.f32.mrf.mxu0
    %v6718 = vadd.f32 %v6605, %v6717
    %6719 = vmatmul.f32.gmra.mxu0 %v5194
    %v6720 = vpop.f32.mrf.mxu0
    %v6721 = vadd.f32 %v6608, %v6720
    %6722 = vmatmul.f32.gmra.mxu0 %v5206
    %v6723 = vpop.f32.mrf.mxu0
    %v6724 = vadd.f32 %v6611, %v6723
    %6725 = vmatmul.f32.gmra.mxu0 %v5218
    %v6726 = vpop.f32.mrf.mxu0
    %v6727 = vadd.f32 %v6614, %v6726
    %6728 = vmatmul.f32.gmra.mxu0 %v5230
    %v6729 = vpop.f32.mrf.mxu0
    %v6730 = vadd.f32 %v6617, %v6729
    %6731 = vmatmul.f32.gmra.mxu0 %v5242
    %v6732 = vpop.f32.mrf.mxu0
    %v6733 = vadd.f32 %v6620, %v6732
    %6734 = vdwg.mxu0
    %6735 = vmatpush.msra.mxu0 %v5676
    %6736 = vmatpush.msra.mxu0 %v5673
    %6737 = vmatpush.msra.mxu0 %v5670
    %6738 = vmatpush.msra.mxu0 %v5667
    %6739 = vmatpush.msra.mxu0 %v5664
    %6740 = vmatpush.msra.mxu0 %v5661
    %6741 = vmatpush.msra.mxu0 %v5658
    %6742 = vmatpush.msra.mxu0 %v5655
    %6743 = vmatpush.msra.mxu0 %v5652
    %6744 = vmatpush.msra.mxu0 %v5649
    %6745 = vmatpush.msra.mxu0 %v5646
    %6746 = vmatpush.msra.mxu0 %v5643
    %6747 = vmatpush.msra.mxu0 %v5640
    %6748 = vmatpush.msra.mxu0 %v5637
    %6749 = vmatpush.msra.mxu0 %v5634
    %6750 = vmatpush.msra.mxu0 %v5631
    %6751 = vmatmul.f32.gmra.mxu0 %v4871
    %v6752 = vpop.f32.mrf.mxu0
    %v6753 = vadd.f32 %v6640, %v6752
    %6754 = vmatmul.f32.gmra.mxu0 %v4883
    %v6755 = vpop.f32.mrf.mxu0
    %v6756 = vadd.f32 %v6643, %v6755
    %6757 = vmatmul.f32.gmra.mxu0 %v4895
    %v6758 = vpop.f32.mrf.mxu0
    %v6759 = vadd.f32 %v6646, %v6758
    %6760 = vmatmul.f32.gmra.mxu0 %v4907
    %v6761 = vpop.f32.mrf.mxu0
    %v6762 = vadd.f32 %v6649, %v6761
    %6763 = vmatmul.f32.gmra.mxu0 %v4919
    %v6764 = vpop.f32.mrf.mxu0
    %v6765 = vadd.f32 %v6652, %v6764
    %6766 = vmatmul.f32.gmra.mxu0 %v4931
    %v6767 = vpop.f32.mrf.mxu0
    %v6768 = vadd.f32 %v6655, %v6767
    %6769 = vmatmul.f32.gmra.mxu0 %v4943
    %v6770 = vpop.f32.mrf.mxu0
    %v6771 = vadd.f32 %v6658, %v6770
    %6772 = vmatmul.f32.gmra.mxu0 %v4955
    %v6773 = vpop.f32.mrf.mxu0
    %v6774 = vadd.f32 %v6661, %v6773
    %6775 = vmatmul.f32.gmra.mxu0 %v4967
    %v6776 = vpop.f32.mrf.mxu0
    %v6777 = vadd.f32 %v6664, %v6776
    %6778 = vmatmul.f32.gmra.mxu0 %v4979
    %v6779 = vpop.f32.mrf.mxu0
    %v6780 = vadd.f32 %v6667, %v6779
    %6781 = vmatmul.f32.gmra.mxu0 %v4991
    %v6782 = vpop.f32.mrf.mxu0
    %v6783 = vadd.f32 %v6670, %v6782
    %6784 = vmatmul.f32.gmra.mxu0 %v5003
    %v6785 = vpop.f32.mrf.mxu0
    %v6786 = vadd.f32 %v6673, %v6785
    %6787 = vmatmul.f32.gmra.mxu0 %v5015
    %v6788 = vpop.f32.mrf.mxu0
    %v6789 = vadd.f32 %v6676, %v6788
    %6790 = vmatmul.f32.gmra.mxu0 %v5027
    %v6791 = vpop.f32.mrf.mxu0
    %v6792 = vadd.f32 %v6679, %v6791
    %6793 = vmatmul.f32.gmra.mxu0 %v5039
    %v6794 = vpop.f32.mrf.mxu0
    %v6795 = vadd.f32 %v6682, %v6794
    %6796 = vmatmul.f32.gmra.mxu0 %v5051
    %v6797 = vpop.f32.mrf.mxu0
    %v6798 = vadd.f32 %v6685, %v6797
    %6799 = vmatmul.f32.gmra.mxu0 %v5063
    %v6800 = vpop.f32.mrf.mxu0
    %v6801 = vadd.f32 %v6688, %v6800
    %6802 = vmatmul.f32.gmra.mxu0 %v5075
    %v6803 = vpop.f32.mrf.mxu0
    %v6804 = vadd.f32 %v6691, %v6803
    %6805 = vmatmul.f32.gmra.mxu0 %v5087
    %v6806 = vpop.f32.mrf.mxu0
    %v6807 = vadd.f32 %v6694, %v6806
    %6808 = vmatmul.f32.gmra.mxu0 %v5099
    %v6809 = vpop.f32.mrf.mxu0
    %v6810 = vadd.f32 %v6697, %v6809
    %6811 = vmatmul.f32.gmra.mxu0 %v5111
    %v6812 = vpop.f32.mrf.mxu0
    %v6813 = vadd.f32 %v6700, %v6812
    %6814 = vmatmul.f32.gmra.mxu0 %v5123
    %v6815 = vpop.f32.mrf.mxu0
    %v6816 = vadd.f32 %v6703, %v6815
    %6817 = vmatmul.f32.gmra.mxu0 %v5135
    %v6818 = vpop.f32.mrf.mxu0
    %v6819 = vadd.f32 %v6706, %v6818
    %6820 = vmatmul.f32.gmra.mxu0 %v5147
    %v6821 = vpop.f32.mrf.mxu0
    %v6822 = vadd.f32 %v6709, %v6821
    %6823 = vmatmul.f32.gmra.mxu0 %v5159
    %v6824 = vpop.f32.mrf.mxu0
    %v6825 = vadd.f32 %v6712, %v6824
    %6826 = vmatmul.f32.gmra.mxu0 %v5171
    %v6827 = vpop.f32.mrf.mxu0
    %v6828 = vadd.f32 %v6715, %v6827
    %6829 = vmatmul.f32.gmra.mxu0 %v5183
    %v6830 = vpop.f32.mrf.mxu0
    %v6831 = vadd.f32 %v6718, %v6830
    %6832 = vmatmul.f32.gmra.mxu0 %v5195
    %v6833 = vpop.f32.mrf.mxu0
    %v6834 = vadd.f32 %v6721, %v6833
    %6835 = vmatmul.f32.gmra.mxu0 %v5207
    %v6836 = vpop.f32.mrf.mxu0
    %v6837 = vadd.f32 %v6724, %v6836
    %6838 = vmatmul.f32.gmra.mxu0 %v5219
    %v6839 = vpop.f32.mrf.mxu0
    %v6840 = vadd.f32 %v6727, %v6839
    %6841 = vmatmul.f32.gmra.mxu0 %v5231
    %v6842 = vpop.f32.mrf.mxu0
    %v6843 = vadd.f32 %v6730, %v6842
    %6844 = vmatmul.f32.gmra.mxu0 %v5243
    %v6845 = vpop.f32.mrf.mxu0
    %v6846 = vadd.f32 %v6733, %v6845
    %6847 = vdwg.mxu0
    %6848 = vmatpush.msra.mxu0 %v5724
    %6849 = vmatpush.msra.mxu0 %v5721
    %6850 = vmatpush.msra.mxu0 %v5718
    %6851 = vmatpush.msra.mxu0 %v5715
    %6852 = vmatpush.msra.mxu0 %v5712
    %6853 = vmatpush.msra.mxu0 %v5709
    %6854 = vmatpush.msra.mxu0 %v5706
    %6855 = vmatpush.msra.mxu0 %v5703
    %6856 = vmatpush.msra.mxu0 %v5700
    %6857 = vmatpush.msra.mxu0 %v5697
    %6858 = vmatpush.msra.mxu0 %v5694
    %6859 = vmatpush.msra.mxu0 %v5691
    %6860 = vmatpush.msra.mxu0 %v5688
    %6861 = vmatpush.msra.mxu0 %v5685
    %6862 = vmatpush.msra.mxu0 %v5682
    %6863 = vmatpush.msra.mxu0 %v5679
    %6864 = vmatmul.f32.gmra.mxu0 %v4872
    %v6865 = vpop.f32.mrf.mxu0
    %v6866 = vadd.f32 %v6753, %v6865
    %6867 = vmatmul.f32.gmra.mxu0 %v4884
    %v6868 = vpop.f32.mrf.mxu0
    %v6869 = vadd.f32 %v6756, %v6868
    %6870 = vmatmul.f32.gmra.mxu0 %v4896
    %v6871 = vpop.f32.mrf.mxu0
    %v6872 = vadd.f32 %v6759, %v6871
    %6873 = vmatmul.f32.gmra.mxu0 %v4908
    %v6874 = vpop.f32.mrf.mxu0
    %v6875 = vadd.f32 %v6762, %v6874
    %6876 = vmatmul.f32.gmra.mxu0 %v4920
    %v6877 = vpop.f32.mrf.mxu0
    %v6878 = vadd.f32 %v6765, %v6877
    %6879 = vmatmul.f32.gmra.mxu0 %v4932
    %v6880 = vpop.f32.mrf.mxu0
    %v6881 = vadd.f32 %v6768, %v6880
    %6882 = vmatmul.f32.gmra.mxu0 %v4944
    %v6883 = vpop.f32.mrf.mxu0
    %v6884 = vadd.f32 %v6771, %v6883
    %6885 = vmatmul.f32.gmra.mxu0 %v4956
    %v6886 = vpop.f32.mrf.mxu0
    %v6887 = vadd.f32 %v6774, %v6886
    %6888 = vmatmul.f32.gmra.mxu0 %v4968
    %v6889 = vpop.f32.mrf.mxu0
    %v6890 = vadd.f32 %v6777, %v6889
    %6891 = vmatmul.f32.gmra.mxu0 %v4980
    %v6892 = vpop.f32.mrf.mxu0
    %v6893 = vadd.f32 %v6780, %v6892
    %6894 = vmatmul.f32.gmra.mxu0 %v4992
    %v6895 = vpop.f32.mrf.mxu0
    %v6896 = vadd.f32 %v6783, %v6895
    %6897 = vmatmul.f32.gmra.mxu0 %v5004
    %v6898 = vpop.f32.mrf.mxu0
    %v6899 = vadd.f32 %v6786, %v6898
    %6900 = vmatmul.f32.gmra.mxu0 %v5016
    %v6901 = vpop.f32.mrf.mxu0
    %v6902 = vadd.f32 %v6789, %v6901
    %6903 = vmatmul.f32.gmra.mxu0 %v5028
    %v6904 = vpop.f32.mrf.mxu0
    %v6905 = vadd.f32 %v6792, %v6904
    %6906 = vmatmul.f32.gmra.mxu0 %v5040
    %v6907 = vpop.f32.mrf.mxu0
    %v6908 = vadd.f32 %v6795, %v6907
    %6909 = vmatmul.f32.gmra.mxu0 %v5052
    %v6910 = vpop.f32.mrf.mxu0
    %v6911 = vadd.f32 %v6798, %v6910
    %6912 = vmatmul.f32.gmra.mxu0 %v5064
    %v6913 = vpop.f32.mrf.mxu0
    %v6914 = vadd.f32 %v6801, %v6913
    %6915 = vmatmul.f32.gmra.mxu0 %v5076
    %v6916 = vpop.f32.mrf.mxu0
    %v6917 = vadd.f32 %v6804, %v6916
    %6918 = vmatmul.f32.gmra.mxu0 %v5088
    %v6919 = vpop.f32.mrf.mxu0
    %v6920 = vadd.f32 %v6807, %v6919
    %6921 = vmatmul.f32.gmra.mxu0 %v5100
    %v6922 = vpop.f32.mrf.mxu0
    %v6923 = vadd.f32 %v6810, %v6922
    %6924 = vmatmul.f32.gmra.mxu0 %v5112
    %v6925 = vpop.f32.mrf.mxu0
    %v6926 = vadd.f32 %v6813, %v6925
    %6927 = vmatmul.f32.gmra.mxu0 %v5124
    %v6928 = vpop.f32.mrf.mxu0
    %v6929 = vadd.f32 %v6816, %v6928
    %6930 = vmatmul.f32.gmra.mxu0 %v5136
    %v6931 = vpop.f32.mrf.mxu0
    %v6932 = vadd.f32 %v6819, %v6931
    %6933 = vmatmul.f32.gmra.mxu0 %v5148
    %v6934 = vpop.f32.mrf.mxu0
    %v6935 = vadd.f32 %v6822, %v6934
    %6936 = vmatmul.f32.gmra.mxu0 %v5160
    %v6937 = vpop.f32.mrf.mxu0
    %v6938 = vadd.f32 %v6825, %v6937
    %6939 = vmatmul.f32.gmra.mxu0 %v5172
    %v6940 = vpop.f32.mrf.mxu0
    %v6941 = vadd.f32 %v6828, %v6940
    %6942 = vmatmul.f32.gmra.mxu0 %v5184
    %v6943 = vpop.f32.mrf.mxu0
    %v6944 = vadd.f32 %v6831, %v6943
    %6945 = vmatmul.f32.gmra.mxu0 %v5196
    %v6946 = vpop.f32.mrf.mxu0
    %v6947 = vadd.f32 %v6834, %v6946
    %6948 = vmatmul.f32.gmra.mxu0 %v5208
    %v6949 = vpop.f32.mrf.mxu0
    %v6950 = vadd.f32 %v6837, %v6949
    %6951 = vmatmul.f32.gmra.mxu0 %v5220
    %v6952 = vpop.f32.mrf.mxu0
    %v6953 = vadd.f32 %v6840, %v6952
    %6954 = vmatmul.f32.gmra.mxu0 %v5232
    %v6955 = vpop.f32.mrf.mxu0
    %v6956 = vadd.f32 %v6843, %v6955
    %6957 = vmatmul.f32.gmra.mxu0 %v5244
    %v6958 = vpop.f32.mrf.mxu0
    %v6959 = vadd.f32 %v6846, %v6958
    %6960 = vdwg.mxu0
    %6961 = vmatpush.msra.mxu0 %v5772
    %6962 = vmatpush.msra.mxu0 %v5769
    %6963 = vmatpush.msra.mxu0 %v5766
    %6964 = vmatpush.msra.mxu0 %v5763
    %6965 = vmatpush.msra.mxu0 %v5760
    %6966 = vmatpush.msra.mxu0 %v5757
    %6967 = vmatpush.msra.mxu0 %v5754
    %6968 = vmatpush.msra.mxu0 %v5751
    %6969 = vmatpush.msra.mxu0 %v5748
    %6970 = vmatpush.msra.mxu0 %v5745
    %6971 = vmatpush.msra.mxu0 %v5742
    %6972 = vmatpush.msra.mxu0 %v5739
    %6973 = vmatpush.msra.mxu0 %v5736
    %6974 = vmatpush.msra.mxu0 %v5733
    %6975 = vmatpush.msra.mxu0 %v5730
    %6976 = vmatpush.msra.mxu0 %v5727
    %6977 = vmatmul.f32.gmra.mxu0 %v4873
    %v6978 = vpop.f32.mrf.mxu0
    %v6979 = vadd.f32 %v6866, %v6978
    %6980 = vmatmul.f32.gmra.mxu0 %v4885
    %v6981 = vpop.f32.mrf.mxu0
    %v6982 = vadd.f32 %v6869, %v6981
    %6983 = vmatmul.f32.gmra.mxu0 %v4897
    %v6984 = vpop.f32.mrf.mxu0
    %v6985 = vadd.f32 %v6872, %v6984
    %6986 = vmatmul.f32.gmra.mxu0 %v4909
    %v6987 = vpop.f32.mrf.mxu0
    %v6988 = vadd.f32 %v6875, %v6987
    %6989 = vmatmul.f32.gmra.mxu0 %v4921
    %v6990 = vpop.f32.mrf.mxu0
    %v6991 = vadd.f32 %v6878, %v6990
    %6992 = vmatmul.f32.gmra.mxu0 %v4933
    %v6993 = vpop.f32.mrf.mxu0
    %v6994 = vadd.f32 %v6881, %v6993
    %6995 = vmatmul.f32.gmra.mxu0 %v4945
    %v6996 = vpop.f32.mrf.mxu0
    %v6997 = vadd.f32 %v6884, %v6996
    %6998 = vmatmul.f32.gmra.mxu0 %v4957
    %v6999 = vpop.f32.mrf.mxu0
    %v7000 = vadd.f32 %v6887, %v6999
    %7001 = vmatmul.f32.gmra.mxu0 %v4969
    %v7002 = vpop.f32.mrf.mxu0
    %v7003 = vadd.f32 %v6890, %v7002
    %7004 = vmatmul.f32.gmra.mxu0 %v4981
    %v7005 = vpop.f32.mrf.mxu0
    %v7006 = vadd.f32 %v6893, %v7005
    %7007 = vmatmul.f32.gmra.mxu0 %v4993
    %v7008 = vpop.f32.mrf.mxu0
    %v7009 = vadd.f32 %v6896, %v7008
    %7010 = vmatmul.f32.gmra.mxu0 %v5005
    %v7011 = vpop.f32.mrf.mxu0
    %v7012 = vadd.f32 %v6899, %v7011
    %7013 = vmatmul.f32.gmra.mxu0 %v5017
    %v7014 = vpop.f32.mrf.mxu0
    %v7015 = vadd.f32 %v6902, %v7014
    %7016 = vmatmul.f32.gmra.mxu0 %v5029
    %v7017 = vpop.f32.mrf.mxu0
    %v7018 = vadd.f32 %v6905, %v7017
    %7019 = vmatmul.f32.gmra.mxu0 %v5041
    %v7020 = vpop.f32.mrf.mxu0
    %v7021 = vadd.f32 %v6908, %v7020
    %7022 = vmatmul.f32.gmra.mxu0 %v5053
    %v7023 = vpop.f32.mrf.mxu0
    %v7024 = vadd.f32 %v6911, %v7023
    %7025 = vmatmul.f32.gmra.mxu0 %v5065
    %v7026 = vpop.f32.mrf.mxu0
    %v7027 = vadd.f32 %v6914, %v7026
    %7028 = vmatmul.f32.gmra.mxu0 %v5077
    %v7029 = vpop.f32.mrf.mxu0
    %v7030 = vadd.f32 %v6917, %v7029
    %7031 = vmatmul.f32.gmra.mxu0 %v5089
    %v7032 = vpop.f32.mrf.mxu0
    %v7033 = vadd.f32 %v6920, %v7032
    %7034 = vmatmul.f32.gmra.mxu0 %v5101
    %v7035 = vpop.f32.mrf.mxu0
    %v7036 = vadd.f32 %v6923, %v7035
    %7037 = vmatmul.f32.gmra.mxu0 %v5113
    %v7038 = vpop.f32.mrf.mxu0
    %v7039 = vadd.f32 %v6926, %v7038
    %7040 = vmatmul.f32.gmra.mxu0 %v5125
    %v7041 = vpop.f32.mrf.mxu0
    %v7042 = vadd.f32 %v6929, %v7041
    %7043 = vmatmul.f32.gmra.mxu0 %v5137
    %v7044 = vpop.f32.mrf.mxu0
    %v7045 = vadd.f32 %v6932, %v7044
    %7046 = vmatmul.f32.gmra.mxu0 %v5149
    %v7047 = vpop.f32.mrf.mxu0
    %v7048 = vadd.f32 %v6935, %v7047
    %7049 = vmatmul.f32.gmra.mxu0 %v5161
    %v7050 = vpop.f32.mrf.mxu0
    %v7051 = vadd.f32 %v6938, %v7050
    %7052 = vmatmul.f32.gmra.mxu0 %v5173
    %v7053 = vpop.f32.mrf.mxu0
    %v7054 = vadd.f32 %v6941, %v7053
    %7055 = vmatmul.f32.gmra.mxu0 %v5185
    %v7056 = vpop.f32.mrf.mxu0
    %v7057 = vadd.f32 %v6944, %v7056
    %7058 = vmatmul.f32.gmra.mxu0 %v5197
    %v7059 = vpop.f32.mrf.mxu0
    %v7060 = vadd.f32 %v6947, %v7059
    %7061 = vmatmul.f32.gmra.mxu0 %v5209
    %v7062 = vpop.f32.mrf.mxu0
    %v7063 = vadd.f32 %v6950, %v7062
    %7064 = vmatmul.f32.gmra.mxu0 %v5221
    %v7065 = vpop.f32.mrf.mxu0
    %v7066 = vadd.f32 %v6953, %v7065
    %7067 = vmatmul.f32.gmra.mxu0 %v5233
    %v7068 = vpop.f32.mrf.mxu0
    %v7069 = vadd.f32 %v6956, %v7068
    %7070 = vmatmul.f32.gmra.mxu0 %v5245
    %v7071 = vpop.f32.mrf.mxu0
    %v7072 = vadd.f32 %v6959, %v7071
    %7073 = vdwg.mxu0
    %7074 = vmatpush.msra.mxu0 %v5820
    %7075 = vmatpush.msra.mxu0 %v5817
    %7076 = vmatpush.msra.mxu0 %v5814
    %7077 = vmatpush.msra.mxu0 %v5811
    %7078 = vmatpush.msra.mxu0 %v5808
    %7079 = vmatpush.msra.mxu0 %v5805
    %7080 = vmatpush.msra.mxu0 %v5802
    %7081 = vmatpush.msra.mxu0 %v5799
    %7082 = vmatpush.msra.mxu0 %v5796
    %7083 = vmatpush.msra.mxu0 %v5793
    %7084 = vmatpush.msra.mxu0 %v5790
    %7085 = vmatpush.msra.mxu0 %v5787
    %7086 = vmatpush.msra.mxu0 %v5784
    %7087 = vmatpush.msra.mxu0 %v5781
    %7088 = vmatpush.msra.mxu0 %v5778
    %7089 = vmatpush.msra.mxu0 %v5775
    %7090 = vmatmul.f32.gmra.mxu0 %v4874
    %v7091 = vpop.f32.mrf.mxu0
    %v7092 = vadd.f32 %v6979, %v7091
    %7093 = vmatmul.f32.gmra.mxu0 %v4886
    %v7094 = vpop.f32.mrf.mxu0
    %v7095 = vadd.f32 %v6982, %v7094
    %7096 = vmatmul.f32.gmra.mxu0 %v4898
    %v7097 = vpop.f32.mrf.mxu0
    %v7098 = vadd.f32 %v6985, %v7097
    %7099 = vmatmul.f32.gmra.mxu0 %v4910
    %v7100 = vpop.f32.mrf.mxu0
    %v7101 = vadd.f32 %v6988, %v7100
    %7102 = vmatmul.f32.gmra.mxu0 %v4922
    %v7103 = vpop.f32.mrf.mxu0
    %v7104 = vadd.f32 %v6991, %v7103
    %7105 = vmatmul.f32.gmra.mxu0 %v4934
    %v7106 = vpop.f32.mrf.mxu0
    %v7107 = vadd.f32 %v6994, %v7106
    %7108 = vmatmul.f32.gmra.mxu0 %v4946
    %v7109 = vpop.f32.mrf.mxu0
    %v7110 = vadd.f32 %v6997, %v7109
    %7111 = vmatmul.f32.gmra.mxu0 %v4958
    %v7112 = vpop.f32.mrf.mxu0
    %v7113 = vadd.f32 %v7000, %v7112
    %7114 = vmatmul.f32.gmra.mxu0 %v4970
    %v7115 = vpop.f32.mrf.mxu0
    %v7116 = vadd.f32 %v7003, %v7115
    %7117 = vmatmul.f32.gmra.mxu0 %v4982
    %v7118 = vpop.f32.mrf.mxu0
    %v7119 = vadd.f32 %v7006, %v7118
    %7120 = vmatmul.f32.gmra.mxu0 %v4994
    %v7121 = vpop.f32.mrf.mxu0
    %v7122 = vadd.f32 %v7009, %v7121
    %7123 = vmatmul.f32.gmra.mxu0 %v5006
    %v7124 = vpop.f32.mrf.mxu0
    %v7125 = vadd.f32 %v7012, %v7124
    %7126 = vmatmul.f32.gmra.mxu0 %v5018
    %v7127 = vpop.f32.mrf.mxu0
    %v7128 = vadd.f32 %v7015, %v7127
    %7129 = vmatmul.f32.gmra.mxu0 %v5030
    %v7130 = vpop.f32.mrf.mxu0
    %v7131 = vadd.f32 %v7018, %v7130
    %7132 = vmatmul.f32.gmra.mxu0 %v5042
    %v7133 = vpop.f32.mrf.mxu0
    %v7134 = vadd.f32 %v7021, %v7133
    %7135 = vmatmul.f32.gmra.mxu0 %v5054
    %v7136 = vpop.f32.mrf.mxu0
    %v7137 = vadd.f32 %v7024, %v7136
    %7138 = vmatmul.f32.gmra.mxu0 %v5066
    %v7139 = vpop.f32.mrf.mxu0
    %v7140 = vadd.f32 %v7027, %v7139
    %7141 = vmatmul.f32.gmra.mxu0 %v5078
    %v7142 = vpop.f32.mrf.mxu0
    %v7143 = vadd.f32 %v7030, %v7142
    %7144 = vmatmul.f32.gmra.mxu0 %v5090
    %v7145 = vpop.f32.mrf.mxu0
    %v7146 = vadd.f32 %v7033, %v7145
    %7147 = vmatmul.f32.gmra.mxu0 %v5102
    %v7148 = vpop.f32.mrf.mxu0
    %v7149 = vadd.f32 %v7036, %v7148
    %7150 = vmatmul.f32.gmra.mxu0 %v5114
    %v7151 = vpop.f32.mrf.mxu0
    %v7152 = vadd.f32 %v7039, %v7151
    %7153 = vmatmul.f32.gmra.mxu0 %v5126
    %v7154 = vpop.f32.mrf.mxu0
    %v7155 = vadd.f32 %v7042, %v7154
    %7156 = vmatmul.f32.gmra.mxu0 %v5138
    %v7157 = vpop.f32.mrf.mxu0
    %v7158 = vadd.f32 %v7045, %v7157
    %7159 = vmatmul.f32.gmra.mxu0 %v5150
    %v7160 = vpop.f32.mrf.mxu0
    %v7161 = vadd.f32 %v7048, %v7160
    %7162 = vmatmul.f32.gmra.mxu0 %v5162
    %v7163 = vpop.f32.mrf.mxu0
    %v7164 = vadd.f32 %v7051, %v7163
    %7165 = vmatmul.f32.gmra.mxu0 %v5174
    %v7166 = vpop.f32.mrf.mxu0
    %v7167 = vadd.f32 %v7054, %v7166
    %7168 = vmatmul.f32.gmra.mxu0 %v5186
    %v7169 = vpop.f32.mrf.mxu0
    %v7170 = vadd.f32 %v7057, %v7169
    %7171 = vmatmul.f32.gmra.mxu0 %v5198
    %v7172 = vpop.f32.mrf.mxu0
    %v7173 = vadd.f32 %v7060, %v7172
    %7174 = vmatmul.f32.gmra.mxu0 %v5210
    %v7175 = vpop.f32.mrf.mxu0
    %v7176 = vadd.f32 %v7063, %v7175
    %7177 = vmatmul.f32.gmra.mxu0 %v5222
    %v7178 = vpop.f32.mrf.mxu0
    %v7179 = vadd.f32 %v7066, %v7178
    %7180 = vmatmul.f32.gmra.mxu0 %v5234
    %v7181 = vpop.f32.mrf.mxu0
    %v7182 = vadd.f32 %v7069, %v7181
    %7183 = vmatmul.f32.gmra.mxu0 %v5246
    %v7184 = vpop.f32.mrf.mxu0
    %v7185 = vadd.f32 %v7072, %v7184
    %7186 = vdwg.mxu0
    %7187 = vmatpush.msra.mxu0 %v5293
    %7188 = vmatpush.msra.mxu0 %v5290
    %7189 = vmatpush.msra.mxu0 %v5287
    %7190 = vmatpush.msra.mxu0 %v5284
    %7191 = vmatpush.msra.mxu0 %v5281
    %7192 = vmatpush.msra.mxu0 %v5278
    %7193 = vmatpush.msra.mxu0 %v5275
    %7194 = vmatpush.msra.mxu0 %v5272
    %7195 = vmatpush.msra.mxu0 %v5269
    %7196 = vmatpush.msra.mxu0 %v5266
    %7197 = vmatpush.msra.mxu0 %v5263
    %7198 = vmatpush.msra.mxu0 %v5260
    %7199 = vmatpush.msra.mxu0 %v5257
    %7200 = vmatpush.msra.mxu0 %v5254
    %7201 = vmatpush.msra.mxu0 %v5251
    %7202 = vmatpush.msra.mxu0 %v5248
    %7203 = vmatmul.f32.gmra.mxu0 %v4863
    %v7204 = vpop.f32.mrf.mxu0
    %v7205 = vadd.f32 %v5826, %v7204
    %7206 = vmatmul.f32.gmra.mxu0 %v4875
    %v7207 = vpop.f32.mrf.mxu0
    %v7208 = vadd.f32 %v5826, %v7207
    %7209 = vmatmul.f32.gmra.mxu0 %v4887
    %v7210 = vpop.f32.mrf.mxu0
    %v7211 = vadd.f32 %v5826, %v7210
    %7212 = vmatmul.f32.gmra.mxu0 %v4899
    %v7213 = vpop.f32.mrf.mxu0
    %v7214 = vadd.f32 %v5826, %v7213
    %7215 = vmatmul.f32.gmra.mxu0 %v4911
    %v7216 = vpop.f32.mrf.mxu0
    %v7217 = vadd.f32 %v5826, %v7216
    %7218 = vmatmul.f32.gmra.mxu0 %v4923
    %v7219 = vpop.f32.mrf.mxu0
    %v7220 = vadd.f32 %v5826, %v7219
    %7221 = vmatmul.f32.gmra.mxu0 %v4935
    %v7222 = vpop.f32.mrf.mxu0
    %v7223 = vadd.f32 %v5826, %v7222
    %7224 = vmatmul.f32.gmra.mxu0 %v4947
    %v7225 = vpop.f32.mrf.mxu0
    %v7226 = vadd.f32 %v5826, %v7225
    %7227 = vmatmul.f32.gmra.mxu0 %v4959
    %v7228 = vpop.f32.mrf.mxu0
    %v7229 = vadd.f32 %v5826, %v7228
    %7230 = vmatmul.f32.gmra.mxu0 %v4971
    %v7231 = vpop.f32.mrf.mxu0
    %v7232 = vadd.f32 %v5826, %v7231
    %7233 = vmatmul.f32.gmra.mxu0 %v4983
    %v7234 = vpop.f32.mrf.mxu0
    %v7235 = vadd.f32 %v5826, %v7234
    %7236 = vmatmul.f32.gmra.mxu0 %v4995
    %v7237 = vpop.f32.mrf.mxu0
    %v7238 = vadd.f32 %v5826, %v7237
    %7239 = vmatmul.f32.gmra.mxu0 %v5007
    %v7240 = vpop.f32.mrf.mxu0
    %v7241 = vadd.f32 %v5826, %v7240
    %7242 = vmatmul.f32.gmra.mxu0 %v5019
    %v7243 = vpop.f32.mrf.mxu0
    %v7244 = vadd.f32 %v5826, %v7243
    %7245 = vmatmul.f32.gmra.mxu0 %v5031
    %v7246 = vpop.f32.mrf.mxu0
    %v7247 = vadd.f32 %v5826, %v7246
    %7248 = vmatmul.f32.gmra.mxu0 %v5043
    %v7249 = vpop.f32.mrf.mxu0
    %v7250 = vadd.f32 %v5826, %v7249
    %7251 = vmatmul.f32.gmra.mxu0 %v5055
    %v7252 = vpop.f32.mrf.mxu0
    %v7253 = vadd.f32 %v5826, %v7252
    %7254 = vmatmul.f32.gmra.mxu0 %v5067
    %v7255 = vpop.f32.mrf.mxu0
    %v7256 = vadd.f32 %v5826, %v7255
    %7257 = vmatmul.f32.gmra.mxu0 %v5079
    %v7258 = vpop.f32.mrf.mxu0
    %v7259 = vadd.f32 %v5826, %v7258
    %7260 = vmatmul.f32.gmra.mxu0 %v5091
    %v7261 = vpop.f32.mrf.mxu0
    %v7262 = vadd.f32 %v5826, %v7261
    %7263 = vmatmul.f32.gmra.mxu0 %v5103
    %v7264 = vpop.f32.mrf.mxu0
    %v7265 = vadd.f32 %v5826, %v7264
    %7266 = vmatmul.f32.gmra.mxu0 %v5115
    %v7267 = vpop.f32.mrf.mxu0
    %v7268 = vadd.f32 %v5826, %v7267
    %7269 = vmatmul.f32.gmra.mxu0 %v5127
    %v7270 = vpop.f32.mrf.mxu0
    %v7271 = vadd.f32 %v5826, %v7270
    %7272 = vmatmul.f32.gmra.mxu0 %v5139
    %v7273 = vpop.f32.mrf.mxu0
    %v7274 = vadd.f32 %v5826, %v7273
    %7275 = vmatmul.f32.gmra.mxu0 %v5151
    %v7276 = vpop.f32.mrf.mxu0
    %v7277 = vadd.f32 %v5826, %v7276
    %7278 = vmatmul.f32.gmra.mxu0 %v5163
    %v7279 = vpop.f32.mrf.mxu0
    %v7280 = vadd.f32 %v5826, %v7279
    %7281 = vmatmul.f32.gmra.mxu0 %v5175
    %v7282 = vpop.f32.mrf.mxu0
    %v7283 = vadd.f32 %v5826, %v7282
    %7284 = vmatmul.f32.gmra.mxu0 %v5187
    %v7285 = vpop.f32.mrf.mxu0
    %v7286 = vadd.f32 %v5826, %v7285
    %7287 = vmatmul.f32.gmra.mxu0 %v5199
    %v7288 = vpop.f32.mrf.mxu0
    %v7289 = vadd.f32 %v5826, %v7288
    %7290 = vmatmul.f32.gmra.mxu0 %v5211
    %v7291 = vpop.f32.mrf.mxu0
    %v7292 = vadd.f32 %v5826, %v7291
    %7293 = vmatmul.f32.gmra.mxu0 %v5223
    %v7294 = vpop.f32.mrf.mxu0
    %v7295 = vadd.f32 %v5826, %v7294
    %7296 = vmatmul.f32.gmra.mxu0 %v5235
    %v7297 = vpop.f32.mrf.mxu0
    %v7298 = vadd.f32 %v5826, %v7297
    %7299 = vdwg.mxu0
    %7300 = vmatpush.msra.mxu0 %v5341
    %7301 = vmatpush.msra.mxu0 %v5338
    %7302 = vmatpush.msra.mxu0 %v5335
    %7303 = vmatpush.msra.mxu0 %v5332
    %7304 = vmatpush.msra.mxu0 %v5329
    %7305 = vmatpush.msra.mxu0 %v5326
    %7306 = vmatpush.msra.mxu0 %v5323
    %7307 = vmatpush.msra.mxu0 %v5320
    %7308 = vmatpush.msra.mxu0 %v5317
    %7309 = vmatpush.msra.mxu0 %v5314
    %7310 = vmatpush.msra.mxu0 %v5311
    %7311 = vmatpush.msra.mxu0 %v5308
    %7312 = vmatpush.msra.mxu0 %v5305
    %7313 = vmatpush.msra.mxu0 %v5302
    %7314 = vmatpush.msra.mxu0 %v5299
    %7315 = vmatpush.msra.mxu0 %v5296
    %7316 = vmatmul.f32.gmra.mxu0 %v4864
    %v7317 = vpop.f32.mrf.mxu0
    %v7318 = vadd.f32 %v7205, %v7317
    %7319 = vmatmul.f32.gmra.mxu0 %v4876
    %v7320 = vpop.f32.mrf.mxu0
    %v7321 = vadd.f32 %v7208, %v7320
    %7322 = vmatmul.f32.gmra.mxu0 %v4888
    %v7323 = vpop.f32.mrf.mxu0
    %v7324 = vadd.f32 %v7211, %v7323
    %7325 = vmatmul.f32.gmra.mxu0 %v4900
    %v7326 = vpop.f32.mrf.mxu0
    %v7327 = vadd.f32 %v7214, %v7326
    %7328 = vmatmul.f32.gmra.mxu0 %v4912
    %v7329 = vpop.f32.mrf.mxu0
    %v7330 = vadd.f32 %v7217, %v7329
    %7331 = vmatmul.f32.gmra.mxu0 %v4924
    %v7332 = vpop.f32.mrf.mxu0
    %v7333 = vadd.f32 %v7220, %v7332
    %7334 = vmatmul.f32.gmra.mxu0 %v4936
    %v7335 = vpop.f32.mrf.mxu0
    %v7336 = vadd.f32 %v7223, %v7335
    %7337 = vmatmul.f32.gmra.mxu0 %v4948
    %v7338 = vpop.f32.mrf.mxu0
    %v7339 = vadd.f32 %v7226, %v7338
    %7340 = vmatmul.f32.gmra.mxu0 %v4960
    %v7341 = vpop.f32.mrf.mxu0
    %v7342 = vadd.f32 %v7229, %v7341
    %7343 = vmatmul.f32.gmra.mxu0 %v4972
    %v7344 = vpop.f32.mrf.mxu0
    %v7345 = vadd.f32 %v7232, %v7344
    %7346 = vmatmul.f32.gmra.mxu0 %v4984
    %v7347 = vpop.f32.mrf.mxu0
    %v7348 = vadd.f32 %v7235, %v7347
    %7349 = vmatmul.f32.gmra.mxu0 %v4996
    %v7350 = vpop.f32.mrf.mxu0
    %v7351 = vadd.f32 %v7238, %v7350
    %7352 = vmatmul.f32.gmra.mxu0 %v5008
    %v7353 = vpop.f32.mrf.mxu0
    %v7354 = vadd.f32 %v7241, %v7353
    %7355 = vmatmul.f32.gmra.mxu0 %v5020
    %v7356 = vpop.f32.mrf.mxu0
    %v7357 = vadd.f32 %v7244, %v7356
    %7358 = vmatmul.f32.gmra.mxu0 %v5032
    %v7359 = vpop.f32.mrf.mxu0
    %v7360 = vadd.f32 %v7247, %v7359
    %7361 = vmatmul.f32.gmra.mxu0 %v5044
    %v7362 = vpop.f32.mrf.mxu0
    %v7363 = vadd.f32 %v7250, %v7362
    %7364 = vmatmul.f32.gmra.mxu0 %v5056
    %v7365 = vpop.f32.mrf.mxu0
    %v7366 = vadd.f32 %v7253, %v7365
    %7367 = vmatmul.f32.gmra.mxu0 %v5068
    %v7368 = vpop.f32.mrf.mxu0
    %v7369 = vadd.f32 %v7256, %v7368
    %7370 = vmatmul.f32.gmra.mxu0 %v5080
    %v7371 = vpop.f32.mrf.mxu0
    %v7372 = vadd.f32 %v7259, %v7371
    %7373 = vmatmul.f32.gmra.mxu0 %v5092
    %v7374 = vpop.f32.mrf.mxu0
    %v7375 = vadd.f32 %v7262, %v7374
    %7376 = vmatmul.f32.gmra.mxu0 %v5104
    %v7377 = vpop.f32.mrf.mxu0
    %v7378 = vadd.f32 %v7265, %v7377
    %7379 = vmatmul.f32.gmra.mxu0 %v5116
    %v7380 = vpop.f32.mrf.mxu0
    %v7381 = vadd.f32 %v7268, %v7380
    %7382 = vmatmul.f32.gmra.mxu0 %v5128
    %v7383 = vpop.f32.mrf.mxu0
    %v7384 = vadd.f32 %v7271, %v7383
    %7385 = vmatmul.f32.gmra.mxu0 %v5140
    %v7386 = vpop.f32.mrf.mxu0
    %v7387 = vadd.f32 %v7274, %v7386
    %7388 = vmatmul.f32.gmra.mxu0 %v5152
    %v7389 = vpop.f32.mrf.mxu0
    %v7390 = vadd.f32 %v7277, %v7389
    %7391 = vmatmul.f32.gmra.mxu0 %v5164
    %v7392 = vpop.f32.mrf.mxu0
    %v7393 = vadd.f32 %v7280, %v7392
    %7394 = vmatmul.f32.gmra.mxu0 %v5176
    %v7395 = vpop.f32.mrf.mxu0
    %v7396 = vadd.f32 %v7283, %v7395
    %7397 = vmatmul.f32.gmra.mxu0 %v5188
    %v7398 = vpop.f32.mrf.mxu0
    %v7399 = vadd.f32 %v7286, %v7398
    %7400 = vmatmul.f32.gmra.mxu0 %v5200
    %v7401 = vpop.f32.mrf.mxu0
    %v7402 = vadd.f32 %v7289, %v7401
    %7403 = vmatmul.f32.gmra.mxu0 %v5212
    %v7404 = vpop.f32.mrf.mxu0
    %v7405 = vadd.f32 %v7292, %v7404
    %7406 = vmatmul.f32.gmra.mxu0 %v5224
    %v7407 = vpop.f32.mrf.mxu0
    %v7408 = vadd.f32 %v7295, %v7407
    %7409 = vmatmul.f32.gmra.mxu0 %v5236
    %v7410 = vpop.f32.mrf.mxu0
    %v7411 = vadd.f32 %v7298, %v7410
    %7412 = vdwg.mxu0
    %7413 = vmatpush.msra.mxu0 %v5389
    %7414 = vmatpush.msra.mxu0 %v5386
    %7415 = vmatpush.msra.mxu0 %v5383
    %7416 = vmatpush.msra.mxu0 %v5380
    %7417 = vmatpush.msra.mxu0 %v5377
    %7418 = vmatpush.msra.mxu0 %v5374
    %7419 = vmatpush.msra.mxu0 %v5371
    %7420 = vmatpush.msra.mxu0 %v5368
    %7421 = vmatpush.msra.mxu0 %v5365
    %7422 = vmatpush.msra.mxu0 %v5362
    %7423 = vmatpush.msra.mxu0 %v5359
    %7424 = vmatpush.msra.mxu0 %v5356
    %7425 = vmatpush.msra.mxu0 %v5353
    %7426 = vmatpush.msra.mxu0 %v5350
    %7427 = vmatpush.msra.mxu0 %v5347
    %7428 = vmatpush.msra.mxu0 %v5344
    %7429 = vmatmul.f32.gmra.mxu0 %v4865
    %v7430 = vpop.f32.mrf.mxu0
    %v7431 = vadd.f32 %v7318, %v7430
    %7432 = vmatmul.f32.gmra.mxu0 %v4877
    %v7433 = vpop.f32.mrf.mxu0
    %v7434 = vadd.f32 %v7321, %v7433
    %7435 = vmatmul.f32.gmra.mxu0 %v4889
    %v7436 = vpop.f32.mrf.mxu0
    %v7437 = vadd.f32 %v7324, %v7436
    %7438 = vmatmul.f32.gmra.mxu0 %v4901
    %v7439 = vpop.f32.mrf.mxu0
    %v7440 = vadd.f32 %v7327, %v7439
    %7441 = vmatmul.f32.gmra.mxu0 %v4913
    %v7442 = vpop.f32.mrf.mxu0
    %v7443 = vadd.f32 %v7330, %v7442
    %7444 = vmatmul.f32.gmra.mxu0 %v4925
    %v7445 = vpop.f32.mrf.mxu0
    %v7446 = vadd.f32 %v7333, %v7445
    %7447 = vmatmul.f32.gmra.mxu0 %v4937
    %v7448 = vpop.f32.mrf.mxu0
    %v7449 = vadd.f32 %v7336, %v7448
    %7450 = vmatmul.f32.gmra.mxu0 %v4949
    %v7451 = vpop.f32.mrf.mxu0
    %v7452 = vadd.f32 %v7339, %v7451
    %7453 = vmatmul.f32.gmra.mxu0 %v4961
    %v7454 = vpop.f32.mrf.mxu0
    %v7455 = vadd.f32 %v7342, %v7454
    %7456 = vmatmul.f32.gmra.mxu0 %v4973
    %v7457 = vpop.f32.mrf.mxu0
    %v7458 = vadd.f32 %v7345, %v7457
    %7459 = vmatmul.f32.gmra.mxu0 %v4985
    %v7460 = vpop.f32.mrf.mxu0
    %v7461 = vadd.f32 %v7348, %v7460
    %7462 = vmatmul.f32.gmra.mxu0 %v4997
    %v7463 = vpop.f32.mrf.mxu0
    %v7464 = vadd.f32 %v7351, %v7463
    %7465 = vmatmul.f32.gmra.mxu0 %v5009
    %v7466 = vpop.f32.mrf.mxu0
    %v7467 = vadd.f32 %v7354, %v7466
    %7468 = vmatmul.f32.gmra.mxu0 %v5021
    %v7469 = vpop.f32.mrf.mxu0
    %v7470 = vadd.f32 %v7357, %v7469
    %7471 = vmatmul.f32.gmra.mxu0 %v5033
    %v7472 = vpop.f32.mrf.mxu0
    %v7473 = vadd.f32 %v7360, %v7472
    %7474 = vmatmul.f32.gmra.mxu0 %v5045
    %v7475 = vpop.f32.mrf.mxu0
    %v7476 = vadd.f32 %v7363, %v7475
    %7477 = vmatmul.f32.gmra.mxu0 %v5057
    %v7478 = vpop.f32.mrf.mxu0
    %v7479 = vadd.f32 %v7366, %v7478
    %7480 = vmatmul.f32.gmra.mxu0 %v5069
    %v7481 = vpop.f32.mrf.mxu0
    %v7482 = vadd.f32 %v7369, %v7481
    %7483 = vmatmul.f32.gmra.mxu0 %v5081
    %v7484 = vpop.f32.mrf.mxu0
    %v7485 = vadd.f32 %v7372, %v7484
    %7486 = vmatmul.f32.gmra.mxu0 %v5093
    %v7487 = vpop.f32.mrf.mxu0
    %v7488 = vadd.f32 %v7375, %v7487
    %7489 = vmatmul.f32.gmra.mxu0 %v5105
    %v7490 = vpop.f32.mrf.mxu0
    %v7491 = vadd.f32 %v7378, %v7490
    %7492 = vmatmul.f32.gmra.mxu0 %v5117
    %v7493 = vpop.f32.mrf.mxu0
    %v7494 = vadd.f32 %v7381, %v7493
    %7495 = vmatmul.f32.gmra.mxu0 %v5129
    %v7496 = vpop.f32.mrf.mxu0
    %v7497 = vadd.f32 %v7384, %v7496
    %7498 = vmatmul.f32.gmra.mxu0 %v5141
    %v7499 = vpop.f32.mrf.mxu0
    %v7500 = vadd.f32 %v7387, %v7499
    %7501 = vmatmul.f32.gmra.mxu0 %v5153
    %v7502 = vpop.f32.mrf.mxu0
    %v7503 = vadd.f32 %v7390, %v7502
    %7504 = vmatmul.f32.gmra.mxu0 %v5165
    %v7505 = vpop.f32.mrf.mxu0
    %v7506 = vadd.f32 %v7393, %v7505
    %7507 = vmatmul.f32.gmra.mxu0 %v5177
    %v7508 = vpop.f32.mrf.mxu0
    %v7509 = vadd.f32 %v7396, %v7508
    %7510 = vmatmul.f32.gmra.mxu0 %v5189
    %v7511 = vpop.f32.mrf.mxu0
    %v7512 = vadd.f32 %v7399, %v7511
    %7513 = vmatmul.f32.gmra.mxu0 %v5201
    %v7514 = vpop.f32.mrf.mxu0
    %v7515 = vadd.f32 %v7402, %v7514
    %7516 = vmatmul.f32.gmra.mxu0 %v5213
    %v7517 = vpop.f32.mrf.mxu0
    %v7518 = vadd.f32 %v7405, %v7517
    %7519 = vmatmul.f32.gmra.mxu0 %v5225
    %v7520 = vpop.f32.mrf.mxu0
    %v7521 = vadd.f32 %v7408, %v7520
    %7522 = vmatmul.f32.gmra.mxu0 %v5237
    %v7523 = vpop.f32.mrf.mxu0
    %v7524 = vadd.f32 %v7411, %v7523
    %7525 = vdwg.mxu0
    %7526 = vmatpush.msra.mxu0 %v5437
    %7527 = vmatpush.msra.mxu0 %v5434
    %7528 = vmatpush.msra.mxu0 %v5431
    %7529 = vmatpush.msra.mxu0 %v5428
    %7530 = vmatpush.msra.mxu0 %v5425
    %7531 = vmatpush.msra.mxu0 %v5422
    %7532 = vmatpush.msra.mxu0 %v5419
    %7533 = vmatpush.msra.mxu0 %v5416
    %7534 = vmatpush.msra.mxu0 %v5413
    %7535 = vmatpush.msra.mxu0 %v5410
    %7536 = vmatpush.msra.mxu0 %v5407
    %7537 = vmatpush.msra.mxu0 %v5404
    %7538 = vmatpush.msra.mxu0 %v5401
    %7539 = vmatpush.msra.mxu0 %v5398
    %7540 = vmatpush.msra.mxu0 %v5395
    %7541 = vmatpush.msra.mxu0 %v5392
    %7542 = vmatmul.f32.gmra.mxu0 %v4866
    %v7543 = vpop.f32.mrf.mxu0
    %v7544 = vadd.f32 %v7431, %v7543
    %7545 = vmatmul.f32.gmra.mxu0 %v4878
    %v7546 = vpop.f32.mrf.mxu0
    %v7547 = vadd.f32 %v7434, %v7546
    %7548 = vmatmul.f32.gmra.mxu0 %v4890
    %v7549 = vpop.f32.mrf.mxu0
    %v7550 = vadd.f32 %v7437, %v7549
    %7551 = vmatmul.f32.gmra.mxu0 %v4902
    %v7552 = vpop.f32.mrf.mxu0
    %v7553 = vadd.f32 %v7440, %v7552
    %7554 = vmatmul.f32.gmra.mxu0 %v4914
    %v7555 = vpop.f32.mrf.mxu0
    %v7556 = vadd.f32 %v7443, %v7555
    %7557 = vmatmul.f32.gmra.mxu0 %v4926
    %v7558 = vpop.f32.mrf.mxu0
    %v7559 = vadd.f32 %v7446, %v7558
    %7560 = vmatmul.f32.gmra.mxu0 %v4938
    %v7561 = vpop.f32.mrf.mxu0
    %v7562 = vadd.f32 %v7449, %v7561
    %7563 = vmatmul.f32.gmra.mxu0 %v4950
    %v7564 = vpop.f32.mrf.mxu0
    %v7565 = vadd.f32 %v7452, %v7564
    %7566 = vmatmul.f32.gmra.mxu0 %v4962
    %v7567 = vpop.f32.mrf.mxu0
    %v7568 = vadd.f32 %v7455, %v7567
    %7569 = vmatmul.f32.gmra.mxu0 %v4974
    %v7570 = vpop.f32.mrf.mxu0
    %v7571 = vadd.f32 %v7458, %v7570
    %7572 = vmatmul.f32.gmra.mxu0 %v4986
    %v7573 = vpop.f32.mrf.mxu0
    %v7574 = vadd.f32 %v7461, %v7573
    %7575 = vmatmul.f32.gmra.mxu0 %v4998
    %v7576 = vpop.f32.mrf.mxu0
    %v7577 = vadd.f32 %v7464, %v7576
    %7578 = vmatmul.f32.gmra.mxu0 %v5010
    %v7579 = vpop.f32.mrf.mxu0
    %v7580 = vadd.f32 %v7467, %v7579
    %7581 = vmatmul.f32.gmra.mxu0 %v5022
    %v7582 = vpop.f32.mrf.mxu0
    %v7583 = vadd.f32 %v7470, %v7582
    %7584 = vmatmul.f32.gmra.mxu0 %v5034
    %v7585 = vpop.f32.mrf.mxu0
    %v7586 = vadd.f32 %v7473, %v7585
    %7587 = vmatmul.f32.gmra.mxu0 %v5046
    %v7588 = vpop.f32.mrf.mxu0
    %v7589 = vadd.f32 %v7476, %v7588
    %7590 = vmatmul.f32.gmra.mxu0 %v5058
    %v7591 = vpop.f32.mrf.mxu0
    %v7592 = vadd.f32 %v7479, %v7591
    %7593 = vmatmul.f32.gmra.mxu0 %v5070
    %v7594 = vpop.f32.mrf.mxu0
    %v7595 = vadd.f32 %v7482, %v7594
    %7596 = vmatmul.f32.gmra.mxu0 %v5082
    %v7597 = vpop.f32.mrf.mxu0
    %v7598 = vadd.f32 %v7485, %v7597
    %7599 = vmatmul.f32.gmra.mxu0 %v5094
    %v7600 = vpop.f32.mrf.mxu0
    %v7601 = vadd.f32 %v7488, %v7600
    %7602 = vmatmul.f32.gmra.mxu0 %v5106
    %v7603 = vpop.f32.mrf.mxu0
    %v7604 = vadd.f32 %v7491, %v7603
    %7605 = vmatmul.f32.gmra.mxu0 %v5118
    %v7606 = vpop.f32.mrf.mxu0
    %v7607 = vadd.f32 %v7494, %v7606
    %7608 = vmatmul.f32.gmra.mxu0 %v5130
    %v7609 = vpop.f32.mrf.mxu0
    %v7610 = vadd.f32 %v7497, %v7609
    %7611 = vmatmul.f32.gmra.mxu0 %v5142
    %v7612 = vpop.f32.mrf.mxu0
    %v7613 = vadd.f32 %v7500, %v7612
    %7614 = vmatmul.f32.gmra.mxu0 %v5154
    %v7615 = vpop.f32.mrf.mxu0
    %v7616 = vadd.f32 %v7503, %v7615
    %7617 = vmatmul.f32.gmra.mxu0 %v5166
    %v7618 = vpop.f32.mrf.mxu0
    %v7619 = vadd.f32 %v7506, %v7618
    %7620 = vmatmul.f32.gmra.mxu0 %v5178
    %v7621 = vpop.f32.mrf.mxu0
    %v7622 = vadd.f32 %v7509, %v7621
    %7623 = vmatmul.f32.gmra.mxu0 %v5190
    %v7624 = vpop.f32.mrf.mxu0
    %v7625 = vadd.f32 %v7512, %v7624
    %7626 = vmatmul.f32.gmra.mxu0 %v5202
    %v7627 = vpop.f32.mrf.mxu0
    %v7628 = vadd.f32 %v7515, %v7627
    %7629 = vmatmul.f32.gmra.mxu0 %v5214
    %v7630 = vpop.f32.mrf.mxu0
    %v7631 = vadd.f32 %v7518, %v7630
    %7632 = vmatmul.f32.gmra.mxu0 %v5226
    %v7633 = vpop.f32.mrf.mxu0
    %v7634 = vadd.f32 %v7521, %v7633
    %7635 = vmatmul.f32.gmra.mxu0 %v5238
    %v7636 = vpop.f32.mrf.mxu0
    %v7637 = vadd.f32 %v7524, %v7636
    %7638 = vdwg.mxu0
    %7639 = vmatpush.msra.mxu0 %v5485
    %7640 = vmatpush.msra.mxu0 %v5482
    %7641 = vmatpush.msra.mxu0 %v5479
    %7642 = vmatpush.msra.mxu0 %v5476
    %7643 = vmatpush.msra.mxu0 %v5473
    %7644 = vmatpush.msra.mxu0 %v5470
    %7645 = vmatpush.msra.mxu0 %v5467
    %7646 = vmatpush.msra.mxu0 %v5464
    %7647 = vmatpush.msra.mxu0 %v5461
    %7648 = vmatpush.msra.mxu0 %v5458
    %7649 = vmatpush.msra.mxu0 %v5455
    %7650 = vmatpush.msra.mxu0 %v5452
    %7651 = vmatpush.msra.mxu0 %v5449
    %7652 = vmatpush.msra.mxu0 %v5446
    %7653 = vmatpush.msra.mxu0 %v5443
    %7654 = vmatpush.msra.mxu0 %v5440
    %7655 = vmatmul.f32.gmra.mxu0 %v4867
    %v7656 = vpop.f32.mrf.mxu0
    %v7657 = vadd.f32 %v7544, %v7656
    %7658 = vmatmul.f32.gmra.mxu0 %v4879
    %v7659 = vpop.f32.mrf.mxu0
    %v7660 = vadd.f32 %v7547, %v7659
    %7661 = vmatmul.f32.gmra.mxu0 %v4891
    %v7662 = vpop.f32.mrf.mxu0
    %v7663 = vadd.f32 %v7550, %v7662
    %7664 = vmatmul.f32.gmra.mxu0 %v4903
    %v7665 = vpop.f32.mrf.mxu0
    %v7666 = vadd.f32 %v7553, %v7665
    %7667 = vmatmul.f32.gmra.mxu0 %v4915
    %v7668 = vpop.f32.mrf.mxu0
    %v7669 = vadd.f32 %v7556, %v7668
    %7670 = vmatmul.f32.gmra.mxu0 %v4927
    %v7671 = vpop.f32.mrf.mxu0
    %v7672 = vadd.f32 %v7559, %v7671
    %7673 = vmatmul.f32.gmra.mxu0 %v4939
    %v7674 = vpop.f32.mrf.mxu0
    %v7675 = vadd.f32 %v7562, %v7674
    %7676 = vmatmul.f32.gmra.mxu0 %v4951
    %v7677 = vpop.f32.mrf.mxu0
    %v7678 = vadd.f32 %v7565, %v7677
    %7679 = vmatmul.f32.gmra.mxu0 %v4963
    %v7680 = vpop.f32.mrf.mxu0
    %v7681 = vadd.f32 %v7568, %v7680
    %7682 = vmatmul.f32.gmra.mxu0 %v4975
    %v7683 = vpop.f32.mrf.mxu0
    %v7684 = vadd.f32 %v7571, %v7683
    %7685 = vmatmul.f32.gmra.mxu0 %v4987
    %v7686 = vpop.f32.mrf.mxu0
    %v7687 = vadd.f32 %v7574, %v7686
    %7688 = vmatmul.f32.gmra.mxu0 %v4999
    %v7689 = vpop.f32.mrf.mxu0
    %v7690 = vadd.f32 %v7577, %v7689
    %7691 = vmatmul.f32.gmra.mxu0 %v5011
    %v7692 = vpop.f32.mrf.mxu0
    %v7693 = vadd.f32 %v7580, %v7692
    %7694 = vmatmul.f32.gmra.mxu0 %v5023
    %v7695 = vpop.f32.mrf.mxu0
    %v7696 = vadd.f32 %v7583, %v7695
    %7697 = vmatmul.f32.gmra.mxu0 %v5035
    %v7698 = vpop.f32.mrf.mxu0
    %v7699 = vadd.f32 %v7586, %v7698
    %7700 = vmatmul.f32.gmra.mxu0 %v5047
    %v7701 = vpop.f32.mrf.mxu0
    %v7702 = vadd.f32 %v7589, %v7701
    %7703 = vmatmul.f32.gmra.mxu0 %v5059
    %v7704 = vpop.f32.mrf.mxu0
    %v7705 = vadd.f32 %v7592, %v7704
    %7706 = vmatmul.f32.gmra.mxu0 %v5071
    %v7707 = vpop.f32.mrf.mxu0
    %v7708 = vadd.f32 %v7595, %v7707
    %7709 = vmatmul.f32.gmra.mxu0 %v5083
    %v7710 = vpop.f32.mrf.mxu0
    %v7711 = vadd.f32 %v7598, %v7710
    %7712 = vmatmul.f32.gmra.mxu0 %v5095
    %v7713 = vpop.f32.mrf.mxu0
    %v7714 = vadd.f32 %v7601, %v7713
    %7715 = vmatmul.f32.gmra.mxu0 %v5107
    %v7716 = vpop.f32.mrf.mxu0
    %v7717 = vadd.f32 %v7604, %v7716
    %7718 = vmatmul.f32.gmra.mxu0 %v5119
    %v7719 = vpop.f32.mrf.mxu0
    %v7720 = vadd.f32 %v7607, %v7719
    %7721 = vmatmul.f32.gmra.mxu0 %v5131
    %v7722 = vpop.f32.mrf.mxu0
    %v7723 = vadd.f32 %v7610, %v7722
    %7724 = vmatmul.f32.gmra.mxu0 %v5143
    %v7725 = vpop.f32.mrf.mxu0
    %v7726 = vadd.f32 %v7613, %v7725
    %7727 = vmatmul.f32.gmra.mxu0 %v5155
    %v7728 = vpop.f32.mrf.mxu0
    %v7729 = vadd.f32 %v7616, %v7728
    %7730 = vmatmul.f32.gmra.mxu0 %v5167
    %v7731 = vpop.f32.mrf.mxu0
    %v7732 = vadd.f32 %v7619, %v7731
    %7733 = vmatmul.f32.gmra.mxu0 %v5179
    %v7734 = vpop.f32.mrf.mxu0
    %v7735 = vadd.f32 %v7622, %v7734
    %7736 = vmatmul.f32.gmra.mxu0 %v5191
    %v7737 = vpop.f32.mrf.mxu0
    %v7738 = vadd.f32 %v7625, %v7737
    %7739 = vmatmul.f32.gmra.mxu0 %v5203
    %v7740 = vpop.f32.mrf.mxu0
    %v7741 = vadd.f32 %v7628, %v7740
    %7742 = vmatmul.f32.gmra.mxu0 %v5215
    %v7743 = vpop.f32.mrf.mxu0
    %v7744 = vadd.f32 %v7631, %v7743
    %7745 = vmatmul.f32.gmra.mxu0 %v5227
    %v7746 = vpop.f32.mrf.mxu0
    %v7747 = vadd.f32 %v7634, %v7746
    %7748 = vmatmul.f32.gmra.mxu0 %v5239
    %v7749 = vpop.f32.mrf.mxu0
    %v7750 = vadd.f32 %v7637, %v7749
    %7751 = vdwg.mxu0
    %7752 = vmatpush.msra.mxu0 %v5533
    %7753 = vmatpush.msra.mxu0 %v5530
    %7754 = vmatpush.msra.mxu0 %v5527
    %7755 = vmatpush.msra.mxu0 %v5524
    %7756 = vmatpush.msra.mxu0 %v5521
    %7757 = vmatpush.msra.mxu0 %v5518
    %7758 = vmatpush.msra.mxu0 %v5515
    %7759 = vmatpush.msra.mxu0 %v5512
    %7760 = vmatpush.msra.mxu0 %v5509
    %7761 = vmatpush.msra.mxu0 %v5506
    %7762 = vmatpush.msra.mxu0 %v5503
    %7763 = vmatpush.msra.mxu0 %v5500
    %7764 = vmatpush.msra.mxu0 %v5497
    %7765 = vmatpush.msra.mxu0 %v5494
    %7766 = vmatpush.msra.mxu0 %v5491
    %7767 = vmatpush.msra.mxu0 %v5488
    %7768 = vmatmul.f32.gmra.mxu0 %v4868
    %v7769 = vpop.f32.mrf.mxu0
    %v7770 = vadd.f32 %v7657, %v7769
    %7771 = vmatmul.f32.gmra.mxu0 %v4880
    %v7772 = vpop.f32.mrf.mxu0
    %v7773 = vadd.f32 %v7660, %v7772
    %7774 = vmatmul.f32.gmra.mxu0 %v4892
    %v7775 = vpop.f32.mrf.mxu0
    %v7776 = vadd.f32 %v7663, %v7775
    %7777 = vmatmul.f32.gmra.mxu0 %v4904
    %v7778 = vpop.f32.mrf.mxu0
    %v7779 = vadd.f32 %v7666, %v7778
    %7780 = vmatmul.f32.gmra.mxu0 %v4916
    %v7781 = vpop.f32.mrf.mxu0
    %v7782 = vadd.f32 %v7669, %v7781
    %7783 = vmatmul.f32.gmra.mxu0 %v4928
    %v7784 = vpop.f32.mrf.mxu0
    %v7785 = vadd.f32 %v7672, %v7784
    %7786 = vmatmul.f32.gmra.mxu0 %v4940
    %v7787 = vpop.f32.mrf.mxu0
    %v7788 = vadd.f32 %v7675, %v7787
    %7789 = vmatmul.f32.gmra.mxu0 %v4952
    %v7790 = vpop.f32.mrf.mxu0
    %v7791 = vadd.f32 %v7678, %v7790
    %7792 = vmatmul.f32.gmra.mxu0 %v4964
    %v7793 = vpop.f32.mrf.mxu0
    %v7794 = vadd.f32 %v7681, %v7793
    %7795 = vmatmul.f32.gmra.mxu0 %v4976
    %v7796 = vpop.f32.mrf.mxu0
    %v7797 = vadd.f32 %v7684, %v7796
    %7798 = vmatmul.f32.gmra.mxu0 %v4988
    %v7799 = vpop.f32.mrf.mxu0
    %v7800 = vadd.f32 %v7687, %v7799
    %7801 = vmatmul.f32.gmra.mxu0 %v5000
    %v7802 = vpop.f32.mrf.mxu0
    %v7803 = vadd.f32 %v7690, %v7802
    %7804 = vmatmul.f32.gmra.mxu0 %v5012
    %v7805 = vpop.f32.mrf.mxu0
    %v7806 = vadd.f32 %v7693, %v7805
    %7807 = vmatmul.f32.gmra.mxu0 %v5024
    %v7808 = vpop.f32.mrf.mxu0
    %v7809 = vadd.f32 %v7696, %v7808
    %7810 = vmatmul.f32.gmra.mxu0 %v5036
    %v7811 = vpop.f32.mrf.mxu0
    %v7812 = vadd.f32 %v7699, %v7811
    %7813 = vmatmul.f32.gmra.mxu0 %v5048
    %v7814 = vpop.f32.mrf.mxu0
    %v7815 = vadd.f32 %v7702, %v7814
    %7816 = vmatmul.f32.gmra.mxu0 %v5060
    %v7817 = vpop.f32.mrf.mxu0
    %v7818 = vadd.f32 %v7705, %v7817
    %7819 = vmatmul.f32.gmra.mxu0 %v5072
    %v7820 = vpop.f32.mrf.mxu0
    %v7821 = vadd.f32 %v7708, %v7820
    %7822 = vmatmul.f32.gmra.mxu0 %v5084
    %v7823 = vpop.f32.mrf.mxu0
    %v7824 = vadd.f32 %v7711, %v7823
    %7825 = vmatmul.f32.gmra.mxu0 %v5096
    %v7826 = vpop.f32.mrf.mxu0
    %v7827 = vadd.f32 %v7714, %v7826
    %7828 = vmatmul.f32.gmra.mxu0 %v5108
    %v7829 = vpop.f32.mrf.mxu0
    %v7830 = vadd.f32 %v7717, %v7829
    %7831 = vmatmul.f32.gmra.mxu0 %v5120
    %v7832 = vpop.f32.mrf.mxu0
    %v7833 = vadd.f32 %v7720, %v7832
    %7834 = vmatmul.f32.gmra.mxu0 %v5132
    %v7835 = vpop.f32.mrf.mxu0
    %v7836 = vadd.f32 %v7723, %v7835
    %7837 = vmatmul.f32.gmra.mxu0 %v5144
    %v7838 = vpop.f32.mrf.mxu0
    %v7839 = vadd.f32 %v7726, %v7838
    %7840 = vmatmul.f32.gmra.mxu0 %v5156
    %v7841 = vpop.f32.mrf.mxu0
    %v7842 = vadd.f32 %v7729, %v7841
    %7843 = vmatmul.f32.gmra.mxu0 %v5168
    %v7844 = vpop.f32.mrf.mxu0
    %v7845 = vadd.f32 %v7732, %v7844
    %7846 = vmatmul.f32.gmra.mxu0 %v5180
    %v7847 = vpop.f32.mrf.mxu0
    %v7848 = vadd.f32 %v7735, %v7847
    %7849 = vmatmul.f32.gmra.mxu0 %v5192
    %v7850 = vpop.f32.mrf.mxu0
    %v7851 = vadd.f32 %v7738, %v7850
    %7852 = vmatmul.f32.gmra.mxu0 %v5204
    %v7853 = vpop.f32.mrf.mxu0
    %v7854 = vadd.f32 %v7741, %v7853
    %7855 = vmatmul.f32.gmra.mxu0 %v5216
    %v7856 = vpop.f32.mrf.mxu0
    %v7857 = vadd.f32 %v7744, %v7856
    %7858 = vmatmul.f32.gmra.mxu0 %v5228
    %v7859 = vpop.f32.mrf.mxu0
    %v7860 = vadd.f32 %v7747, %v7859
    %7861 = vmatmul.f32.gmra.mxu0 %v5240
    %v7862 = vpop.f32.mrf.mxu0
    %v7863 = vadd.f32 %v7750, %v7862
    %7864 = vdwg.mxu0
    %7865 = vmatpush.msra.mxu0 %v5581
    %7866 = vmatpush.msra.mxu0 %v5578
    %7867 = vmatpush.msra.mxu0 %v5575
    %7868 = vmatpush.msra.mxu0 %v5572
    %7869 = vmatpush.msra.mxu0 %v5569
    %7870 = vmatpush.msra.mxu0 %v5566
    %7871 = vmatpush.msra.mxu0 %v5563
    %7872 = vmatpush.msra.mxu0 %v5560
    %7873 = vmatpush.msra.mxu0 %v5557
    %7874 = vmatpush.msra.mxu0 %v5554
    %7875 = vmatpush.msra.mxu0 %v5551
    %7876 = vmatpush.msra.mxu0 %v5548
    %7877 = vmatpush.msra.mxu0 %v5545
    %7878 = vmatpush.msra.mxu0 %v5542
    %7879 = vmatpush.msra.mxu0 %v5539
    %7880 = vmatpush.msra.mxu0 %v5536
    %7881 = vmatmul.f32.gmra.mxu0 %v4869
    %v7882 = vpop.f32.mrf.mxu0
    %v7883 = vadd.f32 %v7770, %v7882
    %7884 = vmatmul.f32.gmra.mxu0 %v4881
    %v7885 = vpop.f32.mrf.mxu0
    %v7886 = vadd.f32 %v7773, %v7885
    %7887 = vmatmul.f32.gmra.mxu0 %v4893
    %v7888 = vpop.f32.mrf.mxu0
    %v7889 = vadd.f32 %v7776, %v7888
    %7890 = vmatmul.f32.gmra.mxu0 %v4905
    %v7891 = vpop.f32.mrf.mxu0
    %v7892 = vadd.f32 %v7779, %v7891
    %7893 = vmatmul.f32.gmra.mxu0 %v4917
    %v7894 = vpop.f32.mrf.mxu0
    %v7895 = vadd.f32 %v7782, %v7894
    %7896 = vmatmul.f32.gmra.mxu0 %v4929
    %v7897 = vpop.f32.mrf.mxu0
    %v7898 = vadd.f32 %v7785, %v7897
    %7899 = vmatmul.f32.gmra.mxu0 %v4941
    %v7900 = vpop.f32.mrf.mxu0
    %v7901 = vadd.f32 %v7788, %v7900
    %7902 = vmatmul.f32.gmra.mxu0 %v4953
    %v7903 = vpop.f32.mrf.mxu0
    %v7904 = vadd.f32 %v7791, %v7903
    %7905 = vmatmul.f32.gmra.mxu0 %v4965
    %v7906 = vpop.f32.mrf.mxu0
    %v7907 = vadd.f32 %v7794, %v7906
    %7908 = vmatmul.f32.gmra.mxu0 %v4977
    %v7909 = vpop.f32.mrf.mxu0
    %v7910 = vadd.f32 %v7797, %v7909
    %7911 = vmatmul.f32.gmra.mxu0 %v4989
    %v7912 = vpop.f32.mrf.mxu0
    %v7913 = vadd.f32 %v7800, %v7912
    %7914 = vmatmul.f32.gmra.mxu0 %v5001
    %v7915 = vpop.f32.mrf.mxu0
    %v7916 = vadd.f32 %v7803, %v7915
    %7917 = vmatmul.f32.gmra.mxu0 %v5013
    %v7918 = vpop.f32.mrf.mxu0
    %v7919 = vadd.f32 %v7806, %v7918
    %7920 = vmatmul.f32.gmra.mxu0 %v5025
    %v7921 = vpop.f32.mrf.mxu0
    %v7922 = vadd.f32 %v7809, %v7921
    %7923 = vmatmul.f32.gmra.mxu0 %v5037
    %v7924 = vpop.f32.mrf.mxu0
    %v7925 = vadd.f32 %v7812, %v7924
    %7926 = vmatmul.f32.gmra.mxu0 %v5049
    %v7927 = vpop.f32.mrf.mxu0
    %v7928 = vadd.f32 %v7815, %v7927
    %7929 = vmatmul.f32.gmra.mxu0 %v5061
    %v7930 = vpop.f32.mrf.mxu0
    %v7931 = vadd.f32 %v7818, %v7930
    %7932 = vmatmul.f32.gmra.mxu0 %v5073
    %v7933 = vpop.f32.mrf.mxu0
    %v7934 = vadd.f32 %v7821, %v7933
    %7935 = vmatmul.f32.gmra.mxu0 %v5085
    %v7936 = vpop.f32.mrf.mxu0
    %v7937 = vadd.f32 %v7824, %v7936
    %7938 = vmatmul.f32.gmra.mxu0 %v5097
    %v7939 = vpop.f32.mrf.mxu0
    %v7940 = vadd.f32 %v7827, %v7939
    %7941 = vmatmul.f32.gmra.mxu0 %v5109
    %v7942 = vpop.f32.mrf.mxu0
    %v7943 = vadd.f32 %v7830, %v7942
    %7944 = vmatmul.f32.gmra.mxu0 %v5121
    %v7945 = vpop.f32.mrf.mxu0
    %v7946 = vadd.f32 %v7833, %v7945
    %7947 = vmatmul.f32.gmra.mxu0 %v5133
    %v7948 = vpop.f32.mrf.mxu0
    %v7949 = vadd.f32 %v7836, %v7948
    %7950 = vmatmul.f32.gmra.mxu0 %v5145
    %v7951 = vpop.f32.mrf.mxu0
    %v7952 = vadd.f32 %v7839, %v7951
    %7953 = vmatmul.f32.gmra.mxu0 %v5157
    %v7954 = vpop.f32.mrf.mxu0
    %v7955 = vadd.f32 %v7842, %v7954
    %7956 = vmatmul.f32.gmra.mxu0 %v5169
    %v7957 = vpop.f32.mrf.mxu0
    %v7958 = vadd.f32 %v7845, %v7957
    %7959 = vmatmul.f32.gmra.mxu0 %v5181
    %v7960 = vpop.f32.mrf.mxu0
    %v7961 = vadd.f32 %v7848, %v7960
    %7962 = vmatmul.f32.gmra.mxu0 %v5193
    %v7963 = vpop.f32.mrf.mxu0
    %v7964 = vadd.f32 %v7851, %v7963
    %7965 = vmatmul.f32.gmra.mxu0 %v5205
    %v7966 = vpop.f32.mrf.mxu0
    %v7967 = vadd.f32 %v7854, %v7966
    %7968 = vmatmul.f32.gmra.mxu0 %v5217
    %v7969 = vpop.f32.mrf.mxu0
    %v7970 = vadd.f32 %v7857, %v7969
    %7971 = vmatmul.f32.gmra.mxu0 %v5229
    %v7972 = vpop.f32.mrf.mxu0
    %v7973 = vadd.f32 %v7860, %v7972
    %7974 = vmatmul.f32.gmra.mxu0 %v5241
    %v7975 = vpop.f32.mrf.mxu0
    %v7976 = vadd.f32 %v7863, %v7975
    %7977 = vdwg.mxu0
    %7978 = vmatpush.msra.mxu0 %v5629
    %7979 = vmatpush.msra.mxu0 %v5626
    %7980 = vmatpush.msra.mxu0 %v5623
    %7981 = vmatpush.msra.mxu0 %v5620
    %7982 = vmatpush.msra.mxu0 %v5617
    %7983 = vmatpush.msra.mxu0 %v5614
    %7984 = vmatpush.msra.mxu0 %v5611
    %7985 = vmatpush.msra.mxu0 %v5608
    %7986 = vmatpush.msra.mxu0 %v5605
    %7987 = vmatpush.msra.mxu0 %v5602
    %7988 = vmatpush.msra.mxu0 %v5599
    %7989 = vmatpush.msra.mxu0 %v5596
    %7990 = vmatpush.msra.mxu0 %v5593
    %7991 = vmatpush.msra.mxu0 %v5590
    %7992 = vmatpush.msra.mxu0 %v5587
    %7993 = vmatpush.msra.mxu0 %v5584
    %7994 = vmatmul.f32.gmra.mxu0 %v4870
    %v7995 = vpop.f32.mrf.mxu0
    %v7996 = vadd.f32 %v7883, %v7995
    %7997 = vmatmul.f32.gmra.mxu0 %v4882
    %v7998 = vpop.f32.mrf.mxu0
    %v7999 = vadd.f32 %v7886, %v7998
    %8000 = vmatmul.f32.gmra.mxu0 %v4894
    %v8001 = vpop.f32.mrf.mxu0
    %v8002 = vadd.f32 %v7889, %v8001
    %8003 = vmatmul.f32.gmra.mxu0 %v4906
    %v8004 = vpop.f32.mrf.mxu0
    %v8005 = vadd.f32 %v7892, %v8004
    %8006 = vmatmul.f32.gmra.mxu0 %v4918
    %v8007 = vpop.f32.mrf.mxu0
    %v8008 = vadd.f32 %v7895, %v8007
    %8009 = vmatmul.f32.gmra.mxu0 %v4930
    %v8010 = vpop.f32.mrf.mxu0
    %v8011 = vadd.f32 %v7898, %v8010
    %8012 = vmatmul.f32.gmra.mxu0 %v4942
    %v8013 = vpop.f32.mrf.mxu0
    %v8014 = vadd.f32 %v7901, %v8013
    %8015 = vmatmul.f32.gmra.mxu0 %v4954
    %v8016 = vpop.f32.mrf.mxu0
    %v8017 = vadd.f32 %v7904, %v8016
    %8018 = vmatmul.f32.gmra.mxu0 %v4966
    %v8019 = vpop.f32.mrf.mxu0
    %v8020 = vadd.f32 %v7907, %v8019
    %8021 = vmatmul.f32.gmra.mxu0 %v4978
    %v8022 = vpop.f32.mrf.mxu0
    %v8023 = vadd.f32 %v7910, %v8022
    %8024 = vmatmul.f32.gmra.mxu0 %v4990
    %v8025 = vpop.f32.mrf.mxu0
    %v8026 = vadd.f32 %v7913, %v8025
    %8027 = vmatmul.f32.gmra.mxu0 %v5002
    %v8028 = vpop.f32.mrf.mxu0
    %v8029 = vadd.f32 %v7916, %v8028
    %8030 = vmatmul.f32.gmra.mxu0 %v5014
    %v8031 = vpop.f32.mrf.mxu0
    %v8032 = vadd.f32 %v7919, %v8031
    %8033 = vmatmul.f32.gmra.mxu0 %v5026
    %v8034 = vpop.f32.mrf.mxu0
    %v8035 = vadd.f32 %v7922, %v8034
    %8036 = vmatmul.f32.gmra.mxu0 %v5038
    %v8037 = vpop.f32.mrf.mxu0
    %v8038 = vadd.f32 %v7925, %v8037
    %8039 = vmatmul.f32.gmra.mxu0 %v5050
    %v8040 = vpop.f32.mrf.mxu0
    %v8041 = vadd.f32 %v7928, %v8040
    %8042 = vmatmul.f32.gmra.mxu0 %v5062
    %v8043 = vpop.f32.mrf.mxu0
    %v8044 = vadd.f32 %v7931, %v8043
    %8045 = vmatmul.f32.gmra.mxu0 %v5074
    %v8046 = vpop.f32.mrf.mxu0
    %v8047 = vadd.f32 %v7934, %v8046
    %8048 = vmatmul.f32.gmra.mxu0 %v5086
    %v8049 = vpop.f32.mrf.mxu0
    %v8050 = vadd.f32 %v7937, %v8049
    %8051 = vmatmul.f32.gmra.mxu0 %v5098
    %v8052 = vpop.f32.mrf.mxu0
    %v8053 = vadd.f32 %v7940, %v8052
    %8054 = vmatmul.f32.gmra.mxu0 %v5110
    %v8055 = vpop.f32.mrf.mxu0
    %v8056 = vadd.f32 %v7943, %v8055
    %8057 = vmatmul.f32.gmra.mxu0 %v5122
    %v8058 = vpop.f32.mrf.mxu0
    %v8059 = vadd.f32 %v7946, %v8058
    %8060 = vmatmul.f32.gmra.mxu0 %v5134
    %v8061 = vpop.f32.mrf.mxu0
    %v8062 = vadd.f32 %v7949, %v8061
    %8063 = vmatmul.f32.gmra.mxu0 %v5146
    %v8064 = vpop.f32.mrf.mxu0
    %v8065 = vadd.f32 %v7952, %v8064
    %8066 = vmatmul.f32.gmra.mxu0 %v5158
    %v8067 = vpop.f32.mrf.mxu0
    %v8068 = vadd.f32 %v7955, %v8067
    %8069 = vmatmul.f32.gmra.mxu0 %v5170
    %v8070 = vpop.f32.mrf.mxu0
    %v8071 = vadd.f32 %v7958, %v8070
    %8072 = vmatmul.f32.gmra.mxu0 %v5182
    %v8073 = vpop.f32.mrf.mxu0
    %v8074 = vadd.f32 %v7961, %v8073
    %8075 = vmatmul.f32.gmra.mxu0 %v5194
    %v8076 = vpop.f32.mrf.mxu0
    %v8077 = vadd.f32 %v7964, %v8076
    %8078 = vmatmul.f32.gmra.mxu0 %v5206
    %v8079 = vpop.f32.mrf.mxu0
    %v8080 = vadd.f32 %v7967, %v8079
    %8081 = vmatmul.f32.gmra.mxu0 %v5218
    %v8082 = vpop.f32.mrf.mxu0
    %v8083 = vadd.f32 %v7970, %v8082
    %8084 = vmatmul.f32.gmra.mxu0 %v5230
    %v8085 = vpop.f32.mrf.mxu0
    %v8086 = vadd.f32 %v7973, %v8085
    %8087 = vmatmul.f32.gmra.mxu0 %v5242
    %v8088 = vpop.f32.mrf.mxu0
    %v8089 = vadd.f32 %v7976, %v8088
    %8090 = vdwg.mxu0
    %8091 = vmatpush.msra.mxu0 %v5677
    %8092 = vmatpush.msra.mxu0 %v5674
    %8093 = vmatpush.msra.mxu0 %v5671
    %8094 = vmatpush.msra.mxu0 %v5668
    %8095 = vmatpush.msra.mxu0 %v5665
    %8096 = vmatpush.msra.mxu0 %v5662
    %8097 = vmatpush.msra.mxu0 %v5659
    %8098 = vmatpush.msra.mxu0 %v5656
    %8099 = vmatpush.msra.mxu0 %v5653
    %8100 = vmatpush.msra.mxu0 %v5650
    %8101 = vmatpush.msra.mxu0 %v5647
    %8102 = vmatpush.msra.mxu0 %v5644
    %8103 = vmatpush.msra.mxu0 %v5641
    %8104 = vmatpush.msra.mxu0 %v5638
    %8105 = vmatpush.msra.mxu0 %v5635
    %8106 = vmatpush.msra.mxu0 %v5632
    %8107 = vmatmul.f32.gmra.mxu0 %v4871
    %v8108 = vpop.f32.mrf.mxu0
    %v8109 = vadd.f32 %v7996, %v8108
    %8110 = vmatmul.f32.gmra.mxu0 %v4883
    %v8111 = vpop.f32.mrf.mxu0
    %v8112 = vadd.f32 %v7999, %v8111
    %8113 = vmatmul.f32.gmra.mxu0 %v4895
    %v8114 = vpop.f32.mrf.mxu0
    %v8115 = vadd.f32 %v8002, %v8114
    %8116 = vmatmul.f32.gmra.mxu0 %v4907
    %v8117 = vpop.f32.mrf.mxu0
    %v8118 = vadd.f32 %v8005, %v8117
    %8119 = vmatmul.f32.gmra.mxu0 %v4919
    %v8120 = vpop.f32.mrf.mxu0
    %v8121 = vadd.f32 %v8008, %v8120
    %8122 = vmatmul.f32.gmra.mxu0 %v4931
    %v8123 = vpop.f32.mrf.mxu0
    %v8124 = vadd.f32 %v8011, %v8123
    %8125 = vmatmul.f32.gmra.mxu0 %v4943
    %v8126 = vpop.f32.mrf.mxu0
    %v8127 = vadd.f32 %v8014, %v8126
    %8128 = vmatmul.f32.gmra.mxu0 %v4955
    %v8129 = vpop.f32.mrf.mxu0
    %v8130 = vadd.f32 %v8017, %v8129
    %8131 = vmatmul.f32.gmra.mxu0 %v4967
    %v8132 = vpop.f32.mrf.mxu0
    %v8133 = vadd.f32 %v8020, %v8132
    %8134 = vmatmul.f32.gmra.mxu0 %v4979
    %v8135 = vpop.f32.mrf.mxu0
    %v8136 = vadd.f32 %v8023, %v8135
    %8137 = vmatmul.f32.gmra.mxu0 %v4991
    %v8138 = vpop.f32.mrf.mxu0
    %v8139 = vadd.f32 %v8026, %v8138
    %8140 = vmatmul.f32.gmra.mxu0 %v5003
    %v8141 = vpop.f32.mrf.mxu0
    %v8142 = vadd.f32 %v8029, %v8141
    %8143 = vmatmul.f32.gmra.mxu0 %v5015
    %v8144 = vpop.f32.mrf.mxu0
    %v8145 = vadd.f32 %v8032, %v8144
    %8146 = vmatmul.f32.gmra.mxu0 %v5027
    %v8147 = vpop.f32.mrf.mxu0
    %v8148 = vadd.f32 %v8035, %v8147
    %8149 = vmatmul.f32.gmra.mxu0 %v5039
    %v8150 = vpop.f32.mrf.mxu0
    %v8151 = vadd.f32 %v8038, %v8150
    %8152 = vmatmul.f32.gmra.mxu0 %v5051
    %v8153 = vpop.f32.mrf.mxu0
    %v8154 = vadd.f32 %v8041, %v8153
    %8155 = vmatmul.f32.gmra.mxu0 %v5063
    %v8156 = vpop.f32.mrf.mxu0
    %v8157 = vadd.f32 %v8044, %v8156
    %8158 = vmatmul.f32.gmra.mxu0 %v5075
    %v8159 = vpop.f32.mrf.mxu0
    %v8160 = vadd.f32 %v8047, %v8159
    %8161 = vmatmul.f32.gmra.mxu0 %v5087
    %v8162 = vpop.f32.mrf.mxu0
    %v8163 = vadd.f32 %v8050, %v8162
    %8164 = vmatmul.f32.gmra.mxu0 %v5099
    %v8165 = vpop.f32.mrf.mxu0
    %v8166 = vadd.f32 %v8053, %v8165
    %8167 = vmatmul.f32.gmra.mxu0 %v5111
    %v8168 = vpop.f32.mrf.mxu0
    %v8169 = vadd.f32 %v8056, %v8168
    %8170 = vmatmul.f32.gmra.mxu0 %v5123
    %v8171 = vpop.f32.mrf.mxu0
    %v8172 = vadd.f32 %v8059, %v8171
    %8173 = vmatmul.f32.gmra.mxu0 %v5135
    %v8174 = vpop.f32.mrf.mxu0
    %v8175 = vadd.f32 %v8062, %v8174
    %8176 = vmatmul.f32.gmra.mxu0 %v5147
    %v8177 = vpop.f32.mrf.mxu0
    %v8178 = vadd.f32 %v8065, %v8177
    %8179 = vmatmul.f32.gmra.mxu0 %v5159
    %v8180 = vpop.f32.mrf.mxu0
    %v8181 = vadd.f32 %v8068, %v8180
    %8182 = vmatmul.f32.gmra.mxu0 %v5171
    %v8183 = vpop.f32.mrf.mxu0
    %v8184 = vadd.f32 %v8071, %v8183
    %8185 = vmatmul.f32.gmra.mxu0 %v5183
    %v8186 = vpop.f32.mrf.mxu0
    %v8187 = vadd.f32 %v8074, %v8186
    %8188 = vmatmul.f32.gmra.mxu0 %v5195
    %v8189 = vpop.f32.mrf.mxu0
    %v8190 = vadd.f32 %v8077, %v8189
    %8191 = vmatmul.f32.gmra.mxu0 %v5207
    %v8192 = vpop.f32.mrf.mxu0
    %v8193 = vadd.f32 %v8080, %v8192
    %8194 = vmatmul.f32.gmra.mxu0 %v5219
    %v8195 = vpop.f32.mrf.mxu0
    %v8196 = vadd.f32 %v8083, %v8195
    %8197 = vmatmul.f32.gmra.mxu0 %v5231
    %v8198 = vpop.f32.mrf.mxu0
    %v8199 = vadd.f32 %v8086, %v8198
    %8200 = vmatmul.f32.gmra.mxu0 %v5243
    %v8201 = vpop.f32.mrf.mxu0
    %v8202 = vadd.f32 %v8089, %v8201
    %8203 = vdwg.mxu0
    %8204 = vmatpush.msra.mxu0 %v5725
    %8205 = vmatpush.msra.mxu0 %v5722
    %8206 = vmatpush.msra.mxu0 %v5719
    %8207 = vmatpush.msra.mxu0 %v5716
    %8208 = vmatpush.msra.mxu0 %v5713
    %8209 = vmatpush.msra.mxu0 %v5710
    %8210 = vmatpush.msra.mxu0 %v5707
    %8211 = vmatpush.msra.mxu0 %v5704
    %8212 = vmatpush.msra.mxu0 %v5701
    %8213 = vmatpush.msra.mxu0 %v5698
    %8214 = vmatpush.msra.mxu0 %v5695
    %8215 = vmatpush.msra.mxu0 %v5692
    %8216 = vmatpush.msra.mxu0 %v5689
    %8217 = vmatpush.msra.mxu0 %v5686
    %8218 = vmatpush.msra.mxu0 %v5683
    %8219 = vmatpush.msra.mxu0 %v5680
    %8220 = vmatmul.f32.gmra.mxu0 %v4872
    %v8221 = vpop.f32.mrf.mxu0
    %v8222 = vadd.f32 %v8109, %v8221
    %8223 = vmatmul.f32.gmra.mxu0 %v4884
    %v8224 = vpop.f32.mrf.mxu0
    %v8225 = vadd.f32 %v8112, %v8224
    %8226 = vmatmul.f32.gmra.mxu0 %v4896
    %v8227 = vpop.f32.mrf.mxu0
    %v8228 = vadd.f32 %v8115, %v8227
    %8229 = vmatmul.f32.gmra.mxu0 %v4908
    %v8230 = vpop.f32.mrf.mxu0
    %v8231 = vadd.f32 %v8118, %v8230
    %8232 = vmatmul.f32.gmra.mxu0 %v4920
    %v8233 = vpop.f32.mrf.mxu0
    %v8234 = vadd.f32 %v8121, %v8233
    %8235 = vmatmul.f32.gmra.mxu0 %v4932
    %v8236 = vpop.f32.mrf.mxu0
    %v8237 = vadd.f32 %v8124, %v8236
    %8238 = vmatmul.f32.gmra.mxu0 %v4944
    %v8239 = vpop.f32.mrf.mxu0
    %v8240 = vadd.f32 %v8127, %v8239
    %8241 = vmatmul.f32.gmra.mxu0 %v4956
    %v8242 = vpop.f32.mrf.mxu0
    %v8243 = vadd.f32 %v8130, %v8242
    %8244 = vmatmul.f32.gmra.mxu0 %v4968
    %v8245 = vpop.f32.mrf.mxu0
    %v8246 = vadd.f32 %v8133, %v8245
    %8247 = vmatmul.f32.gmra.mxu0 %v4980
    %v8248 = vpop.f32.mrf.mxu0
    %v8249 = vadd.f32 %v8136, %v8248
    %8250 = vmatmul.f32.gmra.mxu0 %v4992
    %v8251 = vpop.f32.mrf.mxu0
    %v8252 = vadd.f32 %v8139, %v8251
    %8253 = vmatmul.f32.gmra.mxu0 %v5004
    %v8254 = vpop.f32.mrf.mxu0
    %v8255 = vadd.f32 %v8142, %v8254
    %8256 = vmatmul.f32.gmra.mxu0 %v5016
    %v8257 = vpop.f32.mrf.mxu0
    %v8258 = vadd.f32 %v8145, %v8257
    %8259 = vmatmul.f32.gmra.mxu0 %v5028
    %v8260 = vpop.f32.mrf.mxu0
    %v8261 = vadd.f32 %v8148, %v8260
    %8262 = vmatmul.f32.gmra.mxu0 %v5040
    %v8263 = vpop.f32.mrf.mxu0
    %v8264 = vadd.f32 %v8151, %v8263
    %8265 = vmatmul.f32.gmra.mxu0 %v5052
    %v8266 = vpop.f32.mrf.mxu0
    %v8267 = vadd.f32 %v8154, %v8266
    %8268 = vmatmul.f32.gmra.mxu0 %v5064
    %v8269 = vpop.f32.mrf.mxu0
    %v8270 = vadd.f32 %v8157, %v8269
    %8271 = vmatmul.f32.gmra.mxu0 %v5076
    %v8272 = vpop.f32.mrf.mxu0
    %v8273 = vadd.f32 %v8160, %v8272
    %8274 = vmatmul.f32.gmra.mxu0 %v5088
    %v8275 = vpop.f32.mrf.mxu0
    %v8276 = vadd.f32 %v8163, %v8275
    %8277 = vmatmul.f32.gmra.mxu0 %v5100
    %v8278 = vpop.f32.mrf.mxu0
    %v8279 = vadd.f32 %v8166, %v8278
    %8280 = vmatmul.f32.gmra.mxu0 %v5112
    %v8281 = vpop.f32.mrf.mxu0
    %v8282 = vadd.f32 %v8169, %v8281
    %8283 = vmatmul.f32.gmra.mxu0 %v5124
    %v8284 = vpop.f32.mrf.mxu0
    %v8285 = vadd.f32 %v8172, %v8284
    %8286 = vmatmul.f32.gmra.mxu0 %v5136
    %v8287 = vpop.f32.mrf.mxu0
    %v8288 = vadd.f32 %v8175, %v8287
    %8289 = vmatmul.f32.gmra.mxu0 %v5148
    %v8290 = vpop.f32.mrf.mxu0
    %v8291 = vadd.f32 %v8178, %v8290
    %8292 = vmatmul.f32.gmra.mxu0 %v5160
    %v8293 = vpop.f32.mrf.mxu0
    %v8294 = vadd.f32 %v8181, %v8293
    %8295 = vmatmul.f32.gmra.mxu0 %v5172
    %v8296 = vpop.f32.mrf.mxu0
    %v8297 = vadd.f32 %v8184, %v8296
    %8298 = vmatmul.f32.gmra.mxu0 %v5184
    %v8299 = vpop.f32.mrf.mxu0
    %v8300 = vadd.f32 %v8187, %v8299
    %8301 = vmatmul.f32.gmra.mxu0 %v5196
    %v8302 = vpop.f32.mrf.mxu0
    %v8303 = vadd.f32 %v8190, %v8302
    %8304 = vmatmul.f32.gmra.mxu0 %v5208
    %v8305 = vpop.f32.mrf.mxu0
    %v8306 = vadd.f32 %v8193, %v8305
    %8307 = vmatmul.f32.gmra.mxu0 %v5220
    %v8308 = vpop.f32.mrf.mxu0
    %v8309 = vadd.f32 %v8196, %v8308
    %8310 = vmatmul.f32.gmra.mxu0 %v5232
    %v8311 = vpop.f32.mrf.mxu0
    %v8312 = vadd.f32 %v8199, %v8311
    %8313 = vmatmul.f32.gmra.mxu0 %v5244
    %v8314 = vpop.f32.mrf.mxu0
    %v8315 = vadd.f32 %v8202, %v8314
    %8316 = vdwg.mxu0
    %8317 = vmatpush.msra.mxu0 %v5773
    %8318 = vmatpush.msra.mxu0 %v5770
    %8319 = vmatpush.msra.mxu0 %v5767
    %8320 = vmatpush.msra.mxu0 %v5764
    %8321 = vmatpush.msra.mxu0 %v5761
    %8322 = vmatpush.msra.mxu0 %v5758
    %8323 = vmatpush.msra.mxu0 %v5755
    %8324 = vmatpush.msra.mxu0 %v5752
    %8325 = vmatpush.msra.mxu0 %v5749
    %8326 = vmatpush.msra.mxu0 %v5746
    %8327 = vmatpush.msra.mxu0 %v5743
    %8328 = vmatpush.msra.mxu0 %v5740
    %8329 = vmatpush.msra.mxu0 %v5737
    %8330 = vmatpush.msra.mxu0 %v5734
    %8331 = vmatpush.msra.mxu0 %v5731
    %8332 = vmatpush.msra.mxu0 %v5728
    %8333 = vmatmul.f32.gmra.mxu0 %v4873
    %v8334 = vpop.f32.mrf.mxu0
    %v8335 = vadd.f32 %v8222, %v8334
    %8336 = vmatmul.f32.gmra.mxu0 %v4885
    %v8337 = vpop.f32.mrf.mxu0
    %v8338 = vadd.f32 %v8225, %v8337
    %8339 = vmatmul.f32.gmra.mxu0 %v4897
    %v8340 = vpop.f32.mrf.mxu0
    %v8341 = vadd.f32 %v8228, %v8340
    %8342 = vmatmul.f32.gmra.mxu0 %v4909
    %v8343 = vpop.f32.mrf.mxu0
    %v8344 = vadd.f32 %v8231, %v8343
    %8345 = vmatmul.f32.gmra.mxu0 %v4921
    %v8346 = vpop.f32.mrf.mxu0
    %v8347 = vadd.f32 %v8234, %v8346
    %8348 = vmatmul.f32.gmra.mxu0 %v4933
    %v8349 = vpop.f32.mrf.mxu0
    %v8350 = vadd.f32 %v8237, %v8349
    %8351 = vmatmul.f32.gmra.mxu0 %v4945
    %v8352 = vpop.f32.mrf.mxu0
    %v8353 = vadd.f32 %v8240, %v8352
    %8354 = vmatmul.f32.gmra.mxu0 %v4957
    %v8355 = vpop.f32.mrf.mxu0
    %v8356 = vadd.f32 %v8243, %v8355
    %8357 = vmatmul.f32.gmra.mxu0 %v4969
    %v8358 = vpop.f32.mrf.mxu0
    %v8359 = vadd.f32 %v8246, %v8358
    %8360 = vmatmul.f32.gmra.mxu0 %v4981
    %v8361 = vpop.f32.mrf.mxu0
    %v8362 = vadd.f32 %v8249, %v8361
    %8363 = vmatmul.f32.gmra.mxu0 %v4993
    %v8364 = vpop.f32.mrf.mxu0
    %v8365 = vadd.f32 %v8252, %v8364
    %8366 = vmatmul.f32.gmra.mxu0 %v5005
    %v8367 = vpop.f32.mrf.mxu0
    %v8368 = vadd.f32 %v8255, %v8367
    %8369 = vmatmul.f32.gmra.mxu0 %v5017
    %v8370 = vpop.f32.mrf.mxu0
    %v8371 = vadd.f32 %v8258, %v8370
    %8372 = vmatmul.f32.gmra.mxu0 %v5029
    %v8373 = vpop.f32.mrf.mxu0
    %v8374 = vadd.f32 %v8261, %v8373
    %8375 = vmatmul.f32.gmra.mxu0 %v5041
    %v8376 = vpop.f32.mrf.mxu0
    %v8377 = vadd.f32 %v8264, %v8376
    %8378 = vmatmul.f32.gmra.mxu0 %v5053
    %v8379 = vpop.f32.mrf.mxu0
    %v8380 = vadd.f32 %v8267, %v8379
    %8381 = vmatmul.f32.gmra.mxu0 %v5065
    %v8382 = vpop.f32.mrf.mxu0
    %v8383 = vadd.f32 %v8270, %v8382
    %8384 = vmatmul.f32.gmra.mxu0 %v5077
    %v8385 = vpop.f32.mrf.mxu0
    %v8386 = vadd.f32 %v8273, %v8385
    %8387 = vmatmul.f32.gmra.mxu0 %v5089
    %v8388 = vpop.f32.mrf.mxu0
    %v8389 = vadd.f32 %v8276, %v8388
    %8390 = vmatmul.f32.gmra.mxu0 %v5101
    %v8391 = vpop.f32.mrf.mxu0
    %v8392 = vadd.f32 %v8279, %v8391
    %8393 = vmatmul.f32.gmra.mxu0 %v5113
    %v8394 = vpop.f32.mrf.mxu0
    %v8395 = vadd.f32 %v8282, %v8394
    %8396 = vmatmul.f32.gmra.mxu0 %v5125
    %v8397 = vpop.f32.mrf.mxu0
    %v8398 = vadd.f32 %v8285, %v8397
    %8399 = vmatmul.f32.gmra.mxu0 %v5137
    %v8400 = vpop.f32.mrf.mxu0
    %v8401 = vadd.f32 %v8288, %v8400
    %8402 = vmatmul.f32.gmra.mxu0 %v5149
    %v8403 = vpop.f32.mrf.mxu0
    %v8404 = vadd.f32 %v8291, %v8403
    %8405 = vmatmul.f32.gmra.mxu0 %v5161
    %v8406 = vpop.f32.mrf.mxu0
    %v8407 = vadd.f32 %v8294, %v8406
    %8408 = vmatmul.f32.gmra.mxu0 %v5173
    %v8409 = vpop.f32.mrf.mxu0
    %v8410 = vadd.f32 %v8297, %v8409
    %8411 = vmatmul.f32.gmra.mxu0 %v5185
    %v8412 = vpop.f32.mrf.mxu0
    %v8413 = vadd.f32 %v8300, %v8412
    %8414 = vmatmul.f32.gmra.mxu0 %v5197
    %v8415 = vpop.f32.mrf.mxu0
    %v8416 = vadd.f32 %v8303, %v8415
    %8417 = vmatmul.f32.gmra.mxu0 %v5209
    %v8418 = vpop.f32.mrf.mxu0
    %v8419 = vadd.f32 %v8306, %v8418
    %8420 = vmatmul.f32.gmra.mxu0 %v5221
    %v8421 = vpop.f32.mrf.mxu0
    %v8422 = vadd.f32 %v8309, %v8421
    %8423 = vmatmul.f32.gmra.mxu0 %v5233
    %v8424 = vpop.f32.mrf.mxu0
    %v8425 = vadd.f32 %v8312, %v8424
    %8426 = vmatmul.f32.gmra.mxu0 %v5245
    %v8427 = vpop.f32.mrf.mxu0
    %v8428 = vadd.f32 %v8315, %v8427
    %8429 = vdwg.mxu0
    %8430 = vmatpush.msra.mxu0 %v5821
    %8431 = vmatpush.msra.mxu0 %v5818
    %8432 = vmatpush.msra.mxu0 %v5815
    %8433 = vmatpush.msra.mxu0 %v5812
    %8434 = vmatpush.msra.mxu0 %v5809
    %8435 = vmatpush.msra.mxu0 %v5806
    %8436 = vmatpush.msra.mxu0 %v5803
    %8437 = vmatpush.msra.mxu0 %v5800
    %8438 = vmatpush.msra.mxu0 %v5797
    %8439 = vmatpush.msra.mxu0 %v5794
    %8440 = vmatpush.msra.mxu0 %v5791
    %8441 = vmatpush.msra.mxu0 %v5788
    %8442 = vmatpush.msra.mxu0 %v5785
    %8443 = vmatpush.msra.mxu0 %v5782
    %8444 = vmatpush.msra.mxu0 %v5779
    %8445 = vmatpush.msra.mxu0 %v5776
    %8446 = vmatmul.f32.gmra.mxu0 %v4874
    %v8447 = vpop.f32.mrf.mxu0
    %v8448 = vadd.f32 %v8335, %v8447
    %8449 = vmatmul.f32.gmra.mxu0 %v4886
    %v8450 = vpop.f32.mrf.mxu0
    %v8451 = vadd.f32 %v8338, %v8450
    %8452 = vmatmul.f32.gmra.mxu0 %v4898
    %v8453 = vpop.f32.mrf.mxu0
    %v8454 = vadd.f32 %v8341, %v8453
    %8455 = vmatmul.f32.gmra.mxu0 %v4910
    %v8456 = vpop.f32.mrf.mxu0
    %v8457 = vadd.f32 %v8344, %v8456
    %8458 = vmatmul.f32.gmra.mxu0 %v4922
    %v8459 = vpop.f32.mrf.mxu0
    %v8460 = vadd.f32 %v8347, %v8459
    %8461 = vmatmul.f32.gmra.mxu0 %v4934
    %v8462 = vpop.f32.mrf.mxu0
    %v8463 = vadd.f32 %v8350, %v8462
    %8464 = vmatmul.f32.gmra.mxu0 %v4946
    %v8465 = vpop.f32.mrf.mxu0
    %v8466 = vadd.f32 %v8353, %v8465
    %8467 = vmatmul.f32.gmra.mxu0 %v4958
    %v8468 = vpop.f32.mrf.mxu0
    %v8469 = vadd.f32 %v8356, %v8468
    %8470 = vmatmul.f32.gmra.mxu0 %v4970
    %v8471 = vpop.f32.mrf.mxu0
    %v8472 = vadd.f32 %v8359, %v8471
    %8473 = vmatmul.f32.gmra.mxu0 %v4982
    %v8474 = vpop.f32.mrf.mxu0
    %v8475 = vadd.f32 %v8362, %v8474
    %8476 = vmatmul.f32.gmra.mxu0 %v4994
    %v8477 = vpop.f32.mrf.mxu0
    %v8478 = vadd.f32 %v8365, %v8477
    %8479 = vmatmul.f32.gmra.mxu0 %v5006
    %v8480 = vpop.f32.mrf.mxu0
    %v8481 = vadd.f32 %v8368, %v8480
    %8482 = vmatmul.f32.gmra.mxu0 %v5018
    %v8483 = vpop.f32.mrf.mxu0
    %v8484 = vadd.f32 %v8371, %v8483
    %8485 = vmatmul.f32.gmra.mxu0 %v5030
    %v8486 = vpop.f32.mrf.mxu0
    %v8487 = vadd.f32 %v8374, %v8486
    %8488 = vmatmul.f32.gmra.mxu0 %v5042
    %v8489 = vpop.f32.mrf.mxu0
    %v8490 = vadd.f32 %v8377, %v8489
    %8491 = vmatmul.f32.gmra.mxu0 %v5054
    %v8492 = vpop.f32.mrf.mxu0
    %v8493 = vadd.f32 %v8380, %v8492
    %8494 = vmatmul.f32.gmra.mxu0 %v5066
    %v8495 = vpop.f32.mrf.mxu0
    %v8496 = vadd.f32 %v8383, %v8495
    %8497 = vmatmul.f32.gmra.mxu0 %v5078
    %v8498 = vpop.f32.mrf.mxu0
    %v8499 = vadd.f32 %v8386, %v8498
    %8500 = vmatmul.f32.gmra.mxu0 %v5090
    %v8501 = vpop.f32.mrf.mxu0
    %v8502 = vadd.f32 %v8389, %v8501
    %8503 = vmatmul.f32.gmra.mxu0 %v5102
    %v8504 = vpop.f32.mrf.mxu0
    %v8505 = vadd.f32 %v8392, %v8504
    %8506 = vmatmul.f32.gmra.mxu0 %v5114
    %v8507 = vpop.f32.mrf.mxu0
    %v8508 = vadd.f32 %v8395, %v8507
    %8509 = vmatmul.f32.gmra.mxu0 %v5126
    %v8510 = vpop.f32.mrf.mxu0
    %v8511 = vadd.f32 %v8398, %v8510
    %8512 = vmatmul.f32.gmra.mxu0 %v5138
    %v8513 = vpop.f32.mrf.mxu0
    %v8514 = vadd.f32 %v8401, %v8513
    %8515 = vmatmul.f32.gmra.mxu0 %v5150
    %v8516 = vpop.f32.mrf.mxu0
    %v8517 = vadd.f32 %v8404, %v8516
    %8518 = vmatmul.f32.gmra.mxu0 %v5162
    %v8519 = vpop.f32.mrf.mxu0
    %v8520 = vadd.f32 %v8407, %v8519
    %8521 = vmatmul.f32.gmra.mxu0 %v5174
    %v8522 = vpop.f32.mrf.mxu0
    %v8523 = vadd.f32 %v8410, %v8522
    %8524 = vmatmul.f32.gmra.mxu0 %v5186
    %v8525 = vpop.f32.mrf.mxu0
    %v8526 = vadd.f32 %v8413, %v8525
    %8527 = vmatmul.f32.gmra.mxu0 %v5198
    %v8528 = vpop.f32.mrf.mxu0
    %v8529 = vadd.f32 %v8416, %v8528
    %8530 = vmatmul.f32.gmra.mxu0 %v5210
    %v8531 = vpop.f32.mrf.mxu0
    %v8532 = vadd.f32 %v8419, %v8531
    %8533 = vmatmul.f32.gmra.mxu0 %v5222
    %v8534 = vpop.f32.mrf.mxu0
    %v8535 = vadd.f32 %v8422, %v8534
    %8536 = vmatmul.f32.gmra.mxu0 %v5234
    %v8537 = vpop.f32.mrf.mxu0
    %v8538 = vadd.f32 %v8425, %v8537
    %8539 = vmatmul.f32.gmra.mxu0 %v5246
    %v8540 = vpop.f32.mrf.mxu0
    %v8541 = vadd.f32 %v8428, %v8540
    %8542 = vdwg.mxu0
    %8543 = vmatpush.msra.mxu0 %v5294
    %8544 = vmatpush.msra.mxu0 %v5291
    %8545 = vmatpush.msra.mxu0 %v5288
    %8546 = vmatpush.msra.mxu0 %v5285
    %8547 = vmatpush.msra.mxu0 %v5282
    %8548 = vmatpush.msra.mxu0 %v5279
    %8549 = vmatpush.msra.mxu0 %v5276
    %8550 = vmatpush.msra.mxu0 %v5273
    %8551 = vmatpush.msra.mxu0 %v5270
    %8552 = vmatpush.msra.mxu0 %v5267
    %8553 = vmatpush.msra.mxu0 %v5264
    %8554 = vmatpush.msra.mxu0 %v5261
    %8555 = vmatpush.msra.mxu0 %v5258
    %8556 = vmatpush.msra.mxu0 %v5255
    %8557 = vmatpush.msra.mxu0 %v5252
    %8558 = vmatpush.msra.mxu0 %v5249
    %8559 = vmatmul.f32.gmra.mxu0 %v4863
    %v8560 = vpop.f32.mrf.mxu0
    %v8561 = vadd.f32 %v5827, %v8560
    %8562 = vmatmul.f32.gmra.mxu0 %v4875
    %v8563 = vpop.f32.mrf.mxu0
    %v8564 = vadd.f32 %v5827, %v8563
    %8565 = vmatmul.f32.gmra.mxu0 %v4887
    %v8566 = vpop.f32.mrf.mxu0
    %v8567 = vadd.f32 %v5827, %v8566
    %8568 = vmatmul.f32.gmra.mxu0 %v4899
    %v8569 = vpop.f32.mrf.mxu0
    %v8570 = vadd.f32 %v5827, %v8569
    %8571 = vmatmul.f32.gmra.mxu0 %v4911
    %v8572 = vpop.f32.mrf.mxu0
    %v8573 = vadd.f32 %v5827, %v8572
    %8574 = vmatmul.f32.gmra.mxu0 %v4923
    %v8575 = vpop.f32.mrf.mxu0
    %v8576 = vadd.f32 %v5827, %v8575
    %8577 = vmatmul.f32.gmra.mxu0 %v4935
    %v8578 = vpop.f32.mrf.mxu0
    %v8579 = vadd.f32 %v5827, %v8578
    %8580 = vmatmul.f32.gmra.mxu0 %v4947
    %v8581 = vpop.f32.mrf.mxu0
    %v8582 = vadd.f32 %v5827, %v8581
    %8583 = vmatmul.f32.gmra.mxu0 %v4959
    %v8584 = vpop.f32.mrf.mxu0
    %v8585 = vadd.f32 %v5827, %v8584
    %8586 = vmatmul.f32.gmra.mxu0 %v4971
    %v8587 = vpop.f32.mrf.mxu0
    %v8588 = vadd.f32 %v5827, %v8587
    %8589 = vmatmul.f32.gmra.mxu0 %v4983
    %v8590 = vpop.f32.mrf.mxu0
    %v8591 = vadd.f32 %v5827, %v8590
    %8592 = vmatmul.f32.gmra.mxu0 %v4995
    %v8593 = vpop.f32.mrf.mxu0
    %v8594 = vadd.f32 %v5827, %v8593
    %8595 = vmatmul.f32.gmra.mxu0 %v5007
    %v8596 = vpop.f32.mrf.mxu0
    %v8597 = vadd.f32 %v5827, %v8596
    %8598 = vmatmul.f32.gmra.mxu0 %v5019
    %v8599 = vpop.f32.mrf.mxu0
    %v8600 = vadd.f32 %v5827, %v8599
    %8601 = vmatmul.f32.gmra.mxu0 %v5031
    %v8602 = vpop.f32.mrf.mxu0
    %v8603 = vadd.f32 %v5827, %v8602
    %8604 = vmatmul.f32.gmra.mxu0 %v5043
    %v8605 = vpop.f32.mrf.mxu0
    %v8606 = vadd.f32 %v5827, %v8605
    %8607 = vmatmul.f32.gmra.mxu0 %v5055
    %v8608 = vpop.f32.mrf.mxu0
    %v8609 = vadd.f32 %v5827, %v8608
    %8610 = vmatmul.f32.gmra.mxu0 %v5067
    %v8611 = vpop.f32.mrf.mxu0
    %v8612 = vadd.f32 %v5827, %v8611
    %8613 = vmatmul.f32.gmra.mxu0 %v5079
    %v8614 = vpop.f32.mrf.mxu0
    %v8615 = vadd.f32 %v5827, %v8614
    %8616 = vmatmul.f32.gmra.mxu0 %v5091
    %v8617 = vpop.f32.mrf.mxu0
    %v8618 = vadd.f32 %v5827, %v8617
    %8619 = vmatmul.f32.gmra.mxu0 %v5103
    %v8620 = vpop.f32.mrf.mxu0
    %v8621 = vadd.f32 %v5827, %v8620
    %8622 = vmatmul.f32.gmra.mxu0 %v5115
    %v8623 = vpop.f32.mrf.mxu0
    %v8624 = vadd.f32 %v5827, %v8623
    %8625 = vmatmul.f32.gmra.mxu0 %v5127
    %v8626 = vpop.f32.mrf.mxu0
    %v8627 = vadd.f32 %v5827, %v8626
    %8628 = vmatmul.f32.gmra.mxu0 %v5139
    %v8629 = vpop.f32.mrf.mxu0
    %v8630 = vadd.f32 %v5827, %v8629
    %8631 = vmatmul.f32.gmra.mxu0 %v5151
    %v8632 = vpop.f32.mrf.mxu0
    %v8633 = vadd.f32 %v5827, %v8632
    %8634 = vmatmul.f32.gmra.mxu0 %v5163
    %v8635 = vpop.f32.mrf.mxu0
    %v8636 = vadd.f32 %v5827, %v8635
    %8637 = vmatmul.f32.gmra.mxu0 %v5175
    %v8638 = vpop.f32.mrf.mxu0
    %v8639 = vadd.f32 %v5827, %v8638
    %8640 = vmatmul.f32.gmra.mxu0 %v5187
    %v8641 = vpop.f32.mrf.mxu0
    %v8642 = vadd.f32 %v5827, %v8641
    %8643 = vmatmul.f32.gmra.mxu0 %v5199
    %v8644 = vpop.f32.mrf.mxu0
    %v8645 = vadd.f32 %v5827, %v8644
    %8646 = vmatmul.f32.gmra.mxu0 %v5211
    %v8647 = vpop.f32.mrf.mxu0
    %v8648 = vadd.f32 %v5827, %v8647
    %8649 = vmatmul.f32.gmra.mxu0 %v5223
    %v8650 = vpop.f32.mrf.mxu0
    %v8651 = vadd.f32 %v5827, %v8650
    %8652 = vmatmul.f32.gmra.mxu0 %v5235
    %v8653 = vpop.f32.mrf.mxu0
    %v8654 = vadd.f32 %v5827, %v8653
    %8655 = vdwg.mxu0
    %8656 = vmatpush.msra.mxu0 %v5342
    %8657 = vmatpush.msra.mxu0 %v5339
    %8658 = vmatpush.msra.mxu0 %v5336
    %8659 = vmatpush.msra.mxu0 %v5333
    %8660 = vmatpush.msra.mxu0 %v5330
    %8661 = vmatpush.msra.mxu0 %v5327
    %8662 = vmatpush.msra.mxu0 %v5324
    %8663 = vmatpush.msra.mxu0 %v5321
    %8664 = vmatpush.msra.mxu0 %v5318
    %8665 = vmatpush.msra.mxu0 %v5315
    %8666 = vmatpush.msra.mxu0 %v5312
    %8667 = vmatpush.msra.mxu0 %v5309
    %8668 = vmatpush.msra.mxu0 %v5306
    %8669 = vmatpush.msra.mxu0 %v5303
    %8670 = vmatpush.msra.mxu0 %v5300
    %8671 = vmatpush.msra.mxu0 %v5297
    %8672 = vmatmul.f32.gmra.mxu0 %v4864
    %v8673 = vpop.f32.mrf.mxu0
    %v8674 = vadd.f32 %v8561, %v8673
    %8675 = vmatmul.f32.gmra.mxu0 %v4876
    %v8676 = vpop.f32.mrf.mxu0
    %v8677 = vadd.f32 %v8564, %v8676
    %8678 = vmatmul.f32.gmra.mxu0 %v4888
    %v8679 = vpop.f32.mrf.mxu0
    %v8680 = vadd.f32 %v8567, %v8679
    %8681 = vmatmul.f32.gmra.mxu0 %v4900
    %v8682 = vpop.f32.mrf.mxu0
    %v8683 = vadd.f32 %v8570, %v8682
    %8684 = vmatmul.f32.gmra.mxu0 %v4912
    %v8685 = vpop.f32.mrf.mxu0
    %v8686 = vadd.f32 %v8573, %v8685
    %8687 = vmatmul.f32.gmra.mxu0 %v4924
    %v8688 = vpop.f32.mrf.mxu0
    %v8689 = vadd.f32 %v8576, %v8688
    %8690 = vmatmul.f32.gmra.mxu0 %v4936
    %v8691 = vpop.f32.mrf.mxu0
    %v8692 = vadd.f32 %v8579, %v8691
    %8693 = vmatmul.f32.gmra.mxu0 %v4948
    %v8694 = vpop.f32.mrf.mxu0
    %v8695 = vadd.f32 %v8582, %v8694
    %8696 = vmatmul.f32.gmra.mxu0 %v4960
    %v8697 = vpop.f32.mrf.mxu0
    %v8698 = vadd.f32 %v8585, %v8697
    %8699 = vmatmul.f32.gmra.mxu0 %v4972
    %v8700 = vpop.f32.mrf.mxu0
    %v8701 = vadd.f32 %v8588, %v8700
    %8702 = vmatmul.f32.gmra.mxu0 %v4984
    %v8703 = vpop.f32.mrf.mxu0
    %v8704 = vadd.f32 %v8591, %v8703
    %8705 = vmatmul.f32.gmra.mxu0 %v4996
    %v8706 = vpop.f32.mrf.mxu0
    %v8707 = vadd.f32 %v8594, %v8706
    %8708 = vmatmul.f32.gmra.mxu0 %v5008
    %v8709 = vpop.f32.mrf.mxu0
    %v8710 = vadd.f32 %v8597, %v8709
    %8711 = vmatmul.f32.gmra.mxu0 %v5020
    %v8712 = vpop.f32.mrf.mxu0
    %v8713 = vadd.f32 %v8600, %v8712
    %8714 = vmatmul.f32.gmra.mxu0 %v5032
    %v8715 = vpop.f32.mrf.mxu0
    %v8716 = vadd.f32 %v8603, %v8715
    %8717 = vmatmul.f32.gmra.mxu0 %v5044
    %v8718 = vpop.f32.mrf.mxu0
    %v8719 = vadd.f32 %v8606, %v8718
    %8720 = vmatmul.f32.gmra.mxu0 %v5056
    %v8721 = vpop.f32.mrf.mxu0
    %v8722 = vadd.f32 %v8609, %v8721
    %8723 = vmatmul.f32.gmra.mxu0 %v5068
    %v8724 = vpop.f32.mrf.mxu0
    %v8725 = vadd.f32 %v8612, %v8724
    %8726 = vmatmul.f32.gmra.mxu0 %v5080
    %v8727 = vpop.f32.mrf.mxu0
    %v8728 = vadd.f32 %v8615, %v8727
    %8729 = vmatmul.f32.gmra.mxu0 %v5092
    %v8730 = vpop.f32.mrf.mxu0
    %v8731 = vadd.f32 %v8618, %v8730
    %8732 = vmatmul.f32.gmra.mxu0 %v5104
    %v8733 = vpop.f32.mrf.mxu0
    %v8734 = vadd.f32 %v8621, %v8733
    %8735 = vmatmul.f32.gmra.mxu0 %v5116
    %v8736 = vpop.f32.mrf.mxu0
    %v8737 = vadd.f32 %v8624, %v8736
    %8738 = vmatmul.f32.gmra.mxu0 %v5128
    %v8739 = vpop.f32.mrf.mxu0
    %v8740 = vadd.f32 %v8627, %v8739
    %8741 = vmatmul.f32.gmra.mxu0 %v5140
    %v8742 = vpop.f32.mrf.mxu0
    %v8743 = vadd.f32 %v8630, %v8742
    %8744 = vmatmul.f32.gmra.mxu0 %v5152
    %v8745 = vpop.f32.mrf.mxu0
    %v8746 = vadd.f32 %v8633, %v8745
    %8747 = vmatmul.f32.gmra.mxu0 %v5164
    %v8748 = vpop.f32.mrf.mxu0
    %v8749 = vadd.f32 %v8636, %v8748
    %8750 = vmatmul.f32.gmra.mxu0 %v5176
    %v8751 = vpop.f32.mrf.mxu0
    %v8752 = vadd.f32 %v8639, %v8751
    %8753 = vmatmul.f32.gmra.mxu0 %v5188
    %v8754 = vpop.f32.mrf.mxu0
    %v8755 = vadd.f32 %v8642, %v8754
    %8756 = vmatmul.f32.gmra.mxu0 %v5200
    %v8757 = vpop.f32.mrf.mxu0
    %v8758 = vadd.f32 %v8645, %v8757
    %8759 = vmatmul.f32.gmra.mxu0 %v5212
    %v8760 = vpop.f32.mrf.mxu0
    %v8761 = vadd.f32 %v8648, %v8760
    %8762 = vmatmul.f32.gmra.mxu0 %v5224
    %v8763 = vpop.f32.mrf.mxu0
    %v8764 = vadd.f32 %v8651, %v8763
    %8765 = vmatmul.f32.gmra.mxu0 %v5236
    %v8766 = vpop.f32.mrf.mxu0
    %v8767 = vadd.f32 %v8654, %v8766
    %8768 = vdwg.mxu0
    %8769 = vmatpush.msra.mxu0 %v5390
    %8770 = vmatpush.msra.mxu0 %v5387
    %8771 = vmatpush.msra.mxu0 %v5384
    %8772 = vmatpush.msra.mxu0 %v5381
    %8773 = vmatpush.msra.mxu0 %v5378
    %8774 = vmatpush.msra.mxu0 %v5375
    %8775 = vmatpush.msra.mxu0 %v5372
    %8776 = vmatpush.msra.mxu0 %v5369
    %8777 = vmatpush.msra.mxu0 %v5366
    %8778 = vmatpush.msra.mxu0 %v5363
    %8779 = vmatpush.msra.mxu0 %v5360
    %8780 = vmatpush.msra.mxu0 %v5357
    %8781 = vmatpush.msra.mxu0 %v5354
    %8782 = vmatpush.msra.mxu0 %v5351
    %8783 = vmatpush.msra.mxu0 %v5348
    %8784 = vmatpush.msra.mxu0 %v5345
    %8785 = vmatmul.f32.gmra.mxu0 %v4865
    %v8786 = vpop.f32.mrf.mxu0
    %v8787 = vadd.f32 %v8674, %v8786
    %8788 = vmatmul.f32.gmra.mxu0 %v4877
    %v8789 = vpop.f32.mrf.mxu0
    %v8790 = vadd.f32 %v8677, %v8789
    %8791 = vmatmul.f32.gmra.mxu0 %v4889
    %v8792 = vpop.f32.mrf.mxu0
    %v8793 = vadd.f32 %v8680, %v8792
    %8794 = vmatmul.f32.gmra.mxu0 %v4901
    %v8795 = vpop.f32.mrf.mxu0
    %v8796 = vadd.f32 %v8683, %v8795
    %8797 = vmatmul.f32.gmra.mxu0 %v4913
    %v8798 = vpop.f32.mrf.mxu0
    %v8799 = vadd.f32 %v8686, %v8798
    %8800 = vmatmul.f32.gmra.mxu0 %v4925
    %v8801 = vpop.f32.mrf.mxu0
    %v8802 = vadd.f32 %v8689, %v8801
    %8803 = vmatmul.f32.gmra.mxu0 %v4937
    %v8804 = vpop.f32.mrf.mxu0
    %v8805 = vadd.f32 %v8692, %v8804
    %8806 = vmatmul.f32.gmra.mxu0 %v4949
    %v8807 = vpop.f32.mrf.mxu0
    %v8808 = vadd.f32 %v8695, %v8807
    %8809 = vmatmul.f32.gmra.mxu0 %v4961
    %v8810 = vpop.f32.mrf.mxu0
    %v8811 = vadd.f32 %v8698, %v8810
    %8812 = vmatmul.f32.gmra.mxu0 %v4973
    %v8813 = vpop.f32.mrf.mxu0
    %v8814 = vadd.f32 %v8701, %v8813
    %8815 = vmatmul.f32.gmra.mxu0 %v4985
    %v8816 = vpop.f32.mrf.mxu0
    %v8817 = vadd.f32 %v8704, %v8816
    %8818 = vmatmul.f32.gmra.mxu0 %v4997
    %v8819 = vpop.f32.mrf.mxu0
    %v8820 = vadd.f32 %v8707, %v8819
    %8821 = vmatmul.f32.gmra.mxu0 %v5009
    %v8822 = vpop.f32.mrf.mxu0
    %v8823 = vadd.f32 %v8710, %v8822
    %8824 = vmatmul.f32.gmra.mxu0 %v5021
    %v8825 = vpop.f32.mrf.mxu0
    %v8826 = vadd.f32 %v8713, %v8825
    %8827 = vmatmul.f32.gmra.mxu0 %v5033
    %v8828 = vpop.f32.mrf.mxu0
    %v8829 = vadd.f32 %v8716, %v8828
    %8830 = vmatmul.f32.gmra.mxu0 %v5045
    %v8831 = vpop.f32.mrf.mxu0
    %v8832 = vadd.f32 %v8719, %v8831
    %8833 = vmatmul.f32.gmra.mxu0 %v5057
    %v8834 = vpop.f32.mrf.mxu0
    %v8835 = vadd.f32 %v8722, %v8834
    %8836 = vmatmul.f32.gmra.mxu0 %v5069
    %v8837 = vpop.f32.mrf.mxu0
    %v8838 = vadd.f32 %v8725, %v8837
    %8839 = vmatmul.f32.gmra.mxu0 %v5081
    %v8840 = vpop.f32.mrf.mxu0
    %v8841 = vadd.f32 %v8728, %v8840
    %8842 = vmatmul.f32.gmra.mxu0 %v5093
    %v8843 = vpop.f32.mrf.mxu0
    %v8844 = vadd.f32 %v8731, %v8843
    %8845 = vmatmul.f32.gmra.mxu0 %v5105
    %v8846 = vpop.f32.mrf.mxu0
    %v8847 = vadd.f32 %v8734, %v8846
    %8848 = vmatmul.f32.gmra.mxu0 %v5117
    %v8849 = vpop.f32.mrf.mxu0
    %v8850 = vadd.f32 %v8737, %v8849
    %8851 = vmatmul.f32.gmra.mxu0 %v5129
    %v8852 = vpop.f32.mrf.mxu0
    %v8853 = vadd.f32 %v8740, %v8852
    %8854 = vmatmul.f32.gmra.mxu0 %v5141
    %v8855 = vpop.f32.mrf.mxu0
    %v8856 = vadd.f32 %v8743, %v8855
    %8857 = vmatmul.f32.gmra.mxu0 %v5153
    %v8858 = vpop.f32.mrf.mxu0
    %v8859 = vadd.f32 %v8746, %v8858
    %8860 = vmatmul.f32.gmra.mxu0 %v5165
    %v8861 = vpop.f32.mrf.mxu0
    %v8862 = vadd.f32 %v8749, %v8861
    %8863 = vmatmul.f32.gmra.mxu0 %v5177
    %v8864 = vpop.f32.mrf.mxu0
    %v8865 = vadd.f32 %v8752, %v8864
    %8866 = vmatmul.f32.gmra.mxu0 %v5189
    %v8867 = vpop.f32.mrf.mxu0
    %v8868 = vadd.f32 %v8755, %v8867
    %8869 = vmatmul.f32.gmra.mxu0 %v5201
    %v8870 = vpop.f32.mrf.mxu0
    %v8871 = vadd.f32 %v8758, %v8870
    %8872 = vmatmul.f32.gmra.mxu0 %v5213
    %v8873 = vpop.f32.mrf.mxu0
    %v8874 = vadd.f32 %v8761, %v8873
    %8875 = vmatmul.f32.gmra.mxu0 %v5225
    %v8876 = vpop.f32.mrf.mxu0
    %v8877 = vadd.f32 %v8764, %v8876
    %8878 = vmatmul.f32.gmra.mxu0 %v5237
    %v8879 = vpop.f32.mrf.mxu0
    %v8880 = vadd.f32 %v8767, %v8879
    %8881 = vdwg.mxu0
    %8882 = vmatpush.msra.mxu0 %v5438
    %8883 = vmatpush.msra.mxu0 %v5435
    %8884 = vmatpush.msra.mxu0 %v5432
    %8885 = vmatpush.msra.mxu0 %v5429
    %8886 = vmatpush.msra.mxu0 %v5426
    %8887 = vmatpush.msra.mxu0 %v5423
    %8888 = vmatpush.msra.mxu0 %v5420
    %8889 = vmatpush.msra.mxu0 %v5417
    %8890 = vmatpush.msra.mxu0 %v5414
    %8891 = vmatpush.msra.mxu0 %v5411
    %8892 = vmatpush.msra.mxu0 %v5408
    %8893 = vmatpush.msra.mxu0 %v5405
    %8894 = vmatpush.msra.mxu0 %v5402
    %8895 = vmatpush.msra.mxu0 %v5399
    %8896 = vmatpush.msra.mxu0 %v5396
    %8897 = vmatpush.msra.mxu0 %v5393
    %8898 = vmatmul.f32.gmra.mxu0 %v4866
    %v8899 = vpop.f32.mrf.mxu0
    %v8900 = vadd.f32 %v8787, %v8899
    %8901 = vmatmul.f32.gmra.mxu0 %v4878
    %v8902 = vpop.f32.mrf.mxu0
    %v8903 = vadd.f32 %v8790, %v8902
    %8904 = vmatmul.f32.gmra.mxu0 %v4890
    %v8905 = vpop.f32.mrf.mxu0
    %v8906 = vadd.f32 %v8793, %v8905
    %8907 = vmatmul.f32.gmra.mxu0 %v4902
    %v8908 = vpop.f32.mrf.mxu0
    %v8909 = vadd.f32 %v8796, %v8908
    %8910 = vmatmul.f32.gmra.mxu0 %v4914
    %v8911 = vpop.f32.mrf.mxu0
    %v8912 = vadd.f32 %v8799, %v8911
    %8913 = vmatmul.f32.gmra.mxu0 %v4926
    %v8914 = vpop.f32.mrf.mxu0
    %v8915 = vadd.f32 %v8802, %v8914
    %8916 = vmatmul.f32.gmra.mxu0 %v4938
    %v8917 = vpop.f32.mrf.mxu0
    %v8918 = vadd.f32 %v8805, %v8917
    %8919 = vmatmul.f32.gmra.mxu0 %v4950
    %v8920 = vpop.f32.mrf.mxu0
    %v8921 = vadd.f32 %v8808, %v8920
    %8922 = vmatmul.f32.gmra.mxu0 %v4962
    %v8923 = vpop.f32.mrf.mxu0
    %v8924 = vadd.f32 %v8811, %v8923
    %8925 = vmatmul.f32.gmra.mxu0 %v4974
    %v8926 = vpop.f32.mrf.mxu0
    %v8927 = vadd.f32 %v8814, %v8926
    %8928 = vmatmul.f32.gmra.mxu0 %v4986
    %v8929 = vpop.f32.mrf.mxu0
    %v8930 = vadd.f32 %v8817, %v8929
    %8931 = vmatmul.f32.gmra.mxu0 %v4998
    %v8932 = vpop.f32.mrf.mxu0
    %v8933 = vadd.f32 %v8820, %v8932
    %8934 = vmatmul.f32.gmra.mxu0 %v5010
    %v8935 = vpop.f32.mrf.mxu0
    %v8936 = vadd.f32 %v8823, %v8935
    %8937 = vmatmul.f32.gmra.mxu0 %v5022
    %v8938 = vpop.f32.mrf.mxu0
    %v8939 = vadd.f32 %v8826, %v8938
    %8940 = vmatmul.f32.gmra.mxu0 %v5034
    %v8941 = vpop.f32.mrf.mxu0
    %v8942 = vadd.f32 %v8829, %v8941
    %8943 = vmatmul.f32.gmra.mxu0 %v5046
    %v8944 = vpop.f32.mrf.mxu0
    %v8945 = vadd.f32 %v8832, %v8944
    %8946 = vmatmul.f32.gmra.mxu0 %v5058
    %v8947 = vpop.f32.mrf.mxu0
    %v8948 = vadd.f32 %v8835, %v8947
    %8949 = vmatmul.f32.gmra.mxu0 %v5070
    %v8950 = vpop.f32.mrf.mxu0
    %v8951 = vadd.f32 %v8838, %v8950
    %8952 = vmatmul.f32.gmra.mxu0 %v5082
    %v8953 = vpop.f32.mrf.mxu0
    %v8954 = vadd.f32 %v8841, %v8953
    %8955 = vmatmul.f32.gmra.mxu0 %v5094
    %v8956 = vpop.f32.mrf.mxu0
    %v8957 = vadd.f32 %v8844, %v8956
    %8958 = vmatmul.f32.gmra.mxu0 %v5106
    %v8959 = vpop.f32.mrf.mxu0
    %v8960 = vadd.f32 %v8847, %v8959
    %8961 = vmatmul.f32.gmra.mxu0 %v5118
    %v8962 = vpop.f32.mrf.mxu0
    %v8963 = vadd.f32 %v8850, %v8962
    %8964 = vmatmul.f32.gmra.mxu0 %v5130
    %v8965 = vpop.f32.mrf.mxu0
    %v8966 = vadd.f32 %v8853, %v8965
    %8967 = vmatmul.f32.gmra.mxu0 %v5142
    %v8968 = vpop.f32.mrf.mxu0
    %v8969 = vadd.f32 %v8856, %v8968
    %8970 = vmatmul.f32.gmra.mxu0 %v5154
    %v8971 = vpop.f32.mrf.mxu0
    %v8972 = vadd.f32 %v8859, %v8971
    %8973 = vmatmul.f32.gmra.mxu0 %v5166
    %v8974 = vpop.f32.mrf.mxu0
    %v8975 = vadd.f32 %v8862, %v8974
    %8976 = vmatmul.f32.gmra.mxu0 %v5178
    %v8977 = vpop.f32.mrf.mxu0
    %v8978 = vadd.f32 %v8865, %v8977
    %8979 = vmatmul.f32.gmra.mxu0 %v5190
    %v8980 = vpop.f32.mrf.mxu0
    %v8981 = vadd.f32 %v8868, %v8980
    %8982 = vmatmul.f32.gmra.mxu0 %v5202
    %v8983 = vpop.f32.mrf.mxu0
    %v8984 = vadd.f32 %v8871, %v8983
    %8985 = vmatmul.f32.gmra.mxu0 %v5214
    %v8986 = vpop.f32.mrf.mxu0
    %v8987 = vadd.f32 %v8874, %v8986
    %8988 = vmatmul.f32.gmra.mxu0 %v5226
    %v8989 = vpop.f32.mrf.mxu0
    %v8990 = vadd.f32 %v8877, %v8989
    %8991 = vmatmul.f32.gmra.mxu0 %v5238
    %v8992 = vpop.f32.mrf.mxu0
    %v8993 = vadd.f32 %v8880, %v8992
    %8994 = vdwg.mxu0
    %8995 = vmatpush.msra.mxu0 %v5486
    %8996 = vmatpush.msra.mxu0 %v5483
    %8997 = vmatpush.msra.mxu0 %v5480
    %8998 = vmatpush.msra.mxu0 %v5477
    %8999 = vmatpush.msra.mxu0 %v5474
    %9000 = vmatpush.msra.mxu0 %v5471
    %9001 = vmatpush.msra.mxu0 %v5468
    %9002 = vmatpush.msra.mxu0 %v5465
    %9003 = vmatpush.msra.mxu0 %v5462
    %9004 = vmatpush.msra.mxu0 %v5459
    %9005 = vmatpush.msra.mxu0 %v5456
    %9006 = vmatpush.msra.mxu0 %v5453
    %9007 = vmatpush.msra.mxu0 %v5450
    %9008 = vmatpush.msra.mxu0 %v5447
    %9009 = vmatpush.msra.mxu0 %v5444
    %9010 = vmatpush.msra.mxu0 %v5441
    %9011 = vmatmul.f32.gmra.mxu0 %v4867
    %v9012 = vpop.f32.mrf.mxu0
    %v9013 = vadd.f32 %v8900, %v9012
    %9014 = vmatmul.f32.gmra.mxu0 %v4879
    %v9015 = vpop.f32.mrf.mxu0
    %v9016 = vadd.f32 %v8903, %v9015
    %9017 = vmatmul.f32.gmra.mxu0 %v4891
    %v9018 = vpop.f32.mrf.mxu0
    %v9019 = vadd.f32 %v8906, %v9018
    %9020 = vmatmul.f32.gmra.mxu0 %v4903
    %v9021 = vpop.f32.mrf.mxu0
    %v9022 = vadd.f32 %v8909, %v9021
    %9023 = vmatmul.f32.gmra.mxu0 %v4915
    %v9024 = vpop.f32.mrf.mxu0
    %v9025 = vadd.f32 %v8912, %v9024
    %9026 = vmatmul.f32.gmra.mxu0 %v4927
    %v9027 = vpop.f32.mrf.mxu0
    %v9028 = vadd.f32 %v8915, %v9027
    %9029 = vmatmul.f32.gmra.mxu0 %v4939
    %v9030 = vpop.f32.mrf.mxu0
    %v9031 = vadd.f32 %v8918, %v9030
    %9032 = vmatmul.f32.gmra.mxu0 %v4951
    %v9033 = vpop.f32.mrf.mxu0
    %v9034 = vadd.f32 %v8921, %v9033
    %9035 = vmatmul.f32.gmra.mxu0 %v4963
    %v9036 = vpop.f32.mrf.mxu0
    %v9037 = vadd.f32 %v8924, %v9036
    %9038 = vmatmul.f32.gmra.mxu0 %v4975
    %v9039 = vpop.f32.mrf.mxu0
    %v9040 = vadd.f32 %v8927, %v9039
    %9041 = vmatmul.f32.gmra.mxu0 %v4987
    %v9042 = vpop.f32.mrf.mxu0
    %v9043 = vadd.f32 %v8930, %v9042
    %9044 = vmatmul.f32.gmra.mxu0 %v4999
    %v9045 = vpop.f32.mrf.mxu0
    %v9046 = vadd.f32 %v8933, %v9045
    %9047 = vmatmul.f32.gmra.mxu0 %v5011
    %v9048 = vpop.f32.mrf.mxu0
    %v9049 = vadd.f32 %v8936, %v9048
    %9050 = vmatmul.f32.gmra.mxu0 %v5023
    %v9051 = vpop.f32.mrf.mxu0
    %v9052 = vadd.f32 %v8939, %v9051
    %9053 = vmatmul.f32.gmra.mxu0 %v5035
    %v9054 = vpop.f32.mrf.mxu0
    %v9055 = vadd.f32 %v8942, %v9054
    %9056 = vmatmul.f32.gmra.mxu0 %v5047
    %v9057 = vpop.f32.mrf.mxu0
    %v9058 = vadd.f32 %v8945, %v9057
    %9059 = vmatmul.f32.gmra.mxu0 %v5059
    %v9060 = vpop.f32.mrf.mxu0
    %v9061 = vadd.f32 %v8948, %v9060
    %9062 = vmatmul.f32.gmra.mxu0 %v5071
    %v9063 = vpop.f32.mrf.mxu0
    %v9064 = vadd.f32 %v8951, %v9063
    %9065 = vmatmul.f32.gmra.mxu0 %v5083
    %v9066 = vpop.f32.mrf.mxu0
    %v9067 = vadd.f32 %v8954, %v9066
    %9068 = vmatmul.f32.gmra.mxu0 %v5095
    %v9069 = vpop.f32.mrf.mxu0
    %v9070 = vadd.f32 %v8957, %v9069
    %9071 = vmatmul.f32.gmra.mxu0 %v5107
    %v9072 = vpop.f32.mrf.mxu0
    %v9073 = vadd.f32 %v8960, %v9072
    %9074 = vmatmul.f32.gmra.mxu0 %v5119
    %v9075 = vpop.f32.mrf.mxu0
    %v9076 = vadd.f32 %v8963, %v9075
    %9077 = vmatmul.f32.gmra.mxu0 %v5131
    %v9078 = vpop.f32.mrf.mxu0
    %v9079 = vadd.f32 %v8966, %v9078
    %9080 = vmatmul.f32.gmra.mxu0 %v5143
    %v9081 = vpop.f32.mrf.mxu0
    %v9082 = vadd.f32 %v8969, %v9081
    %9083 = vmatmul.f32.gmra.mxu0 %v5155
    %v9084 = vpop.f32.mrf.mxu0
    %v9085 = vadd.f32 %v8972, %v9084
    %9086 = vmatmul.f32.gmra.mxu0 %v5167
    %v9087 = vpop.f32.mrf.mxu0
    %v9088 = vadd.f32 %v8975, %v9087
    %9089 = vmatmul.f32.gmra.mxu0 %v5179
    %v9090 = vpop.f32.mrf.mxu0
    %v9091 = vadd.f32 %v8978, %v9090
    %9092 = vmatmul.f32.gmra.mxu0 %v5191
    %v9093 = vpop.f32.mrf.mxu0
    %v9094 = vadd.f32 %v8981, %v9093
    %9095 = vmatmul.f32.gmra.mxu0 %v5203
    %v9096 = vpop.f32.mrf.mxu0
    %v9097 = vadd.f32 %v8984, %v9096
    %9098 = vmatmul.f32.gmra.mxu0 %v5215
    %v9099 = vpop.f32.mrf.mxu0
    %v9100 = vadd.f32 %v8987, %v9099
    %9101 = vmatmul.f32.gmra.mxu0 %v5227
    %v9102 = vpop.f32.mrf.mxu0
    %v9103 = vadd.f32 %v8990, %v9102
    %9104 = vmatmul.f32.gmra.mxu0 %v5239
    %v9105 = vpop.f32.mrf.mxu0
    %v9106 = vadd.f32 %v8993, %v9105
    %9107 = vdwg.mxu0
    %9108 = vmatpush.msra.mxu0 %v5534
    %9109 = vmatpush.msra.mxu0 %v5531
    %9110 = vmatpush.msra.mxu0 %v5528
    %9111 = vmatpush.msra.mxu0 %v5525
    %9112 = vmatpush.msra.mxu0 %v5522
    %9113 = vmatpush.msra.mxu0 %v5519
    %9114 = vmatpush.msra.mxu0 %v5516
    %9115 = vmatpush.msra.mxu0 %v5513
    %9116 = vmatpush.msra.mxu0 %v5510
    %9117 = vmatpush.msra.mxu0 %v5507
    %9118 = vmatpush.msra.mxu0 %v5504
    %9119 = vmatpush.msra.mxu0 %v5501
    %9120 = vmatpush.msra.mxu0 %v5498
    %9121 = vmatpush.msra.mxu0 %v5495
    %9122 = vmatpush.msra.mxu0 %v5492
    %9123 = vmatpush.msra.mxu0 %v5489
    %9124 = vmatmul.f32.gmra.mxu0 %v4868
    %v9125 = vpop.f32.mrf.mxu0
    %v9126 = vadd.f32 %v9013, %v9125
    %9127 = vmatmul.f32.gmra.mxu0 %v4880
    %v9128 = vpop.f32.mrf.mxu0
    %v9129 = vadd.f32 %v9016, %v9128
    %9130 = vmatmul.f32.gmra.mxu0 %v4892
    %v9131 = vpop.f32.mrf.mxu0
    %v9132 = vadd.f32 %v9019, %v9131
    %9133 = vmatmul.f32.gmra.mxu0 %v4904
    %v9134 = vpop.f32.mrf.mxu0
    %v9135 = vadd.f32 %v9022, %v9134
    %9136 = vmatmul.f32.gmra.mxu0 %v4916
    %v9137 = vpop.f32.mrf.mxu0
    %v9138 = vadd.f32 %v9025, %v9137
    %9139 = vmatmul.f32.gmra.mxu0 %v4928
    %v9140 = vpop.f32.mrf.mxu0
    %v9141 = vadd.f32 %v9028, %v9140
    %9142 = vmatmul.f32.gmra.mxu0 %v4940
    %v9143 = vpop.f32.mrf.mxu0
    %v9144 = vadd.f32 %v9031, %v9143
    %9145 = vmatmul.f32.gmra.mxu0 %v4952
    %v9146 = vpop.f32.mrf.mxu0
    %v9147 = vadd.f32 %v9034, %v9146
    %9148 = vmatmul.f32.gmra.mxu0 %v4964
    %v9149 = vpop.f32.mrf.mxu0
    %v9150 = vadd.f32 %v9037, %v9149
    %9151 = vmatmul.f32.gmra.mxu0 %v4976
    %v9152 = vpop.f32.mrf.mxu0
    %v9153 = vadd.f32 %v9040, %v9152
    %9154 = vmatmul.f32.gmra.mxu0 %v4988
    %v9155 = vpop.f32.mrf.mxu0
    %v9156 = vadd.f32 %v9043, %v9155
    %9157 = vmatmul.f32.gmra.mxu0 %v5000
    %v9158 = vpop.f32.mrf.mxu0
    %v9159 = vadd.f32 %v9046, %v9158
    %9160 = vmatmul.f32.gmra.mxu0 %v5012
    %v9161 = vpop.f32.mrf.mxu0
    %v9162 = vadd.f32 %v9049, %v9161
    %9163 = vmatmul.f32.gmra.mxu0 %v5024
    %v9164 = vpop.f32.mrf.mxu0
    %v9165 = vadd.f32 %v9052, %v9164
    %9166 = vmatmul.f32.gmra.mxu0 %v5036
    %v9167 = vpop.f32.mrf.mxu0
    %v9168 = vadd.f32 %v9055, %v9167
    %9169 = vmatmul.f32.gmra.mxu0 %v5048
    %v9170 = vpop.f32.mrf.mxu0
    %v9171 = vadd.f32 %v9058, %v9170
    %9172 = vmatmul.f32.gmra.mxu0 %v5060
    %v9173 = vpop.f32.mrf.mxu0
    %v9174 = vadd.f32 %v9061, %v9173
    %9175 = vmatmul.f32.gmra.mxu0 %v5072
    %v9176 = vpop.f32.mrf.mxu0
    %v9177 = vadd.f32 %v9064, %v9176
    %9178 = vmatmul.f32.gmra.mxu0 %v5084
    %v9179 = vpop.f32.mrf.mxu0
    %v9180 = vadd.f32 %v9067, %v9179
    %9181 = vmatmul.f32.gmra.mxu0 %v5096
    %v9182 = vpop.f32.mrf.mxu0
    %v9183 = vadd.f32 %v9070, %v9182
    %9184 = vmatmul.f32.gmra.mxu0 %v5108
    %v9185 = vpop.f32.mrf.mxu0
    %v9186 = vadd.f32 %v9073, %v9185
    %9187 = vmatmul.f32.gmra.mxu0 %v5120
    %v9188 = vpop.f32.mrf.mxu0
    %v9189 = vadd.f32 %v9076, %v9188
    %9190 = vmatmul.f32.gmra.mxu0 %v5132
    %v9191 = vpop.f32.mrf.mxu0
    %v9192 = vadd.f32 %v9079, %v9191
    %9193 = vmatmul.f32.gmra.mxu0 %v5144
    %v9194 = vpop.f32.mrf.mxu0
    %v9195 = vadd.f32 %v9082, %v9194
    %9196 = vmatmul.f32.gmra.mxu0 %v5156
    %v9197 = vpop.f32.mrf.mxu0
    %v9198 = vadd.f32 %v9085, %v9197
    %9199 = vmatmul.f32.gmra.mxu0 %v5168
    %v9200 = vpop.f32.mrf.mxu0
    %v9201 = vadd.f32 %v9088, %v9200
    %9202 = vmatmul.f32.gmra.mxu0 %v5180
    %v9203 = vpop.f32.mrf.mxu0
    %v9204 = vadd.f32 %v9091, %v9203
    %9205 = vmatmul.f32.gmra.mxu0 %v5192
    %v9206 = vpop.f32.mrf.mxu0
    %v9207 = vadd.f32 %v9094, %v9206
    %9208 = vmatmul.f32.gmra.mxu0 %v5204
    %v9209 = vpop.f32.mrf.mxu0
    %v9210 = vadd.f32 %v9097, %v9209
    %9211 = vmatmul.f32.gmra.mxu0 %v5216
    %v9212 = vpop.f32.mrf.mxu0
    %v9213 = vadd.f32 %v9100, %v9212
    %9214 = vmatmul.f32.gmra.mxu0 %v5228
    %v9215 = vpop.f32.mrf.mxu0
    %v9216 = vadd.f32 %v9103, %v9215
    %9217 = vmatmul.f32.gmra.mxu0 %v5240
    %v9218 = vpop.f32.mrf.mxu0
    %v9219 = vadd.f32 %v9106, %v9218
    %9220 = vdwg.mxu0
    %9221 = vmatpush.msra.mxu0 %v5582
    %9222 = vmatpush.msra.mxu0 %v5579
    %9223 = vmatpush.msra.mxu0 %v5576
    %9224 = vmatpush.msra.mxu0 %v5573
    %9225 = vmatpush.msra.mxu0 %v5570
    %9226 = vmatpush.msra.mxu0 %v5567
    %9227 = vmatpush.msra.mxu0 %v5564
    %9228 = vmatpush.msra.mxu0 %v5561
    %9229 = vmatpush.msra.mxu0 %v5558
    %9230 = vmatpush.msra.mxu0 %v5555
    %9231 = vmatpush.msra.mxu0 %v5552
    %9232 = vmatpush.msra.mxu0 %v5549
    %9233 = vmatpush.msra.mxu0 %v5546
    %9234 = vmatpush.msra.mxu0 %v5543
    %9235 = vmatpush.msra.mxu0 %v5540
    %9236 = vmatpush.msra.mxu0 %v5537
    %9237 = vmatmul.f32.gmra.mxu0 %v4869
    %v9238 = vpop.f32.mrf.mxu0
    %v9239 = vadd.f32 %v9126, %v9238
    %9240 = vmatmul.f32.gmra.mxu0 %v4881
    %v9241 = vpop.f32.mrf.mxu0
    %v9242 = vadd.f32 %v9129, %v9241
    %9243 = vmatmul.f32.gmra.mxu0 %v4893
    %v9244 = vpop.f32.mrf.mxu0
    %v9245 = vadd.f32 %v9132, %v9244
    %9246 = vmatmul.f32.gmra.mxu0 %v4905
    %v9247 = vpop.f32.mrf.mxu0
    %v9248 = vadd.f32 %v9135, %v9247
    %9249 = vmatmul.f32.gmra.mxu0 %v4917
    %v9250 = vpop.f32.mrf.mxu0
    %v9251 = vadd.f32 %v9138, %v9250
    %9252 = vmatmul.f32.gmra.mxu0 %v4929
    %v9253 = vpop.f32.mrf.mxu0
    %v9254 = vadd.f32 %v9141, %v9253
    %9255 = vmatmul.f32.gmra.mxu0 %v4941
    %v9256 = vpop.f32.mrf.mxu0
    %v9257 = vadd.f32 %v9144, %v9256
    %9258 = vmatmul.f32.gmra.mxu0 %v4953
    %v9259 = vpop.f32.mrf.mxu0
    %v9260 = vadd.f32 %v9147, %v9259
    %9261 = vmatmul.f32.gmra.mxu0 %v4965
    %v9262 = vpop.f32.mrf.mxu0
    %v9263 = vadd.f32 %v9150, %v9262
    %9264 = vmatmul.f32.gmra.mxu0 %v4977
    %v9265 = vpop.f32.mrf.mxu0
    %v9266 = vadd.f32 %v9153, %v9265
    %9267 = vmatmul.f32.gmra.mxu0 %v4989
    %v9268 = vpop.f32.mrf.mxu0
    %v9269 = vadd.f32 %v9156, %v9268
    %9270 = vmatmul.f32.gmra.mxu0 %v5001
    %v9271 = vpop.f32.mrf.mxu0
    %v9272 = vadd.f32 %v9159, %v9271
    %9273 = vmatmul.f32.gmra.mxu0 %v5013
    %v9274 = vpop.f32.mrf.mxu0
    %v9275 = vadd.f32 %v9162, %v9274
    %9276 = vmatmul.f32.gmra.mxu0 %v5025
    %v9277 = vpop.f32.mrf.mxu0
    %v9278 = vadd.f32 %v9165, %v9277
    %9279 = vmatmul.f32.gmra.mxu0 %v5037
    %v9280 = vpop.f32.mrf.mxu0
    %v9281 = vadd.f32 %v9168, %v9280
    %9282 = vmatmul.f32.gmra.mxu0 %v5049
    %v9283 = vpop.f32.mrf.mxu0
    %v9284 = vadd.f32 %v9171, %v9283
    %9285 = vmatmul.f32.gmra.mxu0 %v5061
    %v9286 = vpop.f32.mrf.mxu0
    %v9287 = vadd.f32 %v9174, %v9286
    %9288 = vmatmul.f32.gmra.mxu0 %v5073
    %v9289 = vpop.f32.mrf.mxu0
    %v9290 = vadd.f32 %v9177, %v9289
    %9291 = vmatmul.f32.gmra.mxu0 %v5085
    %v9292 = vpop.f32.mrf.mxu0
    %v9293 = vadd.f32 %v9180, %v9292
    %9294 = vmatmul.f32.gmra.mxu0 %v5097
    %v9295 = vpop.f32.mrf.mxu0
    %v9296 = vadd.f32 %v9183, %v9295
    %9297 = vmatmul.f32.gmra.mxu0 %v5109
    %v9298 = vpop.f32.mrf.mxu0
    %v9299 = vadd.f32 %v9186, %v9298
    %9300 = vmatmul.f32.gmra.mxu0 %v5121
    %v9301 = vpop.f32.mrf.mxu0
    %v9302 = vadd.f32 %v9189, %v9301
    %9303 = vmatmul.f32.gmra.mxu0 %v5133
    %v9304 = vpop.f32.mrf.mxu0
    %v9305 = vadd.f32 %v9192, %v9304
    %9306 = vmatmul.f32.gmra.mxu0 %v5145
    %v9307 = vpop.f32.mrf.mxu0
    %v9308 = vadd.f32 %v9195, %v9307
    %9309 = vmatmul.f32.gmra.mxu0 %v5157
    %v9310 = vpop.f32.mrf.mxu0
    %v9311 = vadd.f32 %v9198, %v9310
    %9312 = vmatmul.f32.gmra.mxu0 %v5169
    %v9313 = vpop.f32.mrf.mxu0
    %v9314 = vadd.f32 %v9201, %v9313
    %9315 = vmatmul.f32.gmra.mxu0 %v5181
    %v9316 = vpop.f32.mrf.mxu0
    %v9317 = vadd.f32 %v9204, %v9316
    %9318 = vmatmul.f32.gmra.mxu0 %v5193
    %v9319 = vpop.f32.mrf.mxu0
    %v9320 = vadd.f32 %v9207, %v9319
    %9321 = vmatmul.f32.gmra.mxu0 %v5205
    %v9322 = vpop.f32.mrf.mxu0
    %v9323 = vadd.f32 %v9210, %v9322
    %9324 = vmatmul.f32.gmra.mxu0 %v5217
    %v9325 = vpop.f32.mrf.mxu0
    %v9326 = vadd.f32 %v9213, %v9325
    %9327 = vmatmul.f32.gmra.mxu0 %v5229
    %v9328 = vpop.f32.mrf.mxu0
    %v9329 = vadd.f32 %v9216, %v9328
    %9330 = vmatmul.f32.gmra.mxu0 %v5241
    %v9331 = vpop.f32.mrf.mxu0
    %v9332 = vadd.f32 %v9219, %v9331
    %9333 = vdwg.mxu0
    %9334 = vmatpush.msra.mxu0 %v5630
    %9335 = vmatpush.msra.mxu0 %v5627
    %9336 = vmatpush.msra.mxu0 %v5624
    %9337 = vmatpush.msra.mxu0 %v5621
    %9338 = vmatpush.msra.mxu0 %v5618
    %9339 = vmatpush.msra.mxu0 %v5615
    %9340 = vmatpush.msra.mxu0 %v5612
    %9341 = vmatpush.msra.mxu0 %v5609
    %9342 = vmatpush.msra.mxu0 %v5606
    %9343 = vmatpush.msra.mxu0 %v5603
    %9344 = vmatpush.msra.mxu0 %v5600
    %9345 = vmatpush.msra.mxu0 %v5597
    %9346 = vmatpush.msra.mxu0 %v5594
    %9347 = vmatpush.msra.mxu0 %v5591
    %9348 = vmatpush.msra.mxu0 %v5588
    %9349 = vmatpush.msra.mxu0 %v5585
    %9350 = vmatmul.f32.gmra.mxu0 %v4870
    %v9351 = vpop.f32.mrf.mxu0
    %v9352 = vadd.f32 %v9239, %v9351
    %9353 = vmatmul.f32.gmra.mxu0 %v4882
    %v9354 = vpop.f32.mrf.mxu0
    %v9355 = vadd.f32 %v9242, %v9354
    %9356 = vmatmul.f32.gmra.mxu0 %v4894
    %v9357 = vpop.f32.mrf.mxu0
    %v9358 = vadd.f32 %v9245, %v9357
    %9359 = vmatmul.f32.gmra.mxu0 %v4906
    %v9360 = vpop.f32.mrf.mxu0
    %v9361 = vadd.f32 %v9248, %v9360
    %9362 = vmatmul.f32.gmra.mxu0 %v4918
    %v9363 = vpop.f32.mrf.mxu0
    %v9364 = vadd.f32 %v9251, %v9363
    %9365 = vmatmul.f32.gmra.mxu0 %v4930
    %v9366 = vpop.f32.mrf.mxu0
    %v9367 = vadd.f32 %v9254, %v9366
    %9368 = vmatmul.f32.gmra.mxu0 %v4942
    %v9369 = vpop.f32.mrf.mxu0
    %v9370 = vadd.f32 %v9257, %v9369
    %9371 = vmatmul.f32.gmra.mxu0 %v4954
    %v9372 = vpop.f32.mrf.mxu0
    %v9373 = vadd.f32 %v9260, %v9372
    %9374 = vmatmul.f32.gmra.mxu0 %v4966
    %v9375 = vpop.f32.mrf.mxu0
    %v9376 = vadd.f32 %v9263, %v9375
    %9377 = vmatmul.f32.gmra.mxu0 %v4978
    %v9378 = vpop.f32.mrf.mxu0
    %v9379 = vadd.f32 %v9266, %v9378
    %9380 = vmatmul.f32.gmra.mxu0 %v4990
    %v9381 = vpop.f32.mrf.mxu0
    %v9382 = vadd.f32 %v9269, %v9381
    %9383 = vmatmul.f32.gmra.mxu0 %v5002
    %v9384 = vpop.f32.mrf.mxu0
    %v9385 = vadd.f32 %v9272, %v9384
    %9386 = vmatmul.f32.gmra.mxu0 %v5014
    %v9387 = vpop.f32.mrf.mxu0
    %v9388 = vadd.f32 %v9275, %v9387
    %9389 = vmatmul.f32.gmra.mxu0 %v5026
    %v9390 = vpop.f32.mrf.mxu0
    %v9391 = vadd.f32 %v9278, %v9390
    %9392 = vmatmul.f32.gmra.mxu0 %v5038
    %v9393 = vpop.f32.mrf.mxu0
    %v9394 = vadd.f32 %v9281, %v9393
    %9395 = vmatmul.f32.gmra.mxu0 %v5050
    %v9396 = vpop.f32.mrf.mxu0
    %v9397 = vadd.f32 %v9284, %v9396
    %9398 = vmatmul.f32.gmra.mxu0 %v5062
    %v9399 = vpop.f32.mrf.mxu0
    %v9400 = vadd.f32 %v9287, %v9399
    %9401 = vmatmul.f32.gmra.mxu0 %v5074
    %v9402 = vpop.f32.mrf.mxu0
    %v9403 = vadd.f32 %v9290, %v9402
    %9404 = vmatmul.f32.gmra.mxu0 %v5086
    %v9405 = vpop.f32.mrf.mxu0
    %v9406 = vadd.f32 %v9293, %v9405
    %9407 = vmatmul.f32.gmra.mxu0 %v5098
    %v9408 = vpop.f32.mrf.mxu0
    %v9409 = vadd.f32 %v9296, %v9408
    %9410 = vmatmul.f32.gmra.mxu0 %v5110
    %v9411 = vpop.f32.mrf.mxu0
    %v9412 = vadd.f32 %v9299, %v9411
    %9413 = vmatmul.f32.gmra.mxu0 %v5122
    %v9414 = vpop.f32.mrf.mxu0
    %v9415 = vadd.f32 %v9302, %v9414
    %9416 = vmatmul.f32.gmra.mxu0 %v5134
    %v9417 = vpop.f32.mrf.mxu0
    %v9418 = vadd.f32 %v9305, %v9417
    %9419 = vmatmul.f32.gmra.mxu0 %v5146
    %v9420 = vpop.f32.mrf.mxu0
    %v9421 = vadd.f32 %v9308, %v9420
    %9422 = vmatmul.f32.gmra.mxu0 %v5158
    %v9423 = vpop.f32.mrf.mxu0
    %v9424 = vadd.f32 %v9311, %v9423
    %9425 = vmatmul.f32.gmra.mxu0 %v5170
    %v9426 = vpop.f32.mrf.mxu0
    %v9427 = vadd.f32 %v9314, %v9426
    %9428 = vmatmul.f32.gmra.mxu0 %v5182
    %v9429 = vpop.f32.mrf.mxu0
    %v9430 = vadd.f32 %v9317, %v9429
    %9431 = vmatmul.f32.gmra.mxu0 %v5194
    %v9432 = vpop.f32.mrf.mxu0
    %v9433 = vadd.f32 %v9320, %v9432
    %9434 = vmatmul.f32.gmra.mxu0 %v5206
    %v9435 = vpop.f32.mrf.mxu0
    %v9436 = vadd.f32 %v9323, %v9435
    %9437 = vmatmul.f32.gmra.mxu0 %v5218
    %v9438 = vpop.f32.mrf.mxu0
    %v9439 = vadd.f32 %v9326, %v9438
    %9440 = vmatmul.f32.gmra.mxu0 %v5230
    %v9441 = vpop.f32.mrf.mxu0
    %v9442 = vadd.f32 %v9329, %v9441
    %9443 = vmatmul.f32.gmra.mxu0 %v5242
    %v9444 = vpop.f32.mrf.mxu0
    %v9445 = vadd.f32 %v9332, %v9444
    %9446 = vdwg.mxu0
    %9447 = vmatpush.msra.mxu0 %v5678
    %9448 = vmatpush.msra.mxu0 %v5675
    %9449 = vmatpush.msra.mxu0 %v5672
    %9450 = vmatpush.msra.mxu0 %v5669
    %9451 = vmatpush.msra.mxu0 %v5666
    %9452 = vmatpush.msra.mxu0 %v5663
    %9453 = vmatpush.msra.mxu0 %v5660
    %9454 = vmatpush.msra.mxu0 %v5657
    %9455 = vmatpush.msra.mxu0 %v5654
    %9456 = vmatpush.msra.mxu0 %v5651
    %9457 = vmatpush.msra.mxu0 %v5648
    %9458 = vmatpush.msra.mxu0 %v5645
    %9459 = vmatpush.msra.mxu0 %v5642
    %9460 = vmatpush.msra.mxu0 %v5639
    %9461 = vmatpush.msra.mxu0 %v5636
    %9462 = vmatpush.msra.mxu0 %v5633
    %9463 = vmatmul.f32.gmra.mxu0 %v4871
    %v9464 = vpop.f32.mrf.mxu0
    %v9465 = vadd.f32 %v9352, %v9464
    %9466 = vmatmul.f32.gmra.mxu0 %v4883
    %v9467 = vpop.f32.mrf.mxu0
    %v9468 = vadd.f32 %v9355, %v9467
    %9469 = vmatmul.f32.gmra.mxu0 %v4895
    %v9470 = vpop.f32.mrf.mxu0
    %v9471 = vadd.f32 %v9358, %v9470
    %9472 = vmatmul.f32.gmra.mxu0 %v4907
    %v9473 = vpop.f32.mrf.mxu0
    %v9474 = vadd.f32 %v9361, %v9473
    %9475 = vmatmul.f32.gmra.mxu0 %v4919
    %v9476 = vpop.f32.mrf.mxu0
    %v9477 = vadd.f32 %v9364, %v9476
    %9478 = vmatmul.f32.gmra.mxu0 %v4931
    %v9479 = vpop.f32.mrf.mxu0
    %v9480 = vadd.f32 %v9367, %v9479
    %9481 = vmatmul.f32.gmra.mxu0 %v4943
    %v9482 = vpop.f32.mrf.mxu0
    %v9483 = vadd.f32 %v9370, %v9482
    %9484 = vmatmul.f32.gmra.mxu0 %v4955
    %v9485 = vpop.f32.mrf.mxu0
    %v9486 = vadd.f32 %v9373, %v9485
    %9487 = vmatmul.f32.gmra.mxu0 %v4967
    %v9488 = vpop.f32.mrf.mxu0
    %v9489 = vadd.f32 %v9376, %v9488
    %9490 = vmatmul.f32.gmra.mxu0 %v4979
    %v9491 = vpop.f32.mrf.mxu0
    %v9492 = vadd.f32 %v9379, %v9491
    %9493 = vmatmul.f32.gmra.mxu0 %v4991
    %v9494 = vpop.f32.mrf.mxu0
    %v9495 = vadd.f32 %v9382, %v9494
    %9496 = vmatmul.f32.gmra.mxu0 %v5003
    %v9497 = vpop.f32.mrf.mxu0
    %v9498 = vadd.f32 %v9385, %v9497
    %9499 = vmatmul.f32.gmra.mxu0 %v5015
    %v9500 = vpop.f32.mrf.mxu0
    %v9501 = vadd.f32 %v9388, %v9500
    %9502 = vmatmul.f32.gmra.mxu0 %v5027
    %v9503 = vpop.f32.mrf.mxu0
    %v9504 = vadd.f32 %v9391, %v9503
    %9505 = vmatmul.f32.gmra.mxu0 %v5039
    %v9506 = vpop.f32.mrf.mxu0
    %v9507 = vadd.f32 %v9394, %v9506
    %9508 = vmatmul.f32.gmra.mxu0 %v5051
    %v9509 = vpop.f32.mrf.mxu0
    %v9510 = vadd.f32 %v9397, %v9509
    %9511 = vmatmul.f32.gmra.mxu0 %v5063
    %v9512 = vpop.f32.mrf.mxu0
    %v9513 = vadd.f32 %v9400, %v9512
    %9514 = vmatmul.f32.gmra.mxu0 %v5075
    %v9515 = vpop.f32.mrf.mxu0
    %v9516 = vadd.f32 %v9403, %v9515
    %9517 = vmatmul.f32.gmra.mxu0 %v5087
    %v9518 = vpop.f32.mrf.mxu0
    %v9519 = vadd.f32 %v9406, %v9518
    %9520 = vmatmul.f32.gmra.mxu0 %v5099
    %v9521 = vpop.f32.mrf.mxu0
    %v9522 = vadd.f32 %v9409, %v9521
    %9523 = vmatmul.f32.gmra.mxu0 %v5111
    %v9524 = vpop.f32.mrf.mxu0
    %v9525 = vadd.f32 %v9412, %v9524
    %9526 = vmatmul.f32.gmra.mxu0 %v5123
    %v9527 = vpop.f32.mrf.mxu0
    %v9528 = vadd.f32 %v9415, %v9527
    %9529 = vmatmul.f32.gmra.mxu0 %v5135
    %v9530 = vpop.f32.mrf.mxu0
    %v9531 = vadd.f32 %v9418, %v9530
    %9532 = vmatmul.f32.gmra.mxu0 %v5147
    %v9533 = vpop.f32.mrf.mxu0
    %v9534 = vadd.f32 %v9421, %v9533
    %9535 = vmatmul.f32.gmra.mxu0 %v5159
    %v9536 = vpop.f32.mrf.mxu0
    %v9537 = vadd.f32 %v9424, %v9536
    %9538 = vmatmul.f32.gmra.mxu0 %v5171
    %v9539 = vpop.f32.mrf.mxu0
    %v9540 = vadd.f32 %v9427, %v9539
    %9541 = vmatmul.f32.gmra.mxu0 %v5183
    %v9542 = vpop.f32.mrf.mxu0
    %v9543 = vadd.f32 %v9430, %v9542
    %9544 = vmatmul.f32.gmra.mxu0 %v5195
    %v9545 = vpop.f32.mrf.mxu0
    %v9546 = vadd.f32 %v9433, %v9545
    %9547 = vmatmul.f32.gmra.mxu0 %v5207
    %v9548 = vpop.f32.mrf.mxu0
    %v9549 = vadd.f32 %v9436, %v9548
    %9550 = vmatmul.f32.gmra.mxu0 %v5219
    %v9551 = vpop.f32.mrf.mxu0
    %v9552 = vadd.f32 %v9439, %v9551
    %9553 = vmatmul.f32.gmra.mxu0 %v5231
    %v9554 = vpop.f32.mrf.mxu0
    %v9555 = vadd.f32 %v9442, %v9554
    %9556 = vmatmul.f32.gmra.mxu0 %v5243
    %v9557 = vpop.f32.mrf.mxu0
    %v9558 = vadd.f32 %v9445, %v9557
    %9559 = vdwg.mxu0
    %9560 = vmatpush.msra.mxu0 %v5726
    %9561 = vmatpush.msra.mxu0 %v5723
    %9562 = vmatpush.msra.mxu0 %v5720
    %9563 = vmatpush.msra.mxu0 %v5717
    %9564 = vmatpush.msra.mxu0 %v5714
    %9565 = vmatpush.msra.mxu0 %v5711
    %9566 = vmatpush.msra.mxu0 %v5708
    %9567 = vmatpush.msra.mxu0 %v5705
    %9568 = vmatpush.msra.mxu0 %v5702
    %9569 = vmatpush.msra.mxu0 %v5699
    %9570 = vmatpush.msra.mxu0 %v5696
    %9571 = vmatpush.msra.mxu0 %v5693
    %9572 = vmatpush.msra.mxu0 %v5690
    %9573 = vmatpush.msra.mxu0 %v5687
    %9574 = vmatpush.msra.mxu0 %v5684
    %9575 = vmatpush.msra.mxu0 %v5681
    %9576 = vmatmul.f32.gmra.mxu0 %v4872
    %v9577 = vpop.f32.mrf.mxu0
    %v9578 = vadd.f32 %v9465, %v9577
    %9579 = vmatmul.f32.gmra.mxu0 %v4884
    %v9580 = vpop.f32.mrf.mxu0
    %v9581 = vadd.f32 %v9468, %v9580
    %9582 = vmatmul.f32.gmra.mxu0 %v4896
    %v9583 = vpop.f32.mrf.mxu0
    %v9584 = vadd.f32 %v9471, %v9583
    %9585 = vmatmul.f32.gmra.mxu0 %v4908
    %v9586 = vpop.f32.mrf.mxu0
    %v9587 = vadd.f32 %v9474, %v9586
    %9588 = vmatmul.f32.gmra.mxu0 %v4920
    %v9589 = vpop.f32.mrf.mxu0
    %v9590 = vadd.f32 %v9477, %v9589
    %9591 = vmatmul.f32.gmra.mxu0 %v4932
    %v9592 = vpop.f32.mrf.mxu0
    %v9593 = vadd.f32 %v9480, %v9592
    %9594 = vmatmul.f32.gmra.mxu0 %v4944
    %v9595 = vpop.f32.mrf.mxu0
    %v9596 = vadd.f32 %v9483, %v9595
    %9597 = vmatmul.f32.gmra.mxu0 %v4956
    %v9598 = vpop.f32.mrf.mxu0
    %v9599 = vadd.f32 %v9486, %v9598
    %9600 = vmatmul.f32.gmra.mxu0 %v4968
    %v9601 = vpop.f32.mrf.mxu0
    %v9602 = vadd.f32 %v9489, %v9601
    %9603 = vmatmul.f32.gmra.mxu0 %v4980
    %v9604 = vpop.f32.mrf.mxu0
    %v9605 = vadd.f32 %v9492, %v9604
    %9606 = vmatmul.f32.gmra.mxu0 %v4992
    %v9607 = vpop.f32.mrf.mxu0
    %v9608 = vadd.f32 %v9495, %v9607
    %9609 = vmatmul.f32.gmra.mxu0 %v5004
    %v9610 = vpop.f32.mrf.mxu0
    %v9611 = vadd.f32 %v9498, %v9610
    %9612 = vmatmul.f32.gmra.mxu0 %v5016
    %v9613 = vpop.f32.mrf.mxu0
    %v9614 = vadd.f32 %v9501, %v9613
    %9615 = vmatmul.f32.gmra.mxu0 %v5028
    %v9616 = vpop.f32.mrf.mxu0
    %v9617 = vadd.f32 %v9504, %v9616
    %9618 = vmatmul.f32.gmra.mxu0 %v5040
    %v9619 = vpop.f32.mrf.mxu0
    %v9620 = vadd.f32 %v9507, %v9619
    %9621 = vmatmul.f32.gmra.mxu0 %v5052
    %v9622 = vpop.f32.mrf.mxu0
    %v9623 = vadd.f32 %v9510, %v9622
    %9624 = vmatmul.f32.gmra.mxu0 %v5064
    %v9625 = vpop.f32.mrf.mxu0
    %v9626 = vadd.f32 %v9513, %v9625
    %9627 = vmatmul.f32.gmra.mxu0 %v5076
    %v9628 = vpop.f32.mrf.mxu0
    %v9629 = vadd.f32 %v9516, %v9628
    %9630 = vmatmul.f32.gmra.mxu0 %v5088
    %v9631 = vpop.f32.mrf.mxu0
    %v9632 = vadd.f32 %v9519, %v9631
    %9633 = vmatmul.f32.gmra.mxu0 %v5100
    %v9634 = vpop.f32.mrf.mxu0
    %v9635 = vadd.f32 %v9522, %v9634
    %9636 = vmatmul.f32.gmra.mxu0 %v5112
    %v9637 = vpop.f32.mrf.mxu0
    %v9638 = vadd.f32 %v9525, %v9637
    %9639 = vmatmul.f32.gmra.mxu0 %v5124
    %v9640 = vpop.f32.mrf.mxu0
    %v9641 = vadd.f32 %v9528, %v9640
    %9642 = vmatmul.f32.gmra.mxu0 %v5136
    %v9643 = vpop.f32.mrf.mxu0
    %v9644 = vadd.f32 %v9531, %v9643
    %9645 = vmatmul.f32.gmra.mxu0 %v5148
    %v9646 = vpop.f32.mrf.mxu0
    %v9647 = vadd.f32 %v9534, %v9646
    %9648 = vmatmul.f32.gmra.mxu0 %v5160
    %v9649 = vpop.f32.mrf.mxu0
    %v9650 = vadd.f32 %v9537, %v9649
    %9651 = vmatmul.f32.gmra.mxu0 %v5172
    %v9652 = vpop.f32.mrf.mxu0
    %v9653 = vadd.f32 %v9540, %v9652
    %9654 = vmatmul.f32.gmra.mxu0 %v5184
    %v9655 = vpop.f32.mrf.mxu0
    %v9656 = vadd.f32 %v9543, %v9655
    %9657 = vmatmul.f32.gmra.mxu0 %v5196
    %v9658 = vpop.f32.mrf.mxu0
    %v9659 = vadd.f32 %v9546, %v9658
    %9660 = vmatmul.f32.gmra.mxu0 %v5208
    %v9661 = vpop.f32.mrf.mxu0
    %v9662 = vadd.f32 %v9549, %v9661
    %9663 = vmatmul.f32.gmra.mxu0 %v5220
    %v9664 = vpop.f32.mrf.mxu0
    %v9665 = vadd.f32 %v9552, %v9664
    %9666 = vmatmul.f32.gmra.mxu0 %v5232
    %v9667 = vpop.f32.mrf.mxu0
    %v9668 = vadd.f32 %v9555, %v9667
    %9669 = vmatmul.f32.gmra.mxu0 %v5244
    %v9670 = vpop.f32.mrf.mxu0
    %v9671 = vadd.f32 %v9558, %v9670
    %9672 = vdwg.mxu0
    %9673 = vmatpush.msra.mxu0 %v5774
    %9674 = vmatpush.msra.mxu0 %v5771
    %9675 = vmatpush.msra.mxu0 %v5768
    %9676 = vmatpush.msra.mxu0 %v5765
    %9677 = vmatpush.msra.mxu0 %v5762
    %9678 = vmatpush.msra.mxu0 %v5759
    %9679 = vmatpush.msra.mxu0 %v5756
    %9680 = vmatpush.msra.mxu0 %v5753
    %9681 = vmatpush.msra.mxu0 %v5750
    %9682 = vmatpush.msra.mxu0 %v5747
    %9683 = vmatpush.msra.mxu0 %v5744
    %9684 = vmatpush.msra.mxu0 %v5741
    %9685 = vmatpush.msra.mxu0 %v5738
    %9686 = vmatpush.msra.mxu0 %v5735
    %9687 = vmatpush.msra.mxu0 %v5732
    %9688 = vmatpush.msra.mxu0 %v5729
    %9689 = vmatmul.f32.gmra.mxu0 %v4873
    %v9690 = vpop.f32.mrf.mxu0
    %v9691 = vadd.f32 %v9578, %v9690
    %9692 = vmatmul.f32.gmra.mxu0 %v4885
    %v9693 = vpop.f32.mrf.mxu0
    %v9694 = vadd.f32 %v9581, %v9693
    %9695 = vmatmul.f32.gmra.mxu0 %v4897
    %v9696 = vpop.f32.mrf.mxu0
    %v9697 = vadd.f32 %v9584, %v9696
    %9698 = vmatmul.f32.gmra.mxu0 %v4909
    %v9699 = vpop.f32.mrf.mxu0
    %v9700 = vadd.f32 %v9587, %v9699
    %9701 = vmatmul.f32.gmra.mxu0 %v4921
    %v9702 = vpop.f32.mrf.mxu0
    %v9703 = vadd.f32 %v9590, %v9702
    %9704 = vmatmul.f32.gmra.mxu0 %v4933
    %v9705 = vpop.f32.mrf.mxu0
    %v9706 = vadd.f32 %v9593, %v9705
    %9707 = vmatmul.f32.gmra.mxu0 %v4945
    %v9708 = vpop.f32.mrf.mxu0
    %v9709 = vadd.f32 %v9596, %v9708
    %9710 = vmatmul.f32.gmra.mxu0 %v4957
    %v9711 = vpop.f32.mrf.mxu0
    %v9712 = vadd.f32 %v9599, %v9711
    %9713 = vmatmul.f32.gmra.mxu0 %v4969
    %v9714 = vpop.f32.mrf.mxu0
    %v9715 = vadd.f32 %v9602, %v9714
    %9716 = vmatmul.f32.gmra.mxu0 %v4981
    %v9717 = vpop.f32.mrf.mxu0
    %v9718 = vadd.f32 %v9605, %v9717
    %9719 = vmatmul.f32.gmra.mxu0 %v4993
    %v9720 = vpop.f32.mrf.mxu0
    %v9721 = vadd.f32 %v9608, %v9720
    %9722 = vmatmul.f32.gmra.mxu0 %v5005
    %v9723 = vpop.f32.mrf.mxu0
    %v9724 = vadd.f32 %v9611, %v9723
    %9725 = vmatmul.f32.gmra.mxu0 %v5017
    %v9726 = vpop.f32.mrf.mxu0
    %v9727 = vadd.f32 %v9614, %v9726
    %9728 = vmatmul.f32.gmra.mxu0 %v5029
    %v9729 = vpop.f32.mrf.mxu0
    %v9730 = vadd.f32 %v9617, %v9729
    %9731 = vmatmul.f32.gmra.mxu0 %v5041
    %v9732 = vpop.f32.mrf.mxu0
    %v9733 = vadd.f32 %v9620, %v9732
    %9734 = vmatmul.f32.gmra.mxu0 %v5053
    %v9735 = vpop.f32.mrf.mxu0
    %v9736 = vadd.f32 %v9623, %v9735
    %9737 = vmatmul.f32.gmra.mxu0 %v5065
    %v9738 = vpop.f32.mrf.mxu0
    %v9739 = vadd.f32 %v9626, %v9738
    %9740 = vmatmul.f32.gmra.mxu0 %v5077
    %v9741 = vpop.f32.mrf.mxu0
    %v9742 = vadd.f32 %v9629, %v9741
    %9743 = vmatmul.f32.gmra.mxu0 %v5089
    %v9744 = vpop.f32.mrf.mxu0
    %v9745 = vadd.f32 %v9632, %v9744
    %9746 = vmatmul.f32.gmra.mxu0 %v5101
    %v9747 = vpop.f32.mrf.mxu0
    %v9748 = vadd.f32 %v9635, %v9747
    %9749 = vmatmul.f32.gmra.mxu0 %v5113
    %v9750 = vpop.f32.mrf.mxu0
    %v9751 = vadd.f32 %v9638, %v9750
    %9752 = vmatmul.f32.gmra.mxu0 %v5125
    %v9753 = vpop.f32.mrf.mxu0
    %v9754 = vadd.f32 %v9641, %v9753
    %9755 = vmatmul.f32.gmra.mxu0 %v5137
    %v9756 = vpop.f32.mrf.mxu0
    %v9757 = vadd.f32 %v9644, %v9756
    %9758 = vmatmul.f32.gmra.mxu0 %v5149
    %v9759 = vpop.f32.mrf.mxu0
    %v9760 = vadd.f32 %v9647, %v9759
    %9761 = vmatmul.f32.gmra.mxu0 %v5161
    %v9762 = vpop.f32.mrf.mxu0
    %v9763 = vadd.f32 %v9650, %v9762
    %9764 = vmatmul.f32.gmra.mxu0 %v5173
    %v9765 = vpop.f32.mrf.mxu0
    %v9766 = vadd.f32 %v9653, %v9765
    %9767 = vmatmul.f32.gmra.mxu0 %v5185
    %v9768 = vpop.f32.mrf.mxu0
    %v9769 = vadd.f32 %v9656, %v9768
    %9770 = vmatmul.f32.gmra.mxu0 %v5197
    %v9771 = vpop.f32.mrf.mxu0
    %v9772 = vadd.f32 %v9659, %v9771
    %9773 = vmatmul.f32.gmra.mxu0 %v5209
    %v9774 = vpop.f32.mrf.mxu0
    %v9775 = vadd.f32 %v9662, %v9774
    %9776 = vmatmul.f32.gmra.mxu0 %v5221
    %v9777 = vpop.f32.mrf.mxu0
    %v9778 = vadd.f32 %v9665, %v9777
    %9779 = vmatmul.f32.gmra.mxu0 %v5233
    %v9780 = vpop.f32.mrf.mxu0
    %v9781 = vadd.f32 %v9668, %v9780
    %9782 = vmatmul.f32.gmra.mxu0 %v5245
    %v9783 = vpop.f32.mrf.mxu0
    %v9784 = vadd.f32 %v9671, %v9783
    %9785 = vdwg.mxu0
    %9786 = vmatpush.msra.mxu0 %v5822
    %9787 = vmatpush.msra.mxu0 %v5819
    %9788 = vmatpush.msra.mxu0 %v5816
    %9789 = vmatpush.msra.mxu0 %v5813
    %9790 = vmatpush.msra.mxu0 %v5810
    %9791 = vmatpush.msra.mxu0 %v5807
    %9792 = vmatpush.msra.mxu0 %v5804
    %9793 = vmatpush.msra.mxu0 %v5801
    %9794 = vmatpush.msra.mxu0 %v5798
    %9795 = vmatpush.msra.mxu0 %v5795
    %9796 = vmatpush.msra.mxu0 %v5792
    %9797 = vmatpush.msra.mxu0 %v5789
    %9798 = vmatpush.msra.mxu0 %v5786
    %9799 = vmatpush.msra.mxu0 %v5783
    %9800 = vmatpush.msra.mxu0 %v5780
    %9801 = vmatpush.msra.mxu0 %v5777
    %9802 = vmatmul.f32.gmra.mxu0 %v4874
    %v9803 = vpop.f32.mrf.mxu0
    %v9804 = vadd.f32 %v9691, %v9803
    %9805 = vmatmul.f32.gmra.mxu0 %v4886
    %v9806 = vpop.f32.mrf.mxu0
    %v9807 = vadd.f32 %v9694, %v9806
    %9808 = vmatmul.f32.gmra.mxu0 %v4898
    %v9809 = vpop.f32.mrf.mxu0
    %v9810 = vadd.f32 %v9697, %v9809
    %9811 = vmatmul.f32.gmra.mxu0 %v4910
    %v9812 = vpop.f32.mrf.mxu0
    %v9813 = vadd.f32 %v9700, %v9812
    %9814 = vmatmul.f32.gmra.mxu0 %v4922
    %v9815 = vpop.f32.mrf.mxu0
    %v9816 = vadd.f32 %v9703, %v9815
    %9817 = vmatmul.f32.gmra.mxu0 %v4934
    %v9818 = vpop.f32.mrf.mxu0
    %v9819 = vadd.f32 %v9706, %v9818
    %9820 = vmatmul.f32.gmra.mxu0 %v4946
    %v9821 = vpop.f32.mrf.mxu0
    %v9822 = vadd.f32 %v9709, %v9821
    %9823 = vmatmul.f32.gmra.mxu0 %v4958
    %v9824 = vpop.f32.mrf.mxu0
    %v9825 = vadd.f32 %v9712, %v9824
    %9826 = vmatmul.f32.gmra.mxu0 %v4970
    %v9827 = vpop.f32.mrf.mxu0
    %v9828 = vadd.f32 %v9715, %v9827
    %9829 = vmatmul.f32.gmra.mxu0 %v4982
    %v9830 = vpop.f32.mrf.mxu0
    %v9831 = vadd.f32 %v9718, %v9830
    %9832 = vmatmul.f32.gmra.mxu0 %v4994
    %v9833 = vpop.f32.mrf.mxu0
    %v9834 = vadd.f32 %v9721, %v9833
    %9835 = vmatmul.f32.gmra.mxu0 %v5006
    %v9836 = vpop.f32.mrf.mxu0
    %v9837 = vadd.f32 %v9724, %v9836
    %9838 = vmatmul.f32.gmra.mxu0 %v5018
    %v9839 = vpop.f32.mrf.mxu0
    %v9840 = vadd.f32 %v9727, %v9839
    %9841 = vmatmul.f32.gmra.mxu0 %v5030
    %v9842 = vpop.f32.mrf.mxu0
    %v9843 = vadd.f32 %v9730, %v9842
    %9844 = vmatmul.f32.gmra.mxu0 %v5042
    %v9845 = vpop.f32.mrf.mxu0
    %v9846 = vadd.f32 %v9733, %v9845
    %9847 = vmatmul.f32.gmra.mxu0 %v5054
    %v9848 = vpop.f32.mrf.mxu0
    %v9849 = vadd.f32 %v9736, %v9848
    %9850 = vmatmul.f32.gmra.mxu0 %v5066
    %v9851 = vpop.f32.mrf.mxu0
    %v9852 = vadd.f32 %v9739, %v9851
    %9853 = vmatmul.f32.gmra.mxu0 %v5078
    %v9854 = vpop.f32.mrf.mxu0
    %v9855 = vadd.f32 %v9742, %v9854
    %9856 = vmatmul.f32.gmra.mxu0 %v5090
    %v9857 = vpop.f32.mrf.mxu0
    %v9858 = vadd.f32 %v9745, %v9857
    %9859 = vmatmul.f32.gmra.mxu0 %v5102
    %v9860 = vpop.f32.mrf.mxu0
    %v9861 = vadd.f32 %v9748, %v9860
    %9862 = vmatmul.f32.gmra.mxu0 %v5114
    %v9863 = vpop.f32.mrf.mxu0
    %v9864 = vadd.f32 %v9751, %v9863
    %9865 = vmatmul.f32.gmra.mxu0 %v5126
    %v9866 = vpop.f32.mrf.mxu0
    %v9867 = vadd.f32 %v9754, %v9866
    %9868 = vmatmul.f32.gmra.mxu0 %v5138
    %v9869 = vpop.f32.mrf.mxu0
    %v9870 = vadd.f32 %v9757, %v9869
    %9871 = vmatmul.f32.gmra.mxu0 %v5150
    %v9872 = vpop.f32.mrf.mxu0
    %v9873 = vadd.f32 %v9760, %v9872
    %9874 = vmatmul.f32.gmra.mxu0 %v5162
    %v9875 = vpop.f32.mrf.mxu0
    %v9876 = vadd.f32 %v9763, %v9875
    %9877 = vmatmul.f32.gmra.mxu0 %v5174
    %v9878 = vpop.f32.mrf.mxu0
    %v9879 = vadd.f32 %v9766, %v9878
    %9880 = vmatmul.f32.gmra.mxu0 %v5186
    %v9881 = vpop.f32.mrf.mxu0
    %v9882 = vadd.f32 %v9769, %v9881
    %9883 = vmatmul.f32.gmra.mxu0 %v5198
    %v9884 = vpop.f32.mrf.mxu0
    %v9885 = vadd.f32 %v9772, %v9884
    %9886 = vmatmul.f32.gmra.mxu0 %v5210
    %v9887 = vpop.f32.mrf.mxu0
    %v9888 = vadd.f32 %v9775, %v9887
    %9889 = vmatmul.f32.gmra.mxu0 %v5222
    %v9890 = vpop.f32.mrf.mxu0
    %v9891 = vadd.f32 %v9778, %v9890
    %9892 = vmatmul.f32.gmra.mxu0 %v5234
    %v9893 = vpop.f32.mrf.mxu0
    %v9894 = vadd.f32 %v9781, %v9893
    %9895 = vmatmul.f32.gmra.mxu0 %v5246
    %v9896 = vpop.f32.mrf.mxu0
    %v9897 = vadd.f32 %v9784, %v9896
    %9898 = vdwg.mxu0
    %9899 = vst [vmem:[#allocation11] sm:$0xff] %v7092
    %9900 = vst [vmem:[#allocation11 + $0x8] sm:$0xff] %v8448
    %9901 = vst [vmem:[#allocation11 + $0x10] sm:$0xff] %v9804
    %9902 = vst [vmem:[#allocation11 + $0x18] sm:$0xff] %v7095
    %9903 = vst [vmem:[#allocation11 + $0x20] sm:$0xff] %v8451
    %9904 = vst [vmem:[#allocation11 + $0x28] sm:$0xff] %v9807
    %9905 = vst [vmem:[#allocation11 + $0x30] sm:$0xff] %v7098
    %9906 = vst [vmem:[#allocation11 + $0x38] sm:$0xff] %v8454
    %9907 = vst [vmem:[#allocation11 + $0x40] sm:$0xff] %v9810
    %9908 = vst [vmem:[#allocation11 + $0x48] sm:$0xff] %v7101
    %9909 = vst [vmem:[#allocation11 + $0x50] sm:$0xff] %v8457
    %9910 = vst [vmem:[#allocation11 + $0x58] sm:$0xff] %v9813
    %9911 = vst [vmem:[#allocation11 + $0x60] sm:$0xff] %v7104
    %9912 = vst [vmem:[#allocation11 + $0x68] sm:$0xff] %v8460
    %9913 = vst [vmem:[#allocation11 + $0x70] sm:$0xff] %v9816
    %9914 = vst [vmem:[#allocation11 + $0x78] sm:$0xff] %v7107
    %9915 = vst [vmem:[#allocation11 + $0x80] sm:$0xff] %v8463
    %9916 = vst [vmem:[#allocation11 + $0x88] sm:$0xff] %v9819
    %9917 = vst [vmem:[#allocation11 + $0x90] sm:$0xff] %v7110
    %9918 = vst [vmem:[#allocation11 + $0x98] sm:$0xff] %v8466
    %9919 = vst [vmem:[#allocation11 + $0xa0] sm:$0xff] %v9822
    %9920 = vst [vmem:[#allocation11 + $0xa8] sm:$0xff] %v7113
    %9921 = vst [vmem:[#allocation11 + $0xb0] sm:$0xff] %v8469
    %9922 = vst [vmem:[#allocation11 + $0xb8] sm:$0xff] %v9825
    %9923 = vst [vmem:[#allocation11 + $0xc0] sm:$0xff] %v7116
    %9924 = vst [vmem:[#allocation11 + $0xc8] sm:$0xff] %v8472
    %9925 = vst [vmem:[#allocation11 + $0xd0] sm:$0xff] %v9828
    %9926 = vst [vmem:[#allocation11 + $0xd8] sm:$0xff] %v7119
    %9927 = vst [vmem:[#allocation11 + $0xe0] sm:$0xff] %v8475
    %9928 = vst [vmem:[#allocation11 + $0xe8] sm:$0xff] %v9831
    %9929 = vst [vmem:[#allocation11 + $0xf0] sm:$0xff] %v7122
    %9930 = vst [vmem:[#allocation11 + $0xf8] sm:$0xff] %v8478
    %9931 = vst [vmem:[#allocation11 + $0x100] sm:$0xff] %v9834
    %9932 = vst [vmem:[#allocation11 + $0x108] sm:$0xff] %v7125
    %9933 = vst [vmem:[#allocation11 + $0x110] sm:$0xff] %v8481
    %9934 = vst [vmem:[#allocation11 + $0x118] sm:$0xff] %v9837
    %9935 = vst [vmem:[#allocation11 + $0x120] sm:$0xff] %v7128
    %9936 = vst [vmem:[#allocation11 + $0x128] sm:$0xff] %v8484
    %9937 = vst [vmem:[#allocation11 + $0x130] sm:$0xff] %v9840
    %9938 = vst [vmem:[#allocation11 + $0x138] sm:$0xff] %v7131
    %9939 = vst [vmem:[#allocation11 + $0x140] sm:$0xff] %v8487
    %9940 = vst [vmem:[#allocation11 + $0x148] sm:$0xff] %v9843
    %9941 = vst [vmem:[#allocation11 + $0x150] sm:$0xff] %v7134
    %9942 = vst [vmem:[#allocation11 + $0x158] sm:$0xff] %v8490
    %9943 = vst [vmem:[#allocation11 + $0x160] sm:$0xff] %v9846
    %9944 = vst [vmem:[#allocation11 + $0x168] sm:$0xff] %v7137
    %9945 = vst [vmem:[#allocation11 + $0x170] sm:$0xff] %v8493
    %9946 = vst [vmem:[#allocation11 + $0x178] sm:$0xff] %v9849
    %9947 = vst [vmem:[#allocation11 + $0x180] sm:$0xff] %v7140
    %9948 = vst [vmem:[#allocation11 + $0x188] sm:$0xff] %v8496
    %9949 = vst [vmem:[#allocation11 + $0x190] sm:$0xff] %v9852
    %9950 = vst [vmem:[#allocation11 + $0x198] sm:$0xff] %v7143
    %9951 = vst [vmem:[#allocation11 + $0x1a0] sm:$0xff] %v8499
    %9952 = vst [vmem:[#allocation11 + $0x1a8] sm:$0xff] %v9855
    %9953 = vst [vmem:[#allocation11 + $0x1b0] sm:$0xff] %v7146
    %9954 = vst [vmem:[#allocation11 + $0x1b8] sm:$0xff] %v8502
    %9955 = vst [vmem:[#allocation11 + $0x1c0] sm:$0xff] %v9858
    %9956 = vst [vmem:[#allocation11 + $0x1c8] sm:$0xff] %v7149
    %9957 = vst [vmem:[#allocation11 + $0x1d0] sm:$0xff] %v8505
    %9958 = vst [vmem:[#allocation11 + $0x1d8] sm:$0xff] %v9861
    %9959 = vst [vmem:[#allocation11 + $0x1e0] sm:$0xff] %v7152
    %9960 = vst [vmem:[#allocation11 + $0x1e8] sm:$0xff] %v8508
    %9961 = vst [vmem:[#allocation11 + $0x1f0] sm:$0xff] %v9864
    %9962 = vst [vmem:[#allocation11 + $0x1f8] sm:$0xff] %v7155
    %9963 = vst [vmem:[#allocation11 + $0x200] sm:$0xff] %v8511
    %9964 = vst [vmem:[#allocation11 + $0x208] sm:$0xff] %v9867
    %9965 = vst [vmem:[#allocation11 + $0x210] sm:$0xff] %v7158
    %9966 = vst [vmem:[#allocation11 + $0x218] sm:$0xff] %v8514
    %9967 = vst [vmem:[#allocation11 + $0x220] sm:$0xff] %v9870
    %9968 = vst [vmem:[#allocation11 + $0x228] sm:$0xff] %v7161
    %9969 = vst [vmem:[#allocation11 + $0x230] sm:$0xff] %v8517
    %9970 = vst [vmem:[#allocation11 + $0x238] sm:$0xff] %v9873
    %9971 = vst [vmem:[#allocation11 + $0x240] sm:$0xff] %v7164
    %9972 = vst [vmem:[#allocation11 + $0x248] sm:$0xff] %v8520
    %9973 = vst [vmem:[#allocation11 + $0x250] sm:$0xff] %v9876
    %9974 = vst [vmem:[#allocation11 + $0x258] sm:$0xff] %v7167
    %9975 = vst [vmem:[#allocation11 + $0x260] sm:$0xff] %v8523
    %9976 = vst [vmem:[#allocation11 + $0x268] sm:$0xff] %v9879
    %9977 = vst [vmem:[#allocation11 + $0x270] sm:$0xff] %v7170
    %9978 = vst [vmem:[#allocation11 + $0x278] sm:$0xff] %v8526
    %9979 = vst [vmem:[#allocation11 + $0x280] sm:$0xff] %v9882
    %9980 = vst [vmem:[#allocation11 + $0x288] sm:$0xff] %v7173
    %9981 = vst [vmem:[#allocation11 + $0x290] sm:$0xff] %v8529
    %9982 = vst [vmem:[#allocation11 + $0x298] sm:$0xff] %v9885
    %9983 = vst [vmem:[#allocation11 + $0x2a0] sm:$0xff] %v7176
    %9984 = vst [vmem:[#allocation11 + $0x2a8] sm:$0xff] %v8532
    %9985 = vst [vmem:[#allocation11 + $0x2b0] sm:$0xff] %v9888
    %9986 = vst [vmem:[#allocation11 + $0x2b8] sm:$0xff] %v7179
    %9987 = vst [vmem:[#allocation11 + $0x2c0] sm:$0xff] %v8535
    %9988 = vst [vmem:[#allocation11 + $0x2c8] sm:$0xff] %v9891
    %9989 = vst [vmem:[#allocation11 + $0x2d0] sm:$0xff] %v7182
    %9990 = vst [vmem:[#allocation11 + $0x2d8] sm:$0xff] %v8538
    %9991 = vst [vmem:[#allocation11 + $0x2e0] sm:$0xff] %v9894
    %9992 = vst [vmem:[#allocation11 + $0x2e8] sm:$0xff] %v7185
    %9993 = vst [vmem:[#allocation11 + $0x2f0] sm:$0xff] %v8541
    %9994 = vst [vmem:[#allocation11 + $0x2f8] sm:$0xff] %v9897
    // Predicated region
    $region42: #{feed_forward.1} parent=1 // pred_check
      _
    $region43: #{feed_forward.1} parent=1 // pred_check_branch
      %9996 = sbr.rel (0) target = $region45
    $region44: #{feed_forward.1} parent=1 // pred_region
      %9998 = vsyncadd [#allocation4], 0
      %s9999 = sshll.u32 [#allocation11], 4
      %s10000 = int_to_ptr.vmem [resolvable:$true] %s9999
      %s10001 = sshll.u32 %s5, 4
      %s10002 = int_to_ptr.hbm [resolvable:$true] %s10001
      %10007 = dma.vmem_to_hbm [thread:$0]  %s10000, 12288, %s10002, [#allocation4], 384, 384, 24
    $region45: #{feed_forward.1} parent=1 // pred_fallthru
      _
    // Predicated region
    $region46: #{feed_forward.1} parent=1 // pred_check
      _
    $region47: #{feed_forward.1} parent=1 // pred_check_branch
      %10009 = sbr.rel (0) target = $region49
    $region48: #{feed_forward.1} parent=1 // pred_region
      %10011 = dma.done [#allocation4], 12288
    $region49: #{feed_forward.1} parent=1 // pred_fallthru
      _
    %10012 = vsyncpa [#allocation3], 1
    %10013 = vsyncpa [#allocation6], 1
    %10014 = vsyncpa [#allocation9], 1
    %10015 = vsyncpa [#allocation4], 1

</llo_original>
